<compile_context>
chip_gen: v5e
topology: v5e:2x2
jax: 0.10.0
libtpu: 0.0.40
codegen_flags: <defaults>
</compile_context>

<pallas_src>
import jax
import jax.numpy as jnp
from jax import lax
from jax.experimental import pallas as pl
from jax.experimental.pallas import tpu as pltpu

EPS = 1e-5  # nn.InstanceNorm3d default eps (affine=False -> no scale/shift)


def _round_up(a, b):
    return (a + b - 1) // b * b


def conv3d_block_forward(x_ncdhw, params):
    """Pallas forward of conv3D_block.

    NOTE: the Conv3d biases in `params` are intentionally ignored — InstanceNorm3d here is
    affine=False, so the mean subtraction cancels a per-channel bias exactly.  If this block
    is ever switched to affine norm / BatchNorm, the bias must be added back.
    """
    w1, w2 = params["w1"], params["w2"]            # (3,3,3,Cin,C1), (3,3,3,C1,C2)
    N, Cin, D, H, W = x_ncdhw.shape
    C1, C2 = w1.shape[-1], w2.shape[-1]
    Dp, Hp, Wp = D + 2, H + 2, W + 2

    c8_1 = _round_up(Cin, 8)                       # stage-1 in-channels, sublane aligned
    c8_2 = _round_up(C1, 8)                        # stage-2 in-channels, sublane aligned

    L = D * Hp * Wp                                # flat positions covering all output voxels
    L_pad = _round_up(L, 128)                      # lane-dense (128-aligned) output width
    OFF = Hp * Wp + Wp + 1                         # flat index of padded coordinate (1,1,1)
    DMAX = 2 * Hp * Wp + 2 * Wp + 2                # largest tap offset
    F = (-OFF) % 128                               # front pad: mid-buffer data store starts
                                                   # at lane F+OFF, a multiple of 128
    P_in = _round_up(DMAX + L_pad, 128)            # input buffer lane width (>= Dp*Hp*Wp)
    P_mid = _round_up(F + DMAX + L_pad, 128)       # handoff buffer lane width
    inv_cnt = 1.0 / float(D * H * W)
    deltas = tuple(kd * Hp * Wp + kh * Wp + kw
                   for kd in range(3) for kh in range(3) for kw in range(3))

    # ---- stage-1 input: channels on sublanes, flattened zero-padded volume on lanes, bf16.
    xp = jnp.pad(x_ncdhw.astype(jnp.float32),
                 ((0, 0), (0, c8_1 - Cin), (1, 1), (1, 1), (1, 1)))
    xp = xp.reshape(N, c8_1, Dp * Hp * Wp)
    xp = jnp.pad(xp, ((0, 0), (0, 0), (0, P_in - Dp * Hp * Wp))).astype(jnp.bfloat16)

    # ---- weights as per-tap matrices (27, Cout, C8) bf16, tap order matching `deltas`.
    def tap_weights(w, cin, c8):
        cout = w.shape[-1]
        wf = jnp.pad(w, ((0, 0), (0, 0), (0, 0), (0, c8 - cin), (0, 0)))  # (3,3,3,c8,cout)
        wf = wf.reshape(27, c8, cout)
        return jnp.transpose(wf, (0, 2, 1)).astype(jnp.bfloat16)          # (27, cout, c8)

    w1t = tap_weights(w1, Cin, c8_1)               # (27, C1, c8_1)
    w2t = tap_weights(w2, C1, c8_2)                # (27, C2, c8_2)

    # ---- 0/1 mask of flat positions that are real voxels (not row/plane wrap-around,
    #      not lane padding).  Tiny (1, L_pad) f32 input; its DMA is negligible.
    pos = jnp.arange(L_pad, dtype=jnp.int32)
    valid = ((pos < L) & ((pos % Wp) < W) & (((pos // Wp) % Hp) < H))
    valid = valid.astype(jnp.float32).reshape(1, L_pad)

    def kernel(x_ref, w1_ref, w2_ref, valid_ref, o_ref, mid_ref):
        vmask = valid_ref[...]                                    # (1, L_pad) f32

        def conv_in_relu(load_tap, w_ref):
            # Conv as 27 accumulating MXU matmuls straight from lane-shifted slices:
            # no im2col scratch store/reload.  Accumulator is (Cout, L_pad) f32 (few vregs).
            acc = jnp.dot(w_ref[0], load_tap(deltas[0]),
                          preferred_element_type=jnp.float32)
            for t in range(1, 27):
                acc = acc + jnp.dot(w_ref[t], load_tap(deltas[t]),
                                    preferred_element_type=jnp.float32)
            # InstanceNorm3d (affine=False): single-pass masked stats per channel.
            am = acc * vmask
            s1 = jnp.sum(am, axis=1, keepdims=True)
            s2 = jnp.sum(am * acc, axis=1, keepdims=True)
            mean = s1 * inv_cnt
            var = jnp.maximum(s2 * inv_cnt - mean * mean, 0.0)    # guard f32 cancellation
            return jnp.maximum((acc - mean) * lax.rsqrt(var + EPS), 0.0)

        # ---- Stage 1: Conv(Cin->C1) + IN + ReLU.  Keep the mask: its zeros become the
        #      stage-2 halo once written into mid_ref below.
        y1 = conv_in_relu(lambda d: x_ref[:, d:d + L_pad], w1_ref) * vmask

        # ---- Handoff: stage-1 activation stays in VMEM as the flattened zero-padded
        #      stage-2 input (bf16), starting at lane F.  Only the halo lanes are
        #      re-zeroed (lane-aligned, cheap); the data region [F+OFF, F+OFF+L_pad)
        #      is fully overwritten every grid step, starting on a 128-lane boundary.
        mid_ref[:, 0:F + OFF] = jnp.zeros((c8_2, F + OFF), mid_ref.dtype)
        mid_ref[:, F + OFF + L_pad:P_mid] = jnp.zeros(
            (c8_2, P_mid - (F + OFF + L_pad)), mid_ref.dtype)
        if C1 < c8_2:   # sublane-padded channels must stay finite/zero (static branch)
            mid_ref[C1:c8_2, :] = jnp.zeros((c8_2 - C1, P_mid), mid_ref.dtype)
        mid_ref[0:C1, F + OFF:F + OFF + L_pad] = y1.astype(mid_ref.dtype)

        # ---- Stage 2: Conv(C1->C2) + IN + ReLU.  No output mask — the wrapper slice
        #      [:, :, :, :H, :W] discards the wrapped columns.
        y2 = conv_in_relu(lambda d: mid_ref[:, F + d:F + d + L_pad], w2_ref)
        o_ref[...] = y2

    out_flat = pl.pallas_call(
        kernel,
        out_shape=jax.ShapeDtypeStruct((N, C2, L_pad), jnp.float32),
        grid_spec=pltpu.PrefetchScalarGridSpec(
            num_scalar_prefetch=0,
            grid=(N,),
            in_specs=[
                pl.BlockSpec((None, c8_1, P_in), lambda n: (n, 0, 0)),
                pl.BlockSpec((27, C1, c8_1), lambda n: (0, 0, 0)),
                pl.BlockSpec((27, C2, c8_2), lambda n: (0, 0, 0)),
                pl.BlockSpec((1, L_pad), lambda n: (0, 0)),
            ],
            out_specs=pl.BlockSpec((None, C2, L_pad), lambda n: (n, 0, 0)),
            scratch_shapes=[
                pltpu.VMEM((c8_2, P_mid), jnp.bfloat16),   # stage-1 -> stage-2 handoff
            ],
        ),
        compiler_params=pltpu.CompilerParams(
            dimension_semantics=("parallel",),             # batches map to the 2 TCs on v7x
        ),
    )(xp, w1t, w2t, valid)

    # Lane-dense flat (d, h', w') grid back to NCDHW: drop lane padding and wrap columns.
    out = out_flat[:, :, :L].reshape(N, C2, D, Hp, Wp)
    return out[:, :, :, :H, :W]


def ref_forward(x_ncdhw, params):
    """Pure-JAX reference (XLA conv, f32, with bias) for validation."""
    def stage(x, w, b):
        y = lax.conv_general_dilated(
            x, w, window_strides=(1, 1, 1), padding="SAME",
            dimension_numbers=("NDHWC", "DHWIO", "NDHWC"))
        y = y + b
        mean = jnp.mean(y, axis=(1, 2, 3), keepdims=True)
        var = jnp.mean((y - mean) ** 2, axis=(1, 2, 3), keepdims=True)
        y = (y - mean) / jnp.sqrt(var + EPS)
        return jnp.maximum(y, 0.0)

    x = jnp.transpose(x_ncdhw, (0, 2, 3, 4, 1))
    y = stage(x, params["w1"], params["b1"])
    y = stage(y, params["w2"], params["b2"])
    return jnp.transpose(y, (0, 4, 1, 2, 3))


if __name__ == "__main__":
    # Small shapes consistent with the module: batch=2, in_ch=4, out_ch=8, D=H=W=8
    N, Cin, Cout, D, H, W = 2, 4, 8, 8, 8, 8

    key = jax.random.PRNGKey(0)
    kx, kw1, kb1, kw2, kb2 = jax.random.split(key, 5)

    x = jax.random.normal(kx, (N, Cin, D, H, W), dtype=jnp.float32)  # NCDHW like PyTorch

    # Synthetic parameters (conv kernel layout: kd, kh, kw, Cin, Cout).
    params = {
        "w1": 0.1 * jax.random.normal(kw1, (3, 3, 3, Cin, Cout), dtype=jnp.float32),
        "b1": 0.05 * jax.random.normal(kb1, (Cout,), dtype=jnp.float32),
        "w2": 0.1 * jax.random.normal(kw2, (3, 3, 3, Cout, Cout), dtype=jnp.float32),
        "b2": 0.05 * jax.random.normal(kb2, (Cout,), dtype=jnp.float32),
    }

    out = jax.block_until_ready(conv3d_block_forward(x, params))
    ref = jax.block_until_ready(ref_forward(x, params))

    assert out.shape == (N, Cout, D, H, W), out.shape
    # bf16 MXU operands vs. the f32 XLA reference -> slightly looser tolerance.
    if not jnp.allclose(out, ref, atol=2e-2, rtol=2e-2):
        err = float(jnp.max(jnp.abs(out - ref)))
        raise AssertionError(
            f"Pallas kernel output mismatch vs JAX reference (max abs err {err})")

    print("KERNEL_OK")
</pallas_src>

<mosaic_0001>
module attributes {stable_mosaic.version = 11 : i64} {
  func.func @kernel(%arg0: i32, %arg1: memref<1x8x1152xbf16, #tpu.memory_space<vmem>>, %arg2: memref<27x8x8xbf16, #tpu.memory_space<vmem>>, %arg3: memref<27x8x8xbf16, #tpu.memory_space<vmem>>, %arg4: memref<1x896xf32, #tpu.memory_space<vmem>>, %arg5: memref<1x8x896xf32, #tpu.memory_space<vmem>>, %arg6: memref<8x1152xbf16, #tpu.memory_space<vmem>>) attributes {dimension_semantics = [#tpu.dimension_semantics<parallel>], iteration_bounds = array<i64: 2>, scalar_prefetch = 0 : i64, scratch_operands = 1 : i64, tpu.core_type = #tpu.core_type<tc>, window_params = [{transform_indices = @transform_0, window_bounds = array<i64: 1, 8, 1152>}, {pipeline_mode = #tpu.pipeline_mode<synchronous>, transform_indices = @transform_1, window_bounds = array<i64: 27, 8, 8>}, {pipeline_mode = #tpu.pipeline_mode<synchronous>, transform_indices = @transform_2, window_bounds = array<i64: 27, 8, 8>}, {pipeline_mode = #tpu.pipeline_mode<synchronous>, transform_indices = @transform_3, window_bounds = array<i64: 1, 896>}, {transform_indices = @transform_4, window_bounds = array<i64: 1, 8, 896>}]} {
    %c0 = arith.constant 0 : index
    %c0_0 = arith.constant 0 : index
    %0 = vector.load %arg4[%c0, %c0_0] : memref<1x896xf32, #tpu.memory_space<vmem>>, vector<1x896xf32>
    %c0_1 = arith.constant 0 : index
    %c0_2 = arith.constant 0 : index
    %c0_3 = arith.constant 0 : index
    %1 = vector.load %arg2[%c0_1, %c0_2, %c0_3] : memref<27x8x8xbf16, #tpu.memory_space<vmem>>, vector<1x8x8xbf16>
    %2 = vector.shape_cast %1 : vector<1x8x8xbf16> to vector<8x8xbf16>
    %c0_4 = arith.constant 0 : index
    %c0_5 = arith.constant 0 : index
    %c0_6 = arith.constant 0 : index
    %3 = vector.load %arg1[%c0_4, %c0_5, %c0_6] : memref<1x8x1152xbf16, #tpu.memory_space<vmem>>, vector<1x8x896xbf16>
    %4 = vector.shape_cast %3 : vector<1x8x896xbf16> to vector<8x896xbf16>
    %cst = arith.constant dense<0.000000e+00> : vector<8x896xf32>
    %5 = tpu.matmul %2, %4, %cst {dimension_numbers = #tpu.dot_dimension_numbers<[1], [0], [0], [1], [0, 0, 1, 1], [], []>} : vector<8x8xbf16>, vector<8x896xbf16>, vector<8x896xf32> -> vector<8x896xf32>
    %c1 = arith.constant 1 : index
    %c0_7 = arith.constant 0 : index
    %c0_8 = arith.constant 0 : index
    %6 = vector.load %arg2[%c1, %c0_7, %c0_8] : memref<27x8x8xbf16, #tpu.memory_space<vmem>>, vector<1x8x8xbf16>
    %7 = vector.shape_cast %6 : vector<1x8x8xbf16> to vector<8x8xbf16>
    %c0_9 = arith.constant 0 : index
    %c0_10 = arith.constant 0 : index
    %c1_11 = arith.constant 1 : index
    %8 = vector.load %arg1[%c0_9, %c0_10, %c1_11] : memref<1x8x1152xbf16, #tpu.memory_space<vmem>>, vector<1x8x896xbf16>
    %9 = vector.shape_cast %8 : vector<1x8x896xbf16> to vector<8x896xbf16>
    %cst_12 = arith.constant dense<0.000000e+00> : vector<8x896xf32>
    %10 = tpu.matmul %7, %9, %cst_12 {dimension_numbers = #tpu.dot_dimension_numbers<[1], [0], [0], [1], [0, 0, 1, 1], [], []>} : vector<8x8xbf16>, vector<8x896xbf16>, vector<8x896xf32> -> vector<8x896xf32>
    %11 = arith.addf %5, %10 : vector<8x896xf32>
    %c2 = arith.constant 2 : index
    %c0_13 = arith.constant 0 : index
    %c0_14 = arith.constant 0 : index
    %12 = vector.load %arg2[%c2, %c0_13, %c0_14] : memref<27x8x8xbf16, #tpu.memory_space<vmem>>, vector<1x8x8xbf16>
    %13 = vector.shape_cast %12 : vector<1x8x8xbf16> to vector<8x8xbf16>
    %c0_15 = arith.constant 0 : index
    %c0_16 = arith.constant 0 : index
    %c2_17 = arith.constant 2 : index
    %14 = vector.load %arg1[%c0_15, %c0_16, %c2_17] : memref<1x8x1152xbf16, #tpu.memory_space<vmem>>, vector<1x8x896xbf16>
    %15 = vector.shape_cast %14 : vector<1x8x896xbf16> to vector<8x896xbf16>
    %cst_18 = arith.constant dense<0.000000e+00> : vector<8x896xf32>
    %16 = tpu.matmul %13, %15, %cst_18 {dimension_numbers = #tpu.dot_dimension_numbers<[1], [0], [0], [1], [0, 0, 1, 1], [], []>} : vector<8x8xbf16>, vector<8x896xbf16>, vector<8x896xf32> -> vector<8x896xf32>
    %17 = arith.addf %11, %16 : vector<8x896xf32>
    %c3 = arith.constant 3 : index
    %c0_19 = arith.constant 0 : index
    %c0_20 = arith.constant 0 : index
    %18 = vector.load %arg2[%c3, %c0_19, %c0_20] : memref<27x8x8xbf16, #tpu.memory_space<vmem>>, vector<1x8x8xbf16>
    %19 = vector.shape_cast %18 : vector<1x8x8xbf16> to vector<8x8xbf16>
    %c0_21 = arith.constant 0 : index
    %c0_22 = arith.constant 0 : index
    %c10 = arith.constant 10 : index
    %20 = vector.load %arg1[%c0_21, %c0_22, %c10] : memref<1x8x1152xbf16, #tpu.memory_space<vmem>>, vector<1x8x896xbf16>
    %21 = vector.shape_cast %20 : vector<1x8x896xbf16> to vector<8x896xbf16>
    %cst_23 = arith.constant dense<0.000000e+00> : vector<8x896xf32>
    %22 = tpu.matmul %19, %21, %cst_23 {dimension_numbers = #tpu.dot_dimension_numbers<[1], [0], [0], [1], [0, 0, 1, 1], [], []>} : vector<8x8xbf16>, vector<8x896xbf16>, vector<8x896xf32> -> vector<8x896xf32>
    %23 = arith.addf %17, %22 : vector<8x896xf32>
    %c4 = arith.constant 4 : index
    %c0_24 = arith.constant 0 : index
    %c0_25 = arith.constant 0 : index
    %24 = vector.load %arg2[%c4, %c0_24, %c0_25] : memref<27x8x8xbf16, #tpu.memory_space<vmem>>, vector<1x8x8xbf16>
    %25 = vector.shape_cast %24 : vector<1x8x8xbf16> to vector<8x8xbf16>
    %c0_26 = arith.constant 0 : index
    %c0_27 = arith.constant 0 : index
    %c11 = arith.constant 11 : index
    %26 = vector.load %arg1[%c0_26, %c0_27, %c11] : memref<1x8x1152xbf16, #tpu.memory_space<vmem>>, vector<1x8x896xbf16>
    %27 = vector.shape_cast %26 : vector<1x8x896xbf16> to vector<8x896xbf16>
    %cst_28 = arith.constant dense<0.000000e+00> : vector<8x896xf32>
    %28 = tpu.matmul %25, %27, %cst_28 {dimension_numbers = #tpu.dot_dimension_numbers<[1], [0], [0], [1], [0, 0, 1, 1], [], []>} : vector<8x8xbf16>, vector<8x896xbf16>, vector<8x896xf32> -> vector<8x896xf32>
    %29 = arith.addf %23, %28 : vector<8x896xf32>
    %c5 = arith.constant 5 : index
    %c0_29 = arith.constant 0 : index
    %c0_30 = arith.constant 0 : index
    %30 = vector.load %arg2[%c5, %c0_29, %c0_30] : memref<27x8x8xbf16, #tpu.memory_space<vmem>>, vector<1x8x8xbf16>
    %31 = vector.shape_cast %30 : vector<1x8x8xbf16> to vector<8x8xbf16>
    %c0_31 = arith.constant 0 : index
    %c0_32 = arith.constant 0 : index
    %c12 = arith.constant 12 : index
    %32 = vector.load %arg1[%c0_31, %c0_32, %c12] : memref<1x8x1152xbf16, #tpu.memory_space<vmem>>, vector<1x8x896xbf16>
    %33 = vector.shape_cast %32 : vector<1x8x896xbf16> to vector<8x896xbf16>
    %cst_33 = arith.constant dense<0.000000e+00> : vector<8x896xf32>
    %34 = tpu.matmul %31, %33, %cst_33 {dimension_numbers = #tpu.dot_dimension_numbers<[1], [0], [0], [1], [0, 0, 1, 1], [], []>} : vector<8x8xbf16>, vector<8x896xbf16>, vector<8x896xf32> -> vector<8x896xf32>
    %35 = arith.addf %29, %34 : vector<8x896xf32>
    %c6 = arith.constant 6 : index
    %c0_34 = arith.constant 0 : index
    %c0_35 = arith.constant 0 : index
    %36 = vector.load %arg2[%c6, %c0_34, %c0_35] : memref<27x8x8xbf16, #tpu.memory_space<vmem>>, vector<1x8x8xbf16>
    %37 = vector.shape_cast %36 : vector<1x8x8xbf16> to vector<8x8xbf16>
    %c0_36 = arith.constant 0 : index
    %c0_37 = arith.constant 0 : index
    %c20 = arith.constant 20 : index
    %38 = vector.load %arg1[%c0_36, %c0_37, %c20] : memref<1x8x1152xbf16, #tpu.memory_space<vmem>>, vector<1x8x896xbf16>
    %39 = vector.shape_cast %38 : vector<1x8x896xbf16> to vector<8x896xbf16>
    %cst_38 = arith.constant dense<0.000000e+00> : vector<8x896xf32>
    %40 = tpu.matmul %37, %39, %cst_38 {dimension_numbers = #tpu.dot_dimension_numbers<[1], [0], [0], [1], [0, 0, 1, 1], [], []>} : vector<8x8xbf16>, vector<8x896xbf16>, vector<8x896xf32> -> vector<8x896xf32>
    %41 = arith.addf %35, %40 : vector<8x896xf32>
    %c7 = arith.constant 7 : index
    %c0_39 = arith.constant 0 : index
    %c0_40 = arith.constant 0 : index
    %42 = vector.load %arg2[%c7, %c0_39, %c0_40] : memref<27x8x8xbf16, #tpu.memory_space<vmem>>, vector<1x8x8xbf16>
    %43 = vector.shape_cast %42 : vector<1x8x8xbf16> to vector<8x8xbf16>
    %c0_41 = arith.constant 0 : index
    %c0_42 = arith.constant 0 : index
    %c21 = arith.constant 21 : index
    %44 = vector.load %arg1[%c0_41, %c0_42, %c21] : memref<1x8x1152xbf16, #tpu.memory_space<vmem>>, vector<1x8x896xbf16>
    %45 = vector.shape_cast %44 : vector<1x8x896xbf16> to vector<8x896xbf16>
    %cst_43 = arith.constant dense<0.000000e+00> : vector<8x896xf32>
    %46 = tpu.matmul %43, %45, %cst_43 {dimension_numbers = #tpu.dot_dimension_numbers<[1], [0], [0], [1], [0, 0, 1, 1], [], []>} : vector<8x8xbf16>, vector<8x896xbf16>, vector<8x896xf32> -> vector<8x896xf32>
    %47 = arith.addf %41, %46 : vector<8x896xf32>
    %c8 = arith.constant 8 : index
    %c0_44 = arith.constant 0 : index
    %c0_45 = arith.constant 0 : index
    %48 = vector.load %arg2[%c8, %c0_44, %c0_45] : memref<27x8x8xbf16, #tpu.memory_space<vmem>>, vector<1x8x8xbf16>
    %49 = vector.shape_cast %48 : vector<1x8x8xbf16> to vector<8x8xbf16>
    %c0_46 = arith.constant 0 : index
    %c0_47 = arith.constant 0 : index
    %c22 = arith.constant 22 : index
    %50 = vector.load %arg1[%c0_46, %c0_47, %c22] : memref<1x8x1152xbf16, #tpu.memory_space<vmem>>, vector<1x8x896xbf16>
    %51 = vector.shape_cast %50 : vector<1x8x896xbf16> to vector<8x896xbf16>
    %cst_48 = arith.constant dense<0.000000e+00> : vector<8x896xf32>
    %52 = tpu.matmul %49, %51, %cst_48 {dimension_numbers = #tpu.dot_dimension_numbers<[1], [0], [0], [1], [0, 0, 1, 1], [], []>} : vector<8x8xbf16>, vector<8x896xbf16>, vector<8x896xf32> -> vector<8x896xf32>
    %53 = arith.addf %47, %52 : vector<8x896xf32>
    %c9 = arith.constant 9 : index
    %c0_49 = arith.constant 0 : index
    %c0_50 = arith.constant 0 : index
    %54 = vector.load %arg2[%c9, %c0_49, %c0_50] : memref<27x8x8xbf16, #tpu.memory_space<vmem>>, vector<1x8x8xbf16>
    %55 = vector.shape_cast %54 : vector<1x8x8xbf16> to vector<8x8xbf16>
    %c0_51 = arith.constant 0 : index
    %c0_52 = arith.constant 0 : index
    %c100 = arith.constant 100 : index
    %56 = vector.load %arg1[%c0_51, %c0_52, %c100] : memref<1x8x1152xbf16, #tpu.memory_space<vmem>>, vector<1x8x896xbf16>
    %57 = vector.shape_cast %56 : vector<1x8x896xbf16> to vector<8x896xbf16>
    %cst_53 = arith.constant dense<0.000000e+00> : vector<8x896xf32>
    %58 = tpu.matmul %55, %57, %cst_53 {dimension_numbers = #tpu.dot_dimension_numbers<[1], [0], [0], [1], [0, 0, 1, 1], [], []>} : vector<8x8xbf16>, vector<8x896xbf16>, vector<8x896xf32> -> vector<8x896xf32>
    %59 = arith.addf %53, %58 : vector<8x896xf32>
    %c10_54 = arith.constant 10 : index
    %c0_55 = arith.constant 0 : index
    %c0_56 = arith.constant 0 : index
    %60 = vector.load %arg2[%c10_54, %c0_55, %c0_56] : memref<27x8x8xbf16, #tpu.memory_space<vmem>>, vector<1x8x8xbf16>
    %61 = vector.shape_cast %60 : vector<1x8x8xbf16> to vector<8x8xbf16>
    %c0_57 = arith.constant 0 : index
    %c0_58 = arith.constant 0 : index
    %c101 = arith.constant 101 : index
    %62 = vector.load %arg1[%c0_57, %c0_58, %c101] : memref<1x8x1152xbf16, #tpu.memory_space<vmem>>, vector<1x8x896xbf16>
    %63 = vector.shape_cast %62 : vector<1x8x896xbf16> to vector<8x896xbf16>
    %cst_59 = arith.constant dense<0.000000e+00> : vector<8x896xf32>
    %64 = tpu.matmul %61, %63, %cst_59 {dimension_numbers = #tpu.dot_dimension_numbers<[1], [0], [0], [1], [0, 0, 1, 1], [], []>} : vector<8x8xbf16>, vector<8x896xbf16>, vector<8x896xf32> -> vector<8x896xf32>
    %65 = arith.addf %59, %64 : vector<8x896xf32>
    %c11_60 = arith.constant 11 : index
    %c0_61 = arith.constant 0 : index
    %c0_62 = arith.constant 0 : index
    %66 = vector.load %arg2[%c11_60, %c0_61, %c0_62] : memref<27x8x8xbf16, #tpu.memory_space<vmem>>, vector<1x8x8xbf16>
    %67 = vector.shape_cast %66 : vector<1x8x8xbf16> to vector<8x8xbf16>
    %c0_63 = arith.constant 0 : index
    %c0_64 = arith.constant 0 : index
    %c102 = arith.constant 102 : index
    %68 = vector.load %arg1[%c0_63, %c0_64, %c102] : memref<1x8x1152xbf16, #tpu.memory_space<vmem>>, vector<1x8x896xbf16>
    %69 = vector.shape_cast %68 : vector<1x8x896xbf16> to vector<8x896xbf16>
    %cst_65 = arith.constant dense<0.000000e+00> : vector<8x896xf32>
    %70 = tpu.matmul %67, %69, %cst_65 {dimension_numbers = #tpu.dot_dimension_numbers<[1], [0], [0], [1], [0, 0, 1, 1], [], []>} : vector<8x8xbf16>, vector<8x896xbf16>, vector<8x896xf32> -> vector<8x896xf32>
    %71 = arith.addf %65, %70 : vector<8x896xf32>
    %c12_66 = arith.constant 12 : index
    %c0_67 = arith.constant 0 : index
    %c0_68 = arith.constant 0 : index
    %72 = vector.load %arg2[%c12_66, %c0_67, %c0_68] : memref<27x8x8xbf16, #tpu.memory_space<vmem>>, vector<1x8x8xbf16>
    %73 = vector.shape_cast %72 : vector<1x8x8xbf16> to vector<8x8xbf16>
    %c0_69 = arith.constant 0 : index
    %c0_70 = arith.constant 0 : index
    %c110 = arith.constant 110 : index
    %74 = vector.load %arg1[%c0_69, %c0_70, %c110] : memref<1x8x1152xbf16, #tpu.memory_space<vmem>>, vector<1x8x896xbf16>
    %75 = vector.shape_cast %74 : vector<1x8x896xbf16> to vector<8x896xbf16>
    %cst_71 = arith.constant dense<0.000000e+00> : vector<8x896xf32>
    %76 = tpu.matmul %73, %75, %cst_71 {dimension_numbers = #tpu.dot_dimension_numbers<[1], [0], [0], [1], [0, 0, 1, 1], [], []>} : vector<8x8xbf16>, vector<8x896xbf16>, vector<8x896xf32> -> vector<8x896xf32>
    %77 = arith.addf %71, %76 : vector<8x896xf32>
    %c13 = arith.constant 13 : index
    %c0_72 = arith.constant 0 : index
    %c0_73 = arith.constant 0 : index
    %78 = vector.load %arg2[%c13, %c0_72, %c0_73] : memref<27x8x8xbf16, #tpu.memory_space<vmem>>, vector<1x8x8xbf16>
    %79 = vector.shape_cast %78 : vector<1x8x8xbf16> to vector<8x8xbf16>
    %c0_74 = arith.constant 0 : index
    %c0_75 = arith.constant 0 : index
    %c111 = arith.constant 111 : index
    %80 = vector.load %arg1[%c0_74, %c0_75, %c111] : memref<1x8x1152xbf16, #tpu.memory_space<vmem>>, vector<1x8x896xbf16>
    %81 = vector.shape_cast %80 : vector<1x8x896xbf16> to vector<8x896xbf16>
    %cst_76 = arith.constant dense<0.000000e+00> : vector<8x896xf32>
    %82 = tpu.matmul %79, %81, %cst_76 {dimension_numbers = #tpu.dot_dimension_numbers<[1], [0], [0], [1], [0, 0, 1, 1], [], []>} : vector<8x8xbf16>, vector<8x896xbf16>, vector<8x896xf32> -> vector<8x896xf32>
    %83 = arith.addf %77, %82 : vector<8x896xf32>
    %c14 = arith.constant 14 : index
    %c0_77 = arith.constant 0 : index
    %c0_78 = arith.constant 0 : index
    %84 = vector.load %arg2[%c14, %c0_77, %c0_78] : memref<27x8x8xbf16, #tpu.memory_space<vmem>>, vector<1x8x8xbf16>
    %85 = vector.shape_cast %84 : vector<1x8x8xbf16> to vector<8x8xbf16>
    %c0_79 = arith.constant 0 : index
    %c0_80 = arith.constant 0 : index
    %c112 = arith.constant 112 : index
    %86 = vector.load %arg1[%c0_79, %c0_80, %c112] : memref<1x8x1152xbf16, #tpu.memory_space<vmem>>, vector<1x8x896xbf16>
    %87 = vector.shape_cast %86 : vector<1x8x896xbf16> to vector<8x896xbf16>
    %cst_81 = arith.constant dense<0.000000e+00> : vector<8x896xf32>
    %88 = tpu.matmul %85, %87, %cst_81 {dimension_numbers = #tpu.dot_dimension_numbers<[1], [0], [0], [1], [0, 0, 1, 1], [], []>} : vector<8x8xbf16>, vector<8x896xbf16>, vector<8x896xf32> -> vector<8x896xf32>
    %89 = arith.addf %83, %88 : vector<8x896xf32>
    %c15 = arith.constant 15 : index
    %c0_82 = arith.constant 0 : index
    %c0_83 = arith.constant 0 : index
    %90 = vector.load %arg2[%c15, %c0_82, %c0_83] : memref<27x8x8xbf16, #tpu.memory_space<vmem>>, vector<1x8x8xbf16>
    %91 = vector.shape_cast %90 : vector<1x8x8xbf16> to vector<8x8xbf16>
    %c0_84 = arith.constant 0 : index
    %c0_85 = arith.constant 0 : index
    %c120 = arith.constant 120 : index
    %92 = vector.load %arg1[%c0_84, %c0_85, %c120] : memref<1x8x1152xbf16, #tpu.memory_space<vmem>>, vector<1x8x896xbf16>
    %93 = vector.shape_cast %92 : vector<1x8x896xbf16> to vector<8x896xbf16>
    %cst_86 = arith.constant dense<0.000000e+00> : vector<8x896xf32>
    %94 = tpu.matmul %91, %93, %cst_86 {dimension_numbers = #tpu.dot_dimension_numbers<[1], [0], [0], [1], [0, 0, 1, 1], [], []>} : vector<8x8xbf16>, vector<8x896xbf16>, vector<8x896xf32> -> vector<8x896xf32>
    %95 = arith.addf %89, %94 : vector<8x896xf32>
    %c16 = arith.constant 16 : index
    %c0_87 = arith.constant 0 : index
    %c0_88 = arith.constant 0 : index
    %96 = vector.load %arg2[%c16, %c0_87, %c0_88] : memref<27x8x8xbf16, #tpu.memory_space<vmem>>, vector<1x8x8xbf16>
    %97 = vector.shape_cast %96 : vector<1x8x8xbf16> to vector<8x8xbf16>
    %c0_89 = arith.constant 0 : index
    %c0_90 = arith.constant 0 : index
    %c121 = arith.constant 121 : index
    %98 = vector.load %arg1[%c0_89, %c0_90, %c121] : memref<1x8x1152xbf16, #tpu.memory_space<vmem>>, vector<1x8x896xbf16>
    %99 = vector.shape_cast %98 : vector<1x8x896xbf16> to vector<8x896xbf16>
    %cst_91 = arith.constant dense<0.000000e+00> : vector<8x896xf32>
    %100 = tpu.matmul %97, %99, %cst_91 {dimension_numbers = #tpu.dot_dimension_numbers<[1], [0], [0], [1], [0, 0, 1, 1], [], []>} : vector<8x8xbf16>, vector<8x896xbf16>, vector<8x896xf32> -> vector<8x896xf32>
    %101 = arith.addf %95, %100 : vector<8x896xf32>
    %c17 = arith.constant 17 : index
    %c0_92 = arith.constant 0 : index
    %c0_93 = arith.constant 0 : index
    %102 = vector.load %arg2[%c17, %c0_92, %c0_93] : memref<27x8x8xbf16, #tpu.memory_space<vmem>>, vector<1x8x8xbf16>
    %103 = vector.shape_cast %102 : vector<1x8x8xbf16> to vector<8x8xbf16>
    %c0_94 = arith.constant 0 : index
    %c0_95 = arith.constant 0 : index
    %c122 = arith.constant 122 : index
    %104 = vector.load %arg1[%c0_94, %c0_95, %c122] : memref<1x8x1152xbf16, #tpu.memory_space<vmem>>, vector<1x8x896xbf16>
    %105 = vector.shape_cast %104 : vector<1x8x896xbf16> to vector<8x896xbf16>
    %cst_96 = arith.constant dense<0.000000e+00> : vector<8x896xf32>
    %106 = tpu.matmul %103, %105, %cst_96 {dimension_numbers = #tpu.dot_dimension_numbers<[1], [0], [0], [1], [0, 0, 1, 1], [], []>} : vector<8x8xbf16>, vector<8x896xbf16>, vector<8x896xf32> -> vector<8x896xf32>
    %107 = arith.addf %101, %106 : vector<8x896xf32>
    %c18 = arith.constant 18 : index
    %c0_97 = arith.constant 0 : index
    %c0_98 = arith.constant 0 : index
    %108 = vector.load %arg2[%c18, %c0_97, %c0_98] : memref<27x8x8xbf16, #tpu.memory_space<vmem>>, vector<1x8x8xbf16>
    %109 = vector.shape_cast %108 : vector<1x8x8xbf16> to vector<8x8xbf16>
    %c0_99 = arith.constant 0 : index
    %c0_100 = arith.constant 0 : index
    %c200 = arith.constant 200 : index
    %110 = vector.load %arg1[%c0_99, %c0_100, %c200] : memref<1x8x1152xbf16, #tpu.memory_space<vmem>>, vector<1x8x896xbf16>
    %111 = vector.shape_cast %110 : vector<1x8x896xbf16> to vector<8x896xbf16>
    %cst_101 = arith.constant dense<0.000000e+00> : vector<8x896xf32>
    %112 = tpu.matmul %109, %111, %cst_101 {dimension_numbers = #tpu.dot_dimension_numbers<[1], [0], [0], [1], [0, 0, 1, 1], [], []>} : vector<8x8xbf16>, vector<8x896xbf16>, vector<8x896xf32> -> vector<8x896xf32>
    %113 = arith.addf %107, %112 : vector<8x896xf32>
    %c19 = arith.constant 19 : index
    %c0_102 = arith.constant 0 : index
    %c0_103 = arith.constant 0 : index
    %114 = vector.load %arg2[%c19, %c0_102, %c0_103] : memref<27x8x8xbf16, #tpu.memory_space<vmem>>, vector<1x8x8xbf16>
    %115 = vector.shape_cast %114 : vector<1x8x8xbf16> to vector<8x8xbf16>
    %c0_104 = arith.constant 0 : index
    %c0_105 = arith.constant 0 : index
    %c201 = arith.constant 201 : index
    %116 = vector.load %arg1[%c0_104, %c0_105, %c201] : memref<1x8x1152xbf16, #tpu.memory_space<vmem>>, vector<1x8x896xbf16>
    %117 = vector.shape_cast %116 : vector<1x8x896xbf16> to vector<8x896xbf16>
    %cst_106 = arith.constant dense<0.000000e+00> : vector<8x896xf32>
    %118 = tpu.matmul %115, %117, %cst_106 {dimension_numbers = #tpu.dot_dimension_numbers<[1], [0], [0], [1], [0, 0, 1, 1], [], []>} : vector<8x8xbf16>, vector<8x896xbf16>, vector<8x896xf32> -> vector<8x896xf32>
    %119 = arith.addf %113, %118 : vector<8x896xf32>
    %c20_107 = arith.constant 20 : index
    %c0_108 = arith.constant 0 : index
    %c0_109 = arith.constant 0 : index
    %120 = vector.load %arg2[%c20_107, %c0_108, %c0_109] : memref<27x8x8xbf16, #tpu.memory_space<vmem>>, vector<1x8x8xbf16>
    %121 = vector.shape_cast %120 : vector<1x8x8xbf16> to vector<8x8xbf16>
    %c0_110 = arith.constant 0 : index
    %c0_111 = arith.constant 0 : index
    %c202 = arith.constant 202 : index
    %122 = vector.load %arg1[%c0_110, %c0_111, %c202] : memref<1x8x1152xbf16, #tpu.memory_space<vmem>>, vector<1x8x896xbf16>
    %123 = vector.shape_cast %122 : vector<1x8x896xbf16> to vector<8x896xbf16>
    %cst_112 = arith.constant dense<0.000000e+00> : vector<8x896xf32>
    %124 = tpu.matmul %121, %123, %cst_112 {dimension_numbers = #tpu.dot_dimension_numbers<[1], [0], [0], [1], [0, 0, 1, 1], [], []>} : vector<8x8xbf16>, vector<8x896xbf16>, vector<8x896xf32> -> vector<8x896xf32>
    %125 = arith.addf %119, %124 : vector<8x896xf32>
    %c21_113 = arith.constant 21 : index
    %c0_114 = arith.constant 0 : index
    %c0_115 = arith.constant 0 : index
    %126 = vector.load %arg2[%c21_113, %c0_114, %c0_115] : memref<27x8x8xbf16, #tpu.memory_space<vmem>>, vector<1x8x8xbf16>
    %127 = vector.shape_cast %126 : vector<1x8x8xbf16> to vector<8x8xbf16>
    %c0_116 = arith.constant 0 : index
    %c0_117 = arith.constant 0 : index
    %c210 = arith.constant 210 : index
    %128 = vector.load %arg1[%c0_116, %c0_117, %c210] : memref<1x8x1152xbf16, #tpu.memory_space<vmem>>, vector<1x8x896xbf16>
    %129 = vector.shape_cast %128 : vector<1x8x896xbf16> to vector<8x896xbf16>
    %cst_118 = arith.constant dense<0.000000e+00> : vector<8x896xf32>
    %130 = tpu.matmul %127, %129, %cst_118 {dimension_numbers = #tpu.dot_dimension_numbers<[1], [0], [0], [1], [0, 0, 1, 1], [], []>} : vector<8x8xbf16>, vector<8x896xbf16>, vector<8x896xf32> -> vector<8x896xf32>
    %131 = arith.addf %125, %130 : vector<8x896xf32>
    %c22_119 = arith.constant 22 : index
    %c0_120 = arith.constant 0 : index
    %c0_121 = arith.constant 0 : index
    %132 = vector.load %arg2[%c22_119, %c0_120, %c0_121] : memref<27x8x8xbf16, #tpu.memory_space<vmem>>, vector<1x8x8xbf16>
    %133 = vector.shape_cast %132 : vector<1x8x8xbf16> to vector<8x8xbf16>
    %c0_122 = arith.constant 0 : index
    %c0_123 = arith.constant 0 : index
    %c211 = arith.constant 211 : index
    %134 = vector.load %arg1[%c0_122, %c0_123, %c211] : memref<1x8x1152xbf16, #tpu.memory_space<vmem>>, vector<1x8x896xbf16>
    %135 = vector.shape_cast %134 : vector<1x8x896xbf16> to vector<8x896xbf16>
    %cst_124 = arith.constant dense<0.000000e+00> : vector<8x896xf32>
    %136 = tpu.matmul %133, %135, %cst_124 {dimension_numbers = #tpu.dot_dimension_numbers<[1], [0], [0], [1], [0, 0, 1, 1], [], []>} : vector<8x8xbf16>, vector<8x896xbf16>, vector<8x896xf32> -> vector<8x896xf32>
    %137 = arith.addf %131, %136 : vector<8x896xf32>
    %c23 = arith.constant 23 : index
    %c0_125 = arith.constant 0 : index
    %c0_126 = arith.constant 0 : index
    %138 = vector.load %arg2[%c23, %c0_125, %c0_126] : memref<27x8x8xbf16, #tpu.memory_space<vmem>>, vector<1x8x8xbf16>
    %139 = vector.shape_cast %138 : vector<1x8x8xbf16> to vector<8x8xbf16>
    %c0_127 = arith.constant 0 : index
    %c0_128 = arith.constant 0 : index
    %c212 = arith.constant 212 : index
    %140 = vector.load %arg1[%c0_127, %c0_128, %c212] : memref<1x8x1152xbf16, #tpu.memory_space<vmem>>, vector<1x8x896xbf16>
    %141 = vector.shape_cast %140 : vector<1x8x896xbf16> to vector<8x896xbf16>
    %cst_129 = arith.constant dense<0.000000e+00> : vector<8x896xf32>
    %142 = tpu.matmul %139, %141, %cst_129 {dimension_numbers = #tpu.dot_dimension_numbers<[1], [0], [0], [1], [0, 0, 1, 1], [], []>} : vector<8x8xbf16>, vector<8x896xbf16>, vector<8x896xf32> -> vector<8x896xf32>
    %143 = arith.addf %137, %142 : vector<8x896xf32>
    %c24 = arith.constant 24 : index
    %c0_130 = arith.constant 0 : index
    %c0_131 = arith.constant 0 : index
    %144 = vector.load %arg2[%c24, %c0_130, %c0_131] : memref<27x8x8xbf16, #tpu.memory_space<vmem>>, vector<1x8x8xbf16>
    %145 = vector.shape_cast %144 : vector<1x8x8xbf16> to vector<8x8xbf16>
    %c0_132 = arith.constant 0 : index
    %c0_133 = arith.constant 0 : index
    %c220 = arith.constant 220 : index
    %146 = vector.load %arg1[%c0_132, %c0_133, %c220] : memref<1x8x1152xbf16, #tpu.memory_space<vmem>>, vector<1x8x896xbf16>
    %147 = vector.shape_cast %146 : vector<1x8x896xbf16> to vector<8x896xbf16>
    %cst_134 = arith.constant dense<0.000000e+00> : vector<8x896xf32>
    %148 = tpu.matmul %145, %147, %cst_134 {dimension_numbers = #tpu.dot_dimension_numbers<[1], [0], [0], [1], [0, 0, 1, 1], [], []>} : vector<8x8xbf16>, vector<8x896xbf16>, vector<8x896xf32> -> vector<8x896xf32>
    %149 = arith.addf %143, %148 : vector<8x896xf32>
    %c25 = arith.constant 25 : index
    %c0_135 = arith.constant 0 : index
    %c0_136 = arith.constant 0 : index
    %150 = vector.load %arg2[%c25, %c0_135, %c0_136] : memref<27x8x8xbf16, #tpu.memory_space<vmem>>, vector<1x8x8xbf16>
    %151 = vector.shape_cast %150 : vector<1x8x8xbf16> to vector<8x8xbf16>
    %c0_137 = arith.constant 0 : index
    %c0_138 = arith.constant 0 : index
    %c221 = arith.constant 221 : index
    %152 = vector.load %arg1[%c0_137, %c0_138, %c221] : memref<1x8x1152xbf16, #tpu.memory_space<vmem>>, vector<1x8x896xbf16>
    %153 = vector.shape_cast %152 : vector<1x8x896xbf16> to vector<8x896xbf16>
    %cst_139 = arith.constant dense<0.000000e+00> : vector<8x896xf32>
    %154 = tpu.matmul %151, %153, %cst_139 {dimension_numbers = #tpu.dot_dimension_numbers<[1], [0], [0], [1], [0, 0, 1, 1], [], []>} : vector<8x8xbf16>, vector<8x896xbf16>, vector<8x896xf32> -> vector<8x896xf32>
    %155 = arith.addf %149, %154 : vector<8x896xf32>
    %c26 = arith.constant 26 : index
    %c0_140 = arith.constant 0 : index
    %c0_141 = arith.constant 0 : index
    %156 = vector.load %arg2[%c26, %c0_140, %c0_141] : memref<27x8x8xbf16, #tpu.memory_space<vmem>>, vector<1x8x8xbf16>
    %157 = vector.shape_cast %156 : vector<1x8x8xbf16> to vector<8x8xbf16>
    %c0_142 = arith.constant 0 : index
    %c0_143 = arith.constant 0 : index
    %c222 = arith.constant 222 : index
    %158 = vector.load %arg1[%c0_142, %c0_143, %c222] : memref<1x8x1152xbf16, #tpu.memory_space<vmem>>, vector<1x8x896xbf16>
    %159 = vector.shape_cast %158 : vector<1x8x896xbf16> to vector<8x896xbf16>
    %cst_144 = arith.constant dense<0.000000e+00> : vector<8x896xf32>
    %160 = tpu.matmul %157, %159, %cst_144 {dimension_numbers = #tpu.dot_dimension_numbers<[1], [0], [0], [1], [0, 0, 1, 1], [], []>} : vector<8x8xbf16>, vector<8x896xbf16>, vector<8x896xf32> -> vector<8x896xf32>
    %161 = arith.addf %155, %160 : vector<8x896xf32>
    %162 = vector.broadcast %0 : vector<1x896xf32> to vector<8x896xf32>
    %163 = arith.mulf %161, %162 : vector<8x896xf32>
    %cst_145 = arith.constant dense<0.000000e+00> : vector<8xf32>
    %164 = vector.multi_reduction <add>, %163, %cst_145 [1] : vector<8x896xf32> to vector<8xf32>
    %165 = vector.shape_cast %164 : vector<8xf32> to vector<8x1xf32>
    %166 = arith.mulf %163, %161 : vector<8x896xf32>
    %cst_146 = arith.constant dense<0.000000e+00> : vector<8xf32>
    %167 = vector.multi_reduction <add>, %166, %cst_146 [1] : vector<8x896xf32> to vector<8xf32>
    %168 = vector.shape_cast %167 : vector<8xf32> to vector<8x1xf32>
    %cst_147 = arith.constant 0.001953125 : f32
    %169 = vector.broadcast %cst_147 : f32 to vector<8x1xf32>
    %170 = arith.mulf %165, %169 : vector<8x1xf32>
    %cst_148 = arith.constant 0.001953125 : f32
    %171 = vector.broadcast %cst_148 : f32 to vector<8x1xf32>
    %172 = arith.mulf %168, %171 : vector<8x1xf32>
    %173 = arith.mulf %170, %170 : vector<8x1xf32>
    %174 = arith.subf %172, %173 : vector<8x1xf32>
    %cst_149 = arith.constant 0.000000e+00 : f32
    %175 = vector.broadcast %cst_149 : f32 to vector<8x1xf32>
    %176 = arith.maximumf %174, %175 : vector<8x1xf32>
    %177 = vector.broadcast %170 : vector<8x1xf32> to vector<8x896xf32>
    %178 = arith.subf %161, %177 : vector<8x896xf32>
    %cst_150 = arith.constant 9.99999974E-6 : f32
    %179 = vector.broadcast %cst_150 : f32 to vector<8x1xf32>
    %180 = arith.addf %176, %179 : vector<8x1xf32>
    %181 = math.rsqrt %180 : vector<8x1xf32>
    %182 = vector.broadcast %181 : vector<8x1xf32> to vector<8x896xf32>
    %183 = arith.mulf %178, %182 : vector<8x896xf32>
    %cst_151 = arith.constant 0.000000e+00 : f32
    %184 = vector.broadcast %cst_151 : f32 to vector<8x896xf32>
    %185 = arith.maximumf %183, %184 : vector<8x896xf32>
    %186 = vector.broadcast %0 : vector<1x896xf32> to vector<8x896xf32>
    %187 = arith.mulf %185, %186 : vector<8x896xf32>
    %cst_152 = arith.constant 0.000000e+00 : bf16
    %188 = vector.broadcast %cst_152 : bf16 to vector<8x128xbf16>
    %c0_153 = arith.constant 0 : index
    %c0_154 = arith.constant 0 : index
    %189 = vector.load %arg6[%c0_153, %c0_154] : memref<8x1152xbf16, #tpu.memory_space<vmem>>, vector<8x128xbf16>
    tpu.vector_store %arg6[%c0_153, %c0_154], %188 {strides = array<i32>} : memref<8x1152xbf16, #tpu.memory_space<vmem>>, vector<8x128xbf16>,
    %cst_155 = arith.constant 0.000000e+00 : bf16
    %190 = vector.broadcast %cst_155 : bf16 to vector<8x128xbf16>
    %c0_156 = arith.constant 0 : index
    %c1024 = arith.constant 1024 : index
    %191 = vector.load %arg6[%c0_156, %c1024] : memref<8x1152xbf16, #tpu.memory_space<vmem>>, vector<8x128xbf16>
    tpu.vector_store %arg6[%c0_156, %c1024], %190 {strides = array<i32>} : memref<8x1152xbf16, #tpu.memory_space<vmem>>, vector<8x128xbf16>,
    %192 = arith.truncf %187 : vector<8x896xf32> to vector<8x896xbf16>
    %c0_157 = arith.constant 0 : index
    %c128 = arith.constant 128 : index
    %193 = vector.load %arg6[%c0_157, %c128] : memref<8x1152xbf16, #tpu.memory_space<vmem>>, vector<8x896xbf16>
    tpu.vector_store %arg6[%c0_157, %c128], %192 {strides = array<i32>} : memref<8x1152xbf16, #tpu.memory_space<vmem>>, vector<8x896xbf16>,
    %c0_158 = arith.constant 0 : index
    %c0_159 = arith.constant 0 : index
    %c0_160 = arith.constant 0 : index
    %194 = vector.load %arg3[%c0_158, %c0_159, %c0_160] : memref<27x8x8xbf16, #tpu.memory_space<vmem>>, vector<1x8x8xbf16>
    %195 = vector.shape_cast %194 : vector<1x8x8xbf16> to vector<8x8xbf16>
    %c0_161 = arith.constant 0 : index
    %c17_162 = arith.constant 17 : index
    %196 = vector.load %arg6[%c0_161, %c17_162] : memref<8x1152xbf16, #tpu.memory_space<vmem>>, vector<8x896xbf16>
    %cst_163 = arith.constant dense<0.000000e+00> : vector<8x896xf32>
    %197 = tpu.matmul %195, %196, %cst_163 {dimension_numbers = #tpu.dot_dimension_numbers<[1], [0], [0], [1], [0, 0, 1, 1], [], []>} : vector<8x8xbf16>, vector<8x896xbf16>, vector<8x896xf32> -> vector<8x896xf32>
    %c1_164 = arith.constant 1 : index
    %c0_165 = arith.constant 0 : index
    %c0_166 = arith.constant 0 : index
    %198 = vector.load %arg3[%c1_164, %c0_165, %c0_166] : memref<27x8x8xbf16, #tpu.memory_space<vmem>>, vector<1x8x8xbf16>
    %199 = vector.shape_cast %198 : vector<1x8x8xbf16> to vector<8x8xbf16>
    %c0_167 = arith.constant 0 : index
    %c18_168 = arith.constant 18 : index
    %200 = vector.load %arg6[%c0_167, %c18_168] : memref<8x1152xbf16, #tpu.memory_space<vmem>>, vector<8x896xbf16>
    %cst_169 = arith.constant dense<0.000000e+00> : vector<8x896xf32>
    %201 = tpu.matmul %199, %200, %cst_169 {dimension_numbers = #tpu.dot_dimension_numbers<[1], [0], [0], [1], [0, 0, 1, 1], [], []>} : vector<8x8xbf16>, vector<8x896xbf16>, vector<8x896xf32> -> vector<8x896xf32>
    %202 = arith.addf %197, %201 : vector<8x896xf32>
    %c2_170 = arith.constant 2 : index
    %c0_171 = arith.constant 0 : index
    %c0_172 = arith.constant 0 : index
    %203 = vector.load %arg3[%c2_170, %c0_171, %c0_172] : memref<27x8x8xbf16, #tpu.memory_space<vmem>>, vector<1x8x8xbf16>
    %204 = vector.shape_cast %203 : vector<1x8x8xbf16> to vector<8x8xbf16>
    %c0_173 = arith.constant 0 : index
    %c19_174 = arith.constant 19 : index
    %205 = vector.load %arg6[%c0_173, %c19_174] : memref<8x1152xbf16, #tpu.memory_space<vmem>>, vector<8x896xbf16>
    %cst_175 = arith.constant dense<0.000000e+00> : vector<8x896xf32>
    %206 = tpu.matmul %204, %205, %cst_175 {dimension_numbers = #tpu.dot_dimension_numbers<[1], [0], [0], [1], [0, 0, 1, 1], [], []>} : vector<8x8xbf16>, vector<8x896xbf16>, vector<8x896xf32> -> vector<8x896xf32>
    %207 = arith.addf %202, %206 : vector<8x896xf32>
    %c3_176 = arith.constant 3 : index
    %c0_177 = arith.constant 0 : index
    %c0_178 = arith.constant 0 : index
    %208 = vector.load %arg3[%c3_176, %c0_177, %c0_178] : memref<27x8x8xbf16, #tpu.memory_space<vmem>>, vector<1x8x8xbf16>
    %209 = vector.shape_cast %208 : vector<1x8x8xbf16> to vector<8x8xbf16>
    %c0_179 = arith.constant 0 : index
    %c27 = arith.constant 27 : index
    %210 = vector.load %arg6[%c0_179, %c27] : memref<8x1152xbf16, #tpu.memory_space<vmem>>, vector<8x896xbf16>
    %cst_180 = arith.constant dense<0.000000e+00> : vector<8x896xf32>
    %211 = tpu.matmul %209, %210, %cst_180 {dimension_numbers = #tpu.dot_dimension_numbers<[1], [0], [0], [1], [0, 0, 1, 1], [], []>} : vector<8x8xbf16>, vector<8x896xbf16>, vector<8x896xf32> -> vector<8x896xf32>
    %212 = arith.addf %207, %211 : vector<8x896xf32>
    %c4_181 = arith.constant 4 : index
    %c0_182 = arith.constant 0 : index
    %c0_183 = arith.constant 0 : index
    %213 = vector.load %arg3[%c4_181, %c0_182, %c0_183] : memref<27x8x8xbf16, #tpu.memory_space<vmem>>, vector<1x8x8xbf16>
    %214 = vector.shape_cast %213 : vector<1x8x8xbf16> to vector<8x8xbf16>
    %c0_184 = arith.constant 0 : index
    %c28 = arith.constant 28 : index
    %215 = vector.load %arg6[%c0_184, %c28] : memref<8x1152xbf16, #tpu.memory_space<vmem>>, vector<8x896xbf16>
    %cst_185 = arith.constant dense<0.000000e+00> : vector<8x896xf32>
    %216 = tpu.matmul %214, %215, %cst_185 {dimension_numbers = #tpu.dot_dimension_numbers<[1], [0], [0], [1], [0, 0, 1, 1], [], []>} : vector<8x8xbf16>, vector<8x896xbf16>, vector<8x896xf32> -> vector<8x896xf32>
    %217 = arith.addf %212, %216 : vector<8x896xf32>
    %c5_186 = arith.constant 5 : index
    %c0_187 = arith.constant 0 : index
    %c0_188 = arith.constant 0 : index
    %218 = vector.load %arg3[%c5_186, %c0_187, %c0_188] : memref<27x8x8xbf16, #tpu.memory_space<vmem>>, vector<1x8x8xbf16>
    %219 = vector.shape_cast %218 : vector<1x8x8xbf16> to vector<8x8xbf16>
    %c0_189 = arith.constant 0 : index
    %c29 = arith.constant 29 : index
    %220 = vector.load %arg6[%c0_189, %c29] : memref<8x1152xbf16, #tpu.memory_space<vmem>>, vector<8x896xbf16>
    %cst_190 = arith.constant dense<0.000000e+00> : vector<8x896xf32>
    %221 = tpu.matmul %219, %220, %cst_190 {dimension_numbers = #tpu.dot_dimension_numbers<[1], [0], [0], [1], [0, 0, 1, 1], [], []>} : vector<8x8xbf16>, vector<8x896xbf16>, vector<8x896xf32> -> vector<8x896xf32>
    %222 = arith.addf %217, %221 : vector<8x896xf32>
    %c6_191 = arith.constant 6 : index
    %c0_192 = arith.constant 0 : index
    %c0_193 = arith.constant 0 : index
    %223 = vector.load %arg3[%c6_191, %c0_192, %c0_193] : memref<27x8x8xbf16, #tpu.memory_space<vmem>>, vector<1x8x8xbf16>
    %224 = vector.shape_cast %223 : vector<1x8x8xbf16> to vector<8x8xbf16>
    %c0_194 = arith.constant 0 : index
    %c37 = arith.constant 37 : index
    %225 = vector.load %arg6[%c0_194, %c37] : memref<8x1152xbf16, #tpu.memory_space<vmem>>, vector<8x896xbf16>
    %cst_195 = arith.constant dense<0.000000e+00> : vector<8x896xf32>
    %226 = tpu.matmul %224, %225, %cst_195 {dimension_numbers = #tpu.dot_dimension_numbers<[1], [0], [0], [1], [0, 0, 1, 1], [], []>} : vector<8x8xbf16>, vector<8x896xbf16>, vector<8x896xf32> -> vector<8x896xf32>
    %227 = arith.addf %222, %226 : vector<8x896xf32>
    %c7_196 = arith.constant 7 : index
    %c0_197 = arith.constant 0 : index
    %c0_198 = arith.constant 0 : index
    %228 = vector.load %arg3[%c7_196, %c0_197, %c0_198] : memref<27x8x8xbf16, #tpu.memory_space<vmem>>, vector<1x8x8xbf16>
    %229 = vector.shape_cast %228 : vector<1x8x8xbf16> to vector<8x8xbf16>
    %c0_199 = arith.constant 0 : index
    %c38 = arith.constant 38 : index
    %230 = vector.load %arg6[%c0_199, %c38] : memref<8x1152xbf16, #tpu.memory_space<vmem>>, vector<8x896xbf16>
    %cst_200 = arith.constant dense<0.000000e+00> : vector<8x896xf32>
    %231 = tpu.matmul %229, %230, %cst_200 {dimension_numbers = #tpu.dot_dimension_numbers<[1], [0], [0], [1], [0, 0, 1, 1], [], []>} : vector<8x8xbf16>, vector<8x896xbf16>, vector<8x896xf32> -> vector<8x896xf32>
    %232 = arith.addf %227, %231 : vector<8x896xf32>
    %c8_201 = arith.constant 8 : index
    %c0_202 = arith.constant 0 : index
    %c0_203 = arith.constant 0 : index
    %233 = vector.load %arg3[%c8_201, %c0_202, %c0_203] : memref<27x8x8xbf16, #tpu.memory_space<vmem>>, vector<1x8x8xbf16>
    %234 = vector.shape_cast %233 : vector<1x8x8xbf16> to vector<8x8xbf16>
    %c0_204 = arith.constant 0 : index
    %c39 = arith.constant 39 : index
    %235 = vector.load %arg6[%c0_204, %c39] : memref<8x1152xbf16, #tpu.memory_space<vmem>>, vector<8x896xbf16>
    %cst_205 = arith.constant dense<0.000000e+00> : vector<8x896xf32>
    %236 = tpu.matmul %234, %235, %cst_205 {dimension_numbers = #tpu.dot_dimension_numbers<[1], [0], [0], [1], [0, 0, 1, 1], [], []>} : vector<8x8xbf16>, vector<8x896xbf16>, vector<8x896xf32> -> vector<8x896xf32>
    %237 = arith.addf %232, %236 : vector<8x896xf32>
    %c9_206 = arith.constant 9 : index
    %c0_207 = arith.constant 0 : index
    %c0_208 = arith.constant 0 : index
    %238 = vector.load %arg3[%c9_206, %c0_207, %c0_208] : memref<27x8x8xbf16, #tpu.memory_space<vmem>>, vector<1x8x8xbf16>
    %239 = vector.shape_cast %238 : vector<1x8x8xbf16> to vector<8x8xbf16>
    %c0_209 = arith.constant 0 : index
    %c117 = arith.constant 117 : index
    %240 = vector.load %arg6[%c0_209, %c117] : memref<8x1152xbf16, #tpu.memory_space<vmem>>, vector<8x896xbf16>
    %cst_210 = arith.constant dense<0.000000e+00> : vector<8x896xf32>
    %241 = tpu.matmul %239, %240, %cst_210 {dimension_numbers = #tpu.dot_dimension_numbers<[1], [0], [0], [1], [0, 0, 1, 1], [], []>} : vector<8x8xbf16>, vector<8x896xbf16>, vector<8x896xf32> -> vector<8x896xf32>
    %242 = arith.addf %237, %241 : vector<8x896xf32>
    %c10_211 = arith.constant 10 : index
    %c0_212 = arith.constant 0 : index
    %c0_213 = arith.constant 0 : index
    %243 = vector.load %arg3[%c10_211, %c0_212, %c0_213] : memref<27x8x8xbf16, #tpu.memory_space<vmem>>, vector<1x8x8xbf16>
    %244 = vector.shape_cast %243 : vector<1x8x8xbf16> to vector<8x8xbf16>
    %c0_214 = arith.constant 0 : index
    %c118 = arith.constant 118 : index
    %245 = vector.load %arg6[%c0_214, %c118] : memref<8x1152xbf16, #tpu.memory_space<vmem>>, vector<8x896xbf16>
    %cst_215 = arith.constant dense<0.000000e+00> : vector<8x896xf32>
    %246 = tpu.matmul %244, %245, %cst_215 {dimension_numbers = #tpu.dot_dimension_numbers<[1], [0], [0], [1], [0, 0, 1, 1], [], []>} : vector<8x8xbf16>, vector<8x896xbf16>, vector<8x896xf32> -> vector<8x896xf32>
    %247 = arith.addf %242, %246 : vector<8x896xf32>
    %c11_216 = arith.constant 11 : index
    %c0_217 = arith.constant 0 : index
    %c0_218 = arith.constant 0 : index
    %248 = vector.load %arg3[%c11_216, %c0_217, %c0_218] : memref<27x8x8xbf16, #tpu.memory_space<vmem>>, vector<1x8x8xbf16>
    %249 = vector.shape_cast %248 : vector<1x8x8xbf16> to vector<8x8xbf16>
    %c0_219 = arith.constant 0 : index
    %c119 = arith.constant 119 : index
    %250 = vector.load %arg6[%c0_219, %c119] : memref<8x1152xbf16, #tpu.memory_space<vmem>>, vector<8x896xbf16>
    %cst_220 = arith.constant dense<0.000000e+00> : vector<8x896xf32>
    %251 = tpu.matmul %249, %250, %cst_220 {dimension_numbers = #tpu.dot_dimension_numbers<[1], [0], [0], [1], [0, 0, 1, 1], [], []>} : vector<8x8xbf16>, vector<8x896xbf16>, vector<8x896xf32> -> vector<8x896xf32>
    %252 = arith.addf %247, %251 : vector<8x896xf32>
    %c12_221 = arith.constant 12 : index
    %c0_222 = arith.constant 0 : index
    %c0_223 = arith.constant 0 : index
    %253 = vector.load %arg3[%c12_221, %c0_222, %c0_223] : memref<27x8x8xbf16, #tpu.memory_space<vmem>>, vector<1x8x8xbf16>
    %254 = vector.shape_cast %253 : vector<1x8x8xbf16> to vector<8x8xbf16>
    %c0_224 = arith.constant 0 : index
    %c127 = arith.constant 127 : index
    %255 = vector.load %arg6[%c0_224, %c127] : memref<8x1152xbf16, #tpu.memory_space<vmem>>, vector<8x896xbf16>
    %cst_225 = arith.constant dense<0.000000e+00> : vector<8x896xf32>
    %256 = tpu.matmul %254, %255, %cst_225 {dimension_numbers = #tpu.dot_dimension_numbers<[1], [0], [0], [1], [0, 0, 1, 1], [], []>} : vector<8x8xbf16>, vector<8x896xbf16>, vector<8x896xf32> -> vector<8x896xf32>
    %257 = arith.addf %252, %256 : vector<8x896xf32>
    %c13_226 = arith.constant 13 : index
    %c0_227 = arith.constant 0 : index
    %c0_228 = arith.constant 0 : index
    %258 = vector.load %arg3[%c13_226, %c0_227, %c0_228] : memref<27x8x8xbf16, #tpu.memory_space<vmem>>, vector<1x8x8xbf16>
    %259 = vector.shape_cast %258 : vector<1x8x8xbf16> to vector<8x8xbf16>
    %c0_229 = arith.constant 0 : index
    %c128_230 = arith.constant 128 : index
    %260 = vector.load %arg6[%c0_229, %c128_230] : memref<8x1152xbf16, #tpu.memory_space<vmem>>, vector<8x896xbf16>
    %cst_231 = arith.constant dense<0.000000e+00> : vector<8x896xf32>
    %261 = tpu.matmul %259, %260, %cst_231 {dimension_numbers = #tpu.dot_dimension_numbers<[1], [0], [0], [1], [0, 0, 1, 1], [], []>} : vector<8x8xbf16>, vector<8x896xbf16>, vector<8x896xf32> -> vector<8x896xf32>
    %262 = arith.addf %257, %261 : vector<8x896xf32>
    %c14_232 = arith.constant 14 : index
    %c0_233 = arith.constant 0 : index
    %c0_234 = arith.constant 0 : index
    %263 = vector.load %arg3[%c14_232, %c0_233, %c0_234] : memref<27x8x8xbf16, #tpu.memory_space<vmem>>, vector<1x8x8xbf16>
    %264 = vector.shape_cast %263 : vector<1x8x8xbf16> to vector<8x8xbf16>
    %c0_235 = arith.constant 0 : index
    %c129 = arith.constant 129 : index
    %265 = vector.load %arg6[%c0_235, %c129] : memref<8x1152xbf16, #tpu.memory_space<vmem>>, vector<8x896xbf16>
    %cst_236 = arith.constant dense<0.000000e+00> : vector<8x896xf32>
    %266 = tpu.matmul %264, %265, %cst_236 {dimension_numbers = #tpu.dot_dimension_numbers<[1], [0], [0], [1], [0, 0, 1, 1], [], []>} : vector<8x8xbf16>, vector<8x896xbf16>, vector<8x896xf32> -> vector<8x896xf32>
    %267 = arith.addf %262, %266 : vector<8x896xf32>
    %c15_237 = arith.constant 15 : index
    %c0_238 = arith.constant 0 : index
    %c0_239 = arith.constant 0 : index
    %268 = vector.load %arg3[%c15_237, %c0_238, %c0_239] : memref<27x8x8xbf16, #tpu.memory_space<vmem>>, vector<1x8x8xbf16>
    %269 = vector.shape_cast %268 : vector<1x8x8xbf16> to vector<8x8xbf16>
    %c0_240 = arith.constant 0 : index
    %c137 = arith.constant 137 : index
    %270 = vector.load %arg6[%c0_240, %c137] : memref<8x1152xbf16, #tpu.memory_space<vmem>>, vector<8x896xbf16>
    %cst_241 = arith.constant dense<0.000000e+00> : vector<8x896xf32>
    %271 = tpu.matmul %269, %270, %cst_241 {dimension_numbers = #tpu.dot_dimension_numbers<[1], [0], [0], [1], [0, 0, 1, 1], [], []>} : vector<8x8xbf16>, vector<8x896xbf16>, vector<8x896xf32> -> vector<8x896xf32>
    %272 = arith.addf %267, %271 : vector<8x896xf32>
    %c16_242 = arith.constant 16 : index
    %c0_243 = arith.constant 0 : index
    %c0_244 = arith.constant 0 : index
    %273 = vector.load %arg3[%c16_242, %c0_243, %c0_244] : memref<27x8x8xbf16, #tpu.memory_space<vmem>>, vector<1x8x8xbf16>
    %274 = vector.shape_cast %273 : vector<1x8x8xbf16> to vector<8x8xbf16>
    %c0_245 = arith.constant 0 : index
    %c138 = arith.constant 138 : index
    %275 = vector.load %arg6[%c0_245, %c138] : memref<8x1152xbf16, #tpu.memory_space<vmem>>, vector<8x896xbf16>
    %cst_246 = arith.constant dense<0.000000e+00> : vector<8x896xf32>
    %276 = tpu.matmul %274, %275, %cst_246 {dimension_numbers = #tpu.dot_dimension_numbers<[1], [0], [0], [1], [0, 0, 1, 1], [], []>} : vector<8x8xbf16>, vector<8x896xbf16>, vector<8x896xf32> -> vector<8x896xf32>
    %277 = arith.addf %272, %276 : vector<8x896xf32>
    %c17_247 = arith.constant 17 : index
    %c0_248 = arith.constant 0 : index
    %c0_249 = arith.constant 0 : index
    %278 = vector.load %arg3[%c17_247, %c0_248, %c0_249] : memref<27x8x8xbf16, #tpu.memory_space<vmem>>, vector<1x8x8xbf16>
    %279 = vector.shape_cast %278 : vector<1x8x8xbf16> to vector<8x8xbf16>
    %c0_250 = arith.constant 0 : index
    %c139 = arith.constant 139 : index
    %280 = vector.load %arg6[%c0_250, %c139] : memref<8x1152xbf16, #tpu.memory_space<vmem>>, vector<8x896xbf16>
    %cst_251 = arith.constant dense<0.000000e+00> : vector<8x896xf32>
    %281 = tpu.matmul %279, %280, %cst_251 {dimension_numbers = #tpu.dot_dimension_numbers<[1], [0], [0], [1], [0, 0, 1, 1], [], []>} : vector<8x8xbf16>, vector<8x896xbf16>, vector<8x896xf32> -> vector<8x896xf32>
    %282 = arith.addf %277, %281 : vector<8x896xf32>
    %c18_252 = arith.constant 18 : index
    %c0_253 = arith.constant 0 : index
    %c0_254 = arith.constant 0 : index
    %283 = vector.load %arg3[%c18_252, %c0_253, %c0_254] : memref<27x8x8xbf16, #tpu.memory_space<vmem>>, vector<1x8x8xbf16>
    %284 = vector.shape_cast %283 : vector<1x8x8xbf16> to vector<8x8xbf16>
    %c0_255 = arith.constant 0 : index
    %c217 = arith.constant 217 : index
    %285 = vector.load %arg6[%c0_255, %c217] : memref<8x1152xbf16, #tpu.memory_space<vmem>>, vector<8x896xbf16>
    %cst_256 = arith.constant dense<0.000000e+00> : vector<8x896xf32>
    %286 = tpu.matmul %284, %285, %cst_256 {dimension_numbers = #tpu.dot_dimension_numbers<[1], [0], [0], [1], [0, 0, 1, 1], [], []>} : vector<8x8xbf16>, vector<8x896xbf16>, vector<8x896xf32> -> vector<8x896xf32>
    %287 = arith.addf %282, %286 : vector<8x896xf32>
    %c19_257 = arith.constant 19 : index
    %c0_258 = arith.constant 0 : index
    %c0_259 = arith.constant 0 : index
    %288 = vector.load %arg3[%c19_257, %c0_258, %c0_259] : memref<27x8x8xbf16, #tpu.memory_space<vmem>>, vector<1x8x8xbf16>
    %289 = vector.shape_cast %288 : vector<1x8x8xbf16> to vector<8x8xbf16>
    %c0_260 = arith.constant 0 : index
    %c218 = arith.constant 218 : index
    %290 = vector.load %arg6[%c0_260, %c218] : memref<8x1152xbf16, #tpu.memory_space<vmem>>, vector<8x896xbf16>
    %cst_261 = arith.constant dense<0.000000e+00> : vector<8x896xf32>
    %291 = tpu.matmul %289, %290, %cst_261 {dimension_numbers = #tpu.dot_dimension_numbers<[1], [0], [0], [1], [0, 0, 1, 1], [], []>} : vector<8x8xbf16>, vector<8x896xbf16>, vector<8x896xf32> -> vector<8x896xf32>
    %292 = arith.addf %287, %291 : vector<8x896xf32>
    %c20_262 = arith.constant 20 : index
    %c0_263 = arith.constant 0 : index
    %c0_264 = arith.constant 0 : index
    %293 = vector.load %arg3[%c20_262, %c0_263, %c0_264] : memref<27x8x8xbf16, #tpu.memory_space<vmem>>, vector<1x8x8xbf16>
    %294 = vector.shape_cast %293 : vector<1x8x8xbf16> to vector<8x8xbf16>
    %c0_265 = arith.constant 0 : index
    %c219 = arith.constant 219 : index
    %295 = vector.load %arg6[%c0_265, %c219] : memref<8x1152xbf16, #tpu.memory_space<vmem>>, vector<8x896xbf16>
    %cst_266 = arith.constant dense<0.000000e+00> : vector<8x896xf32>
    %296 = tpu.matmul %294, %295, %cst_266 {dimension_numbers = #tpu.dot_dimension_numbers<[1], [0], [0], [1], [0, 0, 1, 1], [], []>} : vector<8x8xbf16>, vector<8x896xbf16>, vector<8x896xf32> -> vector<8x896xf32>
    %297 = arith.addf %292, %296 : vector<8x896xf32>
    %c21_267 = arith.constant 21 : index
    %c0_268 = arith.constant 0 : index
    %c0_269 = arith.constant 0 : index
    %298 = vector.load %arg3[%c21_267, %c0_268, %c0_269] : memref<27x8x8xbf16, #tpu.memory_space<vmem>>, vector<1x8x8xbf16>
    %299 = vector.shape_cast %298 : vector<1x8x8xbf16> to vector<8x8xbf16>
    %c0_270 = arith.constant 0 : index
    %c227 = arith.constant 227 : index
    %300 = vector.load %arg6[%c0_270, %c227] : memref<8x1152xbf16, #tpu.memory_space<vmem>>, vector<8x896xbf16>
    %cst_271 = arith.constant dense<0.000000e+00> : vector<8x896xf32>
    %301 = tpu.matmul %299, %300, %cst_271 {dimension_numbers = #tpu.dot_dimension_numbers<[1], [0], [0], [1], [0, 0, 1, 1], [], []>} : vector<8x8xbf16>, vector<8x896xbf16>, vector<8x896xf32> -> vector<8x896xf32>
    %302 = arith.addf %297, %301 : vector<8x896xf32>
    %c22_272 = arith.constant 22 : index
    %c0_273 = arith.constant 0 : index
    %c0_274 = arith.constant 0 : index
    %303 = vector.load %arg3[%c22_272, %c0_273, %c0_274] : memref<27x8x8xbf16, #tpu.memory_space<vmem>>, vector<1x8x8xbf16>
    %304 = vector.shape_cast %303 : vector<1x8x8xbf16> to vector<8x8xbf16>
    %c0_275 = arith.constant 0 : index
    %c228 = arith.constant 228 : index
    %305 = vector.load %arg6[%c0_275, %c228] : memref<8x1152xbf16, #tpu.memory_space<vmem>>, vector<8x896xbf16>
    %cst_276 = arith.constant dense<0.000000e+00> : vector<8x896xf32>
    %306 = tpu.matmul %304, %305, %cst_276 {dimension_numbers = #tpu.dot_dimension_numbers<[1], [0], [0], [1], [0, 0, 1, 1], [], []>} : vector<8x8xbf16>, vector<8x896xbf16>, vector<8x896xf32> -> vector<8x896xf32>
    %307 = arith.addf %302, %306 : vector<8x896xf32>
    %c23_277 = arith.constant 23 : index
    %c0_278 = arith.constant 0 : index
    %c0_279 = arith.constant 0 : index
    %308 = vector.load %arg3[%c23_277, %c0_278, %c0_279] : memref<27x8x8xbf16, #tpu.memory_space<vmem>>, vector<1x8x8xbf16>
    %309 = vector.shape_cast %308 : vector<1x8x8xbf16> to vector<8x8xbf16>
    %c0_280 = arith.constant 0 : index
    %c229 = arith.constant 229 : index
    %310 = vector.load %arg6[%c0_280, %c229] : memref<8x1152xbf16, #tpu.memory_space<vmem>>, vector<8x896xbf16>
    %cst_281 = arith.constant dense<0.000000e+00> : vector<8x896xf32>
    %311 = tpu.matmul %309, %310, %cst_281 {dimension_numbers = #tpu.dot_dimension_numbers<[1], [0], [0], [1], [0, 0, 1, 1], [], []>} : vector<8x8xbf16>, vector<8x896xbf16>, vector<8x896xf32> -> vector<8x896xf32>
    %312 = arith.addf %307, %311 : vector<8x896xf32>
    %c24_282 = arith.constant 24 : index
    %c0_283 = arith.constant 0 : index
    %c0_284 = arith.constant 0 : index
    %313 = vector.load %arg3[%c24_282, %c0_283, %c0_284] : memref<27x8x8xbf16, #tpu.memory_space<vmem>>, vector<1x8x8xbf16>
    %314 = vector.shape_cast %313 : vector<1x8x8xbf16> to vector<8x8xbf16>
    %c0_285 = arith.constant 0 : index
    %c237 = arith.constant 237 : index
    %315 = vector.load %arg6[%c0_285, %c237] : memref<8x1152xbf16, #tpu.memory_space<vmem>>, vector<8x896xbf16>
    %cst_286 = arith.constant dense<0.000000e+00> : vector<8x896xf32>
    %316 = tpu.matmul %314, %315, %cst_286 {dimension_numbers = #tpu.dot_dimension_numbers<[1], [0], [0], [1], [0, 0, 1, 1], [], []>} : vector<8x8xbf16>, vector<8x896xbf16>, vector<8x896xf32> -> vector<8x896xf32>
    %317 = arith.addf %312, %316 : vector<8x896xf32>
    %c25_287 = arith.constant 25 : index
    %c0_288 = arith.constant 0 : index
    %c0_289 = arith.constant 0 : index
    %318 = vector.load %arg3[%c25_287, %c0_288, %c0_289] : memref<27x8x8xbf16, #tpu.memory_space<vmem>>, vector<1x8x8xbf16>
    %319 = vector.shape_cast %318 : vector<1x8x8xbf16> to vector<8x8xbf16>
    %c0_290 = arith.constant 0 : index
    %c238 = arith.constant 238 : index
    %320 = vector.load %arg6[%c0_290, %c238] : memref<8x1152xbf16, #tpu.memory_space<vmem>>, vector<8x896xbf16>
    %cst_291 = arith.constant dense<0.000000e+00> : vector<8x896xf32>
    %321 = tpu.matmul %319, %320, %cst_291 {dimension_numbers = #tpu.dot_dimension_numbers<[1], [0], [0], [1], [0, 0, 1, 1], [], []>} : vector<8x8xbf16>, vector<8x896xbf16>, vector<8x896xf32> -> vector<8x896xf32>
    %322 = arith.addf %317, %321 : vector<8x896xf32>
    %c26_292 = arith.constant 26 : index
    %c0_293 = arith.constant 0 : index
    %c0_294 = arith.constant 0 : index
    %323 = vector.load %arg3[%c26_292, %c0_293, %c0_294] : memref<27x8x8xbf16, #tpu.memory_space<vmem>>, vector<1x8x8xbf16>
    %324 = vector.shape_cast %323 : vector<1x8x8xbf16> to vector<8x8xbf16>
    %c0_295 = arith.constant 0 : index
    %c239 = arith.constant 239 : index
    %325 = vector.load %arg6[%c0_295, %c239] : memref<8x1152xbf16, #tpu.memory_space<vmem>>, vector<8x896xbf16>
    %cst_296 = arith.constant dense<0.000000e+00> : vector<8x896xf32>
    %326 = tpu.matmul %324, %325, %cst_296 {dimension_numbers = #tpu.dot_dimension_numbers<[1], [0], [0], [1], [0, 0, 1, 1], [], []>} : vector<8x8xbf16>, vector<8x896xbf16>, vector<8x896xf32> -> vector<8x896xf32>
    %327 = arith.addf %322, %326 : vector<8x896xf32>
    %328 = vector.broadcast %0 : vector<1x896xf32> to vector<8x896xf32>
    %329 = arith.mulf %327, %328 : vector<8x896xf32>
    %cst_297 = arith.constant dense<0.000000e+00> : vector<8xf32>
    %330 = vector.multi_reduction <add>, %329, %cst_297 [1] : vector<8x896xf32> to vector<8xf32>
    %331 = vector.shape_cast %330 : vector<8xf32> to vector<8x1xf32>
    %332 = arith.mulf %329, %327 : vector<8x896xf32>
    %cst_298 = arith.constant dense<0.000000e+00> : vector<8xf32>
    %333 = vector.multi_reduction <add>, %332, %cst_298 [1] : vector<8x896xf32> to vector<8xf32>
    %334 = vector.shape_cast %333 : vector<8xf32> to vector<8x1xf32>
    %cst_299 = arith.constant 0.001953125 : f32
    %335 = vector.broadcast %cst_299 : f32 to vector<8x1xf32>
    %336 = arith.mulf %331, %335 : vector<8x1xf32>
    %cst_300 = arith.constant 0.001953125 : f32
    %337 = vector.broadcast %cst_300 : f32 to vector<8x1xf32>
    %338 = arith.mulf %334, %337 : vector<8x1xf32>
    %339 = arith.mulf %336, %336 : vector<8x1xf32>
    %340 = arith.subf %338, %339 : vector<8x1xf32>
    %cst_301 = arith.constant 0.000000e+00 : f32
    %341 = vector.broadcast %cst_301 : f32 to vector<8x1xf32>
    %342 = arith.maximumf %340, %341 : vector<8x1xf32>
    %343 = vector.broadcast %336 : vector<8x1xf32> to vector<8x896xf32>
    %344 = arith.subf %327, %343 : vector<8x896xf32>
    %cst_302 = arith.constant 9.99999974E-6 : f32
    %345 = vector.broadcast %cst_302 : f32 to vector<8x1xf32>
    %346 = arith.addf %342, %345 : vector<8x1xf32>
    %347 = math.rsqrt %346 : vector<8x1xf32>
    %348 = vector.broadcast %347 : vector<8x1xf32> to vector<8x896xf32>
    %349 = arith.mulf %344, %348 : vector<8x896xf32>
    %cst_303 = arith.constant 0.000000e+00 : f32
    %350 = vector.broadcast %cst_303 : f32 to vector<8x896xf32>
    %351 = arith.maximumf %349, %350 : vector<8x896xf32>
    %c0_304 = arith.constant 0 : index
    %c0_305 = arith.constant 0 : index
    %c0_306 = arith.constant 0 : index
    %352 = vector.load %arg5[%c0_304, %c0_305, %c0_306] : memref<1x8x896xf32, #tpu.memory_space<vmem>>, vector<1x8x896xf32>
    %353 = vector.shape_cast %352 : vector<1x8x896xf32> to vector<8x896xf32>
    %354 = vector.shape_cast %351 : vector<8x896xf32> to vector<1x8x896xf32>
    tpu.vector_store %arg5[%c0_304, %c0_305, %c0_306], %354 {strides = array<i32>} : memref<1x8x896xf32, #tpu.memory_space<vmem>>, vector<1x8x896xf32>,
    return
  }
  func.func @transform_0(%arg0: i32) -> (i32, i32, i32) {
    %c0_i32 = arith.constant 0 : i32
    %c0_i32_0 = arith.constant 0 : i32
    %c0_i32_1 = arith.constant 0 : i32
    return %arg0, %c0_i32, %c0_i32_0 : i32, i32, i32
  }
  func.func @transform_1(%arg0: i32) -> (i32, i32, i32) {
    %c0_i32 = arith.constant 0 : i32
    %c0_i32_0 = arith.constant 0 : i32
    %c0_i32_1 = arith.constant 0 : i32
    %c0_i32_2 = arith.constant 0 : i32
    return %c0_i32, %c0_i32_0, %c0_i32_1 : i32, i32, i32
  }
  func.func @transform_2(%arg0: i32) -> (i32, i32, i32) {
    %c0_i32 = arith.constant 0 : i32
    %c0_i32_0 = arith.constant 0 : i32
    %c0_i32_1 = arith.constant 0 : i32
    %c0_i32_2 = arith.constant 0 : i32
    return %c0_i32, %c0_i32_0, %c0_i32_1 : i32, i32, i32
  }
  func.func @transform_3(%arg0: i32) -> (i32, i32) {
    %c0_i32 = arith.constant 0 : i32
    %c0_i32_0 = arith.constant 0 : i32
    %c0_i32_1 = arith.constant 0 : i32
    return %c0_i32, %c0_i32_0 : i32, i32
  }
  func.func @transform_4(%arg0: i32) -> (i32, i32, i32) {
    %c0_i32 = arith.constant 0 : i32
    %c0_i32_0 = arith.constant 0 : i32
    %c0_i32_1 = arith.constant 0 : i32
    return %arg0, %c0_i32, %c0_i32_0 : i32, i32, i32
  }
}

</mosaic_0001>

<llo_original>
// kernel: tpu_custom_call.1
$region0: #{tpu_custom_call.1}
  #allocation0 [shape = 'u32[]', space=smem, size = 0x4, offset = 0x4, fixed_abs, tag = 'smem constant byte address 0x4 - core index']
  #allocation1 [shape = 'u32[72,128]{1,0:T(1,128)}', space=vmem, size = 0x9000, scoped, tag = 'internal scratch']
  #allocation2 [shape = 'bf16[8,1152]{1,0:T(8,128)(2,1)}', space=vmem, size = 0x4800, scoped, tag = 'scratch operand']
  %s0 = inlined_call_operand.vmem [shape: bf16[2,8,1152], index: 0, kind: input, shape index: {}]
  %s1 = inlined_call_operand.vmem [shape: bf16[27,8,8], index: 1, kind: input, shape index: {}]
  %s2 = inlined_call_operand.vmem [shape: bf16[27,8,8], index: 2, kind: input, shape index: {}]
  %s3 = inlined_call_operand.vmem [shape: f32[1,896], index: 3, kind: input, shape index: {}]
  %s4 = inlined_call_operand.hbm [shape: f32[2,8,896], index: 4, kind: output, shape index: {}]
  %s5 = sld [smem:[#allocation0]]
  $region49: #{tpu_custom_call.1} parent=0
    _
  %s7 = ssub.s32 1, %s5
  %s8 = scalar_select 0, %s7, %s5
  $region1: #{tpu_custom_call.1} parent=0
    #allocation3 [shape = 'u8[57344]{0}', space=vmem, size = 0xe000, scoped, tag = 'output window, operand 0']
    #allocation4 [shape = 's32[2]{0}', space=sflag, size = 0x8, scoped, tag = 'scoped memory for tpu_custom_call.1']
    %9 = vsyncpa [#allocation4], 0
    %s10 = scalar_lea.sflag [#allocation4], 1
    %11 = vsyncpa %s10, 0
    loop: start=0, step=1, limit=4
    $region2: #{tpu_custom_call.1} parent=1 // loop_pre_header
      _
    $region3: #{tpu_custom_call.1} parent=1 // loop_header
      %s13 = sphi 0, %s17
      %p14 = scmp.ge.s32.totalorder %s13, 4
      %s23 = sphi 0, %s25
      %s26 = sphi 0, %s23
      %s27 = sphi 0, %s26
      %s43 = sphi 0, %s27
      %s47 = sphi 0, %s47
      %s49 = sphi 0, %s47
      %s50 = sphi 0, %s49
      %s64 = sphi 0, %s50
      %s68 = sphi 0, %s68
      %s70 = sphi 0, %s68
      %s71 = sphi 0, %s70
      %s85 = sphi 0, %s71
      %s89 = sphi 0, %s89
      %s91 = sphi 0, %s89
      %s92 = sphi 0, %s91
      %s106 = sphi 0, %s92
      %s112 = sphi 0, %s114
      %s115 = sphi 0, %s112
      %s116 = sphi 0, %s115
      %s132 = sphi 0, %s116
    $region4: #{tpu_custom_call.1} parent=1 // loop_header_branch
      %16 = sbr.rel (%p14) target = $region8
    $region5: #{tpu_custom_call.1} parent=1 // loop_body
      %s18 = ssub.s32 %s13, 1
      %s19 = ssub.s32 %s13, 2
      %s20 = sadd.s32 %s13, 1
      %s21 = ssub.s32 %s13, %s20
      %p22 = scmp.eq.s32.totalorder %s21, 0
      %s24 = sadd.s32 %s23, 1
      %s25 = scalar_select %p22, %s23, %s24
      %p28 = pneg %p22
      %p29 = scmp.eq.s32.totalorder %s13, 1
      %p30 = por %p28, %p29
      %p31 = scmp.ne.s32.totalorder %s23, %s26
      %p32 = scmp.eq.s32.totalorder %s13, 0
      %p33 = por %p31, %p32
      %p34 = scmp.ne.s32.totalorder %s23, %s26
      %p35 = scmp.eq.s32.totalorder %s18, 1
      %p36 = por %p34, %p35
      %p37 = scmp.ne.s32.totalorder %s26, %s27
      %p38 = scmp.eq.s32.totalorder %s18, 0
      %p39 = por %p37, %p38
      %p40 = scmp.ne.s32.totalorder %s26, %s27
      %p41 = scmp.eq.s32.totalorder %s19, 1
      %p42 = por %p40, %p41
      %p44 = scmp.ne.s32.totalorder %s27, %s43
      %p45 = scmp.eq.s32.totalorder %s19, 0
      %p46 = por %p44, %p45
      %s48 = sadd.s32 %s47, 1
      %p51 = scmp.eq.s32.totalorder %s13, 1
      %p52 = scmp.ne.s32.totalorder %s47, %s49
      %p53 = scmp.eq.s32.totalorder %s13, 0
      %p54 = por %p52, %p53
      %p55 = scmp.ne.s32.totalorder %s47, %s49
      %p56 = scmp.eq.s32.totalorder %s18, 1
      %p57 = por %p55, %p56
      %p58 = scmp.ne.s32.totalorder %s49, %s50
      %p59 = scmp.eq.s32.totalorder %s18, 0
      %p60 = por %p58, %p59
      %p61 = scmp.ne.s32.totalorder %s49, %s50
      %p62 = scmp.eq.s32.totalorder %s19, 1
      %p63 = por %p61, %p62
      %p65 = scmp.ne.s32.totalorder %s50, %s64
      %p66 = scmp.eq.s32.totalorder %s19, 0
      %p67 = por %p65, %p66
      %s69 = sadd.s32 %s68, 1
      %p72 = scmp.eq.s32.totalorder %s13, 1
      %p73 = scmp.ne.s32.totalorder %s68, %s70
      %p74 = scmp.eq.s32.totalorder %s13, 0
      %p75 = por %p73, %p74
      %p76 = scmp.ne.s32.totalorder %s68, %s70
      %p77 = scmp.eq.s32.totalorder %s18, 1
      %p78 = por %p76, %p77
      %p79 = scmp.ne.s32.totalorder %s70, %s71
      %p80 = scmp.eq.s32.totalorder %s18, 0
      %p81 = por %p79, %p80
      %p82 = scmp.ne.s32.totalorder %s70, %s71
      %p83 = scmp.eq.s32.totalorder %s19, 1
      %p84 = por %p82, %p83
      %p86 = scmp.ne.s32.totalorder %s71, %s85
      %p87 = scmp.eq.s32.totalorder %s19, 0
      %p88 = por %p86, %p87
      %s90 = sadd.s32 %s89, 1
      %p93 = scmp.eq.s32.totalorder %s13, 1
      %p94 = scmp.ne.s32.totalorder %s89, %s91
      %p95 = scmp.eq.s32.totalorder %s13, 0
      %p96 = por %p94, %p95
      %p97 = scmp.ne.s32.totalorder %s89, %s91
      %p98 = scmp.eq.s32.totalorder %s18, 1
      %p99 = por %p97, %p98
      %p100 = scmp.ne.s32.totalorder %s91, %s92
      %p101 = scmp.eq.s32.totalorder %s18, 0
      %p102 = por %p100, %p101
      %p103 = scmp.ne.s32.totalorder %s91, %s92
      %p104 = scmp.eq.s32.totalorder %s19, 1
      %p105 = por %p103, %p104
      %p107 = scmp.ne.s32.totalorder %s92, %s106
      %p108 = scmp.eq.s32.totalorder %s19, 0
      %p109 = por %p107, %p108
      %s110 = ssub.s32 %s13, %s20
      %p111 = scmp.eq.s32.totalorder %s110, 0
      %s113 = sadd.s32 %s112, 1
      %s114 = scalar_select %p111, %s112, %s113
      %p117 = pneg %p111
      %p118 = scmp.eq.s32.totalorder %s13, 1
      %p119 = por %p117, %p118
      %p120 = scmp.ne.s32.totalorder %s112, %s115
      %p121 = scmp.eq.s32.totalorder %s13, 0
      %p122 = por %p120, %p121
      %p123 = scmp.ne.s32.totalorder %s112, %s115
      %p124 = scmp.eq.s32.totalorder %s18, 1
      %p125 = por %p123, %p124
      %p126 = scmp.ne.s32.totalorder %s115, %s116
      %p127 = scmp.eq.s32.totalorder %s18, 0
      %p128 = por %p126, %p127
      %p129 = scmp.ne.s32.totalorder %s115, %s116
      %p130 = scmp.eq.s32.totalorder %s19, 1
      %p131 = por %p129, %p130
      %p133 = scmp.ne.s32.totalorder %s116, %s132
      %p134 = scmp.eq.s32.totalorder %s19, 0
      %p135 = por %p133, %p134
      %p136 = scmp.le.s32.totalorder 1, %s13
      %p137 = scmp.lt.s32.totalorder %s13, 3
      %p138 = pnand %p136, %p137
      %p139 = pneg %p138
      // Predicated region
      $region9: #{tpu_custom_call.1} parent=5 // pred_check
        _
      $region10: #{tpu_custom_call.1} parent=5 // pred_check_branch
        %141 = sbr.rel (%p138) target = $region12
      $region11: #{tpu_custom_call.1} parent=5 // pred_region
        %s142 = ssub.s32 %s13, 1
        // Predicated region
        $region13: #{tpu_custom_call.1} parent=11 // pred_check
          %p143 = pneg %p60
        $region14: #{tpu_custom_call.1} parent=11 // pred_check_branch
          %145 = sbr.rel (%p143) target = $region16
        $region15: #{tpu_custom_call.1} parent=11 // pred_region
          _
        $region16: #{tpu_custom_call.1} parent=11 // pred_fallthru
          _
        // Predicated region
        $region17: #{tpu_custom_call.1} parent=11 // pred_check
          %p146 = pneg %p81
        $region18: #{tpu_custom_call.1} parent=11 // pred_check_branch
          %148 = sbr.rel (%p146) target = $region20
        $region19: #{tpu_custom_call.1} parent=11 // pred_region
          _
        $region20: #{tpu_custom_call.1} parent=11 // pred_fallthru
          _
        // Predicated region
        $region21: #{tpu_custom_call.1} parent=11 // pred_check
          %p149 = pneg %p102
        $region22: #{tpu_custom_call.1} parent=11 // pred_check_branch
          %151 = sbr.rel (%p149) target = $region24
        $region23: #{tpu_custom_call.1} parent=11 // pred_region
          _
        $region24: #{tpu_custom_call.1} parent=11 // pred_fallthru
          _
      $region12: #{tpu_custom_call.1} parent=5 // pred_fallthru
        _
      %p152 = scmp.lt.s32.totalorder %s13, 2
      // Predicated region
      $region25: #{tpu_custom_call.1} parent=5 // pred_check
        %p153 = pneg %p152
      $region26: #{tpu_custom_call.1} parent=5 // pred_check_branch
        %155 = sbr.rel (%p153) target = $region28
      $region27: #{tpu_custom_call.1} parent=5 // pred_region
        // Predicated region
        $region29: #{tpu_custom_call.1} parent=27 // pred_check
          %p156 = pneg %p33
        $region30: #{tpu_custom_call.1} parent=27 // pred_check_branch
          %158 = sbr.rel (%p156) target = $region32
        $region31: #{tpu_custom_call.1} parent=27 // pred_region
          %p159 = scmp.lt.s32.totalorder %s13, 1
          %s160 = scalar_select %p159, %s13, 1
          %s161 = smul.addr %s160, 9
          %s162 = smul.addr %s161, 4
          %s163 = scalar_lea.vmem %s0, %s162
        $region32: #{tpu_custom_call.1} parent=27 // pred_fallthru
          _
      $region28: #{tpu_custom_call.1} parent=5 // pred_fallthru
        _
      %p164 = scmp.le.s32.totalorder 1, %s13
      %p165 = scmp.lt.s32.totalorder %s13, 3
      %p166 = pnand %p164, %p165
      %p167 = pneg %p166
      // Predicated region
      $region33: #{tpu_custom_call.1} parent=5 // pred_check
        _
      $region34: #{tpu_custom_call.1} parent=5 // pred_check_branch
        %169 = sbr.rel (%p166) target = $region36
      $region35: #{tpu_custom_call.1} parent=5 // pred_region
        %s170 = ssub.s32 %s13, 1
        %p171 = scmp.lt.s32.totalorder %s18, 1
        %s172 = scalar_select %p171, %s18, 1
        %s173 = smul.addr %s172, 9
        %s174 = smul.addr %s173, 4
        %s175 = scalar_lea.vmem %s0, %s174
        %p176 = pneg %p39
        %p177 = pneg %p36
        %p178 = pneg %p60
        %p179 = pneg %p57
        %p180 = pneg %p81
        %p181 = pneg %p78
        %p182 = pneg %p102
        %p183 = pneg %p99
        %p184 = pneg %p128
        %p185 = pneg %p125
        %s186 = sand.u32 %s115, 1
        %s187 = scalar_lea.sflag [#allocation4], %s186
        %s188 = sand.u32 %s115, 1
        %s189 = smul.addr %s188, 56
        %s190 = scalar_lea.vmem [#allocation3], %s189
        %p191 = scmp.lt.s32.totalorder %s18, 1
        %s192 = scalar_select %p191, %s18, 1
        %s193 = smul.addr %s192, 9
        %s194 = smul.addr %s193, 4
        %s195 = scalar_lea.vmem %s0, %s194
        %v197 = vld [vmem:[%s3] sm:$0xff]
        %v198 = vld [vmem:[%s1] sm:$0xf]
        %v199 = vld [vmem:[%s195] sm:$0xff]
        %v200 = vld [vmem:[%s195 + $0x8] sm:$0xff]
        %v201 = vld [vmem:[%s195 + $0x10] sm:$0xff]
        %v202 = vld [vmem:[%s195 + $0x18] sm:$0xf]
        %s203 = scalar_lea.vmem %s1, 4
        %v204 = vld [vmem:[%s203] sm:$0xf]
        %v205 = vld [vmem:[%s195 + $0x18] sm:$0xff]
        %v210 = vunpack.c.l.b16 %v199
        %v211 = vunpack.c.h.b16 %v199
        %v212 = vunpack.c.l.b16 %v200
        %v213 = vunpack.c.h.b16 %v200
        %v214 = vunpack.c.l.b16 %v201
        %v215 = vunpack.c.h.b16 %v201
        %v216 = vunpack.c.l.b16 %v205
        %v217 = vunpack.c.h.b16 %v205
        %v218 = vpack.c.b16 %v210, %v210
        %v219 = vpack.c.b16 %v211, %v211
        %v220 = vpack.c.b16 %v212, %v212
        %v221 = vpack.c.b16 %v213, %v213
        %v222 = vpack.c.b16 %v214, %v214
        %v223 = vpack.c.b16 %v215, %v215
        %v224 = vpack.c.b16 %v216, %v216
        %v225 = vpack.c.b16 %v217, %v217
        %226 = vrot.lane.b32.xlu0 %v218, 127
        %v227 = vpop.permute.xlu0 %226
        %228 = vrot.lane.b32.xlu0 %v219, 127
        %v229 = vpop.permute.xlu0 %228
        %230 = vrot.lane.b32.xlu0 %v220, 127
        %v231 = vpop.permute.xlu0 %230
        %232 = vrot.lane.b32.xlu0 %v221, 127
        %v233 = vpop.permute.xlu0 %232
        %234 = vrot.lane.b32.xlu0 %v222, 127
        %v235 = vpop.permute.xlu0 %234
        %236 = vrot.lane.b32.xlu0 %v223, 127
        %v237 = vpop.permute.xlu0 %236
        %238 = vrot.lane.b32.xlu0 %v224, 127
        %v239 = vpop.permute.xlu0 %238
        %240 = vrot.lane.b32.xlu0 %v225, 127
        %v241 = vpop.permute.xlu0 %240
        %vm242 = vcmask 1039360
        %v243 = vsel %vm242, %v227, %v229
        %v244 = vsel %vm242, %v229, %v231
        %v245 = vsel %vm242, %v231, %v233
        %v246 = vsel %vm242, %v233, %v235
        %v247 = vsel %vm242, %v235, %v237
        %v248 = vsel %vm242, %v237, %v239
        %v249 = vsel %vm242, %v239, %v241
        %vm250 = vcmask 64512
        %v252 = vsel %vm250, %v204, 0
        %vm254 = vcmask 1043456
        %v256 = vsel %vm254, %v243, 0
        %v259 = vsel %vm254, %v244, 0
        %v262 = vsel %vm254, %v245, 0
        %v265 = vsel %vm254, %v246, 0
        %v268 = vsel %vm254, %v247, 0
        %v271 = vsel %vm254, %v248, 0
        %v274 = vsel %vm254, %v249, 0
        %276 = vmatpush.bf16.msra.mxu0 0
        %277 = vmatpush.bf16.msra.mxu0 0
        %278 = vmatpush.bf16.msra.mxu0 0
        %279 = vmatpush.bf16.msra.mxu0 0
        %280 = vmatpush.bf16.msra.mxu0 0
        %281 = vmatpush.bf16.msra.mxu0 0
        %282 = vmatpush.bf16.msra.mxu0 0
        %283 = vmatpush.bf16.msra.mxu0 %v256
        %284 = vmatmul.bf16.gmra.mxu0 %v252
        %v285 = vpop.f32.mrf.mxu0
        %v286 = vadd.f32 0.0, %v285
        %v287 = vpop.f32.mrf.mxu0
        %288 = vdwg.mxu0
        %289 = vmatpush.bf16.msra.mxu0 0
        %290 = vmatpush.bf16.msra.mxu0 0
        %291 = vmatpush.bf16.msra.mxu0 0
        %292 = vmatpush.bf16.msra.mxu0 0
        %293 = vmatpush.bf16.msra.mxu0 0
        %294 = vmatpush.bf16.msra.mxu0 0
        %295 = vmatpush.bf16.msra.mxu0 0
        %296 = vmatpush.bf16.msra.mxu0 %v259
        %297 = vmatmul.bf16.gmra.mxu0 %v252
        %v298 = vpop.f32.mrf.mxu0
        %v299 = vadd.f32 0.0, %v298
        %v300 = vpop.f32.mrf.mxu0
        %301 = vdwg.mxu0
        %302 = vmatpush.bf16.msra.mxu0 0
        %303 = vmatpush.bf16.msra.mxu0 0
        %304 = vmatpush.bf16.msra.mxu0 0
        %305 = vmatpush.bf16.msra.mxu0 0
        %306 = vmatpush.bf16.msra.mxu0 0
        %307 = vmatpush.bf16.msra.mxu0 0
        %308 = vmatpush.bf16.msra.mxu0 0
        %309 = vmatpush.bf16.msra.mxu0 %v262
        %310 = vmatmul.bf16.gmra.mxu0 %v252
        %v311 = vpop.f32.mrf.mxu0
        %v312 = vadd.f32 0.0, %v311
        %v313 = vpop.f32.mrf.mxu0
        %314 = vdwg.mxu0
        %315 = vmatpush.bf16.msra.mxu0 0
        %316 = vmatpush.bf16.msra.mxu0 0
        %317 = vmatpush.bf16.msra.mxu0 0
        %318 = vmatpush.bf16.msra.mxu0 0
        %319 = vmatpush.bf16.msra.mxu0 0
        %320 = vmatpush.bf16.msra.mxu0 0
        %321 = vmatpush.bf16.msra.mxu0 0
        %322 = vmatpush.bf16.msra.mxu0 %v265
        %323 = vmatmul.bf16.gmra.mxu0 %v252
        %v324 = vpop.f32.mrf.mxu0
        %v325 = vadd.f32 0.0, %v324
        %v326 = vpop.f32.mrf.mxu0
        %327 = vdwg.mxu0
        %328 = vmatpush.bf16.msra.mxu0 0
        %329 = vmatpush.bf16.msra.mxu0 0
        %330 = vmatpush.bf16.msra.mxu0 0
        %331 = vmatpush.bf16.msra.mxu0 0
        %332 = vmatpush.bf16.msra.mxu0 0
        %333 = vmatpush.bf16.msra.mxu0 0
        %334 = vmatpush.bf16.msra.mxu0 0
        %335 = vmatpush.bf16.msra.mxu0 %v268
        %336 = vmatmul.bf16.gmra.mxu0 %v252
        %v337 = vpop.f32.mrf.mxu0
        %v338 = vadd.f32 0.0, %v337
        %v339 = vpop.f32.mrf.mxu0
        %340 = vdwg.mxu0
        %341 = vmatpush.bf16.msra.mxu0 0
        %342 = vmatpush.bf16.msra.mxu0 0
        %343 = vmatpush.bf16.msra.mxu0 0
        %344 = vmatpush.bf16.msra.mxu0 0
        %345 = vmatpush.bf16.msra.mxu0 0
        %346 = vmatpush.bf16.msra.mxu0 0
        %347 = vmatpush.bf16.msra.mxu0 0
        %348 = vmatpush.bf16.msra.mxu0 %v271
        %349 = vmatmul.bf16.gmra.mxu0 %v252
        %v350 = vpop.f32.mrf.mxu0
        %v351 = vadd.f32 0.0, %v350
        %v352 = vpop.f32.mrf.mxu0
        %353 = vdwg.mxu0
        %354 = vmatpush.bf16.msra.mxu0 0
        %355 = vmatpush.bf16.msra.mxu0 0
        %356 = vmatpush.bf16.msra.mxu0 0
        %357 = vmatpush.bf16.msra.mxu0 0
        %358 = vmatpush.bf16.msra.mxu0 0
        %359 = vmatpush.bf16.msra.mxu0 0
        %360 = vmatpush.bf16.msra.mxu0 0
        %361 = vmatpush.bf16.msra.mxu0 %v274
        %362 = vmatmul.bf16.gmra.mxu0 %v252
        %v363 = vpop.f32.mrf.mxu0
        %v364 = vadd.f32 0.0, %v363
        %v365 = vpop.f32.mrf.mxu0
        %366 = vdwg.mxu0
        %v368 = vunpack.c.l.b16 %v202
        %v369 = vpack.c.b16 %v368, %v368
        %v371 = vsel %vm250, %v198, 0
        %v374 = vsel %vm254, %v218, 0
        %v377 = vsel %vm254, %v219, 0
        %v380 = vsel %vm254, %v220, 0
        %v383 = vsel %vm254, %v221, 0
        %v386 = vsel %vm254, %v222, 0
        %v389 = vsel %vm254, %v223, 0
        %v392 = vsel %vm254, %v369, 0
        %394 = vmatpush.bf16.msra.mxu0 0
        %395 = vmatpush.bf16.msra.mxu0 0
        %396 = vmatpush.bf16.msra.mxu0 0
        %397 = vmatpush.bf16.msra.mxu0 0
        %398 = vmatpush.bf16.msra.mxu0 0
        %399 = vmatpush.bf16.msra.mxu0 0
        %400 = vmatpush.bf16.msra.mxu0 0
        %401 = vmatpush.bf16.msra.mxu0 %v374
        %402 = vmatmul.bf16.gmra.mxu0 %v371
        %v403 = vpop.f32.mrf.mxu0
        %v404 = vadd.f32 %v286, %v403
        %v405 = vpop.f32.mrf.mxu0
        %406 = vdwg.mxu0
        %407 = vmatpush.bf16.msra.mxu0 0
        %408 = vmatpush.bf16.msra.mxu0 0
        %409 = vmatpush.bf16.msra.mxu0 0
        %410 = vmatpush.bf16.msra.mxu0 0
        %411 = vmatpush.bf16.msra.mxu0 0
        %412 = vmatpush.bf16.msra.mxu0 0
        %413 = vmatpush.bf16.msra.mxu0 0
        %414 = vmatpush.bf16.msra.mxu0 %v377
        %415 = vmatmul.bf16.gmra.mxu0 %v371
        %v416 = vpop.f32.mrf.mxu0
        %v417 = vadd.f32 %v299, %v416
        %v418 = vpop.f32.mrf.mxu0
        %419 = vdwg.mxu0
        %420 = vmatpush.bf16.msra.mxu0 0
        %421 = vmatpush.bf16.msra.mxu0 0
        %422 = vmatpush.bf16.msra.mxu0 0
        %423 = vmatpush.bf16.msra.mxu0 0
        %424 = vmatpush.bf16.msra.mxu0 0
        %425 = vmatpush.bf16.msra.mxu0 0
        %426 = vmatpush.bf16.msra.mxu0 0
        %427 = vmatpush.bf16.msra.mxu0 %v380
        %428 = vmatmul.bf16.gmra.mxu0 %v371
        %v429 = vpop.f32.mrf.mxu0
        %v430 = vadd.f32 %v312, %v429
        %v431 = vpop.f32.mrf.mxu0
        %432 = vdwg.mxu0
        %433 = vmatpush.bf16.msra.mxu0 0
        %434 = vmatpush.bf16.msra.mxu0 0
        %435 = vmatpush.bf16.msra.mxu0 0
        %436 = vmatpush.bf16.msra.mxu0 0
        %437 = vmatpush.bf16.msra.mxu0 0
        %438 = vmatpush.bf16.msra.mxu0 0
        %439 = vmatpush.bf16.msra.mxu0 0
        %440 = vmatpush.bf16.msra.mxu0 %v383
        %441 = vmatmul.bf16.gmra.mxu0 %v371
        %v442 = vpop.f32.mrf.mxu0
        %v443 = vadd.f32 %v325, %v442
        %v444 = vpop.f32.mrf.mxu0
        %445 = vdwg.mxu0
        %446 = vmatpush.bf16.msra.mxu0 0
        %447 = vmatpush.bf16.msra.mxu0 0
        %448 = vmatpush.bf16.msra.mxu0 0
        %449 = vmatpush.bf16.msra.mxu0 0
        %450 = vmatpush.bf16.msra.mxu0 0
        %451 = vmatpush.bf16.msra.mxu0 0
        %452 = vmatpush.bf16.msra.mxu0 0
        %453 = vmatpush.bf16.msra.mxu0 %v386
        %454 = vmatmul.bf16.gmra.mxu0 %v371
        %v455 = vpop.f32.mrf.mxu0
        %v456 = vadd.f32 %v338, %v455
        %v457 = vpop.f32.mrf.mxu0
        %458 = vdwg.mxu0
        %459 = vmatpush.bf16.msra.mxu0 0
        %460 = vmatpush.bf16.msra.mxu0 0
        %461 = vmatpush.bf16.msra.mxu0 0
        %462 = vmatpush.bf16.msra.mxu0 0
        %463 = vmatpush.bf16.msra.mxu0 0
        %464 = vmatpush.bf16.msra.mxu0 0
        %465 = vmatpush.bf16.msra.mxu0 0
        %466 = vmatpush.bf16.msra.mxu0 %v389
        %467 = vmatmul.bf16.gmra.mxu0 %v371
        %v468 = vpop.f32.mrf.mxu0
        %v469 = vadd.f32 %v351, %v468
        %v470 = vpop.f32.mrf.mxu0
        %471 = vdwg.mxu0
        %472 = vmatpush.bf16.msra.mxu0 0
        %473 = vmatpush.bf16.msra.mxu0 0
        %474 = vmatpush.bf16.msra.mxu0 0
        %475 = vmatpush.bf16.msra.mxu0 0
        %476 = vmatpush.bf16.msra.mxu0 0
        %477 = vmatpush.bf16.msra.mxu0 0
        %478 = vmatpush.bf16.msra.mxu0 0
        %479 = vmatpush.bf16.msra.mxu0 %v392
        %480 = vmatmul.bf16.gmra.mxu0 %v371
        %v481 = vpop.f32.mrf.mxu0
        %v482 = vadd.f32 %v364, %v481
        %v483 = vpop.f32.mrf.mxu0
        %484 = vdwg.mxu0
        %s485 = scalar_lea.vmem %s1, 8
        %v486 = vld [vmem:[%s485] sm:$0xf]
        %487 = vrot.lane.b32.xlu0 %v218, 126
        %v488 = vpop.permute.xlu0 %487
        %489 = vrot.lane.b32.xlu0 %v219, 126
        %v490 = vpop.permute.xlu0 %489
        %491 = vrot.lane.b32.xlu0 %v220, 126
        %v492 = vpop.permute.xlu0 %491
        %493 = vrot.lane.b32.xlu0 %v221, 126
        %v494 = vpop.permute.xlu0 %493
        %495 = vrot.lane.b32.xlu0 %v222, 126
        %v496 = vpop.permute.xlu0 %495
        %497 = vrot.lane.b32.xlu0 %v223, 126
        %v498 = vpop.permute.xlu0 %497
        %499 = vrot.lane.b32.xlu0 %v224, 126
        %v500 = vpop.permute.xlu0 %499
        %501 = vrot.lane.b32.xlu0 %v225, 126
        %v502 = vpop.permute.xlu0 %501
        %vm503 = vcmask 1031168
        %v504 = vsel %vm503, %v488, %v490
        %v505 = vsel %vm503, %v490, %v492
        %v506 = vsel %vm503, %v492, %v494
        %v507 = vsel %vm503, %v494, %v496
        %v508 = vsel %vm503, %v496, %v498
        %v509 = vsel %vm503, %v498, %v500
        %v510 = vsel %vm503, %v500, %v502
        %v512 = vsel %vm250, %v486, 0
        %v515 = vsel %vm254, %v504, 0
        %v518 = vsel %vm254, %v505, 0
        %v521 = vsel %vm254, %v506, 0
        %v524 = vsel %vm254, %v507, 0
        %v527 = vsel %vm254, %v508, 0
        %v530 = vsel %vm254, %v509, 0
        %v533 = vsel %vm254, %v510, 0
        %535 = vmatpush.bf16.msra.mxu0 0
        %536 = vmatpush.bf16.msra.mxu0 0
        %537 = vmatpush.bf16.msra.mxu0 0
        %538 = vmatpush.bf16.msra.mxu0 0
        %539 = vmatpush.bf16.msra.mxu0 0
        %540 = vmatpush.bf16.msra.mxu0 0
        %541 = vmatpush.bf16.msra.mxu0 0
        %542 = vmatpush.bf16.msra.mxu0 %v515
        %543 = vmatmul.bf16.gmra.mxu0 %v512
        %v544 = vpop.f32.mrf.mxu0
        %v545 = vadd.f32 0.0, %v544
        %v546 = vpop.f32.mrf.mxu0
        %547 = vdwg.mxu0
        %548 = vmatpush.bf16.msra.mxu0 0
        %549 = vmatpush.bf16.msra.mxu0 0
        %550 = vmatpush.bf16.msra.mxu0 0
        %551 = vmatpush.bf16.msra.mxu0 0
        %552 = vmatpush.bf16.msra.mxu0 0
        %553 = vmatpush.bf16.msra.mxu0 0
        %554 = vmatpush.bf16.msra.mxu0 0
        %555 = vmatpush.bf16.msra.mxu0 %v518
        %556 = vmatmul.bf16.gmra.mxu0 %v512
        %v557 = vpop.f32.mrf.mxu0
        %v558 = vadd.f32 0.0, %v557
        %v559 = vpop.f32.mrf.mxu0
        %560 = vdwg.mxu0
        %561 = vmatpush.bf16.msra.mxu0 0
        %562 = vmatpush.bf16.msra.mxu0 0
        %563 = vmatpush.bf16.msra.mxu0 0
        %564 = vmatpush.bf16.msra.mxu0 0
        %565 = vmatpush.bf16.msra.mxu0 0
        %566 = vmatpush.bf16.msra.mxu0 0
        %567 = vmatpush.bf16.msra.mxu0 0
        %568 = vmatpush.bf16.msra.mxu0 %v521
        %569 = vmatmul.bf16.gmra.mxu0 %v512
        %v570 = vpop.f32.mrf.mxu0
        %v571 = vadd.f32 0.0, %v570
        %v572 = vpop.f32.mrf.mxu0
        %573 = vdwg.mxu0
        %574 = vmatpush.bf16.msra.mxu0 0
        %575 = vmatpush.bf16.msra.mxu0 0
        %576 = vmatpush.bf16.msra.mxu0 0
        %577 = vmatpush.bf16.msra.mxu0 0
        %578 = vmatpush.bf16.msra.mxu0 0
        %579 = vmatpush.bf16.msra.mxu0 0
        %580 = vmatpush.bf16.msra.mxu0 0
        %581 = vmatpush.bf16.msra.mxu0 %v524
        %582 = vmatmul.bf16.gmra.mxu0 %v512
        %v583 = vpop.f32.mrf.mxu0
        %v584 = vadd.f32 0.0, %v583
        %v585 = vpop.f32.mrf.mxu0
        %586 = vdwg.mxu0
        %587 = vmatpush.bf16.msra.mxu0 0
        %588 = vmatpush.bf16.msra.mxu0 0
        %589 = vmatpush.bf16.msra.mxu0 0
        %590 = vmatpush.bf16.msra.mxu0 0
        %591 = vmatpush.bf16.msra.mxu0 0
        %592 = vmatpush.bf16.msra.mxu0 0
        %593 = vmatpush.bf16.msra.mxu0 0
        %594 = vmatpush.bf16.msra.mxu0 %v527
        %595 = vmatmul.bf16.gmra.mxu0 %v512
        %v596 = vpop.f32.mrf.mxu0
        %v597 = vadd.f32 0.0, %v596
        %v598 = vpop.f32.mrf.mxu0
        %599 = vdwg.mxu0
        %600 = vmatpush.bf16.msra.mxu0 0
        %601 = vmatpush.bf16.msra.mxu0 0
        %602 = vmatpush.bf16.msra.mxu0 0
        %603 = vmatpush.bf16.msra.mxu0 0
        %604 = vmatpush.bf16.msra.mxu0 0
        %605 = vmatpush.bf16.msra.mxu0 0
        %606 = vmatpush.bf16.msra.mxu0 0
        %607 = vmatpush.bf16.msra.mxu0 %v530
        %608 = vmatmul.bf16.gmra.mxu0 %v512
        %v609 = vpop.f32.mrf.mxu0
        %v610 = vadd.f32 0.0, %v609
        %v611 = vpop.f32.mrf.mxu0
        %612 = vdwg.mxu0
        %613 = vmatpush.bf16.msra.mxu0 0
        %614 = vmatpush.bf16.msra.mxu0 0
        %615 = vmatpush.bf16.msra.mxu0 0
        %616 = vmatpush.bf16.msra.mxu0 0
        %617 = vmatpush.bf16.msra.mxu0 0
        %618 = vmatpush.bf16.msra.mxu0 0
        %619 = vmatpush.bf16.msra.mxu0 0
        %620 = vmatpush.bf16.msra.mxu0 %v533
        %621 = vmatmul.bf16.gmra.mxu0 %v512
        %v622 = vpop.f32.mrf.mxu0
        %v623 = vadd.f32 0.0, %v622
        %v624 = vpop.f32.mrf.mxu0
        %625 = vdwg.mxu0
        %v626 = vadd.f32 %v404, %v545
        %v627 = vadd.f32 %v417, %v558
        %v628 = vadd.f32 %v430, %v571
        %v629 = vadd.f32 %v443, %v584
        %v630 = vadd.f32 %v456, %v597
        %v631 = vadd.f32 %v469, %v610
        %v632 = vadd.f32 %v482, %v623
        %s633 = scalar_lea.vmem %s1, 12
        %v634 = vld [vmem:[%s633] sm:$0xf]
        %635 = vrot.lane.b32.xlu0 %v218, 118
        %v636 = vpop.permute.xlu0 %635
        %637 = vrot.lane.b32.xlu0 %v219, 118
        %v638 = vpop.permute.xlu0 %637
        %639 = vrot.lane.b32.xlu0 %v220, 118
        %v640 = vpop.permute.xlu0 %639
        %641 = vrot.lane.b32.xlu0 %v221, 118
        %v642 = vpop.permute.xlu0 %641
        %643 = vrot.lane.b32.xlu0 %v222, 118
        %v644 = vpop.permute.xlu0 %643
        %645 = vrot.lane.b32.xlu0 %v223, 118
        %v646 = vpop.permute.xlu0 %645
        %647 = vrot.lane.b32.xlu0 %v224, 118
        %v648 = vpop.permute.xlu0 %647
        %649 = vrot.lane.b32.xlu0 %v225, 118
        %v650 = vpop.permute.xlu0 %649
        %vm651 = vcmask 965632
        %v652 = vsel %vm651, %v636, %v638
        %v653 = vsel %vm651, %v638, %v640
        %v654 = vsel %vm651, %v640, %v642
        %v655 = vsel %vm651, %v642, %v644
        %v656 = vsel %vm651, %v644, %v646
        %v657 = vsel %vm651, %v646, %v648
        %v658 = vsel %vm651, %v648, %v650
        %v660 = vsel %vm250, %v634, 0
        %v663 = vsel %vm254, %v652, 0
        %v666 = vsel %vm254, %v653, 0
        %v669 = vsel %vm254, %v654, 0
        %v672 = vsel %vm254, %v655, 0
        %v675 = vsel %vm254, %v656, 0
        %v678 = vsel %vm254, %v657, 0
        %v681 = vsel %vm254, %v658, 0
        %683 = vmatpush.bf16.msra.mxu0 0
        %684 = vmatpush.bf16.msra.mxu0 0
        %685 = vmatpush.bf16.msra.mxu0 0
        %686 = vmatpush.bf16.msra.mxu0 0
        %687 = vmatpush.bf16.msra.mxu0 0
        %688 = vmatpush.bf16.msra.mxu0 0
        %689 = vmatpush.bf16.msra.mxu0 0
        %690 = vmatpush.bf16.msra.mxu0 %v663
        %691 = vmatmul.bf16.gmra.mxu0 %v660
        %v692 = vpop.f32.mrf.mxu0
        %v693 = vadd.f32 0.0, %v692
        %v694 = vpop.f32.mrf.mxu0
        %695 = vdwg.mxu0
        %696 = vmatpush.bf16.msra.mxu0 0
        %697 = vmatpush.bf16.msra.mxu0 0
        %698 = vmatpush.bf16.msra.mxu0 0
        %699 = vmatpush.bf16.msra.mxu0 0
        %700 = vmatpush.bf16.msra.mxu0 0
        %701 = vmatpush.bf16.msra.mxu0 0
        %702 = vmatpush.bf16.msra.mxu0 0
        %703 = vmatpush.bf16.msra.mxu0 %v666
        %704 = vmatmul.bf16.gmra.mxu0 %v660
        %v705 = vpop.f32.mrf.mxu0
        %v706 = vadd.f32 0.0, %v705
        %v707 = vpop.f32.mrf.mxu0
        %708 = vdwg.mxu0
        %709 = vmatpush.bf16.msra.mxu0 0
        %710 = vmatpush.bf16.msra.mxu0 0
        %711 = vmatpush.bf16.msra.mxu0 0
        %712 = vmatpush.bf16.msra.mxu0 0
        %713 = vmatpush.bf16.msra.mxu0 0
        %714 = vmatpush.bf16.msra.mxu0 0
        %715 = vmatpush.bf16.msra.mxu0 0
        %716 = vmatpush.bf16.msra.mxu0 %v669
        %717 = vmatmul.bf16.gmra.mxu0 %v660
        %v718 = vpop.f32.mrf.mxu0
        %v719 = vadd.f32 0.0, %v718
        %v720 = vpop.f32.mrf.mxu0
        %721 = vdwg.mxu0
        %722 = vmatpush.bf16.msra.mxu0 0
        %723 = vmatpush.bf16.msra.mxu0 0
        %724 = vmatpush.bf16.msra.mxu0 0
        %725 = vmatpush.bf16.msra.mxu0 0
        %726 = vmatpush.bf16.msra.mxu0 0
        %727 = vmatpush.bf16.msra.mxu0 0
        %728 = vmatpush.bf16.msra.mxu0 0
        %729 = vmatpush.bf16.msra.mxu0 %v672
        %730 = vmatmul.bf16.gmra.mxu0 %v660
        %v731 = vpop.f32.mrf.mxu0
        %v732 = vadd.f32 0.0, %v731
        %v733 = vpop.f32.mrf.mxu0
        %734 = vdwg.mxu0
        %735 = vmatpush.bf16.msra.mxu0 0
        %736 = vmatpush.bf16.msra.mxu0 0
        %737 = vmatpush.bf16.msra.mxu0 0
        %738 = vmatpush.bf16.msra.mxu0 0
        %739 = vmatpush.bf16.msra.mxu0 0
        %740 = vmatpush.bf16.msra.mxu0 0
        %741 = vmatpush.bf16.msra.mxu0 0
        %742 = vmatpush.bf16.msra.mxu0 %v675
        %743 = vmatmul.bf16.gmra.mxu0 %v660
        %v744 = vpop.f32.mrf.mxu0
        %v745 = vadd.f32 0.0, %v744
        %v746 = vpop.f32.mrf.mxu0
        %747 = vdwg.mxu0
        %748 = vmatpush.bf16.msra.mxu0 0
        %749 = vmatpush.bf16.msra.mxu0 0
        %750 = vmatpush.bf16.msra.mxu0 0
        %751 = vmatpush.bf16.msra.mxu0 0
        %752 = vmatpush.bf16.msra.mxu0 0
        %753 = vmatpush.bf16.msra.mxu0 0
        %754 = vmatpush.bf16.msra.mxu0 0
        %755 = vmatpush.bf16.msra.mxu0 %v678
        %756 = vmatmul.bf16.gmra.mxu0 %v660
        %v757 = vpop.f32.mrf.mxu0
        %v758 = vadd.f32 0.0, %v757
        %v759 = vpop.f32.mrf.mxu0
        %760 = vdwg.mxu0
        %761 = vmatpush.bf16.msra.mxu0 0
        %762 = vmatpush.bf16.msra.mxu0 0
        %763 = vmatpush.bf16.msra.mxu0 0
        %764 = vmatpush.bf16.msra.mxu0 0
        %765 = vmatpush.bf16.msra.mxu0 0
        %766 = vmatpush.bf16.msra.mxu0 0
        %767 = vmatpush.bf16.msra.mxu0 0
        %768 = vmatpush.bf16.msra.mxu0 %v681
        %769 = vmatmul.bf16.gmra.mxu0 %v660
        %v770 = vpop.f32.mrf.mxu0
        %v771 = vadd.f32 0.0, %v770
        %v772 = vpop.f32.mrf.mxu0
        %773 = vdwg.mxu0
        %v774 = vadd.f32 %v626, %v693
        %v775 = vadd.f32 %v627, %v706
        %v776 = vadd.f32 %v628, %v719
        %v777 = vadd.f32 %v629, %v732
        %v778 = vadd.f32 %v630, %v745
        %v779 = vadd.f32 %v631, %v758
        %v780 = vadd.f32 %v632, %v771
        %s781 = scalar_lea.vmem %s1, 16
        %v782 = vld [vmem:[%s781] sm:$0xf]
        %783 = vrot.lane.b32.xlu0 %v218, 117
        %v784 = vpop.permute.xlu0 %783
        %785 = vrot.lane.b32.xlu0 %v219, 117
        %v786 = vpop.permute.xlu0 %785
        %787 = vrot.lane.b32.xlu0 %v220, 117
        %v788 = vpop.permute.xlu0 %787
        %789 = vrot.lane.b32.xlu0 %v221, 117
        %v790 = vpop.permute.xlu0 %789
        %791 = vrot.lane.b32.xlu0 %v222, 117
        %v792 = vpop.permute.xlu0 %791
        %793 = vrot.lane.b32.xlu0 %v223, 117
        %v794 = vpop.permute.xlu0 %793
        %795 = vrot.lane.b32.xlu0 %v224, 117
        %v796 = vpop.permute.xlu0 %795
        %797 = vrot.lane.b32.xlu0 %v225, 117
        %v798 = vpop.permute.xlu0 %797
        %vm799 = vcmask 957440
        %v800 = vsel %vm799, %v784, %v786
        %v801 = vsel %vm799, %v786, %v788
        %v802 = vsel %vm799, %v788, %v790
        %v803 = vsel %vm799, %v790, %v792
        %v804 = vsel %vm799, %v792, %v794
        %v805 = vsel %vm799, %v794, %v796
        %v806 = vsel %vm799, %v796, %v798
        %v808 = vsel %vm250, %v782, 0
        %v811 = vsel %vm254, %v800, 0
        %v814 = vsel %vm254, %v801, 0
        %v817 = vsel %vm254, %v802, 0
        %v820 = vsel %vm254, %v803, 0
        %v823 = vsel %vm254, %v804, 0
        %v826 = vsel %vm254, %v805, 0
        %v829 = vsel %vm254, %v806, 0
        %831 = vmatpush.bf16.msra.mxu0 0
        %832 = vmatpush.bf16.msra.mxu0 0
        %833 = vmatpush.bf16.msra.mxu0 0
        %834 = vmatpush.bf16.msra.mxu0 0
        %835 = vmatpush.bf16.msra.mxu0 0
        %836 = vmatpush.bf16.msra.mxu0 0
        %837 = vmatpush.bf16.msra.mxu0 0
        %838 = vmatpush.bf16.msra.mxu0 %v811
        %839 = vmatmul.bf16.gmra.mxu0 %v808
        %v840 = vpop.f32.mrf.mxu0
        %v841 = vadd.f32 0.0, %v840
        %v842 = vpop.f32.mrf.mxu0
        %843 = vdwg.mxu0
        %844 = vmatpush.bf16.msra.mxu0 0
        %845 = vmatpush.bf16.msra.mxu0 0
        %846 = vmatpush.bf16.msra.mxu0 0
        %847 = vmatpush.bf16.msra.mxu0 0
        %848 = vmatpush.bf16.msra.mxu0 0
        %849 = vmatpush.bf16.msra.mxu0 0
        %850 = vmatpush.bf16.msra.mxu0 0
        %851 = vmatpush.bf16.msra.mxu0 %v814
        %852 = vmatmul.bf16.gmra.mxu0 %v808
        %v853 = vpop.f32.mrf.mxu0
        %v854 = vadd.f32 0.0, %v853
        %v855 = vpop.f32.mrf.mxu0
        %856 = vdwg.mxu0
        %857 = vmatpush.bf16.msra.mxu0 0
        %858 = vmatpush.bf16.msra.mxu0 0
        %859 = vmatpush.bf16.msra.mxu0 0
        %860 = vmatpush.bf16.msra.mxu0 0
        %861 = vmatpush.bf16.msra.mxu0 0
        %862 = vmatpush.bf16.msra.mxu0 0
        %863 = vmatpush.bf16.msra.mxu0 0
        %864 = vmatpush.bf16.msra.mxu0 %v817
        %865 = vmatmul.bf16.gmra.mxu0 %v808
        %v866 = vpop.f32.mrf.mxu0
        %v867 = vadd.f32 0.0, %v866
        %v868 = vpop.f32.mrf.mxu0
        %869 = vdwg.mxu0
        %870 = vmatpush.bf16.msra.mxu0 0
        %871 = vmatpush.bf16.msra.mxu0 0
        %872 = vmatpush.bf16.msra.mxu0 0
        %873 = vmatpush.bf16.msra.mxu0 0
        %874 = vmatpush.bf16.msra.mxu0 0
        %875 = vmatpush.bf16.msra.mxu0 0
        %876 = vmatpush.bf16.msra.mxu0 0
        %877 = vmatpush.bf16.msra.mxu0 %v820
        %878 = vmatmul.bf16.gmra.mxu0 %v808
        %v879 = vpop.f32.mrf.mxu0
        %v880 = vadd.f32 0.0, %v879
        %v881 = vpop.f32.mrf.mxu0
        %882 = vdwg.mxu0
        %883 = vmatpush.bf16.msra.mxu0 0
        %884 = vmatpush.bf16.msra.mxu0 0
        %885 = vmatpush.bf16.msra.mxu0 0
        %886 = vmatpush.bf16.msra.mxu0 0
        %887 = vmatpush.bf16.msra.mxu0 0
        %888 = vmatpush.bf16.msra.mxu0 0
        %889 = vmatpush.bf16.msra.mxu0 0
        %890 = vmatpush.bf16.msra.mxu0 %v823
        %891 = vmatmul.bf16.gmra.mxu0 %v808
        %v892 = vpop.f32.mrf.mxu0
        %v893 = vadd.f32 0.0, %v892
        %v894 = vpop.f32.mrf.mxu0
        %895 = vdwg.mxu0
        %896 = vmatpush.bf16.msra.mxu0 0
        %897 = vmatpush.bf16.msra.mxu0 0
        %898 = vmatpush.bf16.msra.mxu0 0
        %899 = vmatpush.bf16.msra.mxu0 0
        %900 = vmatpush.bf16.msra.mxu0 0
        %901 = vmatpush.bf16.msra.mxu0 0
        %902 = vmatpush.bf16.msra.mxu0 0
        %903 = vmatpush.bf16.msra.mxu0 %v826
        %904 = vmatmul.bf16.gmra.mxu0 %v808
        %v905 = vpop.f32.mrf.mxu0
        %v906 = vadd.f32 0.0, %v905
        %v907 = vpop.f32.mrf.mxu0
        %908 = vdwg.mxu0
        %909 = vmatpush.bf16.msra.mxu0 0
        %910 = vmatpush.bf16.msra.mxu0 0
        %911 = vmatpush.bf16.msra.mxu0 0
        %912 = vmatpush.bf16.msra.mxu0 0
        %913 = vmatpush.bf16.msra.mxu0 0
        %914 = vmatpush.bf16.msra.mxu0 0
        %915 = vmatpush.bf16.msra.mxu0 0
        %916 = vmatpush.bf16.msra.mxu0 %v829
        %917 = vmatmul.bf16.gmra.mxu0 %v808
        %v918 = vpop.f32.mrf.mxu0
        %v919 = vadd.f32 0.0, %v918
        %v920 = vpop.f32.mrf.mxu0
        %921 = vdwg.mxu0
        %v922 = vadd.f32 %v774, %v841
        %v923 = vadd.f32 %v775, %v854
        %v924 = vadd.f32 %v776, %v867
        %v925 = vadd.f32 %v777, %v880
        %v926 = vadd.f32 %v778, %v893
        %v927 = vadd.f32 %v779, %v906
        %v928 = vadd.f32 %v780, %v919
        %s929 = scalar_lea.vmem %s1, 20
        %v930 = vld [vmem:[%s929] sm:$0xf]
        %931 = vrot.lane.b32.xlu0 %v218, 116
        %v932 = vpop.permute.xlu0 %931
        %933 = vrot.lane.b32.xlu0 %v219, 116
        %v934 = vpop.permute.xlu0 %933
        %935 = vrot.lane.b32.xlu0 %v220, 116
        %v936 = vpop.permute.xlu0 %935
        %937 = vrot.lane.b32.xlu0 %v221, 116
        %v938 = vpop.permute.xlu0 %937
        %939 = vrot.lane.b32.xlu0 %v222, 116
        %v940 = vpop.permute.xlu0 %939
        %941 = vrot.lane.b32.xlu0 %v223, 116
        %v942 = vpop.permute.xlu0 %941
        %943 = vrot.lane.b32.xlu0 %v224, 116
        %v944 = vpop.permute.xlu0 %943
        %945 = vrot.lane.b32.xlu0 %v225, 116
        %v946 = vpop.permute.xlu0 %945
        %vm947 = vcmask 949248
        %v948 = vsel %vm947, %v932, %v934
        %v949 = vsel %vm947, %v934, %v936
        %v950 = vsel %vm947, %v936, %v938
        %v951 = vsel %vm947, %v938, %v940
        %v952 = vsel %vm947, %v940, %v942
        %v953 = vsel %vm947, %v942, %v944
        %v954 = vsel %vm947, %v944, %v946
        %v956 = vsel %vm250, %v930, 0
        %v959 = vsel %vm254, %v948, 0
        %v962 = vsel %vm254, %v949, 0
        %v965 = vsel %vm254, %v950, 0
        %v968 = vsel %vm254, %v951, 0
        %v971 = vsel %vm254, %v952, 0
        %v974 = vsel %vm254, %v953, 0
        %v977 = vsel %vm254, %v954, 0
        %979 = vmatpush.bf16.msra.mxu0 0
        %980 = vmatpush.bf16.msra.mxu0 0
        %981 = vmatpush.bf16.msra.mxu0 0
        %982 = vmatpush.bf16.msra.mxu0 0
        %983 = vmatpush.bf16.msra.mxu0 0
        %984 = vmatpush.bf16.msra.mxu0 0
        %985 = vmatpush.bf16.msra.mxu0 0
        %986 = vmatpush.bf16.msra.mxu0 %v959
        %987 = vmatmul.bf16.gmra.mxu0 %v956
        %v988 = vpop.f32.mrf.mxu0
        %v989 = vadd.f32 0.0, %v988
        %v990 = vpop.f32.mrf.mxu0
        %991 = vdwg.mxu0
        %992 = vmatpush.bf16.msra.mxu0 0
        %993 = vmatpush.bf16.msra.mxu0 0
        %994 = vmatpush.bf16.msra.mxu0 0
        %995 = vmatpush.bf16.msra.mxu0 0
        %996 = vmatpush.bf16.msra.mxu0 0
        %997 = vmatpush.bf16.msra.mxu0 0
        %998 = vmatpush.bf16.msra.mxu0 0
        %999 = vmatpush.bf16.msra.mxu0 %v962
        %1000 = vmatmul.bf16.gmra.mxu0 %v956
        %v1001 = vpop.f32.mrf.mxu0
        %v1002 = vadd.f32 0.0, %v1001
        %v1003 = vpop.f32.mrf.mxu0
        %1004 = vdwg.mxu0
        %1005 = vmatpush.bf16.msra.mxu0 0
        %1006 = vmatpush.bf16.msra.mxu0 0
        %1007 = vmatpush.bf16.msra.mxu0 0
        %1008 = vmatpush.bf16.msra.mxu0 0
        %1009 = vmatpush.bf16.msra.mxu0 0
        %1010 = vmatpush.bf16.msra.mxu0 0
        %1011 = vmatpush.bf16.msra.mxu0 0
        %1012 = vmatpush.bf16.msra.mxu0 %v965
        %1013 = vmatmul.bf16.gmra.mxu0 %v956
        %v1014 = vpop.f32.mrf.mxu0
        %v1015 = vadd.f32 0.0, %v1014
        %v1016 = vpop.f32.mrf.mxu0
        %1017 = vdwg.mxu0
        %1018 = vmatpush.bf16.msra.mxu0 0
        %1019 = vmatpush.bf16.msra.mxu0 0
        %1020 = vmatpush.bf16.msra.mxu0 0
        %1021 = vmatpush.bf16.msra.mxu0 0
        %1022 = vmatpush.bf16.msra.mxu0 0
        %1023 = vmatpush.bf16.msra.mxu0 0
        %1024 = vmatpush.bf16.msra.mxu0 0
        %1025 = vmatpush.bf16.msra.mxu0 %v968
        %1026 = vmatmul.bf16.gmra.mxu0 %v956
        %v1027 = vpop.f32.mrf.mxu0
        %v1028 = vadd.f32 0.0, %v1027
        %v1029 = vpop.f32.mrf.mxu0
        %1030 = vdwg.mxu0
        %1031 = vmatpush.bf16.msra.mxu0 0
        %1032 = vmatpush.bf16.msra.mxu0 0
        %1033 = vmatpush.bf16.msra.mxu0 0
        %1034 = vmatpush.bf16.msra.mxu0 0
        %1035 = vmatpush.bf16.msra.mxu0 0
        %1036 = vmatpush.bf16.msra.mxu0 0
        %1037 = vmatpush.bf16.msra.mxu0 0
        %1038 = vmatpush.bf16.msra.mxu0 %v971
        %1039 = vmatmul.bf16.gmra.mxu0 %v956
        %v1040 = vpop.f32.mrf.mxu0
        %v1041 = vadd.f32 0.0, %v1040
        %v1042 = vpop.f32.mrf.mxu0
        %1043 = vdwg.mxu0
        %1044 = vmatpush.bf16.msra.mxu0 0
        %1045 = vmatpush.bf16.msra.mxu0 0
        %1046 = vmatpush.bf16.msra.mxu0 0
        %1047 = vmatpush.bf16.msra.mxu0 0
        %1048 = vmatpush.bf16.msra.mxu0 0
        %1049 = vmatpush.bf16.msra.mxu0 0
        %1050 = vmatpush.bf16.msra.mxu0 0
        %1051 = vmatpush.bf16.msra.mxu0 %v974
        %1052 = vmatmul.bf16.gmra.mxu0 %v956
        %v1053 = vpop.f32.mrf.mxu0
        %v1054 = vadd.f32 0.0, %v1053
        %v1055 = vpop.f32.mrf.mxu0
        %1056 = vdwg.mxu0
        %1057 = vmatpush.bf16.msra.mxu0 0
        %1058 = vmatpush.bf16.msra.mxu0 0
        %1059 = vmatpush.bf16.msra.mxu0 0
        %1060 = vmatpush.bf16.msra.mxu0 0
        %1061 = vmatpush.bf16.msra.mxu0 0
        %1062 = vmatpush.bf16.msra.mxu0 0
        %1063 = vmatpush.bf16.msra.mxu0 0
        %1064 = vmatpush.bf16.msra.mxu0 %v977
        %1065 = vmatmul.bf16.gmra.mxu0 %v956
        %v1066 = vpop.f32.mrf.mxu0
        %v1067 = vadd.f32 0.0, %v1066
        %v1068 = vpop.f32.mrf.mxu0
        %1069 = vdwg.mxu0
        %v1070 = vadd.f32 %v922, %v989
        %v1071 = vadd.f32 %v923, %v1002
        %v1072 = vadd.f32 %v924, %v1015
        %v1073 = vadd.f32 %v925, %v1028
        %v1074 = vadd.f32 %v926, %v1041
        %v1075 = vadd.f32 %v927, %v1054
        %v1076 = vadd.f32 %v928, %v1067
        %s1077 = scalar_lea.vmem %s1, 24
        %v1078 = vld [vmem:[%s1077] sm:$0xf]
        %1079 = vrot.lane.b32.xlu0 %v218, 108
        %v1080 = vpop.permute.xlu0 %1079
        %1081 = vrot.lane.b32.xlu0 %v219, 108
        %v1082 = vpop.permute.xlu0 %1081
        %1083 = vrot.lane.b32.xlu0 %v220, 108
        %v1084 = vpop.permute.xlu0 %1083
        %1085 = vrot.lane.b32.xlu0 %v221, 108
        %v1086 = vpop.permute.xlu0 %1085
        %1087 = vrot.lane.b32.xlu0 %v222, 108
        %v1088 = vpop.permute.xlu0 %1087
        %1089 = vrot.lane.b32.xlu0 %v223, 108
        %v1090 = vpop.permute.xlu0 %1089
        %1091 = vrot.lane.b32.xlu0 %v224, 108
        %v1092 = vpop.permute.xlu0 %1091
        %1093 = vrot.lane.b32.xlu0 %v225, 108
        %v1094 = vpop.permute.xlu0 %1093
        %vm1095 = vcmask 883712
        %v1096 = vsel %vm1095, %v1080, %v1082
        %v1097 = vsel %vm1095, %v1082, %v1084
        %v1098 = vsel %vm1095, %v1084, %v1086
        %v1099 = vsel %vm1095, %v1086, %v1088
        %v1100 = vsel %vm1095, %v1088, %v1090
        %v1101 = vsel %vm1095, %v1090, %v1092
        %v1102 = vsel %vm1095, %v1092, %v1094
        %v1104 = vsel %vm250, %v1078, 0
        %v1107 = vsel %vm254, %v1096, 0
        %v1110 = vsel %vm254, %v1097, 0
        %v1113 = vsel %vm254, %v1098, 0
        %v1116 = vsel %vm254, %v1099, 0
        %v1119 = vsel %vm254, %v1100, 0
        %v1122 = vsel %vm254, %v1101, 0
        %v1125 = vsel %vm254, %v1102, 0
        %1127 = vmatpush.bf16.msra.mxu0 0
        %1128 = vmatpush.bf16.msra.mxu0 0
        %1129 = vmatpush.bf16.msra.mxu0 0
        %1130 = vmatpush.bf16.msra.mxu0 0
        %1131 = vmatpush.bf16.msra.mxu0 0
        %1132 = vmatpush.bf16.msra.mxu0 0
        %1133 = vmatpush.bf16.msra.mxu0 0
        %1134 = vmatpush.bf16.msra.mxu0 %v1107
        %1135 = vmatmul.bf16.gmra.mxu0 %v1104
        %v1136 = vpop.f32.mrf.mxu0
        %v1137 = vadd.f32 0.0, %v1136
        %v1138 = vpop.f32.mrf.mxu0
        %1139 = vdwg.mxu0
        %1140 = vmatpush.bf16.msra.mxu0 0
        %1141 = vmatpush.bf16.msra.mxu0 0
        %1142 = vmatpush.bf16.msra.mxu0 0
        %1143 = vmatpush.bf16.msra.mxu0 0
        %1144 = vmatpush.bf16.msra.mxu0 0
        %1145 = vmatpush.bf16.msra.mxu0 0
        %1146 = vmatpush.bf16.msra.mxu0 0
        %1147 = vmatpush.bf16.msra.mxu0 %v1110
        %1148 = vmatmul.bf16.gmra.mxu0 %v1104
        %v1149 = vpop.f32.mrf.mxu0
        %v1150 = vadd.f32 0.0, %v1149
        %v1151 = vpop.f32.mrf.mxu0
        %1152 = vdwg.mxu0
        %1153 = vmatpush.bf16.msra.mxu0 0
        %1154 = vmatpush.bf16.msra.mxu0 0
        %1155 = vmatpush.bf16.msra.mxu0 0
        %1156 = vmatpush.bf16.msra.mxu0 0
        %1157 = vmatpush.bf16.msra.mxu0 0
        %1158 = vmatpush.bf16.msra.mxu0 0
        %1159 = vmatpush.bf16.msra.mxu0 0
        %1160 = vmatpush.bf16.msra.mxu0 %v1113
        %1161 = vmatmul.bf16.gmra.mxu0 %v1104
        %v1162 = vpop.f32.mrf.mxu0
        %v1163 = vadd.f32 0.0, %v1162
        %v1164 = vpop.f32.mrf.mxu0
        %1165 = vdwg.mxu0
        %1166 = vmatpush.bf16.msra.mxu0 0
        %1167 = vmatpush.bf16.msra.mxu0 0
        %1168 = vmatpush.bf16.msra.mxu0 0
        %1169 = vmatpush.bf16.msra.mxu0 0
        %1170 = vmatpush.bf16.msra.mxu0 0
        %1171 = vmatpush.bf16.msra.mxu0 0
        %1172 = vmatpush.bf16.msra.mxu0 0
        %1173 = vmatpush.bf16.msra.mxu0 %v1116
        %1174 = vmatmul.bf16.gmra.mxu0 %v1104
        %v1175 = vpop.f32.mrf.mxu0
        %v1176 = vadd.f32 0.0, %v1175
        %v1177 = vpop.f32.mrf.mxu0
        %1178 = vdwg.mxu0
        %1179 = vmatpush.bf16.msra.mxu0 0
        %1180 = vmatpush.bf16.msra.mxu0 0
        %1181 = vmatpush.bf16.msra.mxu0 0
        %1182 = vmatpush.bf16.msra.mxu0 0
        %1183 = vmatpush.bf16.msra.mxu0 0
        %1184 = vmatpush.bf16.msra.mxu0 0
        %1185 = vmatpush.bf16.msra.mxu0 0
        %1186 = vmatpush.bf16.msra.mxu0 %v1119
        %1187 = vmatmul.bf16.gmra.mxu0 %v1104
        %v1188 = vpop.f32.mrf.mxu0
        %v1189 = vadd.f32 0.0, %v1188
        %v1190 = vpop.f32.mrf.mxu0
        %1191 = vdwg.mxu0
        %1192 = vmatpush.bf16.msra.mxu0 0
        %1193 = vmatpush.bf16.msra.mxu0 0
        %1194 = vmatpush.bf16.msra.mxu0 0
        %1195 = vmatpush.bf16.msra.mxu0 0
        %1196 = vmatpush.bf16.msra.mxu0 0
        %1197 = vmatpush.bf16.msra.mxu0 0
        %1198 = vmatpush.bf16.msra.mxu0 0
        %1199 = vmatpush.bf16.msra.mxu0 %v1122
        %1200 = vmatmul.bf16.gmra.mxu0 %v1104
        %v1201 = vpop.f32.mrf.mxu0
        %v1202 = vadd.f32 0.0, %v1201
        %v1203 = vpop.f32.mrf.mxu0
        %1204 = vdwg.mxu0
        %1205 = vmatpush.bf16.msra.mxu0 0
        %1206 = vmatpush.bf16.msra.mxu0 0
        %1207 = vmatpush.bf16.msra.mxu0 0
        %1208 = vmatpush.bf16.msra.mxu0 0
        %1209 = vmatpush.bf16.msra.mxu0 0
        %1210 = vmatpush.bf16.msra.mxu0 0
        %1211 = vmatpush.bf16.msra.mxu0 0
        %1212 = vmatpush.bf16.msra.mxu0 %v1125
        %1213 = vmatmul.bf16.gmra.mxu0 %v1104
        %v1214 = vpop.f32.mrf.mxu0
        %v1215 = vadd.f32 0.0, %v1214
        %v1216 = vpop.f32.mrf.mxu0
        %1217 = vdwg.mxu0
        %v1218 = vadd.f32 %v1070, %v1137
        %v1219 = vadd.f32 %v1071, %v1150
        %v1220 = vadd.f32 %v1072, %v1163
        %v1221 = vadd.f32 %v1073, %v1176
        %v1222 = vadd.f32 %v1074, %v1189
        %v1223 = vadd.f32 %v1075, %v1202
        %v1224 = vadd.f32 %v1076, %v1215
        %s1225 = scalar_lea.vmem %s1, 28
        %v1226 = vld [vmem:[%s1225] sm:$0xf]
        %1227 = vrot.lane.b32.xlu0 %v218, 107
        %v1228 = vpop.permute.xlu0 %1227
        %1229 = vrot.lane.b32.xlu0 %v219, 107
        %v1230 = vpop.permute.xlu0 %1229
        %1231 = vrot.lane.b32.xlu0 %v220, 107
        %v1232 = vpop.permute.xlu0 %1231
        %1233 = vrot.lane.b32.xlu0 %v221, 107
        %v1234 = vpop.permute.xlu0 %1233
        %1235 = vrot.lane.b32.xlu0 %v222, 107
        %v1236 = vpop.permute.xlu0 %1235
        %1237 = vrot.lane.b32.xlu0 %v223, 107
        %v1238 = vpop.permute.xlu0 %1237
        %1239 = vrot.lane.b32.xlu0 %v224, 107
        %v1240 = vpop.permute.xlu0 %1239
        %1241 = vrot.lane.b32.xlu0 %v225, 107
        %v1242 = vpop.permute.xlu0 %1241
        %vm1243 = vcmask 875520
        %v1244 = vsel %vm1243, %v1228, %v1230
        %v1245 = vsel %vm1243, %v1230, %v1232
        %v1246 = vsel %vm1243, %v1232, %v1234
        %v1247 = vsel %vm1243, %v1234, %v1236
        %v1248 = vsel %vm1243, %v1236, %v1238
        %v1249 = vsel %vm1243, %v1238, %v1240
        %v1250 = vsel %vm1243, %v1240, %v1242
        %v1252 = vsel %vm250, %v1226, 0
        %v1255 = vsel %vm254, %v1244, 0
        %v1258 = vsel %vm254, %v1245, 0
        %v1261 = vsel %vm254, %v1246, 0
        %v1264 = vsel %vm254, %v1247, 0
        %v1267 = vsel %vm254, %v1248, 0
        %v1270 = vsel %vm254, %v1249, 0
        %v1273 = vsel %vm254, %v1250, 0
        %1275 = vmatpush.bf16.msra.mxu0 0
        %1276 = vmatpush.bf16.msra.mxu0 0
        %1277 = vmatpush.bf16.msra.mxu0 0
        %1278 = vmatpush.bf16.msra.mxu0 0
        %1279 = vmatpush.bf16.msra.mxu0 0
        %1280 = vmatpush.bf16.msra.mxu0 0
        %1281 = vmatpush.bf16.msra.mxu0 0
        %1282 = vmatpush.bf16.msra.mxu0 %v1255
        %1283 = vmatmul.bf16.gmra.mxu0 %v1252
        %v1284 = vpop.f32.mrf.mxu0
        %v1285 = vadd.f32 0.0, %v1284
        %v1286 = vpop.f32.mrf.mxu0
        %1287 = vdwg.mxu0
        %1288 = vmatpush.bf16.msra.mxu0 0
        %1289 = vmatpush.bf16.msra.mxu0 0
        %1290 = vmatpush.bf16.msra.mxu0 0
        %1291 = vmatpush.bf16.msra.mxu0 0
        %1292 = vmatpush.bf16.msra.mxu0 0
        %1293 = vmatpush.bf16.msra.mxu0 0
        %1294 = vmatpush.bf16.msra.mxu0 0
        %1295 = vmatpush.bf16.msra.mxu0 %v1258
        %1296 = vmatmul.bf16.gmra.mxu0 %v1252
        %v1297 = vpop.f32.mrf.mxu0
        %v1298 = vadd.f32 0.0, %v1297
        %v1299 = vpop.f32.mrf.mxu0
        %1300 = vdwg.mxu0
        %1301 = vmatpush.bf16.msra.mxu0 0
        %1302 = vmatpush.bf16.msra.mxu0 0
        %1303 = vmatpush.bf16.msra.mxu0 0
        %1304 = vmatpush.bf16.msra.mxu0 0
        %1305 = vmatpush.bf16.msra.mxu0 0
        %1306 = vmatpush.bf16.msra.mxu0 0
        %1307 = vmatpush.bf16.msra.mxu0 0
        %1308 = vmatpush.bf16.msra.mxu0 %v1261
        %1309 = vmatmul.bf16.gmra.mxu0 %v1252
        %v1310 = vpop.f32.mrf.mxu0
        %v1311 = vadd.f32 0.0, %v1310
        %v1312 = vpop.f32.mrf.mxu0
        %1313 = vdwg.mxu0
        %1314 = vmatpush.bf16.msra.mxu0 0
        %1315 = vmatpush.bf16.msra.mxu0 0
        %1316 = vmatpush.bf16.msra.mxu0 0
        %1317 = vmatpush.bf16.msra.mxu0 0
        %1318 = vmatpush.bf16.msra.mxu0 0
        %1319 = vmatpush.bf16.msra.mxu0 0
        %1320 = vmatpush.bf16.msra.mxu0 0
        %1321 = vmatpush.bf16.msra.mxu0 %v1264
        %1322 = vmatmul.bf16.gmra.mxu0 %v1252
        %v1323 = vpop.f32.mrf.mxu0
        %v1324 = vadd.f32 0.0, %v1323
        %v1325 = vpop.f32.mrf.mxu0
        %1326 = vdwg.mxu0
        %1327 = vmatpush.bf16.msra.mxu0 0
        %1328 = vmatpush.bf16.msra.mxu0 0
        %1329 = vmatpush.bf16.msra.mxu0 0
        %1330 = vmatpush.bf16.msra.mxu0 0
        %1331 = vmatpush.bf16.msra.mxu0 0
        %1332 = vmatpush.bf16.msra.mxu0 0
        %1333 = vmatpush.bf16.msra.mxu0 0
        %1334 = vmatpush.bf16.msra.mxu0 %v1267
        %1335 = vmatmul.bf16.gmra.mxu0 %v1252
        %v1336 = vpop.f32.mrf.mxu0
        %v1337 = vadd.f32 0.0, %v1336
        %v1338 = vpop.f32.mrf.mxu0
        %1339 = vdwg.mxu0
        %1340 = vmatpush.bf16.msra.mxu0 0
        %1341 = vmatpush.bf16.msra.mxu0 0
        %1342 = vmatpush.bf16.msra.mxu0 0
        %1343 = vmatpush.bf16.msra.mxu0 0
        %1344 = vmatpush.bf16.msra.mxu0 0
        %1345 = vmatpush.bf16.msra.mxu0 0
        %1346 = vmatpush.bf16.msra.mxu0 0
        %1347 = vmatpush.bf16.msra.mxu0 %v1270
        %1348 = vmatmul.bf16.gmra.mxu0 %v1252
        %v1349 = vpop.f32.mrf.mxu0
        %v1350 = vadd.f32 0.0, %v1349
        %v1351 = vpop.f32.mrf.mxu0
        %1352 = vdwg.mxu0
        %1353 = vmatpush.bf16.msra.mxu0 0
        %1354 = vmatpush.bf16.msra.mxu0 0
        %1355 = vmatpush.bf16.msra.mxu0 0
        %1356 = vmatpush.bf16.msra.mxu0 0
        %1357 = vmatpush.bf16.msra.mxu0 0
        %1358 = vmatpush.bf16.msra.mxu0 0
        %1359 = vmatpush.bf16.msra.mxu0 0
        %1360 = vmatpush.bf16.msra.mxu0 %v1273
        %1361 = vmatmul.bf16.gmra.mxu0 %v1252
        %v1362 = vpop.f32.mrf.mxu0
        %v1363 = vadd.f32 0.0, %v1362
        %v1364 = vpop.f32.mrf.mxu0
        %1365 = vdwg.mxu0
        %v1366 = vadd.f32 %v1218, %v1285
        %v1367 = vadd.f32 %v1219, %v1298
        %v1368 = vadd.f32 %v1220, %v1311
        %v1369 = vadd.f32 %v1221, %v1324
        %v1370 = vadd.f32 %v1222, %v1337
        %v1371 = vadd.f32 %v1223, %v1350
        %v1372 = vadd.f32 %v1224, %v1363
        %s1373 = scalar_lea.vmem %s1, 32
        %v1374 = vld [vmem:[%s1373] sm:$0xf]
        %1375 = vrot.lane.b32.xlu0 %v218, 106
        %v1376 = vpop.permute.xlu0 %1375
        %1377 = vrot.lane.b32.xlu0 %v219, 106
        %v1378 = vpop.permute.xlu0 %1377
        %1379 = vrot.lane.b32.xlu0 %v220, 106
        %v1380 = vpop.permute.xlu0 %1379
        %1381 = vrot.lane.b32.xlu0 %v221, 106
        %v1382 = vpop.permute.xlu0 %1381
        %1383 = vrot.lane.b32.xlu0 %v222, 106
        %v1384 = vpop.permute.xlu0 %1383
        %1385 = vrot.lane.b32.xlu0 %v223, 106
        %v1386 = vpop.permute.xlu0 %1385
        %1387 = vrot.lane.b32.xlu0 %v224, 106
        %v1388 = vpop.permute.xlu0 %1387
        %1389 = vrot.lane.b32.xlu0 %v225, 106
        %v1390 = vpop.permute.xlu0 %1389
        %vm1391 = vcmask 867328
        %v1392 = vsel %vm1391, %v1376, %v1378
        %v1393 = vsel %vm1391, %v1378, %v1380
        %v1394 = vsel %vm1391, %v1380, %v1382
        %v1395 = vsel %vm1391, %v1382, %v1384
        %v1396 = vsel %vm1391, %v1384, %v1386
        %v1397 = vsel %vm1391, %v1386, %v1388
        %v1398 = vsel %vm1391, %v1388, %v1390
        %v1400 = vsel %vm250, %v1374, 0
        %v1403 = vsel %vm254, %v1392, 0
        %v1406 = vsel %vm254, %v1393, 0
        %v1409 = vsel %vm254, %v1394, 0
        %v1412 = vsel %vm254, %v1395, 0
        %v1415 = vsel %vm254, %v1396, 0
        %v1418 = vsel %vm254, %v1397, 0
        %v1421 = vsel %vm254, %v1398, 0
        %1423 = vmatpush.bf16.msra.mxu0 0
        %1424 = vmatpush.bf16.msra.mxu0 0
        %1425 = vmatpush.bf16.msra.mxu0 0
        %1426 = vmatpush.bf16.msra.mxu0 0
        %1427 = vmatpush.bf16.msra.mxu0 0
        %1428 = vmatpush.bf16.msra.mxu0 0
        %1429 = vmatpush.bf16.msra.mxu0 0
        %1430 = vmatpush.bf16.msra.mxu0 %v1403
        %1431 = vmatmul.bf16.gmra.mxu0 %v1400
        %v1432 = vpop.f32.mrf.mxu0
        %v1433 = vadd.f32 0.0, %v1432
        %v1434 = vpop.f32.mrf.mxu0
        %1435 = vdwg.mxu0
        %1436 = vmatpush.bf16.msra.mxu0 0
        %1437 = vmatpush.bf16.msra.mxu0 0
        %1438 = vmatpush.bf16.msra.mxu0 0
        %1439 = vmatpush.bf16.msra.mxu0 0
        %1440 = vmatpush.bf16.msra.mxu0 0
        %1441 = vmatpush.bf16.msra.mxu0 0
        %1442 = vmatpush.bf16.msra.mxu0 0
        %1443 = vmatpush.bf16.msra.mxu0 %v1406
        %1444 = vmatmul.bf16.gmra.mxu0 %v1400
        %v1445 = vpop.f32.mrf.mxu0
        %v1446 = vadd.f32 0.0, %v1445
        %v1447 = vpop.f32.mrf.mxu0
        %1448 = vdwg.mxu0
        %1449 = vmatpush.bf16.msra.mxu0 0
        %1450 = vmatpush.bf16.msra.mxu0 0
        %1451 = vmatpush.bf16.msra.mxu0 0
        %1452 = vmatpush.bf16.msra.mxu0 0
        %1453 = vmatpush.bf16.msra.mxu0 0
        %1454 = vmatpush.bf16.msra.mxu0 0
        %1455 = vmatpush.bf16.msra.mxu0 0
        %1456 = vmatpush.bf16.msra.mxu0 %v1409
        %1457 = vmatmul.bf16.gmra.mxu0 %v1400
        %v1458 = vpop.f32.mrf.mxu0
        %v1459 = vadd.f32 0.0, %v1458
        %v1460 = vpop.f32.mrf.mxu0
        %1461 = vdwg.mxu0
        %1462 = vmatpush.bf16.msra.mxu0 0
        %1463 = vmatpush.bf16.msra.mxu0 0
        %1464 = vmatpush.bf16.msra.mxu0 0
        %1465 = vmatpush.bf16.msra.mxu0 0
        %1466 = vmatpush.bf16.msra.mxu0 0
        %1467 = vmatpush.bf16.msra.mxu0 0
        %1468 = vmatpush.bf16.msra.mxu0 0
        %1469 = vmatpush.bf16.msra.mxu0 %v1412
        %1470 = vmatmul.bf16.gmra.mxu0 %v1400
        %v1471 = vpop.f32.mrf.mxu0
        %v1472 = vadd.f32 0.0, %v1471
        %v1473 = vpop.f32.mrf.mxu0
        %1474 = vdwg.mxu0
        %1475 = vmatpush.bf16.msra.mxu0 0
        %1476 = vmatpush.bf16.msra.mxu0 0
        %1477 = vmatpush.bf16.msra.mxu0 0
        %1478 = vmatpush.bf16.msra.mxu0 0
        %1479 = vmatpush.bf16.msra.mxu0 0
        %1480 = vmatpush.bf16.msra.mxu0 0
        %1481 = vmatpush.bf16.msra.mxu0 0
        %1482 = vmatpush.bf16.msra.mxu0 %v1415
        %1483 = vmatmul.bf16.gmra.mxu0 %v1400
        %v1484 = vpop.f32.mrf.mxu0
        %v1485 = vadd.f32 0.0, %v1484
        %v1486 = vpop.f32.mrf.mxu0
        %1487 = vdwg.mxu0
        %1488 = vmatpush.bf16.msra.mxu0 0
        %1489 = vmatpush.bf16.msra.mxu0 0
        %1490 = vmatpush.bf16.msra.mxu0 0
        %1491 = vmatpush.bf16.msra.mxu0 0
        %1492 = vmatpush.bf16.msra.mxu0 0
        %1493 = vmatpush.bf16.msra.mxu0 0
        %1494 = vmatpush.bf16.msra.mxu0 0
        %1495 = vmatpush.bf16.msra.mxu0 %v1418
        %1496 = vmatmul.bf16.gmra.mxu0 %v1400
        %v1497 = vpop.f32.mrf.mxu0
        %v1498 = vadd.f32 0.0, %v1497
        %v1499 = vpop.f32.mrf.mxu0
        %1500 = vdwg.mxu0
        %1501 = vmatpush.bf16.msra.mxu0 0
        %1502 = vmatpush.bf16.msra.mxu0 0
        %1503 = vmatpush.bf16.msra.mxu0 0
        %1504 = vmatpush.bf16.msra.mxu0 0
        %1505 = vmatpush.bf16.msra.mxu0 0
        %1506 = vmatpush.bf16.msra.mxu0 0
        %1507 = vmatpush.bf16.msra.mxu0 0
        %1508 = vmatpush.bf16.msra.mxu0 %v1421
        %1509 = vmatmul.bf16.gmra.mxu0 %v1400
        %v1510 = vpop.f32.mrf.mxu0
        %v1511 = vadd.f32 0.0, %v1510
        %v1512 = vpop.f32.mrf.mxu0
        %1513 = vdwg.mxu0
        %v1514 = vadd.f32 %v1366, %v1433
        %v1515 = vadd.f32 %v1367, %v1446
        %v1516 = vadd.f32 %v1368, %v1459
        %v1517 = vadd.f32 %v1369, %v1472
        %v1518 = vadd.f32 %v1370, %v1485
        %v1519 = vadd.f32 %v1371, %v1498
        %v1520 = vadd.f32 %v1372, %v1511
        %s1521 = scalar_lea.vmem %s1, 36
        %v1522 = vld [vmem:[%s1521] sm:$0xf]
        %1523 = vrot.lane.b32.xlu0 %v218, 28
        %v1524 = vpop.permute.xlu0 %1523
        %1525 = vrot.lane.b32.xlu0 %v219, 28
        %v1526 = vpop.permute.xlu0 %1525
        %1527 = vrot.lane.b32.xlu0 %v220, 28
        %v1528 = vpop.permute.xlu0 %1527
        %1529 = vrot.lane.b32.xlu0 %v221, 28
        %v1530 = vpop.permute.xlu0 %1529
        %1531 = vrot.lane.b32.xlu0 %v222, 28
        %v1532 = vpop.permute.xlu0 %1531
        %1533 = vrot.lane.b32.xlu0 %v223, 28
        %v1534 = vpop.permute.xlu0 %1533
        %1535 = vrot.lane.b32.xlu0 %v224, 28
        %v1536 = vpop.permute.xlu0 %1535
        %1537 = vrot.lane.b32.xlu0 %v225, 28
        %v1538 = vpop.permute.xlu0 %1537
        %vm1539 = vcmask 228352
        %v1540 = vsel %vm1539, %v1524, %v1526
        %v1541 = vsel %vm1539, %v1526, %v1528
        %v1542 = vsel %vm1539, %v1528, %v1530
        %v1543 = vsel %vm1539, %v1530, %v1532
        %v1544 = vsel %vm1539, %v1532, %v1534
        %v1545 = vsel %vm1539, %v1534, %v1536
        %v1546 = vsel %vm1539, %v1536, %v1538
        %v1548 = vsel %vm250, %v1522, 0
        %v1551 = vsel %vm254, %v1540, 0
        %v1554 = vsel %vm254, %v1541, 0
        %v1557 = vsel %vm254, %v1542, 0
        %v1560 = vsel %vm254, %v1543, 0
        %v1563 = vsel %vm254, %v1544, 0
        %v1566 = vsel %vm254, %v1545, 0
        %v1569 = vsel %vm254, %v1546, 0
        %1571 = vmatpush.bf16.msra.mxu0 0
        %1572 = vmatpush.bf16.msra.mxu0 0
        %1573 = vmatpush.bf16.msra.mxu0 0
        %1574 = vmatpush.bf16.msra.mxu0 0
        %1575 = vmatpush.bf16.msra.mxu0 0
        %1576 = vmatpush.bf16.msra.mxu0 0
        %1577 = vmatpush.bf16.msra.mxu0 0
        %1578 = vmatpush.bf16.msra.mxu0 %v1551
        %1579 = vmatmul.bf16.gmra.mxu0 %v1548
        %v1580 = vpop.f32.mrf.mxu0
        %v1581 = vadd.f32 0.0, %v1580
        %v1582 = vpop.f32.mrf.mxu0
        %1583 = vdwg.mxu0
        %1584 = vmatpush.bf16.msra.mxu0 0
        %1585 = vmatpush.bf16.msra.mxu0 0
        %1586 = vmatpush.bf16.msra.mxu0 0
        %1587 = vmatpush.bf16.msra.mxu0 0
        %1588 = vmatpush.bf16.msra.mxu0 0
        %1589 = vmatpush.bf16.msra.mxu0 0
        %1590 = vmatpush.bf16.msra.mxu0 0
        %1591 = vmatpush.bf16.msra.mxu0 %v1554
        %1592 = vmatmul.bf16.gmra.mxu0 %v1548
        %v1593 = vpop.f32.mrf.mxu0
        %v1594 = vadd.f32 0.0, %v1593
        %v1595 = vpop.f32.mrf.mxu0
        %1596 = vdwg.mxu0
        %1597 = vmatpush.bf16.msra.mxu0 0
        %1598 = vmatpush.bf16.msra.mxu0 0
        %1599 = vmatpush.bf16.msra.mxu0 0
        %1600 = vmatpush.bf16.msra.mxu0 0
        %1601 = vmatpush.bf16.msra.mxu0 0
        %1602 = vmatpush.bf16.msra.mxu0 0
        %1603 = vmatpush.bf16.msra.mxu0 0
        %1604 = vmatpush.bf16.msra.mxu0 %v1557
        %1605 = vmatmul.bf16.gmra.mxu0 %v1548
        %v1606 = vpop.f32.mrf.mxu0
        %v1607 = vadd.f32 0.0, %v1606
        %v1608 = vpop.f32.mrf.mxu0
        %1609 = vdwg.mxu0
        %1610 = vmatpush.bf16.msra.mxu0 0
        %1611 = vmatpush.bf16.msra.mxu0 0
        %1612 = vmatpush.bf16.msra.mxu0 0
        %1613 = vmatpush.bf16.msra.mxu0 0
        %1614 = vmatpush.bf16.msra.mxu0 0
        %1615 = vmatpush.bf16.msra.mxu0 0
        %1616 = vmatpush.bf16.msra.mxu0 0
        %1617 = vmatpush.bf16.msra.mxu0 %v1560
        %1618 = vmatmul.bf16.gmra.mxu0 %v1548
        %v1619 = vpop.f32.mrf.mxu0
        %v1620 = vadd.f32 0.0, %v1619
        %v1621 = vpop.f32.mrf.mxu0
        %1622 = vdwg.mxu0
        %1623 = vmatpush.bf16.msra.mxu0 0
        %1624 = vmatpush.bf16.msra.mxu0 0
        %1625 = vmatpush.bf16.msra.mxu0 0
        %1626 = vmatpush.bf16.msra.mxu0 0
        %1627 = vmatpush.bf16.msra.mxu0 0
        %1628 = vmatpush.bf16.msra.mxu0 0
        %1629 = vmatpush.bf16.msra.mxu0 0
        %1630 = vmatpush.bf16.msra.mxu0 %v1563
        %1631 = vmatmul.bf16.gmra.mxu0 %v1548
        %v1632 = vpop.f32.mrf.mxu0
        %v1633 = vadd.f32 0.0, %v1632
        %v1634 = vpop.f32.mrf.mxu0
        %1635 = vdwg.mxu0
        %1636 = vmatpush.bf16.msra.mxu0 0
        %1637 = vmatpush.bf16.msra.mxu0 0
        %1638 = vmatpush.bf16.msra.mxu0 0
        %1639 = vmatpush.bf16.msra.mxu0 0
        %1640 = vmatpush.bf16.msra.mxu0 0
        %1641 = vmatpush.bf16.msra.mxu0 0
        %1642 = vmatpush.bf16.msra.mxu0 0
        %1643 = vmatpush.bf16.msra.mxu0 %v1566
        %1644 = vmatmul.bf16.gmra.mxu0 %v1548
        %v1645 = vpop.f32.mrf.mxu0
        %v1646 = vadd.f32 0.0, %v1645
        %v1647 = vpop.f32.mrf.mxu0
        %1648 = vdwg.mxu0
        %1649 = vmatpush.bf16.msra.mxu0 0
        %1650 = vmatpush.bf16.msra.mxu0 0
        %1651 = vmatpush.bf16.msra.mxu0 0
        %1652 = vmatpush.bf16.msra.mxu0 0
        %1653 = vmatpush.bf16.msra.mxu0 0
        %1654 = vmatpush.bf16.msra.mxu0 0
        %1655 = vmatpush.bf16.msra.mxu0 0
        %1656 = vmatpush.bf16.msra.mxu0 %v1569
        %1657 = vmatmul.bf16.gmra.mxu0 %v1548
        %v1658 = vpop.f32.mrf.mxu0
        %v1659 = vadd.f32 0.0, %v1658
        %v1660 = vpop.f32.mrf.mxu0
        %1661 = vdwg.mxu0
        %v1662 = vadd.f32 %v1514, %v1581
        %v1663 = vadd.f32 %v1515, %v1594
        %v1664 = vadd.f32 %v1516, %v1607
        %v1665 = vadd.f32 %v1517, %v1620
        %v1666 = vadd.f32 %v1518, %v1633
        %v1667 = vadd.f32 %v1519, %v1646
        %v1668 = vadd.f32 %v1520, %v1659
        %s1669 = scalar_lea.vmem %s1, 40
        %v1670 = vld [vmem:[%s1669] sm:$0xf]
        %1671 = vrot.lane.b32.xlu0 %v218, 27
        %v1672 = vpop.permute.xlu0 %1671
        %1673 = vrot.lane.b32.xlu0 %v219, 27
        %v1674 = vpop.permute.xlu0 %1673
        %1675 = vrot.lane.b32.xlu0 %v220, 27
        %v1676 = vpop.permute.xlu0 %1675
        %1677 = vrot.lane.b32.xlu0 %v221, 27
        %v1678 = vpop.permute.xlu0 %1677
        %1679 = vrot.lane.b32.xlu0 %v222, 27
        %v1680 = vpop.permute.xlu0 %1679
        %1681 = vrot.lane.b32.xlu0 %v223, 27
        %v1682 = vpop.permute.xlu0 %1681
        %1683 = vrot.lane.b32.xlu0 %v224, 27
        %v1684 = vpop.permute.xlu0 %1683
        %1685 = vrot.lane.b32.xlu0 %v225, 27
        %v1686 = vpop.permute.xlu0 %1685
        %vm1687 = vcmask 220160
        %v1688 = vsel %vm1687, %v1672, %v1674
        %v1689 = vsel %vm1687, %v1674, %v1676
        %v1690 = vsel %vm1687, %v1676, %v1678
        %v1691 = vsel %vm1687, %v1678, %v1680
        %v1692 = vsel %vm1687, %v1680, %v1682
        %v1693 = vsel %vm1687, %v1682, %v1684
        %v1694 = vsel %vm1687, %v1684, %v1686
        %v1696 = vsel %vm250, %v1670, 0
        %v1699 = vsel %vm254, %v1688, 0
        %v1702 = vsel %vm254, %v1689, 0
        %v1705 = vsel %vm254, %v1690, 0
        %v1708 = vsel %vm254, %v1691, 0
        %v1711 = vsel %vm254, %v1692, 0
        %v1714 = vsel %vm254, %v1693, 0
        %v1717 = vsel %vm254, %v1694, 0
        %1719 = vmatpush.bf16.msra.mxu0 0
        %1720 = vmatpush.bf16.msra.mxu0 0
        %1721 = vmatpush.bf16.msra.mxu0 0
        %1722 = vmatpush.bf16.msra.mxu0 0
        %1723 = vmatpush.bf16.msra.mxu0 0
        %1724 = vmatpush.bf16.msra.mxu0 0
        %1725 = vmatpush.bf16.msra.mxu0 0
        %1726 = vmatpush.bf16.msra.mxu0 %v1699
        %1727 = vmatmul.bf16.gmra.mxu0 %v1696
        %v1728 = vpop.f32.mrf.mxu0
        %v1729 = vadd.f32 0.0, %v1728
        %v1730 = vpop.f32.mrf.mxu0
        %1731 = vdwg.mxu0
        %1732 = vmatpush.bf16.msra.mxu0 0
        %1733 = vmatpush.bf16.msra.mxu0 0
        %1734 = vmatpush.bf16.msra.mxu0 0
        %1735 = vmatpush.bf16.msra.mxu0 0
        %1736 = vmatpush.bf16.msra.mxu0 0
        %1737 = vmatpush.bf16.msra.mxu0 0
        %1738 = vmatpush.bf16.msra.mxu0 0
        %1739 = vmatpush.bf16.msra.mxu0 %v1702
        %1740 = vmatmul.bf16.gmra.mxu0 %v1696
        %v1741 = vpop.f32.mrf.mxu0
        %v1742 = vadd.f32 0.0, %v1741
        %v1743 = vpop.f32.mrf.mxu0
        %1744 = vdwg.mxu0
        %1745 = vmatpush.bf16.msra.mxu0 0
        %1746 = vmatpush.bf16.msra.mxu0 0
        %1747 = vmatpush.bf16.msra.mxu0 0
        %1748 = vmatpush.bf16.msra.mxu0 0
        %1749 = vmatpush.bf16.msra.mxu0 0
        %1750 = vmatpush.bf16.msra.mxu0 0
        %1751 = vmatpush.bf16.msra.mxu0 0
        %1752 = vmatpush.bf16.msra.mxu0 %v1705
        %1753 = vmatmul.bf16.gmra.mxu0 %v1696
        %v1754 = vpop.f32.mrf.mxu0
        %v1755 = vadd.f32 0.0, %v1754
        %v1756 = vpop.f32.mrf.mxu0
        %1757 = vdwg.mxu0
        %1758 = vmatpush.bf16.msra.mxu0 0
        %1759 = vmatpush.bf16.msra.mxu0 0
        %1760 = vmatpush.bf16.msra.mxu0 0
        %1761 = vmatpush.bf16.msra.mxu0 0
        %1762 = vmatpush.bf16.msra.mxu0 0
        %1763 = vmatpush.bf16.msra.mxu0 0
        %1764 = vmatpush.bf16.msra.mxu0 0
        %1765 = vmatpush.bf16.msra.mxu0 %v1708
        %1766 = vmatmul.bf16.gmra.mxu0 %v1696
        %v1767 = vpop.f32.mrf.mxu0
        %v1768 = vadd.f32 0.0, %v1767
        %v1769 = vpop.f32.mrf.mxu0
        %1770 = vdwg.mxu0
        %1771 = vmatpush.bf16.msra.mxu0 0
        %1772 = vmatpush.bf16.msra.mxu0 0
        %1773 = vmatpush.bf16.msra.mxu0 0
        %1774 = vmatpush.bf16.msra.mxu0 0
        %1775 = vmatpush.bf16.msra.mxu0 0
        %1776 = vmatpush.bf16.msra.mxu0 0
        %1777 = vmatpush.bf16.msra.mxu0 0
        %1778 = vmatpush.bf16.msra.mxu0 %v1711
        %1779 = vmatmul.bf16.gmra.mxu0 %v1696
        %v1780 = vpop.f32.mrf.mxu0
        %v1781 = vadd.f32 0.0, %v1780
        %v1782 = vpop.f32.mrf.mxu0
        %1783 = vdwg.mxu0
        %1784 = vmatpush.bf16.msra.mxu0 0
        %1785 = vmatpush.bf16.msra.mxu0 0
        %1786 = vmatpush.bf16.msra.mxu0 0
        %1787 = vmatpush.bf16.msra.mxu0 0
        %1788 = vmatpush.bf16.msra.mxu0 0
        %1789 = vmatpush.bf16.msra.mxu0 0
        %1790 = vmatpush.bf16.msra.mxu0 0
        %1791 = vmatpush.bf16.msra.mxu0 %v1714
        %1792 = vmatmul.bf16.gmra.mxu0 %v1696
        %v1793 = vpop.f32.mrf.mxu0
        %v1794 = vadd.f32 0.0, %v1793
        %v1795 = vpop.f32.mrf.mxu0
        %1796 = vdwg.mxu0
        %1797 = vmatpush.bf16.msra.mxu0 0
        %1798 = vmatpush.bf16.msra.mxu0 0
        %1799 = vmatpush.bf16.msra.mxu0 0
        %1800 = vmatpush.bf16.msra.mxu0 0
        %1801 = vmatpush.bf16.msra.mxu0 0
        %1802 = vmatpush.bf16.msra.mxu0 0
        %1803 = vmatpush.bf16.msra.mxu0 0
        %1804 = vmatpush.bf16.msra.mxu0 %v1717
        %1805 = vmatmul.bf16.gmra.mxu0 %v1696
        %v1806 = vpop.f32.mrf.mxu0
        %v1807 = vadd.f32 0.0, %v1806
        %v1808 = vpop.f32.mrf.mxu0
        %1809 = vdwg.mxu0
        %v1810 = vadd.f32 %v1662, %v1729
        %v1811 = vadd.f32 %v1663, %v1742
        %v1812 = vadd.f32 %v1664, %v1755
        %v1813 = vadd.f32 %v1665, %v1768
        %v1814 = vadd.f32 %v1666, %v1781
        %v1815 = vadd.f32 %v1667, %v1794
        %v1816 = vadd.f32 %v1668, %v1807
        %s1817 = scalar_lea.vmem %s1, 44
        %v1818 = vld [vmem:[%s1817] sm:$0xf]
        %1819 = vrot.lane.b32.xlu0 %v218, 26
        %v1820 = vpop.permute.xlu0 %1819
        %1821 = vrot.lane.b32.xlu0 %v219, 26
        %v1822 = vpop.permute.xlu0 %1821
        %1823 = vrot.lane.b32.xlu0 %v220, 26
        %v1824 = vpop.permute.xlu0 %1823
        %1825 = vrot.lane.b32.xlu0 %v221, 26
        %v1826 = vpop.permute.xlu0 %1825
        %1827 = vrot.lane.b32.xlu0 %v222, 26
        %v1828 = vpop.permute.xlu0 %1827
        %1829 = vrot.lane.b32.xlu0 %v223, 26
        %v1830 = vpop.permute.xlu0 %1829
        %1831 = vrot.lane.b32.xlu0 %v224, 26
        %v1832 = vpop.permute.xlu0 %1831
        %1833 = vrot.lane.b32.xlu0 %v225, 26
        %v1834 = vpop.permute.xlu0 %1833
        %vm1835 = vcmask 211968
        %v1836 = vsel %vm1835, %v1820, %v1822
        %v1837 = vsel %vm1835, %v1822, %v1824
        %v1838 = vsel %vm1835, %v1824, %v1826
        %v1839 = vsel %vm1835, %v1826, %v1828
        %v1840 = vsel %vm1835, %v1828, %v1830
        %v1841 = vsel %vm1835, %v1830, %v1832
        %v1842 = vsel %vm1835, %v1832, %v1834
        %v1844 = vsel %vm250, %v1818, 0
        %v1847 = vsel %vm254, %v1836, 0
        %v1850 = vsel %vm254, %v1837, 0
        %v1853 = vsel %vm254, %v1838, 0
        %v1856 = vsel %vm254, %v1839, 0
        %v1859 = vsel %vm254, %v1840, 0
        %v1862 = vsel %vm254, %v1841, 0
        %v1865 = vsel %vm254, %v1842, 0
        %1867 = vmatpush.bf16.msra.mxu0 0
        %1868 = vmatpush.bf16.msra.mxu0 0
        %1869 = vmatpush.bf16.msra.mxu0 0
        %1870 = vmatpush.bf16.msra.mxu0 0
        %1871 = vmatpush.bf16.msra.mxu0 0
        %1872 = vmatpush.bf16.msra.mxu0 0
        %1873 = vmatpush.bf16.msra.mxu0 0
        %1874 = vmatpush.bf16.msra.mxu0 %v1847
        %1875 = vmatmul.bf16.gmra.mxu0 %v1844
        %v1876 = vpop.f32.mrf.mxu0
        %v1877 = vadd.f32 0.0, %v1876
        %v1878 = vpop.f32.mrf.mxu0
        %1879 = vdwg.mxu0
        %1880 = vmatpush.bf16.msra.mxu0 0
        %1881 = vmatpush.bf16.msra.mxu0 0
        %1882 = vmatpush.bf16.msra.mxu0 0
        %1883 = vmatpush.bf16.msra.mxu0 0
        %1884 = vmatpush.bf16.msra.mxu0 0
        %1885 = vmatpush.bf16.msra.mxu0 0
        %1886 = vmatpush.bf16.msra.mxu0 0
        %1887 = vmatpush.bf16.msra.mxu0 %v1850
        %1888 = vmatmul.bf16.gmra.mxu0 %v1844
        %v1889 = vpop.f32.mrf.mxu0
        %v1890 = vadd.f32 0.0, %v1889
        %v1891 = vpop.f32.mrf.mxu0
        %1892 = vdwg.mxu0
        %1893 = vmatpush.bf16.msra.mxu0 0
        %1894 = vmatpush.bf16.msra.mxu0 0
        %1895 = vmatpush.bf16.msra.mxu0 0
        %1896 = vmatpush.bf16.msra.mxu0 0
        %1897 = vmatpush.bf16.msra.mxu0 0
        %1898 = vmatpush.bf16.msra.mxu0 0
        %1899 = vmatpush.bf16.msra.mxu0 0
        %1900 = vmatpush.bf16.msra.mxu0 %v1853
        %1901 = vmatmul.bf16.gmra.mxu0 %v1844
        %v1902 = vpop.f32.mrf.mxu0
        %v1903 = vadd.f32 0.0, %v1902
        %v1904 = vpop.f32.mrf.mxu0
        %1905 = vdwg.mxu0
        %1906 = vmatpush.bf16.msra.mxu0 0
        %1907 = vmatpush.bf16.msra.mxu0 0
        %1908 = vmatpush.bf16.msra.mxu0 0
        %1909 = vmatpush.bf16.msra.mxu0 0
        %1910 = vmatpush.bf16.msra.mxu0 0
        %1911 = vmatpush.bf16.msra.mxu0 0
        %1912 = vmatpush.bf16.msra.mxu0 0
        %1913 = vmatpush.bf16.msra.mxu0 %v1856
        %1914 = vmatmul.bf16.gmra.mxu0 %v1844
        %v1915 = vpop.f32.mrf.mxu0
        %v1916 = vadd.f32 0.0, %v1915
        %v1917 = vpop.f32.mrf.mxu0
        %1918 = vdwg.mxu0
        %1919 = vmatpush.bf16.msra.mxu0 0
        %1920 = vmatpush.bf16.msra.mxu0 0
        %1921 = vmatpush.bf16.msra.mxu0 0
        %1922 = vmatpush.bf16.msra.mxu0 0
        %1923 = vmatpush.bf16.msra.mxu0 0
        %1924 = vmatpush.bf16.msra.mxu0 0
        %1925 = vmatpush.bf16.msra.mxu0 0
        %1926 = vmatpush.bf16.msra.mxu0 %v1859
        %1927 = vmatmul.bf16.gmra.mxu0 %v1844
        %v1928 = vpop.f32.mrf.mxu0
        %v1929 = vadd.f32 0.0, %v1928
        %v1930 = vpop.f32.mrf.mxu0
        %1931 = vdwg.mxu0
        %1932 = vmatpush.bf16.msra.mxu0 0
        %1933 = vmatpush.bf16.msra.mxu0 0
        %1934 = vmatpush.bf16.msra.mxu0 0
        %1935 = vmatpush.bf16.msra.mxu0 0
        %1936 = vmatpush.bf16.msra.mxu0 0
        %1937 = vmatpush.bf16.msra.mxu0 0
        %1938 = vmatpush.bf16.msra.mxu0 0
        %1939 = vmatpush.bf16.msra.mxu0 %v1862
        %1940 = vmatmul.bf16.gmra.mxu0 %v1844
        %v1941 = vpop.f32.mrf.mxu0
        %v1942 = vadd.f32 0.0, %v1941
        %v1943 = vpop.f32.mrf.mxu0
        %1944 = vdwg.mxu0
        %1945 = vmatpush.bf16.msra.mxu0 0
        %1946 = vmatpush.bf16.msra.mxu0 0
        %1947 = vmatpush.bf16.msra.mxu0 0
        %1948 = vmatpush.bf16.msra.mxu0 0
        %1949 = vmatpush.bf16.msra.mxu0 0
        %1950 = vmatpush.bf16.msra.mxu0 0
        %1951 = vmatpush.bf16.msra.mxu0 0
        %1952 = vmatpush.bf16.msra.mxu0 %v1865
        %1953 = vmatmul.bf16.gmra.mxu0 %v1844
        %v1954 = vpop.f32.mrf.mxu0
        %v1955 = vadd.f32 0.0, %v1954
        %v1956 = vpop.f32.mrf.mxu0
        %1957 = vdwg.mxu0
        %v1958 = vadd.f32 %v1810, %v1877
        %v1959 = vadd.f32 %v1811, %v1890
        %v1960 = vadd.f32 %v1812, %v1903
        %v1961 = vadd.f32 %v1813, %v1916
        %v1962 = vadd.f32 %v1814, %v1929
        %v1963 = vadd.f32 %v1815, %v1942
        %v1964 = vadd.f32 %v1816, %v1955
        %s1965 = scalar_lea.vmem %s1, 48
        %v1966 = vld [vmem:[%s1965] sm:$0xf]
        %1967 = vrot.lane.b32.xlu0 %v218, 18
        %v1968 = vpop.permute.xlu0 %1967
        %1969 = vrot.lane.b32.xlu0 %v219, 18
        %v1970 = vpop.permute.xlu0 %1969
        %1971 = vrot.lane.b32.xlu0 %v220, 18
        %v1972 = vpop.permute.xlu0 %1971
        %1973 = vrot.lane.b32.xlu0 %v221, 18
        %v1974 = vpop.permute.xlu0 %1973
        %1975 = vrot.lane.b32.xlu0 %v222, 18
        %v1976 = vpop.permute.xlu0 %1975
        %1977 = vrot.lane.b32.xlu0 %v223, 18
        %v1978 = vpop.permute.xlu0 %1977
        %1979 = vrot.lane.b32.xlu0 %v224, 18
        %v1980 = vpop.permute.xlu0 %1979
        %1981 = vrot.lane.b32.xlu0 %v225, 18
        %v1982 = vpop.permute.xlu0 %1981
        %vm1983 = vcmask 146432
        %v1984 = vsel %vm1983, %v1968, %v1970
        %v1985 = vsel %vm1983, %v1970, %v1972
        %v1986 = vsel %vm1983, %v1972, %v1974
        %v1987 = vsel %vm1983, %v1974, %v1976
        %v1988 = vsel %vm1983, %v1976, %v1978
        %v1989 = vsel %vm1983, %v1978, %v1980
        %v1990 = vsel %vm1983, %v1980, %v1982
        %v1992 = vsel %vm250, %v1966, 0
        %v1995 = vsel %vm254, %v1984, 0
        %v1998 = vsel %vm254, %v1985, 0
        %v2001 = vsel %vm254, %v1986, 0
        %v2004 = vsel %vm254, %v1987, 0
        %v2007 = vsel %vm254, %v1988, 0
        %v2010 = vsel %vm254, %v1989, 0
        %v2013 = vsel %vm254, %v1990, 0
        %2015 = vmatpush.bf16.msra.mxu0 0
        %2016 = vmatpush.bf16.msra.mxu0 0
        %2017 = vmatpush.bf16.msra.mxu0 0
        %2018 = vmatpush.bf16.msra.mxu0 0
        %2019 = vmatpush.bf16.msra.mxu0 0
        %2020 = vmatpush.bf16.msra.mxu0 0
        %2021 = vmatpush.bf16.msra.mxu0 0
        %2022 = vmatpush.bf16.msra.mxu0 %v1995
        %2023 = vmatmul.bf16.gmra.mxu0 %v1992
        %v2024 = vpop.f32.mrf.mxu0
        %v2025 = vadd.f32 0.0, %v2024
        %v2026 = vpop.f32.mrf.mxu0
        %2027 = vdwg.mxu0
        %2028 = vmatpush.bf16.msra.mxu0 0
        %2029 = vmatpush.bf16.msra.mxu0 0
        %2030 = vmatpush.bf16.msra.mxu0 0
        %2031 = vmatpush.bf16.msra.mxu0 0
        %2032 = vmatpush.bf16.msra.mxu0 0
        %2033 = vmatpush.bf16.msra.mxu0 0
        %2034 = vmatpush.bf16.msra.mxu0 0
        %2035 = vmatpush.bf16.msra.mxu0 %v1998
        %2036 = vmatmul.bf16.gmra.mxu0 %v1992
        %v2037 = vpop.f32.mrf.mxu0
        %v2038 = vadd.f32 0.0, %v2037
        %v2039 = vpop.f32.mrf.mxu0
        %2040 = vdwg.mxu0
        %2041 = vmatpush.bf16.msra.mxu0 0
        %2042 = vmatpush.bf16.msra.mxu0 0
        %2043 = vmatpush.bf16.msra.mxu0 0
        %2044 = vmatpush.bf16.msra.mxu0 0
        %2045 = vmatpush.bf16.msra.mxu0 0
        %2046 = vmatpush.bf16.msra.mxu0 0
        %2047 = vmatpush.bf16.msra.mxu0 0
        %2048 = vmatpush.bf16.msra.mxu0 %v2001
        %2049 = vmatmul.bf16.gmra.mxu0 %v1992
        %v2050 = vpop.f32.mrf.mxu0
        %v2051 = vadd.f32 0.0, %v2050
        %v2052 = vpop.f32.mrf.mxu0
        %2053 = vdwg.mxu0
        %2054 = vmatpush.bf16.msra.mxu0 0
        %2055 = vmatpush.bf16.msra.mxu0 0
        %2056 = vmatpush.bf16.msra.mxu0 0
        %2057 = vmatpush.bf16.msra.mxu0 0
        %2058 = vmatpush.bf16.msra.mxu0 0
        %2059 = vmatpush.bf16.msra.mxu0 0
        %2060 = vmatpush.bf16.msra.mxu0 0
        %2061 = vmatpush.bf16.msra.mxu0 %v2004
        %2062 = vmatmul.bf16.gmra.mxu0 %v1992
        %v2063 = vpop.f32.mrf.mxu0
        %v2064 = vadd.f32 0.0, %v2063
        %v2065 = vpop.f32.mrf.mxu0
        %2066 = vdwg.mxu0
        %2067 = vmatpush.bf16.msra.mxu0 0
        %2068 = vmatpush.bf16.msra.mxu0 0
        %2069 = vmatpush.bf16.msra.mxu0 0
        %2070 = vmatpush.bf16.msra.mxu0 0
        %2071 = vmatpush.bf16.msra.mxu0 0
        %2072 = vmatpush.bf16.msra.mxu0 0
        %2073 = vmatpush.bf16.msra.mxu0 0
        %2074 = vmatpush.bf16.msra.mxu0 %v2007
        %2075 = vmatmul.bf16.gmra.mxu0 %v1992
        %v2076 = vpop.f32.mrf.mxu0
        %v2077 = vadd.f32 0.0, %v2076
        %v2078 = vpop.f32.mrf.mxu0
        %2079 = vdwg.mxu0
        %2080 = vmatpush.bf16.msra.mxu0 0
        %2081 = vmatpush.bf16.msra.mxu0 0
        %2082 = vmatpush.bf16.msra.mxu0 0
        %2083 = vmatpush.bf16.msra.mxu0 0
        %2084 = vmatpush.bf16.msra.mxu0 0
        %2085 = vmatpush.bf16.msra.mxu0 0
        %2086 = vmatpush.bf16.msra.mxu0 0
        %2087 = vmatpush.bf16.msra.mxu0 %v2010
        %2088 = vmatmul.bf16.gmra.mxu0 %v1992
        %v2089 = vpop.f32.mrf.mxu0
        %v2090 = vadd.f32 0.0, %v2089
        %v2091 = vpop.f32.mrf.mxu0
        %2092 = vdwg.mxu0
        %2093 = vmatpush.bf16.msra.mxu0 0
        %2094 = vmatpush.bf16.msra.mxu0 0
        %2095 = vmatpush.bf16.msra.mxu0 0
        %2096 = vmatpush.bf16.msra.mxu0 0
        %2097 = vmatpush.bf16.msra.mxu0 0
        %2098 = vmatpush.bf16.msra.mxu0 0
        %2099 = vmatpush.bf16.msra.mxu0 0
        %2100 = vmatpush.bf16.msra.mxu0 %v2013
        %2101 = vmatmul.bf16.gmra.mxu0 %v1992
        %v2102 = vpop.f32.mrf.mxu0
        %v2103 = vadd.f32 0.0, %v2102
        %v2104 = vpop.f32.mrf.mxu0
        %2105 = vdwg.mxu0
        %v2106 = vadd.f32 %v1958, %v2025
        %v2107 = vadd.f32 %v1959, %v2038
        %v2108 = vadd.f32 %v1960, %v2051
        %v2109 = vadd.f32 %v1961, %v2064
        %v2110 = vadd.f32 %v1962, %v2077
        %v2111 = vadd.f32 %v1963, %v2090
        %v2112 = vadd.f32 %v1964, %v2103
        %s2113 = scalar_lea.vmem %s1, 52
        %v2114 = vld [vmem:[%s2113] sm:$0xf]
        %2115 = vrot.lane.b32.xlu0 %v218, 17
        %v2116 = vpop.permute.xlu0 %2115
        %2117 = vrot.lane.b32.xlu0 %v219, 17
        %v2118 = vpop.permute.xlu0 %2117
        %2119 = vrot.lane.b32.xlu0 %v220, 17
        %v2120 = vpop.permute.xlu0 %2119
        %2121 = vrot.lane.b32.xlu0 %v221, 17
        %v2122 = vpop.permute.xlu0 %2121
        %2123 = vrot.lane.b32.xlu0 %v222, 17
        %v2124 = vpop.permute.xlu0 %2123
        %2125 = vrot.lane.b32.xlu0 %v223, 17
        %v2126 = vpop.permute.xlu0 %2125
        %2127 = vrot.lane.b32.xlu0 %v224, 17
        %v2128 = vpop.permute.xlu0 %2127
        %2129 = vrot.lane.b32.xlu0 %v225, 17
        %v2130 = vpop.permute.xlu0 %2129
        %vm2131 = vcmask 138240
        %v2132 = vsel %vm2131, %v2116, %v2118
        %v2133 = vsel %vm2131, %v2118, %v2120
        %v2134 = vsel %vm2131, %v2120, %v2122
        %v2135 = vsel %vm2131, %v2122, %v2124
        %v2136 = vsel %vm2131, %v2124, %v2126
        %v2137 = vsel %vm2131, %v2126, %v2128
        %v2138 = vsel %vm2131, %v2128, %v2130
        %v2140 = vsel %vm250, %v2114, 0
        %v2143 = vsel %vm254, %v2132, 0
        %v2146 = vsel %vm254, %v2133, 0
        %v2149 = vsel %vm254, %v2134, 0
        %v2152 = vsel %vm254, %v2135, 0
        %v2155 = vsel %vm254, %v2136, 0
        %v2158 = vsel %vm254, %v2137, 0
        %v2161 = vsel %vm254, %v2138, 0
        %2163 = vmatpush.bf16.msra.mxu0 0
        %2164 = vmatpush.bf16.msra.mxu0 0
        %2165 = vmatpush.bf16.msra.mxu0 0
        %2166 = vmatpush.bf16.msra.mxu0 0
        %2167 = vmatpush.bf16.msra.mxu0 0
        %2168 = vmatpush.bf16.msra.mxu0 0
        %2169 = vmatpush.bf16.msra.mxu0 0
        %2170 = vmatpush.bf16.msra.mxu0 %v2143
        %2171 = vmatmul.bf16.gmra.mxu0 %v2140
        %v2172 = vpop.f32.mrf.mxu0
        %v2173 = vadd.f32 0.0, %v2172
        %v2174 = vpop.f32.mrf.mxu0
        %2175 = vdwg.mxu0
        %2176 = vmatpush.bf16.msra.mxu0 0
        %2177 = vmatpush.bf16.msra.mxu0 0
        %2178 = vmatpush.bf16.msra.mxu0 0
        %2179 = vmatpush.bf16.msra.mxu0 0
        %2180 = vmatpush.bf16.msra.mxu0 0
        %2181 = vmatpush.bf16.msra.mxu0 0
        %2182 = vmatpush.bf16.msra.mxu0 0
        %2183 = vmatpush.bf16.msra.mxu0 %v2146
        %2184 = vmatmul.bf16.gmra.mxu0 %v2140
        %v2185 = vpop.f32.mrf.mxu0
        %v2186 = vadd.f32 0.0, %v2185
        %v2187 = vpop.f32.mrf.mxu0
        %2188 = vdwg.mxu0
        %2189 = vmatpush.bf16.msra.mxu0 0
        %2190 = vmatpush.bf16.msra.mxu0 0
        %2191 = vmatpush.bf16.msra.mxu0 0
        %2192 = vmatpush.bf16.msra.mxu0 0
        %2193 = vmatpush.bf16.msra.mxu0 0
        %2194 = vmatpush.bf16.msra.mxu0 0
        %2195 = vmatpush.bf16.msra.mxu0 0
        %2196 = vmatpush.bf16.msra.mxu0 %v2149
        %2197 = vmatmul.bf16.gmra.mxu0 %v2140
        %v2198 = vpop.f32.mrf.mxu0
        %v2199 = vadd.f32 0.0, %v2198
        %v2200 = vpop.f32.mrf.mxu0
        %2201 = vdwg.mxu0
        %2202 = vmatpush.bf16.msra.mxu0 0
        %2203 = vmatpush.bf16.msra.mxu0 0
        %2204 = vmatpush.bf16.msra.mxu0 0
        %2205 = vmatpush.bf16.msra.mxu0 0
        %2206 = vmatpush.bf16.msra.mxu0 0
        %2207 = vmatpush.bf16.msra.mxu0 0
        %2208 = vmatpush.bf16.msra.mxu0 0
        %2209 = vmatpush.bf16.msra.mxu0 %v2152
        %2210 = vmatmul.bf16.gmra.mxu0 %v2140
        %v2211 = vpop.f32.mrf.mxu0
        %v2212 = vadd.f32 0.0, %v2211
        %v2213 = vpop.f32.mrf.mxu0
        %2214 = vdwg.mxu0
        %2215 = vmatpush.bf16.msra.mxu0 0
        %2216 = vmatpush.bf16.msra.mxu0 0
        %2217 = vmatpush.bf16.msra.mxu0 0
        %2218 = vmatpush.bf16.msra.mxu0 0
        %2219 = vmatpush.bf16.msra.mxu0 0
        %2220 = vmatpush.bf16.msra.mxu0 0
        %2221 = vmatpush.bf16.msra.mxu0 0
        %2222 = vmatpush.bf16.msra.mxu0 %v2155
        %2223 = vmatmul.bf16.gmra.mxu0 %v2140
        %v2224 = vpop.f32.mrf.mxu0
        %v2225 = vadd.f32 0.0, %v2224
        %v2226 = vpop.f32.mrf.mxu0
        %2227 = vdwg.mxu0
        %2228 = vmatpush.bf16.msra.mxu0 0
        %2229 = vmatpush.bf16.msra.mxu0 0
        %2230 = vmatpush.bf16.msra.mxu0 0
        %2231 = vmatpush.bf16.msra.mxu0 0
        %2232 = vmatpush.bf16.msra.mxu0 0
        %2233 = vmatpush.bf16.msra.mxu0 0
        %2234 = vmatpush.bf16.msra.mxu0 0
        %2235 = vmatpush.bf16.msra.mxu0 %v2158
        %2236 = vmatmul.bf16.gmra.mxu0 %v2140
        %v2237 = vpop.f32.mrf.mxu0
        %v2238 = vadd.f32 0.0, %v2237
        %v2239 = vpop.f32.mrf.mxu0
        %2240 = vdwg.mxu0
        %2241 = vmatpush.bf16.msra.mxu0 0
        %2242 = vmatpush.bf16.msra.mxu0 0
        %2243 = vmatpush.bf16.msra.mxu0 0
        %2244 = vmatpush.bf16.msra.mxu0 0
        %2245 = vmatpush.bf16.msra.mxu0 0
        %2246 = vmatpush.bf16.msra.mxu0 0
        %2247 = vmatpush.bf16.msra.mxu0 0
        %2248 = vmatpush.bf16.msra.mxu0 %v2161
        %2249 = vmatmul.bf16.gmra.mxu0 %v2140
        %v2250 = vpop.f32.mrf.mxu0
        %v2251 = vadd.f32 0.0, %v2250
        %v2252 = vpop.f32.mrf.mxu0
        %2253 = vdwg.mxu0
        %v2254 = vadd.f32 %v2106, %v2173
        %v2255 = vadd.f32 %v2107, %v2186
        %v2256 = vadd.f32 %v2108, %v2199
        %v2257 = vadd.f32 %v2109, %v2212
        %v2258 = vadd.f32 %v2110, %v2225
        %v2259 = vadd.f32 %v2111, %v2238
        %v2260 = vadd.f32 %v2112, %v2251
        %s2261 = scalar_lea.vmem %s1, 56
        %v2262 = vld [vmem:[%s2261] sm:$0xf]
        %2263 = vrot.lane.b32.xlu0 %v218, 16
        %v2264 = vpop.permute.xlu0 %2263
        %2265 = vrot.lane.b32.xlu0 %v219, 16
        %v2266 = vpop.permute.xlu0 %2265
        %2267 = vrot.lane.b32.xlu0 %v220, 16
        %v2268 = vpop.permute.xlu0 %2267
        %2269 = vrot.lane.b32.xlu0 %v221, 16
        %v2270 = vpop.permute.xlu0 %2269
        %2271 = vrot.lane.b32.xlu0 %v222, 16
        %v2272 = vpop.permute.xlu0 %2271
        %2273 = vrot.lane.b32.xlu0 %v223, 16
        %v2274 = vpop.permute.xlu0 %2273
        %2275 = vrot.lane.b32.xlu0 %v224, 16
        %v2276 = vpop.permute.xlu0 %2275
        %2277 = vrot.lane.b32.xlu0 %v225, 16
        %v2278 = vpop.permute.xlu0 %2277
        %vm2279 = vcmask 130048
        %v2280 = vsel %vm2279, %v2264, %v2266
        %v2281 = vsel %vm2279, %v2266, %v2268
        %v2282 = vsel %vm2279, %v2268, %v2270
        %v2283 = vsel %vm2279, %v2270, %v2272
        %v2284 = vsel %vm2279, %v2272, %v2274
        %v2285 = vsel %vm2279, %v2274, %v2276
        %v2286 = vsel %vm2279, %v2276, %v2278
        %v2288 = vsel %vm250, %v2262, 0
        %v2291 = vsel %vm254, %v2280, 0
        %v2294 = vsel %vm254, %v2281, 0
        %v2297 = vsel %vm254, %v2282, 0
        %v2300 = vsel %vm254, %v2283, 0
        %v2303 = vsel %vm254, %v2284, 0
        %v2306 = vsel %vm254, %v2285, 0
        %v2309 = vsel %vm254, %v2286, 0
        %2311 = vmatpush.bf16.msra.mxu0 0
        %2312 = vmatpush.bf16.msra.mxu0 0
        %2313 = vmatpush.bf16.msra.mxu0 0
        %2314 = vmatpush.bf16.msra.mxu0 0
        %2315 = vmatpush.bf16.msra.mxu0 0
        %2316 = vmatpush.bf16.msra.mxu0 0
        %2317 = vmatpush.bf16.msra.mxu0 0
        %2318 = vmatpush.bf16.msra.mxu0 %v2291
        %2319 = vmatmul.bf16.gmra.mxu0 %v2288
        %v2320 = vpop.f32.mrf.mxu0
        %v2321 = vadd.f32 0.0, %v2320
        %v2322 = vpop.f32.mrf.mxu0
        %2323 = vdwg.mxu0
        %2324 = vmatpush.bf16.msra.mxu0 0
        %2325 = vmatpush.bf16.msra.mxu0 0
        %2326 = vmatpush.bf16.msra.mxu0 0
        %2327 = vmatpush.bf16.msra.mxu0 0
        %2328 = vmatpush.bf16.msra.mxu0 0
        %2329 = vmatpush.bf16.msra.mxu0 0
        %2330 = vmatpush.bf16.msra.mxu0 0
        %2331 = vmatpush.bf16.msra.mxu0 %v2294
        %2332 = vmatmul.bf16.gmra.mxu0 %v2288
        %v2333 = vpop.f32.mrf.mxu0
        %v2334 = vadd.f32 0.0, %v2333
        %v2335 = vpop.f32.mrf.mxu0
        %2336 = vdwg.mxu0
        %2337 = vmatpush.bf16.msra.mxu0 0
        %2338 = vmatpush.bf16.msra.mxu0 0
        %2339 = vmatpush.bf16.msra.mxu0 0
        %2340 = vmatpush.bf16.msra.mxu0 0
        %2341 = vmatpush.bf16.msra.mxu0 0
        %2342 = vmatpush.bf16.msra.mxu0 0
        %2343 = vmatpush.bf16.msra.mxu0 0
        %2344 = vmatpush.bf16.msra.mxu0 %v2297
        %2345 = vmatmul.bf16.gmra.mxu0 %v2288
        %v2346 = vpop.f32.mrf.mxu0
        %v2347 = vadd.f32 0.0, %v2346
        %v2348 = vpop.f32.mrf.mxu0
        %2349 = vdwg.mxu0
        %2350 = vmatpush.bf16.msra.mxu0 0
        %2351 = vmatpush.bf16.msra.mxu0 0
        %2352 = vmatpush.bf16.msra.mxu0 0
        %2353 = vmatpush.bf16.msra.mxu0 0
        %2354 = vmatpush.bf16.msra.mxu0 0
        %2355 = vmatpush.bf16.msra.mxu0 0
        %2356 = vmatpush.bf16.msra.mxu0 0
        %2357 = vmatpush.bf16.msra.mxu0 %v2300
        %2358 = vmatmul.bf16.gmra.mxu0 %v2288
        %v2359 = vpop.f32.mrf.mxu0
        %v2360 = vadd.f32 0.0, %v2359
        %v2361 = vpop.f32.mrf.mxu0
        %2362 = vdwg.mxu0
        %2363 = vmatpush.bf16.msra.mxu0 0
        %2364 = vmatpush.bf16.msra.mxu0 0
        %2365 = vmatpush.bf16.msra.mxu0 0
        %2366 = vmatpush.bf16.msra.mxu0 0
        %2367 = vmatpush.bf16.msra.mxu0 0
        %2368 = vmatpush.bf16.msra.mxu0 0
        %2369 = vmatpush.bf16.msra.mxu0 0
        %2370 = vmatpush.bf16.msra.mxu0 %v2303
        %2371 = vmatmul.bf16.gmra.mxu0 %v2288
        %v2372 = vpop.f32.mrf.mxu0
        %v2373 = vadd.f32 0.0, %v2372
        %v2374 = vpop.f32.mrf.mxu0
        %2375 = vdwg.mxu0
        %2376 = vmatpush.bf16.msra.mxu0 0
        %2377 = vmatpush.bf16.msra.mxu0 0
        %2378 = vmatpush.bf16.msra.mxu0 0
        %2379 = vmatpush.bf16.msra.mxu0 0
        %2380 = vmatpush.bf16.msra.mxu0 0
        %2381 = vmatpush.bf16.msra.mxu0 0
        %2382 = vmatpush.bf16.msra.mxu0 0
        %2383 = vmatpush.bf16.msra.mxu0 %v2306
        %2384 = vmatmul.bf16.gmra.mxu0 %v2288
        %v2385 = vpop.f32.mrf.mxu0
        %v2386 = vadd.f32 0.0, %v2385
        %v2387 = vpop.f32.mrf.mxu0
        %2388 = vdwg.mxu0
        %2389 = vmatpush.bf16.msra.mxu0 0
        %2390 = vmatpush.bf16.msra.mxu0 0
        %2391 = vmatpush.bf16.msra.mxu0 0
        %2392 = vmatpush.bf16.msra.mxu0 0
        %2393 = vmatpush.bf16.msra.mxu0 0
        %2394 = vmatpush.bf16.msra.mxu0 0
        %2395 = vmatpush.bf16.msra.mxu0 0
        %2396 = vmatpush.bf16.msra.mxu0 %v2309
        %2397 = vmatmul.bf16.gmra.mxu0 %v2288
        %v2398 = vpop.f32.mrf.mxu0
        %v2399 = vadd.f32 0.0, %v2398
        %v2400 = vpop.f32.mrf.mxu0
        %2401 = vdwg.mxu0
        %v2402 = vadd.f32 %v2254, %v2321
        %v2403 = vadd.f32 %v2255, %v2334
        %v2404 = vadd.f32 %v2256, %v2347
        %v2405 = vadd.f32 %v2257, %v2360
        %v2406 = vadd.f32 %v2258, %v2373
        %v2407 = vadd.f32 %v2259, %v2386
        %v2408 = vadd.f32 %v2260, %v2399
        %s2409 = scalar_lea.vmem %s1, 60
        %v2410 = vld [vmem:[%s2409] sm:$0xf]
        %2411 = vrot.lane.b32.xlu0 %v218, 8
        %v2412 = vpop.permute.xlu0 %2411
        %2413 = vrot.lane.b32.xlu0 %v219, 8
        %v2414 = vpop.permute.xlu0 %2413
        %2415 = vrot.lane.b32.xlu0 %v220, 8
        %v2416 = vpop.permute.xlu0 %2415
        %2417 = vrot.lane.b32.xlu0 %v221, 8
        %v2418 = vpop.permute.xlu0 %2417
        %2419 = vrot.lane.b32.xlu0 %v222, 8
        %v2420 = vpop.permute.xlu0 %2419
        %2421 = vrot.lane.b32.xlu0 %v223, 8
        %v2422 = vpop.permute.xlu0 %2421
        %2423 = vrot.lane.b32.xlu0 %v224, 8
        %v2424 = vpop.permute.xlu0 %2423
        %2425 = vrot.lane.b32.xlu0 %v225, 8
        %v2426 = vpop.permute.xlu0 %2425
        %vm2427 = vcmask 64512
        %v2428 = vsel %vm2427, %v2412, %v2414
        %v2429 = vsel %vm2427, %v2414, %v2416
        %v2430 = vsel %vm2427, %v2416, %v2418
        %v2431 = vsel %vm2427, %v2418, %v2420
        %v2432 = vsel %vm2427, %v2420, %v2422
        %v2433 = vsel %vm2427, %v2422, %v2424
        %v2434 = vsel %vm2427, %v2424, %v2426
        %v2436 = vsel %vm250, %v2410, 0
        %v2439 = vsel %vm254, %v2428, 0
        %v2442 = vsel %vm254, %v2429, 0
        %v2445 = vsel %vm254, %v2430, 0
        %v2448 = vsel %vm254, %v2431, 0
        %v2451 = vsel %vm254, %v2432, 0
        %v2454 = vsel %vm254, %v2433, 0
        %v2457 = vsel %vm254, %v2434, 0
        %2459 = vmatpush.bf16.msra.mxu0 0
        %2460 = vmatpush.bf16.msra.mxu0 0
        %2461 = vmatpush.bf16.msra.mxu0 0
        %2462 = vmatpush.bf16.msra.mxu0 0
        %2463 = vmatpush.bf16.msra.mxu0 0
        %2464 = vmatpush.bf16.msra.mxu0 0
        %2465 = vmatpush.bf16.msra.mxu0 0
        %2466 = vmatpush.bf16.msra.mxu0 %v2439
        %2467 = vmatmul.bf16.gmra.mxu0 %v2436
        %v2468 = vpop.f32.mrf.mxu0
        %v2469 = vadd.f32 0.0, %v2468
        %v2470 = vpop.f32.mrf.mxu0
        %2471 = vdwg.mxu0
        %2472 = vmatpush.bf16.msra.mxu0 0
        %2473 = vmatpush.bf16.msra.mxu0 0
        %2474 = vmatpush.bf16.msra.mxu0 0
        %2475 = vmatpush.bf16.msra.mxu0 0
        %2476 = vmatpush.bf16.msra.mxu0 0
        %2477 = vmatpush.bf16.msra.mxu0 0
        %2478 = vmatpush.bf16.msra.mxu0 0
        %2479 = vmatpush.bf16.msra.mxu0 %v2442
        %2480 = vmatmul.bf16.gmra.mxu0 %v2436
        %v2481 = vpop.f32.mrf.mxu0
        %v2482 = vadd.f32 0.0, %v2481
        %v2483 = vpop.f32.mrf.mxu0
        %2484 = vdwg.mxu0
        %2485 = vmatpush.bf16.msra.mxu0 0
        %2486 = vmatpush.bf16.msra.mxu0 0
        %2487 = vmatpush.bf16.msra.mxu0 0
        %2488 = vmatpush.bf16.msra.mxu0 0
        %2489 = vmatpush.bf16.msra.mxu0 0
        %2490 = vmatpush.bf16.msra.mxu0 0
        %2491 = vmatpush.bf16.msra.mxu0 0
        %2492 = vmatpush.bf16.msra.mxu0 %v2445
        %2493 = vmatmul.bf16.gmra.mxu0 %v2436
        %v2494 = vpop.f32.mrf.mxu0
        %v2495 = vadd.f32 0.0, %v2494
        %v2496 = vpop.f32.mrf.mxu0
        %2497 = vdwg.mxu0
        %2498 = vmatpush.bf16.msra.mxu0 0
        %2499 = vmatpush.bf16.msra.mxu0 0
        %2500 = vmatpush.bf16.msra.mxu0 0
        %2501 = vmatpush.bf16.msra.mxu0 0
        %2502 = vmatpush.bf16.msra.mxu0 0
        %2503 = vmatpush.bf16.msra.mxu0 0
        %2504 = vmatpush.bf16.msra.mxu0 0
        %2505 = vmatpush.bf16.msra.mxu0 %v2448
        %2506 = vmatmul.bf16.gmra.mxu0 %v2436
        %v2507 = vpop.f32.mrf.mxu0
        %v2508 = vadd.f32 0.0, %v2507
        %v2509 = vpop.f32.mrf.mxu0
        %2510 = vdwg.mxu0
        %2511 = vmatpush.bf16.msra.mxu0 0
        %2512 = vmatpush.bf16.msra.mxu0 0
        %2513 = vmatpush.bf16.msra.mxu0 0
        %2514 = vmatpush.bf16.msra.mxu0 0
        %2515 = vmatpush.bf16.msra.mxu0 0
        %2516 = vmatpush.bf16.msra.mxu0 0
        %2517 = vmatpush.bf16.msra.mxu0 0
        %2518 = vmatpush.bf16.msra.mxu0 %v2451
        %2519 = vmatmul.bf16.gmra.mxu0 %v2436
        %v2520 = vpop.f32.mrf.mxu0
        %v2521 = vadd.f32 0.0, %v2520
        %v2522 = vpop.f32.mrf.mxu0
        %2523 = vdwg.mxu0
        %2524 = vmatpush.bf16.msra.mxu0 0
        %2525 = vmatpush.bf16.msra.mxu0 0
        %2526 = vmatpush.bf16.msra.mxu0 0
        %2527 = vmatpush.bf16.msra.mxu0 0
        %2528 = vmatpush.bf16.msra.mxu0 0
        %2529 = vmatpush.bf16.msra.mxu0 0
        %2530 = vmatpush.bf16.msra.mxu0 0
        %2531 = vmatpush.bf16.msra.mxu0 %v2454
        %2532 = vmatmul.bf16.gmra.mxu0 %v2436
        %v2533 = vpop.f32.mrf.mxu0
        %v2534 = vadd.f32 0.0, %v2533
        %v2535 = vpop.f32.mrf.mxu0
        %2536 = vdwg.mxu0
        %2537 = vmatpush.bf16.msra.mxu0 0
        %2538 = vmatpush.bf16.msra.mxu0 0
        %2539 = vmatpush.bf16.msra.mxu0 0
        %2540 = vmatpush.bf16.msra.mxu0 0
        %2541 = vmatpush.bf16.msra.mxu0 0
        %2542 = vmatpush.bf16.msra.mxu0 0
        %2543 = vmatpush.bf16.msra.mxu0 0
        %2544 = vmatpush.bf16.msra.mxu0 %v2457
        %2545 = vmatmul.bf16.gmra.mxu0 %v2436
        %v2546 = vpop.f32.mrf.mxu0
        %v2547 = vadd.f32 0.0, %v2546
        %v2548 = vpop.f32.mrf.mxu0
        %2549 = vdwg.mxu0
        %v2550 = vadd.f32 %v2402, %v2469
        %v2551 = vadd.f32 %v2403, %v2482
        %v2552 = vadd.f32 %v2404, %v2495
        %v2553 = vadd.f32 %v2405, %v2508
        %v2554 = vadd.f32 %v2406, %v2521
        %v2555 = vadd.f32 %v2407, %v2534
        %v2556 = vadd.f32 %v2408, %v2547
        %s2557 = scalar_lea.vmem %s1, 64
        %v2558 = vld [vmem:[%s2557] sm:$0xf]
        %2559 = vrot.lane.b32.xlu0 %v218, 7
        %v2560 = vpop.permute.xlu0 %2559
        %2561 = vrot.lane.b32.xlu0 %v219, 7
        %v2562 = vpop.permute.xlu0 %2561
        %2563 = vrot.lane.b32.xlu0 %v220, 7
        %v2564 = vpop.permute.xlu0 %2563
        %2565 = vrot.lane.b32.xlu0 %v221, 7
        %v2566 = vpop.permute.xlu0 %2565
        %2567 = vrot.lane.b32.xlu0 %v222, 7
        %v2568 = vpop.permute.xlu0 %2567
        %2569 = vrot.lane.b32.xlu0 %v223, 7
        %v2570 = vpop.permute.xlu0 %2569
        %2571 = vrot.lane.b32.xlu0 %v224, 7
        %v2572 = vpop.permute.xlu0 %2571
        %2573 = vrot.lane.b32.xlu0 %v225, 7
        %v2574 = vpop.permute.xlu0 %2573
        %vm2575 = vcmask 56320
        %v2576 = vsel %vm2575, %v2560, %v2562
        %v2577 = vsel %vm2575, %v2562, %v2564
        %v2578 = vsel %vm2575, %v2564, %v2566
        %v2579 = vsel %vm2575, %v2566, %v2568
        %v2580 = vsel %vm2575, %v2568, %v2570
        %v2581 = vsel %vm2575, %v2570, %v2572
        %v2582 = vsel %vm2575, %v2572, %v2574
        %v2584 = vsel %vm250, %v2558, 0
        %v2587 = vsel %vm254, %v2576, 0
        %v2590 = vsel %vm254, %v2577, 0
        %v2593 = vsel %vm254, %v2578, 0
        %v2596 = vsel %vm254, %v2579, 0
        %v2599 = vsel %vm254, %v2580, 0
        %v2602 = vsel %vm254, %v2581, 0
        %v2605 = vsel %vm254, %v2582, 0
        %2607 = vmatpush.bf16.msra.mxu0 0
        %2608 = vmatpush.bf16.msra.mxu0 0
        %2609 = vmatpush.bf16.msra.mxu0 0
        %2610 = vmatpush.bf16.msra.mxu0 0
        %2611 = vmatpush.bf16.msra.mxu0 0
        %2612 = vmatpush.bf16.msra.mxu0 0
        %2613 = vmatpush.bf16.msra.mxu0 0
        %2614 = vmatpush.bf16.msra.mxu0 %v2587
        %2615 = vmatmul.bf16.gmra.mxu0 %v2584
        %v2616 = vpop.f32.mrf.mxu0
        %v2617 = vadd.f32 0.0, %v2616
        %v2618 = vpop.f32.mrf.mxu0
        %2619 = vdwg.mxu0
        %2620 = vmatpush.bf16.msra.mxu0 0
        %2621 = vmatpush.bf16.msra.mxu0 0
        %2622 = vmatpush.bf16.msra.mxu0 0
        %2623 = vmatpush.bf16.msra.mxu0 0
        %2624 = vmatpush.bf16.msra.mxu0 0
        %2625 = vmatpush.bf16.msra.mxu0 0
        %2626 = vmatpush.bf16.msra.mxu0 0
        %2627 = vmatpush.bf16.msra.mxu0 %v2590
        %2628 = vmatmul.bf16.gmra.mxu0 %v2584
        %v2629 = vpop.f32.mrf.mxu0
        %v2630 = vadd.f32 0.0, %v2629
        %v2631 = vpop.f32.mrf.mxu0
        %2632 = vdwg.mxu0
        %2633 = vmatpush.bf16.msra.mxu0 0
        %2634 = vmatpush.bf16.msra.mxu0 0
        %2635 = vmatpush.bf16.msra.mxu0 0
        %2636 = vmatpush.bf16.msra.mxu0 0
        %2637 = vmatpush.bf16.msra.mxu0 0
        %2638 = vmatpush.bf16.msra.mxu0 0
        %2639 = vmatpush.bf16.msra.mxu0 0
        %2640 = vmatpush.bf16.msra.mxu0 %v2593
        %2641 = vmatmul.bf16.gmra.mxu0 %v2584
        %v2642 = vpop.f32.mrf.mxu0
        %v2643 = vadd.f32 0.0, %v2642
        %v2644 = vpop.f32.mrf.mxu0
        %2645 = vdwg.mxu0
        %2646 = vmatpush.bf16.msra.mxu0 0
        %2647 = vmatpush.bf16.msra.mxu0 0
        %2648 = vmatpush.bf16.msra.mxu0 0
        %2649 = vmatpush.bf16.msra.mxu0 0
        %2650 = vmatpush.bf16.msra.mxu0 0
        %2651 = vmatpush.bf16.msra.mxu0 0
        %2652 = vmatpush.bf16.msra.mxu0 0
        %2653 = vmatpush.bf16.msra.mxu0 %v2596
        %2654 = vmatmul.bf16.gmra.mxu0 %v2584
        %v2655 = vpop.f32.mrf.mxu0
        %v2656 = vadd.f32 0.0, %v2655
        %v2657 = vpop.f32.mrf.mxu0
        %2658 = vdwg.mxu0
        %2659 = vmatpush.bf16.msra.mxu0 0
        %2660 = vmatpush.bf16.msra.mxu0 0
        %2661 = vmatpush.bf16.msra.mxu0 0
        %2662 = vmatpush.bf16.msra.mxu0 0
        %2663 = vmatpush.bf16.msra.mxu0 0
        %2664 = vmatpush.bf16.msra.mxu0 0
        %2665 = vmatpush.bf16.msra.mxu0 0
        %2666 = vmatpush.bf16.msra.mxu0 %v2599
        %2667 = vmatmul.bf16.gmra.mxu0 %v2584
        %v2668 = vpop.f32.mrf.mxu0
        %v2669 = vadd.f32 0.0, %v2668
        %v2670 = vpop.f32.mrf.mxu0
        %2671 = vdwg.mxu0
        %2672 = vmatpush.bf16.msra.mxu0 0
        %2673 = vmatpush.bf16.msra.mxu0 0
        %2674 = vmatpush.bf16.msra.mxu0 0
        %2675 = vmatpush.bf16.msra.mxu0 0
        %2676 = vmatpush.bf16.msra.mxu0 0
        %2677 = vmatpush.bf16.msra.mxu0 0
        %2678 = vmatpush.bf16.msra.mxu0 0
        %2679 = vmatpush.bf16.msra.mxu0 %v2602
        %2680 = vmatmul.bf16.gmra.mxu0 %v2584
        %v2681 = vpop.f32.mrf.mxu0
        %v2682 = vadd.f32 0.0, %v2681
        %v2683 = vpop.f32.mrf.mxu0
        %2684 = vdwg.mxu0
        %2685 = vmatpush.bf16.msra.mxu0 0
        %2686 = vmatpush.bf16.msra.mxu0 0
        %2687 = vmatpush.bf16.msra.mxu0 0
        %2688 = vmatpush.bf16.msra.mxu0 0
        %2689 = vmatpush.bf16.msra.mxu0 0
        %2690 = vmatpush.bf16.msra.mxu0 0
        %2691 = vmatpush.bf16.msra.mxu0 0
        %2692 = vmatpush.bf16.msra.mxu0 %v2605
        %2693 = vmatmul.bf16.gmra.mxu0 %v2584
        %v2694 = vpop.f32.mrf.mxu0
        %v2695 = vadd.f32 0.0, %v2694
        %v2696 = vpop.f32.mrf.mxu0
        %2697 = vdwg.mxu0
        %v2698 = vadd.f32 %v2550, %v2617
        %v2699 = vadd.f32 %v2551, %v2630
        %v2700 = vadd.f32 %v2552, %v2643
        %v2701 = vadd.f32 %v2553, %v2656
        %v2702 = vadd.f32 %v2554, %v2669
        %v2703 = vadd.f32 %v2555, %v2682
        %v2704 = vadd.f32 %v2556, %v2695
        %s2705 = scalar_lea.vmem %s1, 68
        %v2706 = vld [vmem:[%s2705] sm:$0xf]
        %2707 = vrot.lane.b32.xlu0 %v218, 6
        %v2708 = vpop.permute.xlu0 %2707
        %2709 = vrot.lane.b32.xlu0 %v219, 6
        %v2710 = vpop.permute.xlu0 %2709
        %2711 = vrot.lane.b32.xlu0 %v220, 6
        %v2712 = vpop.permute.xlu0 %2711
        %2713 = vrot.lane.b32.xlu0 %v221, 6
        %v2714 = vpop.permute.xlu0 %2713
        %2715 = vrot.lane.b32.xlu0 %v222, 6
        %v2716 = vpop.permute.xlu0 %2715
        %2717 = vrot.lane.b32.xlu0 %v223, 6
        %v2718 = vpop.permute.xlu0 %2717
        %2719 = vrot.lane.b32.xlu0 %v224, 6
        %v2720 = vpop.permute.xlu0 %2719
        %2721 = vrot.lane.b32.xlu0 %v225, 6
        %v2722 = vpop.permute.xlu0 %2721
        %vm2723 = vcmask 48128
        %v2724 = vsel %vm2723, %v2708, %v2710
        %v2725 = vsel %vm2723, %v2710, %v2712
        %v2726 = vsel %vm2723, %v2712, %v2714
        %v2727 = vsel %vm2723, %v2714, %v2716
        %v2728 = vsel %vm2723, %v2716, %v2718
        %v2729 = vsel %vm2723, %v2718, %v2720
        %v2730 = vsel %vm2723, %v2720, %v2722
        %v2732 = vsel %vm250, %v2706, 0
        %v2735 = vsel %vm254, %v2724, 0
        %v2738 = vsel %vm254, %v2725, 0
        %v2741 = vsel %vm254, %v2726, 0
        %v2744 = vsel %vm254, %v2727, 0
        %v2747 = vsel %vm254, %v2728, 0
        %v2750 = vsel %vm254, %v2729, 0
        %v2753 = vsel %vm254, %v2730, 0
        %2755 = vmatpush.bf16.msra.mxu0 0
        %2756 = vmatpush.bf16.msra.mxu0 0
        %2757 = vmatpush.bf16.msra.mxu0 0
        %2758 = vmatpush.bf16.msra.mxu0 0
        %2759 = vmatpush.bf16.msra.mxu0 0
        %2760 = vmatpush.bf16.msra.mxu0 0
        %2761 = vmatpush.bf16.msra.mxu0 0
        %2762 = vmatpush.bf16.msra.mxu0 %v2735
        %2763 = vmatmul.bf16.gmra.mxu0 %v2732
        %v2764 = vpop.f32.mrf.mxu0
        %v2765 = vadd.f32 0.0, %v2764
        %v2766 = vpop.f32.mrf.mxu0
        %2767 = vdwg.mxu0
        %2768 = vmatpush.bf16.msra.mxu0 0
        %2769 = vmatpush.bf16.msra.mxu0 0
        %2770 = vmatpush.bf16.msra.mxu0 0
        %2771 = vmatpush.bf16.msra.mxu0 0
        %2772 = vmatpush.bf16.msra.mxu0 0
        %2773 = vmatpush.bf16.msra.mxu0 0
        %2774 = vmatpush.bf16.msra.mxu0 0
        %2775 = vmatpush.bf16.msra.mxu0 %v2738
        %2776 = vmatmul.bf16.gmra.mxu0 %v2732
        %v2777 = vpop.f32.mrf.mxu0
        %v2778 = vadd.f32 0.0, %v2777
        %v2779 = vpop.f32.mrf.mxu0
        %2780 = vdwg.mxu0
        %2781 = vmatpush.bf16.msra.mxu0 0
        %2782 = vmatpush.bf16.msra.mxu0 0
        %2783 = vmatpush.bf16.msra.mxu0 0
        %2784 = vmatpush.bf16.msra.mxu0 0
        %2785 = vmatpush.bf16.msra.mxu0 0
        %2786 = vmatpush.bf16.msra.mxu0 0
        %2787 = vmatpush.bf16.msra.mxu0 0
        %2788 = vmatpush.bf16.msra.mxu0 %v2741
        %2789 = vmatmul.bf16.gmra.mxu0 %v2732
        %v2790 = vpop.f32.mrf.mxu0
        %v2791 = vadd.f32 0.0, %v2790
        %v2792 = vpop.f32.mrf.mxu0
        %2793 = vdwg.mxu0
        %2794 = vmatpush.bf16.msra.mxu0 0
        %2795 = vmatpush.bf16.msra.mxu0 0
        %2796 = vmatpush.bf16.msra.mxu0 0
        %2797 = vmatpush.bf16.msra.mxu0 0
        %2798 = vmatpush.bf16.msra.mxu0 0
        %2799 = vmatpush.bf16.msra.mxu0 0
        %2800 = vmatpush.bf16.msra.mxu0 0
        %2801 = vmatpush.bf16.msra.mxu0 %v2744
        %2802 = vmatmul.bf16.gmra.mxu0 %v2732
        %v2803 = vpop.f32.mrf.mxu0
        %v2804 = vadd.f32 0.0, %v2803
        %v2805 = vpop.f32.mrf.mxu0
        %2806 = vdwg.mxu0
        %2807 = vmatpush.bf16.msra.mxu0 0
        %2808 = vmatpush.bf16.msra.mxu0 0
        %2809 = vmatpush.bf16.msra.mxu0 0
        %2810 = vmatpush.bf16.msra.mxu0 0
        %2811 = vmatpush.bf16.msra.mxu0 0
        %2812 = vmatpush.bf16.msra.mxu0 0
        %2813 = vmatpush.bf16.msra.mxu0 0
        %2814 = vmatpush.bf16.msra.mxu0 %v2747
        %2815 = vmatmul.bf16.gmra.mxu0 %v2732
        %v2816 = vpop.f32.mrf.mxu0
        %v2817 = vadd.f32 0.0, %v2816
        %v2818 = vpop.f32.mrf.mxu0
        %2819 = vdwg.mxu0
        %2820 = vmatpush.bf16.msra.mxu0 0
        %2821 = vmatpush.bf16.msra.mxu0 0
        %2822 = vmatpush.bf16.msra.mxu0 0
        %2823 = vmatpush.bf16.msra.mxu0 0
        %2824 = vmatpush.bf16.msra.mxu0 0
        %2825 = vmatpush.bf16.msra.mxu0 0
        %2826 = vmatpush.bf16.msra.mxu0 0
        %2827 = vmatpush.bf16.msra.mxu0 %v2750
        %2828 = vmatmul.bf16.gmra.mxu0 %v2732
        %v2829 = vpop.f32.mrf.mxu0
        %v2830 = vadd.f32 0.0, %v2829
        %v2831 = vpop.f32.mrf.mxu0
        %2832 = vdwg.mxu0
        %2833 = vmatpush.bf16.msra.mxu0 0
        %2834 = vmatpush.bf16.msra.mxu0 0
        %2835 = vmatpush.bf16.msra.mxu0 0
        %2836 = vmatpush.bf16.msra.mxu0 0
        %2837 = vmatpush.bf16.msra.mxu0 0
        %2838 = vmatpush.bf16.msra.mxu0 0
        %2839 = vmatpush.bf16.msra.mxu0 0
        %2840 = vmatpush.bf16.msra.mxu0 %v2753
        %2841 = vmatmul.bf16.gmra.mxu0 %v2732
        %v2842 = vpop.f32.mrf.mxu0
        %v2843 = vadd.f32 0.0, %v2842
        %v2844 = vpop.f32.mrf.mxu0
        %2845 = vdwg.mxu0
        %v2846 = vadd.f32 %v2698, %v2765
        %v2847 = vadd.f32 %v2699, %v2778
        %v2848 = vadd.f32 %v2700, %v2791
        %v2849 = vadd.f32 %v2701, %v2804
        %v2850 = vadd.f32 %v2702, %v2817
        %v2851 = vadd.f32 %v2703, %v2830
        %v2852 = vadd.f32 %v2704, %v2843
        %s2853 = scalar_lea.vmem %s1, 72
        %v2854 = vld [vmem:[%s2853] sm:$0xf]
        %v2855 = vld [vmem:[%s195 + $0x4] sm:$0xff]
        %v2856 = vld [vmem:[%s195 + $0xc] sm:$0xff]
        %v2857 = vld [vmem:[%s195 + $0x14] sm:$0xff]
        %v2858 = vld [vmem:[%s195 + $0x1c] sm:$0xff]
        %v2863 = vunpack.c.l.b16 %v2855
        %v2864 = vunpack.c.h.b16 %v2855
        %v2865 = vunpack.c.l.b16 %v2856
        %v2866 = vunpack.c.h.b16 %v2856
        %v2867 = vunpack.c.l.b16 %v2857
        %v2868 = vunpack.c.h.b16 %v2857
        %v2869 = vunpack.c.l.b16 %v2858
        %v2870 = vunpack.c.h.b16 %v2858
        %v2871 = vpack.c.b16 %v2863, %v2863
        %v2872 = vpack.c.b16 %v2864, %v2864
        %v2873 = vpack.c.b16 %v2865, %v2865
        %v2874 = vpack.c.b16 %v2866, %v2866
        %v2875 = vpack.c.b16 %v2867, %v2867
        %v2876 = vpack.c.b16 %v2868, %v2868
        %v2877 = vpack.c.b16 %v2869, %v2869
        %v2878 = vpack.c.b16 %v2870, %v2870
        %2879 = vrot.lane.b32.xlu0 %v2871, 56
        %v2880 = vpop.permute.xlu0 %2879
        %2881 = vrot.lane.b32.xlu0 %v2872, 56
        %v2882 = vpop.permute.xlu0 %2881
        %2883 = vrot.lane.b32.xlu0 %v2873, 56
        %v2884 = vpop.permute.xlu0 %2883
        %2885 = vrot.lane.b32.xlu0 %v2874, 56
        %v2886 = vpop.permute.xlu0 %2885
        %2887 = vrot.lane.b32.xlu0 %v2875, 56
        %v2888 = vpop.permute.xlu0 %2887
        %2889 = vrot.lane.b32.xlu0 %v2876, 56
        %v2890 = vpop.permute.xlu0 %2889
        %2891 = vrot.lane.b32.xlu0 %v2877, 56
        %v2892 = vpop.permute.xlu0 %2891
        %2893 = vrot.lane.b32.xlu0 %v2878, 56
        %v2894 = vpop.permute.xlu0 %2893
        %vm2895 = vcmask 457728
        %v2896 = vsel %vm2895, %v2880, %v2882
        %v2897 = vsel %vm2895, %v2882, %v2884
        %v2898 = vsel %vm2895, %v2884, %v2886
        %v2899 = vsel %vm2895, %v2886, %v2888
        %v2900 = vsel %vm2895, %v2888, %v2890
        %v2901 = vsel %vm2895, %v2890, %v2892
        %v2902 = vsel %vm2895, %v2892, %v2894
        %v2904 = vsel %vm250, %v2854, 0
        %v2907 = vsel %vm254, %v2896, 0
        %v2910 = vsel %vm254, %v2897, 0
        %v2913 = vsel %vm254, %v2898, 0
        %v2916 = vsel %vm254, %v2899, 0
        %v2919 = vsel %vm254, %v2900, 0
        %v2922 = vsel %vm254, %v2901, 0
        %v2925 = vsel %vm254, %v2902, 0
        %2927 = vmatpush.bf16.msra.mxu0 0
        %2928 = vmatpush.bf16.msra.mxu0 0
        %2929 = vmatpush.bf16.msra.mxu0 0
        %2930 = vmatpush.bf16.msra.mxu0 0
        %2931 = vmatpush.bf16.msra.mxu0 0
        %2932 = vmatpush.bf16.msra.mxu0 0
        %2933 = vmatpush.bf16.msra.mxu0 0
        %2934 = vmatpush.bf16.msra.mxu0 %v2907
        %2935 = vmatmul.bf16.gmra.mxu0 %v2904
        %v2936 = vpop.f32.mrf.mxu0
        %v2937 = vadd.f32 0.0, %v2936
        %v2938 = vpop.f32.mrf.mxu0
        %2939 = vdwg.mxu0
        %2940 = vmatpush.bf16.msra.mxu0 0
        %2941 = vmatpush.bf16.msra.mxu0 0
        %2942 = vmatpush.bf16.msra.mxu0 0
        %2943 = vmatpush.bf16.msra.mxu0 0
        %2944 = vmatpush.bf16.msra.mxu0 0
        %2945 = vmatpush.bf16.msra.mxu0 0
        %2946 = vmatpush.bf16.msra.mxu0 0
        %2947 = vmatpush.bf16.msra.mxu0 %v2910
        %2948 = vmatmul.bf16.gmra.mxu0 %v2904
        %v2949 = vpop.f32.mrf.mxu0
        %v2950 = vadd.f32 0.0, %v2949
        %v2951 = vpop.f32.mrf.mxu0
        %2952 = vdwg.mxu0
        %2953 = vmatpush.bf16.msra.mxu0 0
        %2954 = vmatpush.bf16.msra.mxu0 0
        %2955 = vmatpush.bf16.msra.mxu0 0
        %2956 = vmatpush.bf16.msra.mxu0 0
        %2957 = vmatpush.bf16.msra.mxu0 0
        %2958 = vmatpush.bf16.msra.mxu0 0
        %2959 = vmatpush.bf16.msra.mxu0 0
        %2960 = vmatpush.bf16.msra.mxu0 %v2913
        %2961 = vmatmul.bf16.gmra.mxu0 %v2904
        %v2962 = vpop.f32.mrf.mxu0
        %v2963 = vadd.f32 0.0, %v2962
        %v2964 = vpop.f32.mrf.mxu0
        %2965 = vdwg.mxu0
        %2966 = vmatpush.bf16.msra.mxu0 0
        %2967 = vmatpush.bf16.msra.mxu0 0
        %2968 = vmatpush.bf16.msra.mxu0 0
        %2969 = vmatpush.bf16.msra.mxu0 0
        %2970 = vmatpush.bf16.msra.mxu0 0
        %2971 = vmatpush.bf16.msra.mxu0 0
        %2972 = vmatpush.bf16.msra.mxu0 0
        %2973 = vmatpush.bf16.msra.mxu0 %v2916
        %2974 = vmatmul.bf16.gmra.mxu0 %v2904
        %v2975 = vpop.f32.mrf.mxu0
        %v2976 = vadd.f32 0.0, %v2975
        %v2977 = vpop.f32.mrf.mxu0
        %2978 = vdwg.mxu0
        %2979 = vmatpush.bf16.msra.mxu0 0
        %2980 = vmatpush.bf16.msra.mxu0 0
        %2981 = vmatpush.bf16.msra.mxu0 0
        %2982 = vmatpush.bf16.msra.mxu0 0
        %2983 = vmatpush.bf16.msra.mxu0 0
        %2984 = vmatpush.bf16.msra.mxu0 0
        %2985 = vmatpush.bf16.msra.mxu0 0
        %2986 = vmatpush.bf16.msra.mxu0 %v2919
        %2987 = vmatmul.bf16.gmra.mxu0 %v2904
        %v2988 = vpop.f32.mrf.mxu0
        %v2989 = vadd.f32 0.0, %v2988
        %v2990 = vpop.f32.mrf.mxu0
        %2991 = vdwg.mxu0
        %2992 = vmatpush.bf16.msra.mxu0 0
        %2993 = vmatpush.bf16.msra.mxu0 0
        %2994 = vmatpush.bf16.msra.mxu0 0
        %2995 = vmatpush.bf16.msra.mxu0 0
        %2996 = vmatpush.bf16.msra.mxu0 0
        %2997 = vmatpush.bf16.msra.mxu0 0
        %2998 = vmatpush.bf16.msra.mxu0 0
        %2999 = vmatpush.bf16.msra.mxu0 %v2922
        %3000 = vmatmul.bf16.gmra.mxu0 %v2904
        %v3001 = vpop.f32.mrf.mxu0
        %v3002 = vadd.f32 0.0, %v3001
        %v3003 = vpop.f32.mrf.mxu0
        %3004 = vdwg.mxu0
        %3005 = vmatpush.bf16.msra.mxu0 0
        %3006 = vmatpush.bf16.msra.mxu0 0
        %3007 = vmatpush.bf16.msra.mxu0 0
        %3008 = vmatpush.bf16.msra.mxu0 0
        %3009 = vmatpush.bf16.msra.mxu0 0
        %3010 = vmatpush.bf16.msra.mxu0 0
        %3011 = vmatpush.bf16.msra.mxu0 0
        %3012 = vmatpush.bf16.msra.mxu0 %v2925
        %3013 = vmatmul.bf16.gmra.mxu0 %v2904
        %v3014 = vpop.f32.mrf.mxu0
        %v3015 = vadd.f32 0.0, %v3014
        %v3016 = vpop.f32.mrf.mxu0
        %3017 = vdwg.mxu0
        %v3018 = vadd.f32 %v2846, %v2937
        %v3019 = vadd.f32 %v2847, %v2950
        %v3020 = vadd.f32 %v2848, %v2963
        %v3021 = vadd.f32 %v2849, %v2976
        %v3022 = vadd.f32 %v2850, %v2989
        %v3023 = vadd.f32 %v2851, %v3002
        %v3024 = vadd.f32 %v2852, %v3015
        %s3025 = scalar_lea.vmem %s1, 76
        %v3026 = vld [vmem:[%s3025] sm:$0xf]
        %3027 = vrot.lane.b32.xlu0 %v2871, 55
        %v3028 = vpop.permute.xlu0 %3027
        %3029 = vrot.lane.b32.xlu0 %v2872, 55
        %v3030 = vpop.permute.xlu0 %3029
        %3031 = vrot.lane.b32.xlu0 %v2873, 55
        %v3032 = vpop.permute.xlu0 %3031
        %3033 = vrot.lane.b32.xlu0 %v2874, 55
        %v3034 = vpop.permute.xlu0 %3033
        %3035 = vrot.lane.b32.xlu0 %v2875, 55
        %v3036 = vpop.permute.xlu0 %3035
        %3037 = vrot.lane.b32.xlu0 %v2876, 55
        %v3038 = vpop.permute.xlu0 %3037
        %3039 = vrot.lane.b32.xlu0 %v2877, 55
        %v3040 = vpop.permute.xlu0 %3039
        %3041 = vrot.lane.b32.xlu0 %v2878, 55
        %v3042 = vpop.permute.xlu0 %3041
        %vm3043 = vcmask 449536
        %v3044 = vsel %vm3043, %v3028, %v3030
        %v3045 = vsel %vm3043, %v3030, %v3032
        %v3046 = vsel %vm3043, %v3032, %v3034
        %v3047 = vsel %vm3043, %v3034, %v3036
        %v3048 = vsel %vm3043, %v3036, %v3038
        %v3049 = vsel %vm3043, %v3038, %v3040
        %v3050 = vsel %vm3043, %v3040, %v3042
        %v3052 = vsel %vm250, %v3026, 0
        %v3055 = vsel %vm254, %v3044, 0
        %v3058 = vsel %vm254, %v3045, 0
        %v3061 = vsel %vm254, %v3046, 0
        %v3064 = vsel %vm254, %v3047, 0
        %v3067 = vsel %vm254, %v3048, 0
        %v3070 = vsel %vm254, %v3049, 0
        %v3073 = vsel %vm254, %v3050, 0
        %3075 = vmatpush.bf16.msra.mxu0 0
        %3076 = vmatpush.bf16.msra.mxu0 0
        %3077 = vmatpush.bf16.msra.mxu0 0
        %3078 = vmatpush.bf16.msra.mxu0 0
        %3079 = vmatpush.bf16.msra.mxu0 0
        %3080 = vmatpush.bf16.msra.mxu0 0
        %3081 = vmatpush.bf16.msra.mxu0 0
        %3082 = vmatpush.bf16.msra.mxu0 %v3055
        %3083 = vmatmul.bf16.gmra.mxu0 %v3052
        %v3084 = vpop.f32.mrf.mxu0
        %v3085 = vadd.f32 0.0, %v3084
        %v3086 = vpop.f32.mrf.mxu0
        %3087 = vdwg.mxu0
        %3088 = vmatpush.bf16.msra.mxu0 0
        %3089 = vmatpush.bf16.msra.mxu0 0
        %3090 = vmatpush.bf16.msra.mxu0 0
        %3091 = vmatpush.bf16.msra.mxu0 0
        %3092 = vmatpush.bf16.msra.mxu0 0
        %3093 = vmatpush.bf16.msra.mxu0 0
        %3094 = vmatpush.bf16.msra.mxu0 0
        %3095 = vmatpush.bf16.msra.mxu0 %v3058
        %3096 = vmatmul.bf16.gmra.mxu0 %v3052
        %v3097 = vpop.f32.mrf.mxu0
        %v3098 = vadd.f32 0.0, %v3097
        %v3099 = vpop.f32.mrf.mxu0
        %3100 = vdwg.mxu0
        %3101 = vmatpush.bf16.msra.mxu0 0
        %3102 = vmatpush.bf16.msra.mxu0 0
        %3103 = vmatpush.bf16.msra.mxu0 0
        %3104 = vmatpush.bf16.msra.mxu0 0
        %3105 = vmatpush.bf16.msra.mxu0 0
        %3106 = vmatpush.bf16.msra.mxu0 0
        %3107 = vmatpush.bf16.msra.mxu0 0
        %3108 = vmatpush.bf16.msra.mxu0 %v3061
        %3109 = vmatmul.bf16.gmra.mxu0 %v3052
        %v3110 = vpop.f32.mrf.mxu0
        %v3111 = vadd.f32 0.0, %v3110
        %v3112 = vpop.f32.mrf.mxu0
        %3113 = vdwg.mxu0
        %3114 = vmatpush.bf16.msra.mxu0 0
        %3115 = vmatpush.bf16.msra.mxu0 0
        %3116 = vmatpush.bf16.msra.mxu0 0
        %3117 = vmatpush.bf16.msra.mxu0 0
        %3118 = vmatpush.bf16.msra.mxu0 0
        %3119 = vmatpush.bf16.msra.mxu0 0
        %3120 = vmatpush.bf16.msra.mxu0 0
        %3121 = vmatpush.bf16.msra.mxu0 %v3064
        %3122 = vmatmul.bf16.gmra.mxu0 %v3052
        %v3123 = vpop.f32.mrf.mxu0
        %v3124 = vadd.f32 0.0, %v3123
        %v3125 = vpop.f32.mrf.mxu0
        %3126 = vdwg.mxu0
        %3127 = vmatpush.bf16.msra.mxu0 0
        %3128 = vmatpush.bf16.msra.mxu0 0
        %3129 = vmatpush.bf16.msra.mxu0 0
        %3130 = vmatpush.bf16.msra.mxu0 0
        %3131 = vmatpush.bf16.msra.mxu0 0
        %3132 = vmatpush.bf16.msra.mxu0 0
        %3133 = vmatpush.bf16.msra.mxu0 0
        %3134 = vmatpush.bf16.msra.mxu0 %v3067
        %3135 = vmatmul.bf16.gmra.mxu0 %v3052
        %v3136 = vpop.f32.mrf.mxu0
        %v3137 = vadd.f32 0.0, %v3136
        %v3138 = vpop.f32.mrf.mxu0
        %3139 = vdwg.mxu0
        %3140 = vmatpush.bf16.msra.mxu0 0
        %3141 = vmatpush.bf16.msra.mxu0 0
        %3142 = vmatpush.bf16.msra.mxu0 0
        %3143 = vmatpush.bf16.msra.mxu0 0
        %3144 = vmatpush.bf16.msra.mxu0 0
        %3145 = vmatpush.bf16.msra.mxu0 0
        %3146 = vmatpush.bf16.msra.mxu0 0
        %3147 = vmatpush.bf16.msra.mxu0 %v3070
        %3148 = vmatmul.bf16.gmra.mxu0 %v3052
        %v3149 = vpop.f32.mrf.mxu0
        %v3150 = vadd.f32 0.0, %v3149
        %v3151 = vpop.f32.mrf.mxu0
        %3152 = vdwg.mxu0
        %3153 = vmatpush.bf16.msra.mxu0 0
        %3154 = vmatpush.bf16.msra.mxu0 0
        %3155 = vmatpush.bf16.msra.mxu0 0
        %3156 = vmatpush.bf16.msra.mxu0 0
        %3157 = vmatpush.bf16.msra.mxu0 0
        %3158 = vmatpush.bf16.msra.mxu0 0
        %3159 = vmatpush.bf16.msra.mxu0 0
        %3160 = vmatpush.bf16.msra.mxu0 %v3073
        %3161 = vmatmul.bf16.gmra.mxu0 %v3052
        %v3162 = vpop.f32.mrf.mxu0
        %v3163 = vadd.f32 0.0, %v3162
        %v3164 = vpop.f32.mrf.mxu0
        %3165 = vdwg.mxu0
        %v3166 = vadd.f32 %v3018, %v3085
        %v3167 = vadd.f32 %v3019, %v3098
        %v3168 = vadd.f32 %v3020, %v3111
        %v3169 = vadd.f32 %v3021, %v3124
        %v3170 = vadd.f32 %v3022, %v3137
        %v3171 = vadd.f32 %v3023, %v3150
        %v3172 = vadd.f32 %v3024, %v3163
        %s3173 = scalar_lea.vmem %s1, 80
        %v3174 = vld [vmem:[%s3173] sm:$0xf]
        %3175 = vrot.lane.b32.xlu0 %v2871, 54
        %v3176 = vpop.permute.xlu0 %3175
        %3177 = vrot.lane.b32.xlu0 %v2872, 54
        %v3178 = vpop.permute.xlu0 %3177
        %3179 = vrot.lane.b32.xlu0 %v2873, 54
        %v3180 = vpop.permute.xlu0 %3179
        %3181 = vrot.lane.b32.xlu0 %v2874, 54
        %v3182 = vpop.permute.xlu0 %3181
        %3183 = vrot.lane.b32.xlu0 %v2875, 54
        %v3184 = vpop.permute.xlu0 %3183
        %3185 = vrot.lane.b32.xlu0 %v2876, 54
        %v3186 = vpop.permute.xlu0 %3185
        %3187 = vrot.lane.b32.xlu0 %v2877, 54
        %v3188 = vpop.permute.xlu0 %3187
        %3189 = vrot.lane.b32.xlu0 %v2878, 54
        %v3190 = vpop.permute.xlu0 %3189
        %vm3191 = vcmask 441344
        %v3192 = vsel %vm3191, %v3176, %v3178
        %v3193 = vsel %vm3191, %v3178, %v3180
        %v3194 = vsel %vm3191, %v3180, %v3182
        %v3195 = vsel %vm3191, %v3182, %v3184
        %v3196 = vsel %vm3191, %v3184, %v3186
        %v3197 = vsel %vm3191, %v3186, %v3188
        %v3198 = vsel %vm3191, %v3188, %v3190
        %v3200 = vsel %vm250, %v3174, 0
        %v3203 = vsel %vm254, %v3192, 0
        %v3206 = vsel %vm254, %v3193, 0
        %v3209 = vsel %vm254, %v3194, 0
        %v3212 = vsel %vm254, %v3195, 0
        %v3215 = vsel %vm254, %v3196, 0
        %v3218 = vsel %vm254, %v3197, 0
        %v3221 = vsel %vm254, %v3198, 0
        %3223 = vmatpush.bf16.msra.mxu0 0
        %3224 = vmatpush.bf16.msra.mxu0 0
        %3225 = vmatpush.bf16.msra.mxu0 0
        %3226 = vmatpush.bf16.msra.mxu0 0
        %3227 = vmatpush.bf16.msra.mxu0 0
        %3228 = vmatpush.bf16.msra.mxu0 0
        %3229 = vmatpush.bf16.msra.mxu0 0
        %3230 = vmatpush.bf16.msra.mxu0 %v3203
        %3231 = vmatmul.bf16.gmra.mxu0 %v3200
        %v3232 = vpop.f32.mrf.mxu0
        %v3233 = vadd.f32 0.0, %v3232
        %v3234 = vpop.f32.mrf.mxu0
        %3235 = vdwg.mxu0
        %3236 = vmatpush.bf16.msra.mxu0 0
        %3237 = vmatpush.bf16.msra.mxu0 0
        %3238 = vmatpush.bf16.msra.mxu0 0
        %3239 = vmatpush.bf16.msra.mxu0 0
        %3240 = vmatpush.bf16.msra.mxu0 0
        %3241 = vmatpush.bf16.msra.mxu0 0
        %3242 = vmatpush.bf16.msra.mxu0 0
        %3243 = vmatpush.bf16.msra.mxu0 %v3206
        %3244 = vmatmul.bf16.gmra.mxu0 %v3200
        %v3245 = vpop.f32.mrf.mxu0
        %v3246 = vadd.f32 0.0, %v3245
        %v3247 = vpop.f32.mrf.mxu0
        %3248 = vdwg.mxu0
        %3249 = vmatpush.bf16.msra.mxu0 0
        %3250 = vmatpush.bf16.msra.mxu0 0
        %3251 = vmatpush.bf16.msra.mxu0 0
        %3252 = vmatpush.bf16.msra.mxu0 0
        %3253 = vmatpush.bf16.msra.mxu0 0
        %3254 = vmatpush.bf16.msra.mxu0 0
        %3255 = vmatpush.bf16.msra.mxu0 0
        %3256 = vmatpush.bf16.msra.mxu0 %v3209
        %3257 = vmatmul.bf16.gmra.mxu0 %v3200
        %v3258 = vpop.f32.mrf.mxu0
        %v3259 = vadd.f32 0.0, %v3258
        %v3260 = vpop.f32.mrf.mxu0
        %3261 = vdwg.mxu0
        %3262 = vmatpush.bf16.msra.mxu0 0
        %3263 = vmatpush.bf16.msra.mxu0 0
        %3264 = vmatpush.bf16.msra.mxu0 0
        %3265 = vmatpush.bf16.msra.mxu0 0
        %3266 = vmatpush.bf16.msra.mxu0 0
        %3267 = vmatpush.bf16.msra.mxu0 0
        %3268 = vmatpush.bf16.msra.mxu0 0
        %3269 = vmatpush.bf16.msra.mxu0 %v3212
        %3270 = vmatmul.bf16.gmra.mxu0 %v3200
        %v3271 = vpop.f32.mrf.mxu0
        %v3272 = vadd.f32 0.0, %v3271
        %v3273 = vpop.f32.mrf.mxu0
        %3274 = vdwg.mxu0
        %3275 = vmatpush.bf16.msra.mxu0 0
        %3276 = vmatpush.bf16.msra.mxu0 0
        %3277 = vmatpush.bf16.msra.mxu0 0
        %3278 = vmatpush.bf16.msra.mxu0 0
        %3279 = vmatpush.bf16.msra.mxu0 0
        %3280 = vmatpush.bf16.msra.mxu0 0
        %3281 = vmatpush.bf16.msra.mxu0 0
        %3282 = vmatpush.bf16.msra.mxu0 %v3215
        %3283 = vmatmul.bf16.gmra.mxu0 %v3200
        %v3284 = vpop.f32.mrf.mxu0
        %v3285 = vadd.f32 0.0, %v3284
        %v3286 = vpop.f32.mrf.mxu0
        %3287 = vdwg.mxu0
        %3288 = vmatpush.bf16.msra.mxu0 0
        %3289 = vmatpush.bf16.msra.mxu0 0
        %3290 = vmatpush.bf16.msra.mxu0 0
        %3291 = vmatpush.bf16.msra.mxu0 0
        %3292 = vmatpush.bf16.msra.mxu0 0
        %3293 = vmatpush.bf16.msra.mxu0 0
        %3294 = vmatpush.bf16.msra.mxu0 0
        %3295 = vmatpush.bf16.msra.mxu0 %v3218
        %3296 = vmatmul.bf16.gmra.mxu0 %v3200
        %v3297 = vpop.f32.mrf.mxu0
        %v3298 = vadd.f32 0.0, %v3297
        %v3299 = vpop.f32.mrf.mxu0
        %3300 = vdwg.mxu0
        %3301 = vmatpush.bf16.msra.mxu0 0
        %3302 = vmatpush.bf16.msra.mxu0 0
        %3303 = vmatpush.bf16.msra.mxu0 0
        %3304 = vmatpush.bf16.msra.mxu0 0
        %3305 = vmatpush.bf16.msra.mxu0 0
        %3306 = vmatpush.bf16.msra.mxu0 0
        %3307 = vmatpush.bf16.msra.mxu0 0
        %3308 = vmatpush.bf16.msra.mxu0 %v3221
        %3309 = vmatmul.bf16.gmra.mxu0 %v3200
        %v3310 = vpop.f32.mrf.mxu0
        %v3311 = vadd.f32 0.0, %v3310
        %v3312 = vpop.f32.mrf.mxu0
        %3313 = vdwg.mxu0
        %v3314 = vadd.f32 %v3166, %v3233
        %v3315 = vadd.f32 %v3167, %v3246
        %v3316 = vadd.f32 %v3168, %v3259
        %v3317 = vadd.f32 %v3169, %v3272
        %v3318 = vadd.f32 %v3170, %v3285
        %v3319 = vadd.f32 %v3171, %v3298
        %v3320 = vadd.f32 %v3172, %v3311
        %s3321 = scalar_lea.vmem %s1, 84
        %v3322 = vld [vmem:[%s3321] sm:$0xf]
        %3323 = vrot.lane.b32.xlu0 %v2871, 46
        %v3324 = vpop.permute.xlu0 %3323
        %3325 = vrot.lane.b32.xlu0 %v2872, 46
        %v3326 = vpop.permute.xlu0 %3325
        %3327 = vrot.lane.b32.xlu0 %v2873, 46
        %v3328 = vpop.permute.xlu0 %3327
        %3329 = vrot.lane.b32.xlu0 %v2874, 46
        %v3330 = vpop.permute.xlu0 %3329
        %3331 = vrot.lane.b32.xlu0 %v2875, 46
        %v3332 = vpop.permute.xlu0 %3331
        %3333 = vrot.lane.b32.xlu0 %v2876, 46
        %v3334 = vpop.permute.xlu0 %3333
        %3335 = vrot.lane.b32.xlu0 %v2877, 46
        %v3336 = vpop.permute.xlu0 %3335
        %3337 = vrot.lane.b32.xlu0 %v2878, 46
        %v3338 = vpop.permute.xlu0 %3337
        %vm3339 = vcmask 375808
        %v3340 = vsel %vm3339, %v3324, %v3326
        %v3341 = vsel %vm3339, %v3326, %v3328
        %v3342 = vsel %vm3339, %v3328, %v3330
        %v3343 = vsel %vm3339, %v3330, %v3332
        %v3344 = vsel %vm3339, %v3332, %v3334
        %v3345 = vsel %vm3339, %v3334, %v3336
        %v3346 = vsel %vm3339, %v3336, %v3338
        %v3348 = vsel %vm250, %v3322, 0
        %v3351 = vsel %vm254, %v3340, 0
        %v3354 = vsel %vm254, %v3341, 0
        %v3357 = vsel %vm254, %v3342, 0
        %v3360 = vsel %vm254, %v3343, 0
        %v3363 = vsel %vm254, %v3344, 0
        %v3366 = vsel %vm254, %v3345, 0
        %v3369 = vsel %vm254, %v3346, 0
        %3371 = vmatpush.bf16.msra.mxu0 0
        %3372 = vmatpush.bf16.msra.mxu0 0
        %3373 = vmatpush.bf16.msra.mxu0 0
        %3374 = vmatpush.bf16.msra.mxu0 0
        %3375 = vmatpush.bf16.msra.mxu0 0
        %3376 = vmatpush.bf16.msra.mxu0 0
        %3377 = vmatpush.bf16.msra.mxu0 0
        %3378 = vmatpush.bf16.msra.mxu0 %v3351
        %3379 = vmatmul.bf16.gmra.mxu0 %v3348
        %v3380 = vpop.f32.mrf.mxu0
        %v3381 = vadd.f32 0.0, %v3380
        %v3382 = vpop.f32.mrf.mxu0
        %3383 = vdwg.mxu0
        %3384 = vmatpush.bf16.msra.mxu0 0
        %3385 = vmatpush.bf16.msra.mxu0 0
        %3386 = vmatpush.bf16.msra.mxu0 0
        %3387 = vmatpush.bf16.msra.mxu0 0
        %3388 = vmatpush.bf16.msra.mxu0 0
        %3389 = vmatpush.bf16.msra.mxu0 0
        %3390 = vmatpush.bf16.msra.mxu0 0
        %3391 = vmatpush.bf16.msra.mxu0 %v3354
        %3392 = vmatmul.bf16.gmra.mxu0 %v3348
        %v3393 = vpop.f32.mrf.mxu0
        %v3394 = vadd.f32 0.0, %v3393
        %v3395 = vpop.f32.mrf.mxu0
        %3396 = vdwg.mxu0
        %3397 = vmatpush.bf16.msra.mxu0 0
        %3398 = vmatpush.bf16.msra.mxu0 0
        %3399 = vmatpush.bf16.msra.mxu0 0
        %3400 = vmatpush.bf16.msra.mxu0 0
        %3401 = vmatpush.bf16.msra.mxu0 0
        %3402 = vmatpush.bf16.msra.mxu0 0
        %3403 = vmatpush.bf16.msra.mxu0 0
        %3404 = vmatpush.bf16.msra.mxu0 %v3357
        %3405 = vmatmul.bf16.gmra.mxu0 %v3348
        %v3406 = vpop.f32.mrf.mxu0
        %v3407 = vadd.f32 0.0, %v3406
        %v3408 = vpop.f32.mrf.mxu0
        %3409 = vdwg.mxu0
        %3410 = vmatpush.bf16.msra.mxu0 0
        %3411 = vmatpush.bf16.msra.mxu0 0
        %3412 = vmatpush.bf16.msra.mxu0 0
        %3413 = vmatpush.bf16.msra.mxu0 0
        %3414 = vmatpush.bf16.msra.mxu0 0
        %3415 = vmatpush.bf16.msra.mxu0 0
        %3416 = vmatpush.bf16.msra.mxu0 0
        %3417 = vmatpush.bf16.msra.mxu0 %v3360
        %3418 = vmatmul.bf16.gmra.mxu0 %v3348
        %v3419 = vpop.f32.mrf.mxu0
        %v3420 = vadd.f32 0.0, %v3419
        %v3421 = vpop.f32.mrf.mxu0
        %3422 = vdwg.mxu0
        %3423 = vmatpush.bf16.msra.mxu0 0
        %3424 = vmatpush.bf16.msra.mxu0 0
        %3425 = vmatpush.bf16.msra.mxu0 0
        %3426 = vmatpush.bf16.msra.mxu0 0
        %3427 = vmatpush.bf16.msra.mxu0 0
        %3428 = vmatpush.bf16.msra.mxu0 0
        %3429 = vmatpush.bf16.msra.mxu0 0
        %3430 = vmatpush.bf16.msra.mxu0 %v3363
        %3431 = vmatmul.bf16.gmra.mxu0 %v3348
        %v3432 = vpop.f32.mrf.mxu0
        %v3433 = vadd.f32 0.0, %v3432
        %v3434 = vpop.f32.mrf.mxu0
        %3435 = vdwg.mxu0
        %3436 = vmatpush.bf16.msra.mxu0 0
        %3437 = vmatpush.bf16.msra.mxu0 0
        %3438 = vmatpush.bf16.msra.mxu0 0
        %3439 = vmatpush.bf16.msra.mxu0 0
        %3440 = vmatpush.bf16.msra.mxu0 0
        %3441 = vmatpush.bf16.msra.mxu0 0
        %3442 = vmatpush.bf16.msra.mxu0 0
        %3443 = vmatpush.bf16.msra.mxu0 %v3366
        %3444 = vmatmul.bf16.gmra.mxu0 %v3348
        %v3445 = vpop.f32.mrf.mxu0
        %v3446 = vadd.f32 0.0, %v3445
        %v3447 = vpop.f32.mrf.mxu0
        %3448 = vdwg.mxu0
        %3449 = vmatpush.bf16.msra.mxu0 0
        %3450 = vmatpush.bf16.msra.mxu0 0
        %3451 = vmatpush.bf16.msra.mxu0 0
        %3452 = vmatpush.bf16.msra.mxu0 0
        %3453 = vmatpush.bf16.msra.mxu0 0
        %3454 = vmatpush.bf16.msra.mxu0 0
        %3455 = vmatpush.bf16.msra.mxu0 0
        %3456 = vmatpush.bf16.msra.mxu0 %v3369
        %3457 = vmatmul.bf16.gmra.mxu0 %v3348
        %v3458 = vpop.f32.mrf.mxu0
        %v3459 = vadd.f32 0.0, %v3458
        %v3460 = vpop.f32.mrf.mxu0
        %3461 = vdwg.mxu0
        %v3462 = vadd.f32 %v3314, %v3381
        %v3463 = vadd.f32 %v3315, %v3394
        %v3464 = vadd.f32 %v3316, %v3407
        %v3465 = vadd.f32 %v3317, %v3420
        %v3466 = vadd.f32 %v3318, %v3433
        %v3467 = vadd.f32 %v3319, %v3446
        %v3468 = vadd.f32 %v3320, %v3459
        %s3469 = scalar_lea.vmem %s1, 88
        %v3470 = vld [vmem:[%s3469] sm:$0xf]
        %3471 = vrot.lane.b32.xlu0 %v2871, 45
        %v3472 = vpop.permute.xlu0 %3471
        %3473 = vrot.lane.b32.xlu0 %v2872, 45
        %v3474 = vpop.permute.xlu0 %3473
        %3475 = vrot.lane.b32.xlu0 %v2873, 45
        %v3476 = vpop.permute.xlu0 %3475
        %3477 = vrot.lane.b32.xlu0 %v2874, 45
        %v3478 = vpop.permute.xlu0 %3477
        %3479 = vrot.lane.b32.xlu0 %v2875, 45
        %v3480 = vpop.permute.xlu0 %3479
        %3481 = vrot.lane.b32.xlu0 %v2876, 45
        %v3482 = vpop.permute.xlu0 %3481
        %3483 = vrot.lane.b32.xlu0 %v2877, 45
        %v3484 = vpop.permute.xlu0 %3483
        %3485 = vrot.lane.b32.xlu0 %v2878, 45
        %v3486 = vpop.permute.xlu0 %3485
        %vm3487 = vcmask 367616
        %v3488 = vsel %vm3487, %v3472, %v3474
        %v3489 = vsel %vm3487, %v3474, %v3476
        %v3490 = vsel %vm3487, %v3476, %v3478
        %v3491 = vsel %vm3487, %v3478, %v3480
        %v3492 = vsel %vm3487, %v3480, %v3482
        %v3493 = vsel %vm3487, %v3482, %v3484
        %v3494 = vsel %vm3487, %v3484, %v3486
        %v3496 = vsel %vm250, %v3470, 0
        %v3499 = vsel %vm254, %v3488, 0
        %v3502 = vsel %vm254, %v3489, 0
        %v3505 = vsel %vm254, %v3490, 0
        %v3508 = vsel %vm254, %v3491, 0
        %v3511 = vsel %vm254, %v3492, 0
        %v3514 = vsel %vm254, %v3493, 0
        %v3517 = vsel %vm254, %v3494, 0
        %3519 = vmatpush.bf16.msra.mxu0 0
        %3520 = vmatpush.bf16.msra.mxu0 0
        %3521 = vmatpush.bf16.msra.mxu0 0
        %3522 = vmatpush.bf16.msra.mxu0 0
        %3523 = vmatpush.bf16.msra.mxu0 0
        %3524 = vmatpush.bf16.msra.mxu0 0
        %3525 = vmatpush.bf16.msra.mxu0 0
        %3526 = vmatpush.bf16.msra.mxu0 %v3499
        %3527 = vmatmul.bf16.gmra.mxu0 %v3496
        %v3528 = vpop.f32.mrf.mxu0
        %v3529 = vadd.f32 0.0, %v3528
        %v3530 = vpop.f32.mrf.mxu0
        %3531 = vdwg.mxu0
        %3532 = vmatpush.bf16.msra.mxu0 0
        %3533 = vmatpush.bf16.msra.mxu0 0
        %3534 = vmatpush.bf16.msra.mxu0 0
        %3535 = vmatpush.bf16.msra.mxu0 0
        %3536 = vmatpush.bf16.msra.mxu0 0
        %3537 = vmatpush.bf16.msra.mxu0 0
        %3538 = vmatpush.bf16.msra.mxu0 0
        %3539 = vmatpush.bf16.msra.mxu0 %v3502
        %3540 = vmatmul.bf16.gmra.mxu0 %v3496
        %v3541 = vpop.f32.mrf.mxu0
        %v3542 = vadd.f32 0.0, %v3541
        %v3543 = vpop.f32.mrf.mxu0
        %3544 = vdwg.mxu0
        %3545 = vmatpush.bf16.msra.mxu0 0
        %3546 = vmatpush.bf16.msra.mxu0 0
        %3547 = vmatpush.bf16.msra.mxu0 0
        %3548 = vmatpush.bf16.msra.mxu0 0
        %3549 = vmatpush.bf16.msra.mxu0 0
        %3550 = vmatpush.bf16.msra.mxu0 0
        %3551 = vmatpush.bf16.msra.mxu0 0
        %3552 = vmatpush.bf16.msra.mxu0 %v3505
        %3553 = vmatmul.bf16.gmra.mxu0 %v3496
        %v3554 = vpop.f32.mrf.mxu0
        %v3555 = vadd.f32 0.0, %v3554
        %v3556 = vpop.f32.mrf.mxu0
        %3557 = vdwg.mxu0
        %3558 = vmatpush.bf16.msra.mxu0 0
        %3559 = vmatpush.bf16.msra.mxu0 0
        %3560 = vmatpush.bf16.msra.mxu0 0
        %3561 = vmatpush.bf16.msra.mxu0 0
        %3562 = vmatpush.bf16.msra.mxu0 0
        %3563 = vmatpush.bf16.msra.mxu0 0
        %3564 = vmatpush.bf16.msra.mxu0 0
        %3565 = vmatpush.bf16.msra.mxu0 %v3508
        %3566 = vmatmul.bf16.gmra.mxu0 %v3496
        %v3567 = vpop.f32.mrf.mxu0
        %v3568 = vadd.f32 0.0, %v3567
        %v3569 = vpop.f32.mrf.mxu0
        %3570 = vdwg.mxu0
        %3571 = vmatpush.bf16.msra.mxu0 0
        %3572 = vmatpush.bf16.msra.mxu0 0
        %3573 = vmatpush.bf16.msra.mxu0 0
        %3574 = vmatpush.bf16.msra.mxu0 0
        %3575 = vmatpush.bf16.msra.mxu0 0
        %3576 = vmatpush.bf16.msra.mxu0 0
        %3577 = vmatpush.bf16.msra.mxu0 0
        %3578 = vmatpush.bf16.msra.mxu0 %v3511
        %3579 = vmatmul.bf16.gmra.mxu0 %v3496
        %v3580 = vpop.f32.mrf.mxu0
        %v3581 = vadd.f32 0.0, %v3580
        %v3582 = vpop.f32.mrf.mxu0
        %3583 = vdwg.mxu0
        %3584 = vmatpush.bf16.msra.mxu0 0
        %3585 = vmatpush.bf16.msra.mxu0 0
        %3586 = vmatpush.bf16.msra.mxu0 0
        %3587 = vmatpush.bf16.msra.mxu0 0
        %3588 = vmatpush.bf16.msra.mxu0 0
        %3589 = vmatpush.bf16.msra.mxu0 0
        %3590 = vmatpush.bf16.msra.mxu0 0
        %3591 = vmatpush.bf16.msra.mxu0 %v3514
        %3592 = vmatmul.bf16.gmra.mxu0 %v3496
        %v3593 = vpop.f32.mrf.mxu0
        %v3594 = vadd.f32 0.0, %v3593
        %v3595 = vpop.f32.mrf.mxu0
        %3596 = vdwg.mxu0
        %3597 = vmatpush.bf16.msra.mxu0 0
        %3598 = vmatpush.bf16.msra.mxu0 0
        %3599 = vmatpush.bf16.msra.mxu0 0
        %3600 = vmatpush.bf16.msra.mxu0 0
        %3601 = vmatpush.bf16.msra.mxu0 0
        %3602 = vmatpush.bf16.msra.mxu0 0
        %3603 = vmatpush.bf16.msra.mxu0 0
        %3604 = vmatpush.bf16.msra.mxu0 %v3517
        %3605 = vmatmul.bf16.gmra.mxu0 %v3496
        %v3606 = vpop.f32.mrf.mxu0
        %v3607 = vadd.f32 0.0, %v3606
        %v3608 = vpop.f32.mrf.mxu0
        %3609 = vdwg.mxu0
        %v3610 = vadd.f32 %v3462, %v3529
        %v3611 = vadd.f32 %v3463, %v3542
        %v3612 = vadd.f32 %v3464, %v3555
        %v3613 = vadd.f32 %v3465, %v3568
        %v3614 = vadd.f32 %v3466, %v3581
        %v3615 = vadd.f32 %v3467, %v3594
        %v3616 = vadd.f32 %v3468, %v3607
        %s3617 = scalar_lea.vmem %s1, 92
        %v3618 = vld [vmem:[%s3617] sm:$0xf]
        %3619 = vrot.lane.b32.xlu0 %v2871, 44
        %v3620 = vpop.permute.xlu0 %3619
        %3621 = vrot.lane.b32.xlu0 %v2872, 44
        %v3622 = vpop.permute.xlu0 %3621
        %3623 = vrot.lane.b32.xlu0 %v2873, 44
        %v3624 = vpop.permute.xlu0 %3623
        %3625 = vrot.lane.b32.xlu0 %v2874, 44
        %v3626 = vpop.permute.xlu0 %3625
        %3627 = vrot.lane.b32.xlu0 %v2875, 44
        %v3628 = vpop.permute.xlu0 %3627
        %3629 = vrot.lane.b32.xlu0 %v2876, 44
        %v3630 = vpop.permute.xlu0 %3629
        %3631 = vrot.lane.b32.xlu0 %v2877, 44
        %v3632 = vpop.permute.xlu0 %3631
        %3633 = vrot.lane.b32.xlu0 %v2878, 44
        %v3634 = vpop.permute.xlu0 %3633
        %vm3635 = vcmask 359424
        %v3636 = vsel %vm3635, %v3620, %v3622
        %v3637 = vsel %vm3635, %v3622, %v3624
        %v3638 = vsel %vm3635, %v3624, %v3626
        %v3639 = vsel %vm3635, %v3626, %v3628
        %v3640 = vsel %vm3635, %v3628, %v3630
        %v3641 = vsel %vm3635, %v3630, %v3632
        %v3642 = vsel %vm3635, %v3632, %v3634
        %v3644 = vsel %vm250, %v3618, 0
        %v3647 = vsel %vm254, %v3636, 0
        %v3650 = vsel %vm254, %v3637, 0
        %v3653 = vsel %vm254, %v3638, 0
        %v3656 = vsel %vm254, %v3639, 0
        %v3659 = vsel %vm254, %v3640, 0
        %v3662 = vsel %vm254, %v3641, 0
        %v3665 = vsel %vm254, %v3642, 0
        %3667 = vmatpush.bf16.msra.mxu0 0
        %3668 = vmatpush.bf16.msra.mxu0 0
        %3669 = vmatpush.bf16.msra.mxu0 0
        %3670 = vmatpush.bf16.msra.mxu0 0
        %3671 = vmatpush.bf16.msra.mxu0 0
        %3672 = vmatpush.bf16.msra.mxu0 0
        %3673 = vmatpush.bf16.msra.mxu0 0
        %3674 = vmatpush.bf16.msra.mxu0 %v3647
        %3675 = vmatmul.bf16.gmra.mxu0 %v3644
        %v3676 = vpop.f32.mrf.mxu0
        %v3677 = vadd.f32 0.0, %v3676
        %v3678 = vpop.f32.mrf.mxu0
        %3679 = vdwg.mxu0
        %3680 = vmatpush.bf16.msra.mxu0 0
        %3681 = vmatpush.bf16.msra.mxu0 0
        %3682 = vmatpush.bf16.msra.mxu0 0
        %3683 = vmatpush.bf16.msra.mxu0 0
        %3684 = vmatpush.bf16.msra.mxu0 0
        %3685 = vmatpush.bf16.msra.mxu0 0
        %3686 = vmatpush.bf16.msra.mxu0 0
        %3687 = vmatpush.bf16.msra.mxu0 %v3650
        %3688 = vmatmul.bf16.gmra.mxu0 %v3644
        %v3689 = vpop.f32.mrf.mxu0
        %v3690 = vadd.f32 0.0, %v3689
        %v3691 = vpop.f32.mrf.mxu0
        %3692 = vdwg.mxu0
        %3693 = vmatpush.bf16.msra.mxu0 0
        %3694 = vmatpush.bf16.msra.mxu0 0
        %3695 = vmatpush.bf16.msra.mxu0 0
        %3696 = vmatpush.bf16.msra.mxu0 0
        %3697 = vmatpush.bf16.msra.mxu0 0
        %3698 = vmatpush.bf16.msra.mxu0 0
        %3699 = vmatpush.bf16.msra.mxu0 0
        %3700 = vmatpush.bf16.msra.mxu0 %v3653
        %3701 = vmatmul.bf16.gmra.mxu0 %v3644
        %v3702 = vpop.f32.mrf.mxu0
        %v3703 = vadd.f32 0.0, %v3702
        %v3704 = vpop.f32.mrf.mxu0
        %3705 = vdwg.mxu0
        %3706 = vmatpush.bf16.msra.mxu0 0
        %3707 = vmatpush.bf16.msra.mxu0 0
        %3708 = vmatpush.bf16.msra.mxu0 0
        %3709 = vmatpush.bf16.msra.mxu0 0
        %3710 = vmatpush.bf16.msra.mxu0 0
        %3711 = vmatpush.bf16.msra.mxu0 0
        %3712 = vmatpush.bf16.msra.mxu0 0
        %3713 = vmatpush.bf16.msra.mxu0 %v3656
        %3714 = vmatmul.bf16.gmra.mxu0 %v3644
        %v3715 = vpop.f32.mrf.mxu0
        %v3716 = vadd.f32 0.0, %v3715
        %v3717 = vpop.f32.mrf.mxu0
        %3718 = vdwg.mxu0
        %3719 = vmatpush.bf16.msra.mxu0 0
        %3720 = vmatpush.bf16.msra.mxu0 0
        %3721 = vmatpush.bf16.msra.mxu0 0
        %3722 = vmatpush.bf16.msra.mxu0 0
        %3723 = vmatpush.bf16.msra.mxu0 0
        %3724 = vmatpush.bf16.msra.mxu0 0
        %3725 = vmatpush.bf16.msra.mxu0 0
        %3726 = vmatpush.bf16.msra.mxu0 %v3659
        %3727 = vmatmul.bf16.gmra.mxu0 %v3644
        %v3728 = vpop.f32.mrf.mxu0
        %v3729 = vadd.f32 0.0, %v3728
        %v3730 = vpop.f32.mrf.mxu0
        %3731 = vdwg.mxu0
        %3732 = vmatpush.bf16.msra.mxu0 0
        %3733 = vmatpush.bf16.msra.mxu0 0
        %3734 = vmatpush.bf16.msra.mxu0 0
        %3735 = vmatpush.bf16.msra.mxu0 0
        %3736 = vmatpush.bf16.msra.mxu0 0
        %3737 = vmatpush.bf16.msra.mxu0 0
        %3738 = vmatpush.bf16.msra.mxu0 0
        %3739 = vmatpush.bf16.msra.mxu0 %v3662
        %3740 = vmatmul.bf16.gmra.mxu0 %v3644
        %v3741 = vpop.f32.mrf.mxu0
        %v3742 = vadd.f32 0.0, %v3741
        %v3743 = vpop.f32.mrf.mxu0
        %3744 = vdwg.mxu0
        %3745 = vmatpush.bf16.msra.mxu0 0
        %3746 = vmatpush.bf16.msra.mxu0 0
        %3747 = vmatpush.bf16.msra.mxu0 0
        %3748 = vmatpush.bf16.msra.mxu0 0
        %3749 = vmatpush.bf16.msra.mxu0 0
        %3750 = vmatpush.bf16.msra.mxu0 0
        %3751 = vmatpush.bf16.msra.mxu0 0
        %3752 = vmatpush.bf16.msra.mxu0 %v3665
        %3753 = vmatmul.bf16.gmra.mxu0 %v3644
        %v3754 = vpop.f32.mrf.mxu0
        %v3755 = vadd.f32 0.0, %v3754
        %v3756 = vpop.f32.mrf.mxu0
        %3757 = vdwg.mxu0
        %v3758 = vadd.f32 %v3610, %v3677
        %v3759 = vadd.f32 %v3611, %v3690
        %v3760 = vadd.f32 %v3612, %v3703
        %v3761 = vadd.f32 %v3613, %v3716
        %v3762 = vadd.f32 %v3614, %v3729
        %v3763 = vadd.f32 %v3615, %v3742
        %v3764 = vadd.f32 %v3616, %v3755
        %s3765 = scalar_lea.vmem %s1, 96
        %v3766 = vld [vmem:[%s3765] sm:$0xf]
        %3767 = vrot.lane.b32.xlu0 %v2871, 36
        %v3768 = vpop.permute.xlu0 %3767
        %3769 = vrot.lane.b32.xlu0 %v2872, 36
        %v3770 = vpop.permute.xlu0 %3769
        %3771 = vrot.lane.b32.xlu0 %v2873, 36
        %v3772 = vpop.permute.xlu0 %3771
        %3773 = vrot.lane.b32.xlu0 %v2874, 36
        %v3774 = vpop.permute.xlu0 %3773
        %3775 = vrot.lane.b32.xlu0 %v2875, 36
        %v3776 = vpop.permute.xlu0 %3775
        %3777 = vrot.lane.b32.xlu0 %v2876, 36
        %v3778 = vpop.permute.xlu0 %3777
        %3779 = vrot.lane.b32.xlu0 %v2877, 36
        %v3780 = vpop.permute.xlu0 %3779
        %3781 = vrot.lane.b32.xlu0 %v2878, 36
        %v3782 = vpop.permute.xlu0 %3781
        %vm3783 = vcmask 293888
        %v3784 = vsel %vm3783, %v3768, %v3770
        %v3785 = vsel %vm3783, %v3770, %v3772
        %v3786 = vsel %vm3783, %v3772, %v3774
        %v3787 = vsel %vm3783, %v3774, %v3776
        %v3788 = vsel %vm3783, %v3776, %v3778
        %v3789 = vsel %vm3783, %v3778, %v3780
        %v3790 = vsel %vm3783, %v3780, %v3782
        %v3792 = vsel %vm250, %v3766, 0
        %v3795 = vsel %vm254, %v3784, 0
        %v3798 = vsel %vm254, %v3785, 0
        %v3801 = vsel %vm254, %v3786, 0
        %v3804 = vsel %vm254, %v3787, 0
        %v3807 = vsel %vm254, %v3788, 0
        %v3810 = vsel %vm254, %v3789, 0
        %v3813 = vsel %vm254, %v3790, 0
        %3815 = vmatpush.bf16.msra.mxu0 0
        %3816 = vmatpush.bf16.msra.mxu0 0
        %3817 = vmatpush.bf16.msra.mxu0 0
        %3818 = vmatpush.bf16.msra.mxu0 0
        %3819 = vmatpush.bf16.msra.mxu0 0
        %3820 = vmatpush.bf16.msra.mxu0 0
        %3821 = vmatpush.bf16.msra.mxu0 0
        %3822 = vmatpush.bf16.msra.mxu0 %v3795
        %3823 = vmatmul.bf16.gmra.mxu0 %v3792
        %v3824 = vpop.f32.mrf.mxu0
        %v3825 = vadd.f32 0.0, %v3824
        %v3826 = vpop.f32.mrf.mxu0
        %3827 = vdwg.mxu0
        %3828 = vmatpush.bf16.msra.mxu0 0
        %3829 = vmatpush.bf16.msra.mxu0 0
        %3830 = vmatpush.bf16.msra.mxu0 0
        %3831 = vmatpush.bf16.msra.mxu0 0
        %3832 = vmatpush.bf16.msra.mxu0 0
        %3833 = vmatpush.bf16.msra.mxu0 0
        %3834 = vmatpush.bf16.msra.mxu0 0
        %3835 = vmatpush.bf16.msra.mxu0 %v3798
        %3836 = vmatmul.bf16.gmra.mxu0 %v3792
        %v3837 = vpop.f32.mrf.mxu0
        %v3838 = vadd.f32 0.0, %v3837
        %v3839 = vpop.f32.mrf.mxu0
        %3840 = vdwg.mxu0
        %3841 = vmatpush.bf16.msra.mxu0 0
        %3842 = vmatpush.bf16.msra.mxu0 0
        %3843 = vmatpush.bf16.msra.mxu0 0
        %3844 = vmatpush.bf16.msra.mxu0 0
        %3845 = vmatpush.bf16.msra.mxu0 0
        %3846 = vmatpush.bf16.msra.mxu0 0
        %3847 = vmatpush.bf16.msra.mxu0 0
        %3848 = vmatpush.bf16.msra.mxu0 %v3801
        %3849 = vmatmul.bf16.gmra.mxu0 %v3792
        %v3850 = vpop.f32.mrf.mxu0
        %v3851 = vadd.f32 0.0, %v3850
        %v3852 = vpop.f32.mrf.mxu0
        %3853 = vdwg.mxu0
        %3854 = vmatpush.bf16.msra.mxu0 0
        %3855 = vmatpush.bf16.msra.mxu0 0
        %3856 = vmatpush.bf16.msra.mxu0 0
        %3857 = vmatpush.bf16.msra.mxu0 0
        %3858 = vmatpush.bf16.msra.mxu0 0
        %3859 = vmatpush.bf16.msra.mxu0 0
        %3860 = vmatpush.bf16.msra.mxu0 0
        %3861 = vmatpush.bf16.msra.mxu0 %v3804
        %3862 = vmatmul.bf16.gmra.mxu0 %v3792
        %v3863 = vpop.f32.mrf.mxu0
        %v3864 = vadd.f32 0.0, %v3863
        %v3865 = vpop.f32.mrf.mxu0
        %3866 = vdwg.mxu0
        %3867 = vmatpush.bf16.msra.mxu0 0
        %3868 = vmatpush.bf16.msra.mxu0 0
        %3869 = vmatpush.bf16.msra.mxu0 0
        %3870 = vmatpush.bf16.msra.mxu0 0
        %3871 = vmatpush.bf16.msra.mxu0 0
        %3872 = vmatpush.bf16.msra.mxu0 0
        %3873 = vmatpush.bf16.msra.mxu0 0
        %3874 = vmatpush.bf16.msra.mxu0 %v3807
        %3875 = vmatmul.bf16.gmra.mxu0 %v3792
        %v3876 = vpop.f32.mrf.mxu0
        %v3877 = vadd.f32 0.0, %v3876
        %v3878 = vpop.f32.mrf.mxu0
        %3879 = vdwg.mxu0
        %3880 = vmatpush.bf16.msra.mxu0 0
        %3881 = vmatpush.bf16.msra.mxu0 0
        %3882 = vmatpush.bf16.msra.mxu0 0
        %3883 = vmatpush.bf16.msra.mxu0 0
        %3884 = vmatpush.bf16.msra.mxu0 0
        %3885 = vmatpush.bf16.msra.mxu0 0
        %3886 = vmatpush.bf16.msra.mxu0 0
        %3887 = vmatpush.bf16.msra.mxu0 %v3810
        %3888 = vmatmul.bf16.gmra.mxu0 %v3792
        %v3889 = vpop.f32.mrf.mxu0
        %v3890 = vadd.f32 0.0, %v3889
        %v3891 = vpop.f32.mrf.mxu0
        %3892 = vdwg.mxu0
        %3893 = vmatpush.bf16.msra.mxu0 0
        %3894 = vmatpush.bf16.msra.mxu0 0
        %3895 = vmatpush.bf16.msra.mxu0 0
        %3896 = vmatpush.bf16.msra.mxu0 0
        %3897 = vmatpush.bf16.msra.mxu0 0
        %3898 = vmatpush.bf16.msra.mxu0 0
        %3899 = vmatpush.bf16.msra.mxu0 0
        %3900 = vmatpush.bf16.msra.mxu0 %v3813
        %3901 = vmatmul.bf16.gmra.mxu0 %v3792
        %v3902 = vpop.f32.mrf.mxu0
        %v3903 = vadd.f32 0.0, %v3902
        %v3904 = vpop.f32.mrf.mxu0
        %3905 = vdwg.mxu0
        %v3906 = vadd.f32 %v3758, %v3825
        %v3907 = vadd.f32 %v3759, %v3838
        %v3908 = vadd.f32 %v3760, %v3851
        %v3909 = vadd.f32 %v3761, %v3864
        %v3910 = vadd.f32 %v3762, %v3877
        %v3911 = vadd.f32 %v3763, %v3890
        %v3912 = vadd.f32 %v3764, %v3903
        %s3913 = scalar_lea.vmem %s1, 100
        %v3914 = vld [vmem:[%s3913] sm:$0xf]
        %3915 = vrot.lane.b32.xlu0 %v2871, 35
        %v3916 = vpop.permute.xlu0 %3915
        %3917 = vrot.lane.b32.xlu0 %v2872, 35
        %v3918 = vpop.permute.xlu0 %3917
        %3919 = vrot.lane.b32.xlu0 %v2873, 35
        %v3920 = vpop.permute.xlu0 %3919
        %3921 = vrot.lane.b32.xlu0 %v2874, 35
        %v3922 = vpop.permute.xlu0 %3921
        %3923 = vrot.lane.b32.xlu0 %v2875, 35
        %v3924 = vpop.permute.xlu0 %3923
        %3925 = vrot.lane.b32.xlu0 %v2876, 35
        %v3926 = vpop.permute.xlu0 %3925
        %3927 = vrot.lane.b32.xlu0 %v2877, 35
        %v3928 = vpop.permute.xlu0 %3927
        %3929 = vrot.lane.b32.xlu0 %v2878, 35
        %v3930 = vpop.permute.xlu0 %3929
        %vm3931 = vcmask 285696
        %v3932 = vsel %vm3931, %v3916, %v3918
        %v3933 = vsel %vm3931, %v3918, %v3920
        %v3934 = vsel %vm3931, %v3920, %v3922
        %v3935 = vsel %vm3931, %v3922, %v3924
        %v3936 = vsel %vm3931, %v3924, %v3926
        %v3937 = vsel %vm3931, %v3926, %v3928
        %v3938 = vsel %vm3931, %v3928, %v3930
        %v3940 = vsel %vm250, %v3914, 0
        %v3943 = vsel %vm254, %v3932, 0
        %v3946 = vsel %vm254, %v3933, 0
        %v3949 = vsel %vm254, %v3934, 0
        %v3952 = vsel %vm254, %v3935, 0
        %v3955 = vsel %vm254, %v3936, 0
        %v3958 = vsel %vm254, %v3937, 0
        %v3961 = vsel %vm254, %v3938, 0
        %3963 = vmatpush.bf16.msra.mxu0 0
        %3964 = vmatpush.bf16.msra.mxu0 0
        %3965 = vmatpush.bf16.msra.mxu0 0
        %3966 = vmatpush.bf16.msra.mxu0 0
        %3967 = vmatpush.bf16.msra.mxu0 0
        %3968 = vmatpush.bf16.msra.mxu0 0
        %3969 = vmatpush.bf16.msra.mxu0 0
        %3970 = vmatpush.bf16.msra.mxu0 %v3943
        %3971 = vmatmul.bf16.gmra.mxu0 %v3940
        %v3972 = vpop.f32.mrf.mxu0
        %v3973 = vadd.f32 0.0, %v3972
        %v3974 = vpop.f32.mrf.mxu0
        %3975 = vdwg.mxu0
        %3976 = vmatpush.bf16.msra.mxu0 0
        %3977 = vmatpush.bf16.msra.mxu0 0
        %3978 = vmatpush.bf16.msra.mxu0 0
        %3979 = vmatpush.bf16.msra.mxu0 0
        %3980 = vmatpush.bf16.msra.mxu0 0
        %3981 = vmatpush.bf16.msra.mxu0 0
        %3982 = vmatpush.bf16.msra.mxu0 0
        %3983 = vmatpush.bf16.msra.mxu0 %v3946
        %3984 = vmatmul.bf16.gmra.mxu0 %v3940
        %v3985 = vpop.f32.mrf.mxu0
        %v3986 = vadd.f32 0.0, %v3985
        %v3987 = vpop.f32.mrf.mxu0
        %3988 = vdwg.mxu0
        %3989 = vmatpush.bf16.msra.mxu0 0
        %3990 = vmatpush.bf16.msra.mxu0 0
        %3991 = vmatpush.bf16.msra.mxu0 0
        %3992 = vmatpush.bf16.msra.mxu0 0
        %3993 = vmatpush.bf16.msra.mxu0 0
        %3994 = vmatpush.bf16.msra.mxu0 0
        %3995 = vmatpush.bf16.msra.mxu0 0
        %3996 = vmatpush.bf16.msra.mxu0 %v3949
        %3997 = vmatmul.bf16.gmra.mxu0 %v3940
        %v3998 = vpop.f32.mrf.mxu0
        %v3999 = vadd.f32 0.0, %v3998
        %v4000 = vpop.f32.mrf.mxu0
        %4001 = vdwg.mxu0
        %4002 = vmatpush.bf16.msra.mxu0 0
        %4003 = vmatpush.bf16.msra.mxu0 0
        %4004 = vmatpush.bf16.msra.mxu0 0
        %4005 = vmatpush.bf16.msra.mxu0 0
        %4006 = vmatpush.bf16.msra.mxu0 0
        %4007 = vmatpush.bf16.msra.mxu0 0
        %4008 = vmatpush.bf16.msra.mxu0 0
        %4009 = vmatpush.bf16.msra.mxu0 %v3952
        %4010 = vmatmul.bf16.gmra.mxu0 %v3940
        %v4011 = vpop.f32.mrf.mxu0
        %v4012 = vadd.f32 0.0, %v4011
        %v4013 = vpop.f32.mrf.mxu0
        %4014 = vdwg.mxu0
        %4015 = vmatpush.bf16.msra.mxu0 0
        %4016 = vmatpush.bf16.msra.mxu0 0
        %4017 = vmatpush.bf16.msra.mxu0 0
        %4018 = vmatpush.bf16.msra.mxu0 0
        %4019 = vmatpush.bf16.msra.mxu0 0
        %4020 = vmatpush.bf16.msra.mxu0 0
        %4021 = vmatpush.bf16.msra.mxu0 0
        %4022 = vmatpush.bf16.msra.mxu0 %v3955
        %4023 = vmatmul.bf16.gmra.mxu0 %v3940
        %v4024 = vpop.f32.mrf.mxu0
        %v4025 = vadd.f32 0.0, %v4024
        %v4026 = vpop.f32.mrf.mxu0
        %4027 = vdwg.mxu0
        %4028 = vmatpush.bf16.msra.mxu0 0
        %4029 = vmatpush.bf16.msra.mxu0 0
        %4030 = vmatpush.bf16.msra.mxu0 0
        %4031 = vmatpush.bf16.msra.mxu0 0
        %4032 = vmatpush.bf16.msra.mxu0 0
        %4033 = vmatpush.bf16.msra.mxu0 0
        %4034 = vmatpush.bf16.msra.mxu0 0
        %4035 = vmatpush.bf16.msra.mxu0 %v3958
        %4036 = vmatmul.bf16.gmra.mxu0 %v3940
        %v4037 = vpop.f32.mrf.mxu0
        %v4038 = vadd.f32 0.0, %v4037
        %v4039 = vpop.f32.mrf.mxu0
        %4040 = vdwg.mxu0
        %4041 = vmatpush.bf16.msra.mxu0 0
        %4042 = vmatpush.bf16.msra.mxu0 0
        %4043 = vmatpush.bf16.msra.mxu0 0
        %4044 = vmatpush.bf16.msra.mxu0 0
        %4045 = vmatpush.bf16.msra.mxu0 0
        %4046 = vmatpush.bf16.msra.mxu0 0
        %4047 = vmatpush.bf16.msra.mxu0 0
        %4048 = vmatpush.bf16.msra.mxu0 %v3961
        %4049 = vmatmul.bf16.gmra.mxu0 %v3940
        %v4050 = vpop.f32.mrf.mxu0
        %v4051 = vadd.f32 0.0, %v4050
        %v4052 = vpop.f32.mrf.mxu0
        %4053 = vdwg.mxu0
        %v4054 = vadd.f32 %v3906, %v3973
        %v4055 = vadd.f32 %v3907, %v3986
        %v4056 = vadd.f32 %v3908, %v3999
        %v4057 = vadd.f32 %v3909, %v4012
        %v4058 = vadd.f32 %v3910, %v4025
        %v4059 = vadd.f32 %v3911, %v4038
        %v4060 = vadd.f32 %v3912, %v4051
        %s4061 = scalar_lea.vmem %s1, 104
        %v4062 = vld [vmem:[%s4061] sm:$0xf]
        %4063 = vrot.lane.b32.xlu0 %v2871, 34
        %v4064 = vpop.permute.xlu0 %4063
        %4065 = vrot.lane.b32.xlu0 %v2872, 34
        %v4066 = vpop.permute.xlu0 %4065
        %4067 = vrot.lane.b32.xlu0 %v2873, 34
        %v4068 = vpop.permute.xlu0 %4067
        %4069 = vrot.lane.b32.xlu0 %v2874, 34
        %v4070 = vpop.permute.xlu0 %4069
        %4071 = vrot.lane.b32.xlu0 %v2875, 34
        %v4072 = vpop.permute.xlu0 %4071
        %4073 = vrot.lane.b32.xlu0 %v2876, 34
        %v4074 = vpop.permute.xlu0 %4073
        %4075 = vrot.lane.b32.xlu0 %v2877, 34
        %v4076 = vpop.permute.xlu0 %4075
        %4077 = vrot.lane.b32.xlu0 %v2878, 34
        %v4078 = vpop.permute.xlu0 %4077
        %vm4079 = vcmask 277504
        %v4080 = vsel %vm4079, %v4064, %v4066
        %v4081 = vsel %vm4079, %v4066, %v4068
        %v4082 = vsel %vm4079, %v4068, %v4070
        %v4083 = vsel %vm4079, %v4070, %v4072
        %v4084 = vsel %vm4079, %v4072, %v4074
        %v4085 = vsel %vm4079, %v4074, %v4076
        %v4086 = vsel %vm4079, %v4076, %v4078
        %v4088 = vsel %vm250, %v4062, 0
        %v4091 = vsel %vm254, %v4080, 0
        %v4094 = vsel %vm254, %v4081, 0
        %v4097 = vsel %vm254, %v4082, 0
        %v4100 = vsel %vm254, %v4083, 0
        %v4103 = vsel %vm254, %v4084, 0
        %v4106 = vsel %vm254, %v4085, 0
        %v4109 = vsel %vm254, %v4086, 0
        %4111 = vmatpush.bf16.msra.mxu0 0
        %4112 = vmatpush.bf16.msra.mxu0 0
        %4113 = vmatpush.bf16.msra.mxu0 0
        %4114 = vmatpush.bf16.msra.mxu0 0
        %4115 = vmatpush.bf16.msra.mxu0 0
        %4116 = vmatpush.bf16.msra.mxu0 0
        %4117 = vmatpush.bf16.msra.mxu0 0
        %4118 = vmatpush.bf16.msra.mxu0 %v4091
        %4119 = vmatmul.bf16.gmra.mxu0 %v4088
        %v4120 = vpop.f32.mrf.mxu0
        %v4121 = vadd.f32 0.0, %v4120
        %v4122 = vpop.f32.mrf.mxu0
        %4123 = vdwg.mxu0
        %4124 = vmatpush.bf16.msra.mxu0 0
        %4125 = vmatpush.bf16.msra.mxu0 0
        %4126 = vmatpush.bf16.msra.mxu0 0
        %4127 = vmatpush.bf16.msra.mxu0 0
        %4128 = vmatpush.bf16.msra.mxu0 0
        %4129 = vmatpush.bf16.msra.mxu0 0
        %4130 = vmatpush.bf16.msra.mxu0 0
        %4131 = vmatpush.bf16.msra.mxu0 %v4094
        %4132 = vmatmul.bf16.gmra.mxu0 %v4088
        %v4133 = vpop.f32.mrf.mxu0
        %v4134 = vadd.f32 0.0, %v4133
        %v4135 = vpop.f32.mrf.mxu0
        %4136 = vdwg.mxu0
        %4137 = vmatpush.bf16.msra.mxu0 0
        %4138 = vmatpush.bf16.msra.mxu0 0
        %4139 = vmatpush.bf16.msra.mxu0 0
        %4140 = vmatpush.bf16.msra.mxu0 0
        %4141 = vmatpush.bf16.msra.mxu0 0
        %4142 = vmatpush.bf16.msra.mxu0 0
        %4143 = vmatpush.bf16.msra.mxu0 0
        %4144 = vmatpush.bf16.msra.mxu0 %v4097
        %4145 = vmatmul.bf16.gmra.mxu0 %v4088
        %v4146 = vpop.f32.mrf.mxu0
        %v4147 = vadd.f32 0.0, %v4146
        %v4148 = vpop.f32.mrf.mxu0
        %4149 = vdwg.mxu0
        %4150 = vmatpush.bf16.msra.mxu0 0
        %4151 = vmatpush.bf16.msra.mxu0 0
        %4152 = vmatpush.bf16.msra.mxu0 0
        %4153 = vmatpush.bf16.msra.mxu0 0
        %4154 = vmatpush.bf16.msra.mxu0 0
        %4155 = vmatpush.bf16.msra.mxu0 0
        %4156 = vmatpush.bf16.msra.mxu0 0
        %4157 = vmatpush.bf16.msra.mxu0 %v4100
        %4158 = vmatmul.bf16.gmra.mxu0 %v4088
        %v4159 = vpop.f32.mrf.mxu0
        %v4160 = vadd.f32 0.0, %v4159
        %v4161 = vpop.f32.mrf.mxu0
        %4162 = vdwg.mxu0
        %4163 = vmatpush.bf16.msra.mxu0 0
        %4164 = vmatpush.bf16.msra.mxu0 0
        %4165 = vmatpush.bf16.msra.mxu0 0
        %4166 = vmatpush.bf16.msra.mxu0 0
        %4167 = vmatpush.bf16.msra.mxu0 0
        %4168 = vmatpush.bf16.msra.mxu0 0
        %4169 = vmatpush.bf16.msra.mxu0 0
        %4170 = vmatpush.bf16.msra.mxu0 %v4103
        %4171 = vmatmul.bf16.gmra.mxu0 %v4088
        %v4172 = vpop.f32.mrf.mxu0
        %v4173 = vadd.f32 0.0, %v4172
        %v4174 = vpop.f32.mrf.mxu0
        %4175 = vdwg.mxu0
        %4176 = vmatpush.bf16.msra.mxu0 0
        %4177 = vmatpush.bf16.msra.mxu0 0
        %4178 = vmatpush.bf16.msra.mxu0 0
        %4179 = vmatpush.bf16.msra.mxu0 0
        %4180 = vmatpush.bf16.msra.mxu0 0
        %4181 = vmatpush.bf16.msra.mxu0 0
        %4182 = vmatpush.bf16.msra.mxu0 0
        %4183 = vmatpush.bf16.msra.mxu0 %v4106
        %4184 = vmatmul.bf16.gmra.mxu0 %v4088
        %v4185 = vpop.f32.mrf.mxu0
        %v4186 = vadd.f32 0.0, %v4185
        %v4187 = vpop.f32.mrf.mxu0
        %4188 = vdwg.mxu0
        %4189 = vmatpush.bf16.msra.mxu0 0
        %4190 = vmatpush.bf16.msra.mxu0 0
        %4191 = vmatpush.bf16.msra.mxu0 0
        %4192 = vmatpush.bf16.msra.mxu0 0
        %4193 = vmatpush.bf16.msra.mxu0 0
        %4194 = vmatpush.bf16.msra.mxu0 0
        %4195 = vmatpush.bf16.msra.mxu0 0
        %4196 = vmatpush.bf16.msra.mxu0 %v4109
        %4197 = vmatmul.bf16.gmra.mxu0 %v4088
        %v4198 = vpop.f32.mrf.mxu0
        %v4199 = vadd.f32 0.0, %v4198
        %v4200 = vpop.f32.mrf.mxu0
        %4201 = vdwg.mxu0
        %v4202 = vadd.f32 %v4054, %v4121
        %v4203 = vadd.f32 %v4055, %v4134
        %v4204 = vadd.f32 %v4056, %v4147
        %v4205 = vadd.f32 %v4057, %v4160
        %v4206 = vadd.f32 %v4058, %v4173
        %v4207 = vadd.f32 %v4059, %v4186
        %v4208 = vadd.f32 %v4060, %v4199
        %v4210 = vperm.slane %v197, 0
        %v4211 = vperm.slane %v197, 1
        %v4212 = vperm.slane %v197, 2
        %v4213 = vperm.slane %v197, 3
        %v4214 = vperm.slane %v197, 4
        %v4215 = vperm.slane %v197, 5
        %v4216 = vperm.slane %v197, 6
        %v4224 = vmul.f32 %v4202, %v4210
        %v4225 = vmul.f32 %v4203, %v4211
        %v4226 = vmul.f32 %v4204, %v4212
        %v4227 = vmul.f32 %v4205, %v4213
        %v4228 = vmul.f32 %v4206, %v4214
        %v4229 = vmul.f32 %v4207, %v4215
        %v4230 = vmul.f32 %v4208, %v4216
        %v4231 = vadd.f32 %v4224, %v4225
        %v4232 = vadd.f32 %v4231, %v4226
        %v4233 = vadd.f32 %v4232, %v4227
        %v4234 = vadd.f32 %v4233, %v4228
        %v4235 = vadd.f32 %v4234, %v4229
        %v4236 = vadd.f32 %v4235, %v4230
        %4237 = vadd.xlane.f32.xlu0 %v4236
        %v4238 = vpop.xlane.xlu0 %4237
        %v4239 = vmul.f32 %v4224, %v4202
        %v4240 = vmul.f32 %v4225, %v4203
        %v4241 = vmul.f32 %v4226, %v4204
        %v4242 = vmul.f32 %v4227, %v4205
        %v4243 = vmul.f32 %v4228, %v4206
        %v4244 = vmul.f32 %v4229, %v4207
        %v4245 = vmul.f32 %v4230, %v4208
        %v4246 = vadd.f32 %v4239, %v4240
        %v4247 = vadd.f32 %v4246, %v4241
        %v4248 = vadd.f32 %v4247, %v4242
        %v4249 = vadd.f32 %v4248, %v4243
        %v4250 = vadd.f32 %v4249, %v4244
        %v4251 = vadd.f32 %v4250, %v4245
        %4252 = vadd.xlane.f32.xlu0 %v4251
        %v4253 = vpop.xlane.xlu0 %4252
        %v4254 = vmul.f32 %v4238, 0.001953125
        %v4255 = vmul.f32 %v4253, 0.001953125
        %v4256 = vmul.f32 %v4254, %v4254
        %v4257 = vsub.f32 %v4255, %v4256
        %v4258 = vmax.f32 %v4257, 0.0
        %v4259 = vsub.f32 %v4202, %v4254
        %v4260 = vsub.f32 %v4203, %v4254
        %v4261 = vsub.f32 %v4204, %v4254
        %v4262 = vsub.f32 %v4205, %v4254
        %v4263 = vsub.f32 %v4206, %v4254
        %v4264 = vsub.f32 %v4207, %v4254
        %v4265 = vsub.f32 %v4208, %v4254
        %v4266 = vadd.f32 %v4258, 1e-05
        %v4267 = vrsqrt.pop %v4266
        %v4268 = vmul.f32 %v4267, %v4266
        %v4269 = vmul.f32 %v4268, %v4267
        %v4270 = vmul.f32 0.5, %v4269
        %v4271 = vsub.f32 1.5, %v4270
        %v4272 = vmul.f32 %v4267, %v4271
        %vm4273 = vweird.f32 %v4266
        %vm4274 = vweird.f32 %v4267
        %vm4275 = vmor %vm4273, %vm4274
        %v4276 = vsel %vm4275, %v4267, %v4272
        %v4277 = vmul.f32 %v4259, %v4276
        %v4278 = vmul.f32 %v4260, %v4276
        %v4279 = vmul.f32 %v4261, %v4276
        %v4280 = vmul.f32 %v4262, %v4276
        %v4281 = vmul.f32 %v4263, %v4276
        %v4282 = vmul.f32 %v4264, %v4276
        %v4283 = vmul.f32 %v4265, %v4276
        %v4284 = vmax.f32 %v4277, 0.0
        %v4285 = vmax.f32 %v4278, 0.0
        %v4286 = vmax.f32 %v4279, 0.0
        %v4287 = vmax.f32 %v4280, 0.0
        %v4288 = vmax.f32 %v4281, 0.0
        %v4289 = vmax.f32 %v4282, 0.0
        %v4290 = vmax.f32 %v4283, 0.0
        %v4291 = vmul.f32 %v4284, %v4210
        %v4292 = vmul.f32 %v4285, %v4211
        %v4293 = vmul.f32 %v4286, %v4212
        %v4294 = vmul.f32 %v4287, %v4213
        %v4295 = vmul.f32 %v4288, %v4214
        %v4296 = vmul.f32 %v4289, %v4215
        %v4297 = vmul.f32 %v4290, %v4216
        %4298 = vst [vmem:[#allocation2] sm:$0xf] 0
        %4299 = vst [vmem:[#allocation2 + $0x20] sm:$0xf] 0
        %v4300 = vpack.c.bf16 %v4292, %v4291
        %v4301 = vpack.c.bf16 %v4294, %v4293
        %v4302 = vpack.c.bf16 %v4296, %v4295
        %v4303 = vpack.c.bf16 %v4297, %v4297
        %4304 = vst [vmem:[#allocation2 + $0x4] sm:$0xff] %v4300
        %4305 = vst [vmem:[#allocation2 + $0xc] sm:$0xff] %v4301
        %4306 = vst [vmem:[#allocation2 + $0x14] sm:$0xff] %v4302
        %4307 = vst [vmem:[#allocation2 + $0x1c] sm:$0xf] %v4303
        %v4308 = vld [vmem:[%s2] sm:$0xf]
        %v4309 = vld [vmem:[#allocation2] sm:$0xff]
        %v4310 = vld [vmem:[#allocation2 + $0x8] sm:$0xff]
        %v4311 = vld [vmem:[#allocation2 + $0x10] sm:$0xff]
        %v4312 = vld [vmem:[#allocation2 + $0x18] sm:$0xff]
        %s4313 = scalar_lea.vmem %s2, 4
        %v4314 = vld [vmem:[%s4313] sm:$0xf]
        %v4319 = vunpack.c.l.b16 %v4309
        %v4320 = vunpack.c.h.b16 %v4309
        %v4321 = vunpack.c.l.b16 %v4310
        %v4322 = vunpack.c.h.b16 %v4310
        %v4323 = vunpack.c.l.b16 %v4311
        %v4324 = vunpack.c.h.b16 %v4311
        %v4325 = vunpack.c.l.b16 %v4312
        %v4326 = vunpack.c.h.b16 %v4312
        %v4327 = vpack.c.b16 %v4319, %v4319
        %v4328 = vpack.c.b16 %v4320, %v4320
        %v4329 = vpack.c.b16 %v4321, %v4321
        %v4330 = vpack.c.b16 %v4322, %v4322
        %v4331 = vpack.c.b16 %v4323, %v4323
        %v4332 = vpack.c.b16 %v4324, %v4324
        %v4333 = vpack.c.b16 %v4325, %v4325
        %v4334 = vpack.c.b16 %v4326, %v4326
        %4335 = vrot.lane.b32.xlu0 %v4327, 110
        %v4336 = vpop.permute.xlu0 %4335
        %4337 = vrot.lane.b32.xlu0 %v4328, 110
        %v4338 = vpop.permute.xlu0 %4337
        %4339 = vrot.lane.b32.xlu0 %v4329, 110
        %v4340 = vpop.permute.xlu0 %4339
        %4341 = vrot.lane.b32.xlu0 %v4330, 110
        %v4342 = vpop.permute.xlu0 %4341
        %4343 = vrot.lane.b32.xlu0 %v4331, 110
        %v4344 = vpop.permute.xlu0 %4343
        %4345 = vrot.lane.b32.xlu0 %v4332, 110
        %v4346 = vpop.permute.xlu0 %4345
        %4347 = vrot.lane.b32.xlu0 %v4333, 110
        %v4348 = vpop.permute.xlu0 %4347
        %4349 = vrot.lane.b32.xlu0 %v4334, 110
        %v4350 = vpop.permute.xlu0 %4349
        %vm4351 = vcmask 900096
        %v4352 = vsel %vm4351, %v4336, %v4338
        %v4353 = vsel %vm4351, %v4338, %v4340
        %v4354 = vsel %vm4351, %v4340, %v4342
        %v4355 = vsel %vm4351, %v4342, %v4344
        %v4356 = vsel %vm4351, %v4344, %v4346
        %v4357 = vsel %vm4351, %v4346, %v4348
        %v4358 = vsel %vm4351, %v4348, %v4350
        %v4360 = vsel %vm250, %v4314, 0
        %v4363 = vsel %vm254, %v4352, 0
        %v4366 = vsel %vm254, %v4353, 0
        %v4369 = vsel %vm254, %v4354, 0
        %v4372 = vsel %vm254, %v4355, 0
        %v4375 = vsel %vm254, %v4356, 0
        %v4378 = vsel %vm254, %v4357, 0
        %v4381 = vsel %vm254, %v4358, 0
        %4383 = vmatpush.bf16.msra.mxu0 0
        %4384 = vmatpush.bf16.msra.mxu0 0
        %4385 = vmatpush.bf16.msra.mxu0 0
        %4386 = vmatpush.bf16.msra.mxu0 0
        %4387 = vmatpush.bf16.msra.mxu0 0
        %4388 = vmatpush.bf16.msra.mxu0 0
        %4389 = vmatpush.bf16.msra.mxu0 0
        %4390 = vmatpush.bf16.msra.mxu0 %v4363
        %4391 = vmatmul.bf16.gmra.mxu0 %v4360
        %v4392 = vpop.f32.mrf.mxu0
        %v4393 = vadd.f32 0.0, %v4392
        %v4394 = vpop.f32.mrf.mxu0
        %4395 = vdwg.mxu0
        %4396 = vmatpush.bf16.msra.mxu0 0
        %4397 = vmatpush.bf16.msra.mxu0 0
        %4398 = vmatpush.bf16.msra.mxu0 0
        %4399 = vmatpush.bf16.msra.mxu0 0
        %4400 = vmatpush.bf16.msra.mxu0 0
        %4401 = vmatpush.bf16.msra.mxu0 0
        %4402 = vmatpush.bf16.msra.mxu0 0
        %4403 = vmatpush.bf16.msra.mxu0 %v4366
        %4404 = vmatmul.bf16.gmra.mxu0 %v4360
        %v4405 = vpop.f32.mrf.mxu0
        %v4406 = vadd.f32 0.0, %v4405
        %v4407 = vpop.f32.mrf.mxu0
        %4408 = vdwg.mxu0
        %4409 = vmatpush.bf16.msra.mxu0 0
        %4410 = vmatpush.bf16.msra.mxu0 0
        %4411 = vmatpush.bf16.msra.mxu0 0
        %4412 = vmatpush.bf16.msra.mxu0 0
        %4413 = vmatpush.bf16.msra.mxu0 0
        %4414 = vmatpush.bf16.msra.mxu0 0
        %4415 = vmatpush.bf16.msra.mxu0 0
        %4416 = vmatpush.bf16.msra.mxu0 %v4369
        %4417 = vmatmul.bf16.gmra.mxu0 %v4360
        %v4418 = vpop.f32.mrf.mxu0
        %v4419 = vadd.f32 0.0, %v4418
        %v4420 = vpop.f32.mrf.mxu0
        %4421 = vdwg.mxu0
        %4422 = vmatpush.bf16.msra.mxu0 0
        %4423 = vmatpush.bf16.msra.mxu0 0
        %4424 = vmatpush.bf16.msra.mxu0 0
        %4425 = vmatpush.bf16.msra.mxu0 0
        %4426 = vmatpush.bf16.msra.mxu0 0
        %4427 = vmatpush.bf16.msra.mxu0 0
        %4428 = vmatpush.bf16.msra.mxu0 0
        %4429 = vmatpush.bf16.msra.mxu0 %v4372
        %4430 = vmatmul.bf16.gmra.mxu0 %v4360
        %v4431 = vpop.f32.mrf.mxu0
        %v4432 = vadd.f32 0.0, %v4431
        %v4433 = vpop.f32.mrf.mxu0
        %4434 = vdwg.mxu0
        %4435 = vmatpush.bf16.msra.mxu0 0
        %4436 = vmatpush.bf16.msra.mxu0 0
        %4437 = vmatpush.bf16.msra.mxu0 0
        %4438 = vmatpush.bf16.msra.mxu0 0
        %4439 = vmatpush.bf16.msra.mxu0 0
        %4440 = vmatpush.bf16.msra.mxu0 0
        %4441 = vmatpush.bf16.msra.mxu0 0
        %4442 = vmatpush.bf16.msra.mxu0 %v4375
        %4443 = vmatmul.bf16.gmra.mxu0 %v4360
        %v4444 = vpop.f32.mrf.mxu0
        %v4445 = vadd.f32 0.0, %v4444
        %v4446 = vpop.f32.mrf.mxu0
        %4447 = vdwg.mxu0
        %4448 = vmatpush.bf16.msra.mxu0 0
        %4449 = vmatpush.bf16.msra.mxu0 0
        %4450 = vmatpush.bf16.msra.mxu0 0
        %4451 = vmatpush.bf16.msra.mxu0 0
        %4452 = vmatpush.bf16.msra.mxu0 0
        %4453 = vmatpush.bf16.msra.mxu0 0
        %4454 = vmatpush.bf16.msra.mxu0 0
        %4455 = vmatpush.bf16.msra.mxu0 %v4378
        %4456 = vmatmul.bf16.gmra.mxu0 %v4360
        %v4457 = vpop.f32.mrf.mxu0
        %v4458 = vadd.f32 0.0, %v4457
        %v4459 = vpop.f32.mrf.mxu0
        %4460 = vdwg.mxu0
        %4461 = vmatpush.bf16.msra.mxu0 0
        %4462 = vmatpush.bf16.msra.mxu0 0
        %4463 = vmatpush.bf16.msra.mxu0 0
        %4464 = vmatpush.bf16.msra.mxu0 0
        %4465 = vmatpush.bf16.msra.mxu0 0
        %4466 = vmatpush.bf16.msra.mxu0 0
        %4467 = vmatpush.bf16.msra.mxu0 0
        %4468 = vmatpush.bf16.msra.mxu0 %v4381
        %4469 = vmatmul.bf16.gmra.mxu0 %v4360
        %v4470 = vpop.f32.mrf.mxu0
        %v4471 = vadd.f32 0.0, %v4470
        %v4472 = vpop.f32.mrf.mxu0
        %4473 = vdwg.mxu0
        %4474 = vrot.lane.b32.xlu0 %v4327, 111
        %v4475 = vpop.permute.xlu0 %4474
        %4476 = vrot.lane.b32.xlu0 %v4328, 111
        %v4477 = vpop.permute.xlu0 %4476
        %4478 = vrot.lane.b32.xlu0 %v4329, 111
        %v4479 = vpop.permute.xlu0 %4478
        %4480 = vrot.lane.b32.xlu0 %v4330, 111
        %v4481 = vpop.permute.xlu0 %4480
        %4482 = vrot.lane.b32.xlu0 %v4331, 111
        %v4483 = vpop.permute.xlu0 %4482
        %4484 = vrot.lane.b32.xlu0 %v4332, 111
        %v4485 = vpop.permute.xlu0 %4484
        %4486 = vrot.lane.b32.xlu0 %v4333, 111
        %v4487 = vpop.permute.xlu0 %4486
        %4488 = vrot.lane.b32.xlu0 %v4334, 111
        %v4489 = vpop.permute.xlu0 %4488
        %vm4490 = vcmask 908288
        %v4491 = vsel %vm4490, %v4475, %v4477
        %v4492 = vsel %vm4490, %v4477, %v4479
        %v4493 = vsel %vm4490, %v4479, %v4481
        %v4494 = vsel %vm4490, %v4481, %v4483
        %v4495 = vsel %vm4490, %v4483, %v4485
        %v4496 = vsel %vm4490, %v4485, %v4487
        %v4497 = vsel %vm4490, %v4487, %v4489
        %v4499 = vsel %vm250, %v4308, 0
        %v4502 = vsel %vm254, %v4491, 0
        %v4505 = vsel %vm254, %v4492, 0
        %v4508 = vsel %vm254, %v4493, 0
        %v4511 = vsel %vm254, %v4494, 0
        %v4514 = vsel %vm254, %v4495, 0
        %v4517 = vsel %vm254, %v4496, 0
        %v4520 = vsel %vm254, %v4497, 0
        %4522 = vmatpush.bf16.msra.mxu0 0
        %4523 = vmatpush.bf16.msra.mxu0 0
        %4524 = vmatpush.bf16.msra.mxu0 0
        %4525 = vmatpush.bf16.msra.mxu0 0
        %4526 = vmatpush.bf16.msra.mxu0 0
        %4527 = vmatpush.bf16.msra.mxu0 0
        %4528 = vmatpush.bf16.msra.mxu0 0
        %4529 = vmatpush.bf16.msra.mxu0 %v4502
        %4530 = vmatmul.bf16.gmra.mxu0 %v4499
        %v4531 = vpop.f32.mrf.mxu0
        %v4532 = vadd.f32 %v4393, %v4531
        %v4533 = vpop.f32.mrf.mxu0
        %4534 = vdwg.mxu0
        %4535 = vmatpush.bf16.msra.mxu0 0
        %4536 = vmatpush.bf16.msra.mxu0 0
        %4537 = vmatpush.bf16.msra.mxu0 0
        %4538 = vmatpush.bf16.msra.mxu0 0
        %4539 = vmatpush.bf16.msra.mxu0 0
        %4540 = vmatpush.bf16.msra.mxu0 0
        %4541 = vmatpush.bf16.msra.mxu0 0
        %4542 = vmatpush.bf16.msra.mxu0 %v4505
        %4543 = vmatmul.bf16.gmra.mxu0 %v4499
        %v4544 = vpop.f32.mrf.mxu0
        %v4545 = vadd.f32 %v4406, %v4544
        %v4546 = vpop.f32.mrf.mxu0
        %4547 = vdwg.mxu0
        %4548 = vmatpush.bf16.msra.mxu0 0
        %4549 = vmatpush.bf16.msra.mxu0 0
        %4550 = vmatpush.bf16.msra.mxu0 0
        %4551 = vmatpush.bf16.msra.mxu0 0
        %4552 = vmatpush.bf16.msra.mxu0 0
        %4553 = vmatpush.bf16.msra.mxu0 0
        %4554 = vmatpush.bf16.msra.mxu0 0
        %4555 = vmatpush.bf16.msra.mxu0 %v4508
        %4556 = vmatmul.bf16.gmra.mxu0 %v4499
        %v4557 = vpop.f32.mrf.mxu0
        %v4558 = vadd.f32 %v4419, %v4557
        %v4559 = vpop.f32.mrf.mxu0
        %4560 = vdwg.mxu0
        %4561 = vmatpush.bf16.msra.mxu0 0
        %4562 = vmatpush.bf16.msra.mxu0 0
        %4563 = vmatpush.bf16.msra.mxu0 0
        %4564 = vmatpush.bf16.msra.mxu0 0
        %4565 = vmatpush.bf16.msra.mxu0 0
        %4566 = vmatpush.bf16.msra.mxu0 0
        %4567 = vmatpush.bf16.msra.mxu0 0
        %4568 = vmatpush.bf16.msra.mxu0 %v4511
        %4569 = vmatmul.bf16.gmra.mxu0 %v4499
        %v4570 = vpop.f32.mrf.mxu0
        %v4571 = vadd.f32 %v4432, %v4570
        %v4572 = vpop.f32.mrf.mxu0
        %4573 = vdwg.mxu0
        %4574 = vmatpush.bf16.msra.mxu0 0
        %4575 = vmatpush.bf16.msra.mxu0 0
        %4576 = vmatpush.bf16.msra.mxu0 0
        %4577 = vmatpush.bf16.msra.mxu0 0
        %4578 = vmatpush.bf16.msra.mxu0 0
        %4579 = vmatpush.bf16.msra.mxu0 0
        %4580 = vmatpush.bf16.msra.mxu0 0
        %4581 = vmatpush.bf16.msra.mxu0 %v4514
        %4582 = vmatmul.bf16.gmra.mxu0 %v4499
        %v4583 = vpop.f32.mrf.mxu0
        %v4584 = vadd.f32 %v4445, %v4583
        %v4585 = vpop.f32.mrf.mxu0
        %4586 = vdwg.mxu0
        %4587 = vmatpush.bf16.msra.mxu0 0
        %4588 = vmatpush.bf16.msra.mxu0 0
        %4589 = vmatpush.bf16.msra.mxu0 0
        %4590 = vmatpush.bf16.msra.mxu0 0
        %4591 = vmatpush.bf16.msra.mxu0 0
        %4592 = vmatpush.bf16.msra.mxu0 0
        %4593 = vmatpush.bf16.msra.mxu0 0
        %4594 = vmatpush.bf16.msra.mxu0 %v4517
        %4595 = vmatmul.bf16.gmra.mxu0 %v4499
        %v4596 = vpop.f32.mrf.mxu0
        %v4597 = vadd.f32 %v4458, %v4596
        %v4598 = vpop.f32.mrf.mxu0
        %4599 = vdwg.mxu0
        %4600 = vmatpush.bf16.msra.mxu0 0
        %4601 = vmatpush.bf16.msra.mxu0 0
        %4602 = vmatpush.bf16.msra.mxu0 0
        %4603 = vmatpush.bf16.msra.mxu0 0
        %4604 = vmatpush.bf16.msra.mxu0 0
        %4605 = vmatpush.bf16.msra.mxu0 0
        %4606 = vmatpush.bf16.msra.mxu0 0
        %4607 = vmatpush.bf16.msra.mxu0 %v4520
        %4608 = vmatmul.bf16.gmra.mxu0 %v4499
        %v4609 = vpop.f32.mrf.mxu0
        %v4610 = vadd.f32 %v4471, %v4609
        %v4611 = vpop.f32.mrf.mxu0
        %4612 = vdwg.mxu0
        %s4613 = scalar_lea.vmem %s2, 8
        %v4614 = vld [vmem:[%s4613] sm:$0xf]
        %4615 = vrot.lane.b32.xlu0 %v4327, 109
        %v4616 = vpop.permute.xlu0 %4615
        %4617 = vrot.lane.b32.xlu0 %v4328, 109
        %v4618 = vpop.permute.xlu0 %4617
        %4619 = vrot.lane.b32.xlu0 %v4329, 109
        %v4620 = vpop.permute.xlu0 %4619
        %4621 = vrot.lane.b32.xlu0 %v4330, 109
        %v4622 = vpop.permute.xlu0 %4621
        %4623 = vrot.lane.b32.xlu0 %v4331, 109
        %v4624 = vpop.permute.xlu0 %4623
        %4625 = vrot.lane.b32.xlu0 %v4332, 109
        %v4626 = vpop.permute.xlu0 %4625
        %4627 = vrot.lane.b32.xlu0 %v4333, 109
        %v4628 = vpop.permute.xlu0 %4627
        %4629 = vrot.lane.b32.xlu0 %v4334, 109
        %v4630 = vpop.permute.xlu0 %4629
        %vm4631 = vcmask 891904
        %v4632 = vsel %vm4631, %v4616, %v4618
        %v4633 = vsel %vm4631, %v4618, %v4620
        %v4634 = vsel %vm4631, %v4620, %v4622
        %v4635 = vsel %vm4631, %v4622, %v4624
        %v4636 = vsel %vm4631, %v4624, %v4626
        %v4637 = vsel %vm4631, %v4626, %v4628
        %v4638 = vsel %vm4631, %v4628, %v4630
        %v4640 = vsel %vm250, %v4614, 0
        %v4643 = vsel %vm254, %v4632, 0
        %v4646 = vsel %vm254, %v4633, 0
        %v4649 = vsel %vm254, %v4634, 0
        %v4652 = vsel %vm254, %v4635, 0
        %v4655 = vsel %vm254, %v4636, 0
        %v4658 = vsel %vm254, %v4637, 0
        %v4661 = vsel %vm254, %v4638, 0
        %4663 = vmatpush.bf16.msra.mxu0 0
        %4664 = vmatpush.bf16.msra.mxu0 0
        %4665 = vmatpush.bf16.msra.mxu0 0
        %4666 = vmatpush.bf16.msra.mxu0 0
        %4667 = vmatpush.bf16.msra.mxu0 0
        %4668 = vmatpush.bf16.msra.mxu0 0
        %4669 = vmatpush.bf16.msra.mxu0 0
        %4670 = vmatpush.bf16.msra.mxu0 %v4643
        %4671 = vmatmul.bf16.gmra.mxu0 %v4640
        %v4672 = vpop.f32.mrf.mxu0
        %v4673 = vadd.f32 0.0, %v4672
        %v4674 = vpop.f32.mrf.mxu0
        %4675 = vdwg.mxu0
        %4676 = vmatpush.bf16.msra.mxu0 0
        %4677 = vmatpush.bf16.msra.mxu0 0
        %4678 = vmatpush.bf16.msra.mxu0 0
        %4679 = vmatpush.bf16.msra.mxu0 0
        %4680 = vmatpush.bf16.msra.mxu0 0
        %4681 = vmatpush.bf16.msra.mxu0 0
        %4682 = vmatpush.bf16.msra.mxu0 0
        %4683 = vmatpush.bf16.msra.mxu0 %v4646
        %4684 = vmatmul.bf16.gmra.mxu0 %v4640
        %v4685 = vpop.f32.mrf.mxu0
        %v4686 = vadd.f32 0.0, %v4685
        %v4687 = vpop.f32.mrf.mxu0
        %4688 = vdwg.mxu0
        %4689 = vmatpush.bf16.msra.mxu0 0
        %4690 = vmatpush.bf16.msra.mxu0 0
        %4691 = vmatpush.bf16.msra.mxu0 0
        %4692 = vmatpush.bf16.msra.mxu0 0
        %4693 = vmatpush.bf16.msra.mxu0 0
        %4694 = vmatpush.bf16.msra.mxu0 0
        %4695 = vmatpush.bf16.msra.mxu0 0
        %4696 = vmatpush.bf16.msra.mxu0 %v4649
        %4697 = vmatmul.bf16.gmra.mxu0 %v4640
        %v4698 = vpop.f32.mrf.mxu0
        %v4699 = vadd.f32 0.0, %v4698
        %v4700 = vpop.f32.mrf.mxu0
        %4701 = vdwg.mxu0
        %4702 = vmatpush.bf16.msra.mxu0 0
        %4703 = vmatpush.bf16.msra.mxu0 0
        %4704 = vmatpush.bf16.msra.mxu0 0
        %4705 = vmatpush.bf16.msra.mxu0 0
        %4706 = vmatpush.bf16.msra.mxu0 0
        %4707 = vmatpush.bf16.msra.mxu0 0
        %4708 = vmatpush.bf16.msra.mxu0 0
        %4709 = vmatpush.bf16.msra.mxu0 %v4652
        %4710 = vmatmul.bf16.gmra.mxu0 %v4640
        %v4711 = vpop.f32.mrf.mxu0
        %v4712 = vadd.f32 0.0, %v4711
        %v4713 = vpop.f32.mrf.mxu0
        %4714 = vdwg.mxu0
        %4715 = vmatpush.bf16.msra.mxu0 0
        %4716 = vmatpush.bf16.msra.mxu0 0
        %4717 = vmatpush.bf16.msra.mxu0 0
        %4718 = vmatpush.bf16.msra.mxu0 0
        %4719 = vmatpush.bf16.msra.mxu0 0
        %4720 = vmatpush.bf16.msra.mxu0 0
        %4721 = vmatpush.bf16.msra.mxu0 0
        %4722 = vmatpush.bf16.msra.mxu0 %v4655
        %4723 = vmatmul.bf16.gmra.mxu0 %v4640
        %v4724 = vpop.f32.mrf.mxu0
        %v4725 = vadd.f32 0.0, %v4724
        %v4726 = vpop.f32.mrf.mxu0
        %4727 = vdwg.mxu0
        %4728 = vmatpush.bf16.msra.mxu0 0
        %4729 = vmatpush.bf16.msra.mxu0 0
        %4730 = vmatpush.bf16.msra.mxu0 0
        %4731 = vmatpush.bf16.msra.mxu0 0
        %4732 = vmatpush.bf16.msra.mxu0 0
        %4733 = vmatpush.bf16.msra.mxu0 0
        %4734 = vmatpush.bf16.msra.mxu0 0
        %4735 = vmatpush.bf16.msra.mxu0 %v4658
        %4736 = vmatmul.bf16.gmra.mxu0 %v4640
        %v4737 = vpop.f32.mrf.mxu0
        %v4738 = vadd.f32 0.0, %v4737
        %v4739 = vpop.f32.mrf.mxu0
        %4740 = vdwg.mxu0
        %4741 = vmatpush.bf16.msra.mxu0 0
        %4742 = vmatpush.bf16.msra.mxu0 0
        %4743 = vmatpush.bf16.msra.mxu0 0
        %4744 = vmatpush.bf16.msra.mxu0 0
        %4745 = vmatpush.bf16.msra.mxu0 0
        %4746 = vmatpush.bf16.msra.mxu0 0
        %4747 = vmatpush.bf16.msra.mxu0 0
        %4748 = vmatpush.bf16.msra.mxu0 %v4661
        %4749 = vmatmul.bf16.gmra.mxu0 %v4640
        %v4750 = vpop.f32.mrf.mxu0
        %v4751 = vadd.f32 0.0, %v4750
        %v4752 = vpop.f32.mrf.mxu0
        %4753 = vdwg.mxu0
        %v4754 = vadd.f32 %v4532, %v4673
        %v4755 = vadd.f32 %v4545, %v4686
        %v4756 = vadd.f32 %v4558, %v4699
        %v4757 = vadd.f32 %v4571, %v4712
        %v4758 = vadd.f32 %v4584, %v4725
        %v4759 = vadd.f32 %v4597, %v4738
        %v4760 = vadd.f32 %v4610, %v4751
        %s4761 = scalar_lea.vmem %s2, 12
        %v4762 = vld [vmem:[%s4761] sm:$0xf]
        %4763 = vrot.lane.b32.xlu0 %v4327, 101
        %v4764 = vpop.permute.xlu0 %4763
        %4765 = vrot.lane.b32.xlu0 %v4328, 101
        %v4766 = vpop.permute.xlu0 %4765
        %4767 = vrot.lane.b32.xlu0 %v4329, 101
        %v4768 = vpop.permute.xlu0 %4767
        %4769 = vrot.lane.b32.xlu0 %v4330, 101
        %v4770 = vpop.permute.xlu0 %4769
        %4771 = vrot.lane.b32.xlu0 %v4331, 101
        %v4772 = vpop.permute.xlu0 %4771
        %4773 = vrot.lane.b32.xlu0 %v4332, 101
        %v4774 = vpop.permute.xlu0 %4773
        %4775 = vrot.lane.b32.xlu0 %v4333, 101
        %v4776 = vpop.permute.xlu0 %4775
        %4777 = vrot.lane.b32.xlu0 %v4334, 101
        %v4778 = vpop.permute.xlu0 %4777
        %vm4779 = vcmask 826368
        %v4780 = vsel %vm4779, %v4764, %v4766
        %v4781 = vsel %vm4779, %v4766, %v4768
        %v4782 = vsel %vm4779, %v4768, %v4770
        %v4783 = vsel %vm4779, %v4770, %v4772
        %v4784 = vsel %vm4779, %v4772, %v4774
        %v4785 = vsel %vm4779, %v4774, %v4776
        %v4786 = vsel %vm4779, %v4776, %v4778
        %v4788 = vsel %vm250, %v4762, 0
        %v4791 = vsel %vm254, %v4780, 0
        %v4794 = vsel %vm254, %v4781, 0
        %v4797 = vsel %vm254, %v4782, 0
        %v4800 = vsel %vm254, %v4783, 0
        %v4803 = vsel %vm254, %v4784, 0
        %v4806 = vsel %vm254, %v4785, 0
        %v4809 = vsel %vm254, %v4786, 0
        %4811 = vmatpush.bf16.msra.mxu0 0
        %4812 = vmatpush.bf16.msra.mxu0 0
        %4813 = vmatpush.bf16.msra.mxu0 0
        %4814 = vmatpush.bf16.msra.mxu0 0
        %4815 = vmatpush.bf16.msra.mxu0 0
        %4816 = vmatpush.bf16.msra.mxu0 0
        %4817 = vmatpush.bf16.msra.mxu0 0
        %4818 = vmatpush.bf16.msra.mxu0 %v4791
        %4819 = vmatmul.bf16.gmra.mxu0 %v4788
        %v4820 = vpop.f32.mrf.mxu0
        %v4821 = vadd.f32 0.0, %v4820
        %v4822 = vpop.f32.mrf.mxu0
        %4823 = vdwg.mxu0
        %4824 = vmatpush.bf16.msra.mxu0 0
        %4825 = vmatpush.bf16.msra.mxu0 0
        %4826 = vmatpush.bf16.msra.mxu0 0
        %4827 = vmatpush.bf16.msra.mxu0 0
        %4828 = vmatpush.bf16.msra.mxu0 0
        %4829 = vmatpush.bf16.msra.mxu0 0
        %4830 = vmatpush.bf16.msra.mxu0 0
        %4831 = vmatpush.bf16.msra.mxu0 %v4794
        %4832 = vmatmul.bf16.gmra.mxu0 %v4788
        %v4833 = vpop.f32.mrf.mxu0
        %v4834 = vadd.f32 0.0, %v4833
        %v4835 = vpop.f32.mrf.mxu0
        %4836 = vdwg.mxu0
        %4837 = vmatpush.bf16.msra.mxu0 0
        %4838 = vmatpush.bf16.msra.mxu0 0
        %4839 = vmatpush.bf16.msra.mxu0 0
        %4840 = vmatpush.bf16.msra.mxu0 0
        %4841 = vmatpush.bf16.msra.mxu0 0
        %4842 = vmatpush.bf16.msra.mxu0 0
        %4843 = vmatpush.bf16.msra.mxu0 0
        %4844 = vmatpush.bf16.msra.mxu0 %v4797
        %4845 = vmatmul.bf16.gmra.mxu0 %v4788
        %v4846 = vpop.f32.mrf.mxu0
        %v4847 = vadd.f32 0.0, %v4846
        %v4848 = vpop.f32.mrf.mxu0
        %4849 = vdwg.mxu0
        %4850 = vmatpush.bf16.msra.mxu0 0
        %4851 = vmatpush.bf16.msra.mxu0 0
        %4852 = vmatpush.bf16.msra.mxu0 0
        %4853 = vmatpush.bf16.msra.mxu0 0
        %4854 = vmatpush.bf16.msra.mxu0 0
        %4855 = vmatpush.bf16.msra.mxu0 0
        %4856 = vmatpush.bf16.msra.mxu0 0
        %4857 = vmatpush.bf16.msra.mxu0 %v4800
        %4858 = vmatmul.bf16.gmra.mxu0 %v4788
        %v4859 = vpop.f32.mrf.mxu0
        %v4860 = vadd.f32 0.0, %v4859
        %v4861 = vpop.f32.mrf.mxu0
        %4862 = vdwg.mxu0
        %4863 = vmatpush.bf16.msra.mxu0 0
        %4864 = vmatpush.bf16.msra.mxu0 0
        %4865 = vmatpush.bf16.msra.mxu0 0
        %4866 = vmatpush.bf16.msra.mxu0 0
        %4867 = vmatpush.bf16.msra.mxu0 0
        %4868 = vmatpush.bf16.msra.mxu0 0
        %4869 = vmatpush.bf16.msra.mxu0 0
        %4870 = vmatpush.bf16.msra.mxu0 %v4803
        %4871 = vmatmul.bf16.gmra.mxu0 %v4788
        %v4872 = vpop.f32.mrf.mxu0
        %v4873 = vadd.f32 0.0, %v4872
        %v4874 = vpop.f32.mrf.mxu0
        %4875 = vdwg.mxu0
        %4876 = vmatpush.bf16.msra.mxu0 0
        %4877 = vmatpush.bf16.msra.mxu0 0
        %4878 = vmatpush.bf16.msra.mxu0 0
        %4879 = vmatpush.bf16.msra.mxu0 0
        %4880 = vmatpush.bf16.msra.mxu0 0
        %4881 = vmatpush.bf16.msra.mxu0 0
        %4882 = vmatpush.bf16.msra.mxu0 0
        %4883 = vmatpush.bf16.msra.mxu0 %v4806
        %4884 = vmatmul.bf16.gmra.mxu0 %v4788
        %v4885 = vpop.f32.mrf.mxu0
        %v4886 = vadd.f32 0.0, %v4885
        %v4887 = vpop.f32.mrf.mxu0
        %4888 = vdwg.mxu0
        %4889 = vmatpush.bf16.msra.mxu0 0
        %4890 = vmatpush.bf16.msra.mxu0 0
        %4891 = vmatpush.bf16.msra.mxu0 0
        %4892 = vmatpush.bf16.msra.mxu0 0
        %4893 = vmatpush.bf16.msra.mxu0 0
        %4894 = vmatpush.bf16.msra.mxu0 0
        %4895 = vmatpush.bf16.msra.mxu0 0
        %4896 = vmatpush.bf16.msra.mxu0 %v4809
        %4897 = vmatmul.bf16.gmra.mxu0 %v4788
        %v4898 = vpop.f32.mrf.mxu0
        %v4899 = vadd.f32 0.0, %v4898
        %v4900 = vpop.f32.mrf.mxu0
        %4901 = vdwg.mxu0
        %v4902 = vadd.f32 %v4754, %v4821
        %v4903 = vadd.f32 %v4755, %v4834
        %v4904 = vadd.f32 %v4756, %v4847
        %v4905 = vadd.f32 %v4757, %v4860
        %v4906 = vadd.f32 %v4758, %v4873
        %v4907 = vadd.f32 %v4759, %v4886
        %v4908 = vadd.f32 %v4760, %v4899
        %s4909 = scalar_lea.vmem %s2, 16
        %v4910 = vld [vmem:[%s4909] sm:$0xf]
        %4911 = vrot.lane.b32.xlu0 %v4327, 100
        %v4912 = vpop.permute.xlu0 %4911
        %4913 = vrot.lane.b32.xlu0 %v4328, 100
        %v4914 = vpop.permute.xlu0 %4913
        %4915 = vrot.lane.b32.xlu0 %v4329, 100
        %v4916 = vpop.permute.xlu0 %4915
        %4917 = vrot.lane.b32.xlu0 %v4330, 100
        %v4918 = vpop.permute.xlu0 %4917
        %4919 = vrot.lane.b32.xlu0 %v4331, 100
        %v4920 = vpop.permute.xlu0 %4919
        %4921 = vrot.lane.b32.xlu0 %v4332, 100
        %v4922 = vpop.permute.xlu0 %4921
        %4923 = vrot.lane.b32.xlu0 %v4333, 100
        %v4924 = vpop.permute.xlu0 %4923
        %4925 = vrot.lane.b32.xlu0 %v4334, 100
        %v4926 = vpop.permute.xlu0 %4925
        %vm4927 = vcmask 818176
        %v4928 = vsel %vm4927, %v4912, %v4914
        %v4929 = vsel %vm4927, %v4914, %v4916
        %v4930 = vsel %vm4927, %v4916, %v4918
        %v4931 = vsel %vm4927, %v4918, %v4920
        %v4932 = vsel %vm4927, %v4920, %v4922
        %v4933 = vsel %vm4927, %v4922, %v4924
        %v4934 = vsel %vm4927, %v4924, %v4926
        %v4936 = vsel %vm250, %v4910, 0
        %v4939 = vsel %vm254, %v4928, 0
        %v4942 = vsel %vm254, %v4929, 0
        %v4945 = vsel %vm254, %v4930, 0
        %v4948 = vsel %vm254, %v4931, 0
        %v4951 = vsel %vm254, %v4932, 0
        %v4954 = vsel %vm254, %v4933, 0
        %v4957 = vsel %vm254, %v4934, 0
        %4959 = vmatpush.bf16.msra.mxu0 0
        %4960 = vmatpush.bf16.msra.mxu0 0
        %4961 = vmatpush.bf16.msra.mxu0 0
        %4962 = vmatpush.bf16.msra.mxu0 0
        %4963 = vmatpush.bf16.msra.mxu0 0
        %4964 = vmatpush.bf16.msra.mxu0 0
        %4965 = vmatpush.bf16.msra.mxu0 0
        %4966 = vmatpush.bf16.msra.mxu0 %v4939
        %4967 = vmatmul.bf16.gmra.mxu0 %v4936
        %v4968 = vpop.f32.mrf.mxu0
        %v4969 = vadd.f32 0.0, %v4968
        %v4970 = vpop.f32.mrf.mxu0
        %4971 = vdwg.mxu0
        %4972 = vmatpush.bf16.msra.mxu0 0
        %4973 = vmatpush.bf16.msra.mxu0 0
        %4974 = vmatpush.bf16.msra.mxu0 0
        %4975 = vmatpush.bf16.msra.mxu0 0
        %4976 = vmatpush.bf16.msra.mxu0 0
        %4977 = vmatpush.bf16.msra.mxu0 0
        %4978 = vmatpush.bf16.msra.mxu0 0
        %4979 = vmatpush.bf16.msra.mxu0 %v4942
        %4980 = vmatmul.bf16.gmra.mxu0 %v4936
        %v4981 = vpop.f32.mrf.mxu0
        %v4982 = vadd.f32 0.0, %v4981
        %v4983 = vpop.f32.mrf.mxu0
        %4984 = vdwg.mxu0
        %4985 = vmatpush.bf16.msra.mxu0 0
        %4986 = vmatpush.bf16.msra.mxu0 0
        %4987 = vmatpush.bf16.msra.mxu0 0
        %4988 = vmatpush.bf16.msra.mxu0 0
        %4989 = vmatpush.bf16.msra.mxu0 0
        %4990 = vmatpush.bf16.msra.mxu0 0
        %4991 = vmatpush.bf16.msra.mxu0 0
        %4992 = vmatpush.bf16.msra.mxu0 %v4945
        %4993 = vmatmul.bf16.gmra.mxu0 %v4936
        %v4994 = vpop.f32.mrf.mxu0
        %v4995 = vadd.f32 0.0, %v4994
        %v4996 = vpop.f32.mrf.mxu0
        %4997 = vdwg.mxu0
        %4998 = vmatpush.bf16.msra.mxu0 0
        %4999 = vmatpush.bf16.msra.mxu0 0
        %5000 = vmatpush.bf16.msra.mxu0 0
        %5001 = vmatpush.bf16.msra.mxu0 0
        %5002 = vmatpush.bf16.msra.mxu0 0
        %5003 = vmatpush.bf16.msra.mxu0 0
        %5004 = vmatpush.bf16.msra.mxu0 0
        %5005 = vmatpush.bf16.msra.mxu0 %v4948
        %5006 = vmatmul.bf16.gmra.mxu0 %v4936
        %v5007 = vpop.f32.mrf.mxu0
        %v5008 = vadd.f32 0.0, %v5007
        %v5009 = vpop.f32.mrf.mxu0
        %5010 = vdwg.mxu0
        %5011 = vmatpush.bf16.msra.mxu0 0
        %5012 = vmatpush.bf16.msra.mxu0 0
        %5013 = vmatpush.bf16.msra.mxu0 0
        %5014 = vmatpush.bf16.msra.mxu0 0
        %5015 = vmatpush.bf16.msra.mxu0 0
        %5016 = vmatpush.bf16.msra.mxu0 0
        %5017 = vmatpush.bf16.msra.mxu0 0
        %5018 = vmatpush.bf16.msra.mxu0 %v4951
        %5019 = vmatmul.bf16.gmra.mxu0 %v4936
        %v5020 = vpop.f32.mrf.mxu0
        %v5021 = vadd.f32 0.0, %v5020
        %v5022 = vpop.f32.mrf.mxu0
        %5023 = vdwg.mxu0
        %5024 = vmatpush.bf16.msra.mxu0 0
        %5025 = vmatpush.bf16.msra.mxu0 0
        %5026 = vmatpush.bf16.msra.mxu0 0
        %5027 = vmatpush.bf16.msra.mxu0 0
        %5028 = vmatpush.bf16.msra.mxu0 0
        %5029 = vmatpush.bf16.msra.mxu0 0
        %5030 = vmatpush.bf16.msra.mxu0 0
        %5031 = vmatpush.bf16.msra.mxu0 %v4954
        %5032 = vmatmul.bf16.gmra.mxu0 %v4936
        %v5033 = vpop.f32.mrf.mxu0
        %v5034 = vadd.f32 0.0, %v5033
        %v5035 = vpop.f32.mrf.mxu0
        %5036 = vdwg.mxu0
        %5037 = vmatpush.bf16.msra.mxu0 0
        %5038 = vmatpush.bf16.msra.mxu0 0
        %5039 = vmatpush.bf16.msra.mxu0 0
        %5040 = vmatpush.bf16.msra.mxu0 0
        %5041 = vmatpush.bf16.msra.mxu0 0
        %5042 = vmatpush.bf16.msra.mxu0 0
        %5043 = vmatpush.bf16.msra.mxu0 0
        %5044 = vmatpush.bf16.msra.mxu0 %v4957
        %5045 = vmatmul.bf16.gmra.mxu0 %v4936
        %v5046 = vpop.f32.mrf.mxu0
        %v5047 = vadd.f32 0.0, %v5046
        %v5048 = vpop.f32.mrf.mxu0
        %5049 = vdwg.mxu0
        %v5050 = vadd.f32 %v4902, %v4969
        %v5051 = vadd.f32 %v4903, %v4982
        %v5052 = vadd.f32 %v4904, %v4995
        %v5053 = vadd.f32 %v4905, %v5008
        %v5054 = vadd.f32 %v4906, %v5021
        %v5055 = vadd.f32 %v4907, %v5034
        %v5056 = vadd.f32 %v4908, %v5047
        %s5057 = scalar_lea.vmem %s2, 20
        %v5058 = vld [vmem:[%s5057] sm:$0xf]
        %5059 = vrot.lane.b32.xlu0 %v4327, 99
        %v5060 = vpop.permute.xlu0 %5059
        %5061 = vrot.lane.b32.xlu0 %v4328, 99
        %v5062 = vpop.permute.xlu0 %5061
        %5063 = vrot.lane.b32.xlu0 %v4329, 99
        %v5064 = vpop.permute.xlu0 %5063
        %5065 = vrot.lane.b32.xlu0 %v4330, 99
        %v5066 = vpop.permute.xlu0 %5065
        %5067 = vrot.lane.b32.xlu0 %v4331, 99
        %v5068 = vpop.permute.xlu0 %5067
        %5069 = vrot.lane.b32.xlu0 %v4332, 99
        %v5070 = vpop.permute.xlu0 %5069
        %5071 = vrot.lane.b32.xlu0 %v4333, 99
        %v5072 = vpop.permute.xlu0 %5071
        %5073 = vrot.lane.b32.xlu0 %v4334, 99
        %v5074 = vpop.permute.xlu0 %5073
        %vm5075 = vcmask 809984
        %v5076 = vsel %vm5075, %v5060, %v5062
        %v5077 = vsel %vm5075, %v5062, %v5064
        %v5078 = vsel %vm5075, %v5064, %v5066
        %v5079 = vsel %vm5075, %v5066, %v5068
        %v5080 = vsel %vm5075, %v5068, %v5070
        %v5081 = vsel %vm5075, %v5070, %v5072
        %v5082 = vsel %vm5075, %v5072, %v5074
        %v5084 = vsel %vm250, %v5058, 0
        %v5087 = vsel %vm254, %v5076, 0
        %v5090 = vsel %vm254, %v5077, 0
        %v5093 = vsel %vm254, %v5078, 0
        %v5096 = vsel %vm254, %v5079, 0
        %v5099 = vsel %vm254, %v5080, 0
        %v5102 = vsel %vm254, %v5081, 0
        %v5105 = vsel %vm254, %v5082, 0
        %5107 = vmatpush.bf16.msra.mxu0 0
        %5108 = vmatpush.bf16.msra.mxu0 0
        %5109 = vmatpush.bf16.msra.mxu0 0
        %5110 = vmatpush.bf16.msra.mxu0 0
        %5111 = vmatpush.bf16.msra.mxu0 0
        %5112 = vmatpush.bf16.msra.mxu0 0
        %5113 = vmatpush.bf16.msra.mxu0 0
        %5114 = vmatpush.bf16.msra.mxu0 %v5087
        %5115 = vmatmul.bf16.gmra.mxu0 %v5084
        %v5116 = vpop.f32.mrf.mxu0
        %v5117 = vadd.f32 0.0, %v5116
        %v5118 = vpop.f32.mrf.mxu0
        %5119 = vdwg.mxu0
        %5120 = vmatpush.bf16.msra.mxu0 0
        %5121 = vmatpush.bf16.msra.mxu0 0
        %5122 = vmatpush.bf16.msra.mxu0 0
        %5123 = vmatpush.bf16.msra.mxu0 0
        %5124 = vmatpush.bf16.msra.mxu0 0
        %5125 = vmatpush.bf16.msra.mxu0 0
        %5126 = vmatpush.bf16.msra.mxu0 0
        %5127 = vmatpush.bf16.msra.mxu0 %v5090
        %5128 = vmatmul.bf16.gmra.mxu0 %v5084
        %v5129 = vpop.f32.mrf.mxu0
        %v5130 = vadd.f32 0.0, %v5129
        %v5131 = vpop.f32.mrf.mxu0
        %5132 = vdwg.mxu0
        %5133 = vmatpush.bf16.msra.mxu0 0
        %5134 = vmatpush.bf16.msra.mxu0 0
        %5135 = vmatpush.bf16.msra.mxu0 0
        %5136 = vmatpush.bf16.msra.mxu0 0
        %5137 = vmatpush.bf16.msra.mxu0 0
        %5138 = vmatpush.bf16.msra.mxu0 0
        %5139 = vmatpush.bf16.msra.mxu0 0
        %5140 = vmatpush.bf16.msra.mxu0 %v5093
        %5141 = vmatmul.bf16.gmra.mxu0 %v5084
        %v5142 = vpop.f32.mrf.mxu0
        %v5143 = vadd.f32 0.0, %v5142
        %v5144 = vpop.f32.mrf.mxu0
        %5145 = vdwg.mxu0
        %5146 = vmatpush.bf16.msra.mxu0 0
        %5147 = vmatpush.bf16.msra.mxu0 0
        %5148 = vmatpush.bf16.msra.mxu0 0
        %5149 = vmatpush.bf16.msra.mxu0 0
        %5150 = vmatpush.bf16.msra.mxu0 0
        %5151 = vmatpush.bf16.msra.mxu0 0
        %5152 = vmatpush.bf16.msra.mxu0 0
        %5153 = vmatpush.bf16.msra.mxu0 %v5096
        %5154 = vmatmul.bf16.gmra.mxu0 %v5084
        %v5155 = vpop.f32.mrf.mxu0
        %v5156 = vadd.f32 0.0, %v5155
        %v5157 = vpop.f32.mrf.mxu0
        %5158 = vdwg.mxu0
        %5159 = vmatpush.bf16.msra.mxu0 0
        %5160 = vmatpush.bf16.msra.mxu0 0
        %5161 = vmatpush.bf16.msra.mxu0 0
        %5162 = vmatpush.bf16.msra.mxu0 0
        %5163 = vmatpush.bf16.msra.mxu0 0
        %5164 = vmatpush.bf16.msra.mxu0 0
        %5165 = vmatpush.bf16.msra.mxu0 0
        %5166 = vmatpush.bf16.msra.mxu0 %v5099
        %5167 = vmatmul.bf16.gmra.mxu0 %v5084
        %v5168 = vpop.f32.mrf.mxu0
        %v5169 = vadd.f32 0.0, %v5168
        %v5170 = vpop.f32.mrf.mxu0
        %5171 = vdwg.mxu0
        %5172 = vmatpush.bf16.msra.mxu0 0
        %5173 = vmatpush.bf16.msra.mxu0 0
        %5174 = vmatpush.bf16.msra.mxu0 0
        %5175 = vmatpush.bf16.msra.mxu0 0
        %5176 = vmatpush.bf16.msra.mxu0 0
        %5177 = vmatpush.bf16.msra.mxu0 0
        %5178 = vmatpush.bf16.msra.mxu0 0
        %5179 = vmatpush.bf16.msra.mxu0 %v5102
        %5180 = vmatmul.bf16.gmra.mxu0 %v5084
        %v5181 = vpop.f32.mrf.mxu0
        %v5182 = vadd.f32 0.0, %v5181
        %v5183 = vpop.f32.mrf.mxu0
        %5184 = vdwg.mxu0
        %5185 = vmatpush.bf16.msra.mxu0 0
        %5186 = vmatpush.bf16.msra.mxu0 0
        %5187 = vmatpush.bf16.msra.mxu0 0
        %5188 = vmatpush.bf16.msra.mxu0 0
        %5189 = vmatpush.bf16.msra.mxu0 0
        %5190 = vmatpush.bf16.msra.mxu0 0
        %5191 = vmatpush.bf16.msra.mxu0 0
        %5192 = vmatpush.bf16.msra.mxu0 %v5105
        %5193 = vmatmul.bf16.gmra.mxu0 %v5084
        %v5194 = vpop.f32.mrf.mxu0
        %v5195 = vadd.f32 0.0, %v5194
        %v5196 = vpop.f32.mrf.mxu0
        %5197 = vdwg.mxu0
        %v5198 = vadd.f32 %v5050, %v5117
        %v5199 = vadd.f32 %v5051, %v5130
        %v5200 = vadd.f32 %v5052, %v5143
        %v5201 = vadd.f32 %v5053, %v5156
        %v5202 = vadd.f32 %v5054, %v5169
        %v5203 = vadd.f32 %v5055, %v5182
        %v5204 = vadd.f32 %v5056, %v5195
        %s5205 = scalar_lea.vmem %s2, 24
        %v5206 = vld [vmem:[%s5205] sm:$0xf]
        %5207 = vrot.lane.b32.xlu0 %v4327, 91
        %v5208 = vpop.permute.xlu0 %5207
        %5209 = vrot.lane.b32.xlu0 %v4328, 91
        %v5210 = vpop.permute.xlu0 %5209
        %5211 = vrot.lane.b32.xlu0 %v4329, 91
        %v5212 = vpop.permute.xlu0 %5211
        %5213 = vrot.lane.b32.xlu0 %v4330, 91
        %v5214 = vpop.permute.xlu0 %5213
        %5215 = vrot.lane.b32.xlu0 %v4331, 91
        %v5216 = vpop.permute.xlu0 %5215
        %5217 = vrot.lane.b32.xlu0 %v4332, 91
        %v5218 = vpop.permute.xlu0 %5217
        %5219 = vrot.lane.b32.xlu0 %v4333, 91
        %v5220 = vpop.permute.xlu0 %5219
        %5221 = vrot.lane.b32.xlu0 %v4334, 91
        %v5222 = vpop.permute.xlu0 %5221
        %vm5223 = vcmask 744448
        %v5224 = vsel %vm5223, %v5208, %v5210
        %v5225 = vsel %vm5223, %v5210, %v5212
        %v5226 = vsel %vm5223, %v5212, %v5214
        %v5227 = vsel %vm5223, %v5214, %v5216
        %v5228 = vsel %vm5223, %v5216, %v5218
        %v5229 = vsel %vm5223, %v5218, %v5220
        %v5230 = vsel %vm5223, %v5220, %v5222
        %v5232 = vsel %vm250, %v5206, 0
        %v5235 = vsel %vm254, %v5224, 0
        %v5238 = vsel %vm254, %v5225, 0
        %v5241 = vsel %vm254, %v5226, 0
        %v5244 = vsel %vm254, %v5227, 0
        %v5247 = vsel %vm254, %v5228, 0
        %v5250 = vsel %vm254, %v5229, 0
        %v5253 = vsel %vm254, %v5230, 0
        %5255 = vmatpush.bf16.msra.mxu0 0
        %5256 = vmatpush.bf16.msra.mxu0 0
        %5257 = vmatpush.bf16.msra.mxu0 0
        %5258 = vmatpush.bf16.msra.mxu0 0
        %5259 = vmatpush.bf16.msra.mxu0 0
        %5260 = vmatpush.bf16.msra.mxu0 0
        %5261 = vmatpush.bf16.msra.mxu0 0
        %5262 = vmatpush.bf16.msra.mxu0 %v5235
        %5263 = vmatmul.bf16.gmra.mxu0 %v5232
        %v5264 = vpop.f32.mrf.mxu0
        %v5265 = vadd.f32 0.0, %v5264
        %v5266 = vpop.f32.mrf.mxu0
        %5267 = vdwg.mxu0
        %5268 = vmatpush.bf16.msra.mxu0 0
        %5269 = vmatpush.bf16.msra.mxu0 0
        %5270 = vmatpush.bf16.msra.mxu0 0
        %5271 = vmatpush.bf16.msra.mxu0 0
        %5272 = vmatpush.bf16.msra.mxu0 0
        %5273 = vmatpush.bf16.msra.mxu0 0
        %5274 = vmatpush.bf16.msra.mxu0 0
        %5275 = vmatpush.bf16.msra.mxu0 %v5238
        %5276 = vmatmul.bf16.gmra.mxu0 %v5232
        %v5277 = vpop.f32.mrf.mxu0
        %v5278 = vadd.f32 0.0, %v5277
        %v5279 = vpop.f32.mrf.mxu0
        %5280 = vdwg.mxu0
        %5281 = vmatpush.bf16.msra.mxu0 0
        %5282 = vmatpush.bf16.msra.mxu0 0
        %5283 = vmatpush.bf16.msra.mxu0 0
        %5284 = vmatpush.bf16.msra.mxu0 0
        %5285 = vmatpush.bf16.msra.mxu0 0
        %5286 = vmatpush.bf16.msra.mxu0 0
        %5287 = vmatpush.bf16.msra.mxu0 0
        %5288 = vmatpush.bf16.msra.mxu0 %v5241
        %5289 = vmatmul.bf16.gmra.mxu0 %v5232
        %v5290 = vpop.f32.mrf.mxu0
        %v5291 = vadd.f32 0.0, %v5290
        %v5292 = vpop.f32.mrf.mxu0
        %5293 = vdwg.mxu0
        %5294 = vmatpush.bf16.msra.mxu0 0
        %5295 = vmatpush.bf16.msra.mxu0 0
        %5296 = vmatpush.bf16.msra.mxu0 0
        %5297 = vmatpush.bf16.msra.mxu0 0
        %5298 = vmatpush.bf16.msra.mxu0 0
        %5299 = vmatpush.bf16.msra.mxu0 0
        %5300 = vmatpush.bf16.msra.mxu0 0
        %5301 = vmatpush.bf16.msra.mxu0 %v5244
        %5302 = vmatmul.bf16.gmra.mxu0 %v5232
        %v5303 = vpop.f32.mrf.mxu0
        %v5304 = vadd.f32 0.0, %v5303
        %v5305 = vpop.f32.mrf.mxu0
        %5306 = vdwg.mxu0
        %5307 = vmatpush.bf16.msra.mxu0 0
        %5308 = vmatpush.bf16.msra.mxu0 0
        %5309 = vmatpush.bf16.msra.mxu0 0
        %5310 = vmatpush.bf16.msra.mxu0 0
        %5311 = vmatpush.bf16.msra.mxu0 0
        %5312 = vmatpush.bf16.msra.mxu0 0
        %5313 = vmatpush.bf16.msra.mxu0 0
        %5314 = vmatpush.bf16.msra.mxu0 %v5247
        %5315 = vmatmul.bf16.gmra.mxu0 %v5232
        %v5316 = vpop.f32.mrf.mxu0
        %v5317 = vadd.f32 0.0, %v5316
        %v5318 = vpop.f32.mrf.mxu0
        %5319 = vdwg.mxu0
        %5320 = vmatpush.bf16.msra.mxu0 0
        %5321 = vmatpush.bf16.msra.mxu0 0
        %5322 = vmatpush.bf16.msra.mxu0 0
        %5323 = vmatpush.bf16.msra.mxu0 0
        %5324 = vmatpush.bf16.msra.mxu0 0
        %5325 = vmatpush.bf16.msra.mxu0 0
        %5326 = vmatpush.bf16.msra.mxu0 0
        %5327 = vmatpush.bf16.msra.mxu0 %v5250
        %5328 = vmatmul.bf16.gmra.mxu0 %v5232
        %v5329 = vpop.f32.mrf.mxu0
        %v5330 = vadd.f32 0.0, %v5329
        %v5331 = vpop.f32.mrf.mxu0
        %5332 = vdwg.mxu0
        %5333 = vmatpush.bf16.msra.mxu0 0
        %5334 = vmatpush.bf16.msra.mxu0 0
        %5335 = vmatpush.bf16.msra.mxu0 0
        %5336 = vmatpush.bf16.msra.mxu0 0
        %5337 = vmatpush.bf16.msra.mxu0 0
        %5338 = vmatpush.bf16.msra.mxu0 0
        %5339 = vmatpush.bf16.msra.mxu0 0
        %5340 = vmatpush.bf16.msra.mxu0 %v5253
        %5341 = vmatmul.bf16.gmra.mxu0 %v5232
        %v5342 = vpop.f32.mrf.mxu0
        %v5343 = vadd.f32 0.0, %v5342
        %v5344 = vpop.f32.mrf.mxu0
        %5345 = vdwg.mxu0
        %v5346 = vadd.f32 %v5198, %v5265
        %v5347 = vadd.f32 %v5199, %v5278
        %v5348 = vadd.f32 %v5200, %v5291
        %v5349 = vadd.f32 %v5201, %v5304
        %v5350 = vadd.f32 %v5202, %v5317
        %v5351 = vadd.f32 %v5203, %v5330
        %v5352 = vadd.f32 %v5204, %v5343
        %s5353 = scalar_lea.vmem %s2, 28
        %v5354 = vld [vmem:[%s5353] sm:$0xf]
        %5355 = vrot.lane.b32.xlu0 %v4327, 90
        %v5356 = vpop.permute.xlu0 %5355
        %5357 = vrot.lane.b32.xlu0 %v4328, 90
        %v5358 = vpop.permute.xlu0 %5357
        %5359 = vrot.lane.b32.xlu0 %v4329, 90
        %v5360 = vpop.permute.xlu0 %5359
        %5361 = vrot.lane.b32.xlu0 %v4330, 90
        %v5362 = vpop.permute.xlu0 %5361
        %5363 = vrot.lane.b32.xlu0 %v4331, 90
        %v5364 = vpop.permute.xlu0 %5363
        %5365 = vrot.lane.b32.xlu0 %v4332, 90
        %v5366 = vpop.permute.xlu0 %5365
        %5367 = vrot.lane.b32.xlu0 %v4333, 90
        %v5368 = vpop.permute.xlu0 %5367
        %5369 = vrot.lane.b32.xlu0 %v4334, 90
        %v5370 = vpop.permute.xlu0 %5369
        %vm5371 = vcmask 736256
        %v5372 = vsel %vm5371, %v5356, %v5358
        %v5373 = vsel %vm5371, %v5358, %v5360
        %v5374 = vsel %vm5371, %v5360, %v5362
        %v5375 = vsel %vm5371, %v5362, %v5364
        %v5376 = vsel %vm5371, %v5364, %v5366
        %v5377 = vsel %vm5371, %v5366, %v5368
        %v5378 = vsel %vm5371, %v5368, %v5370
        %v5380 = vsel %vm250, %v5354, 0
        %v5383 = vsel %vm254, %v5372, 0
        %v5386 = vsel %vm254, %v5373, 0
        %v5389 = vsel %vm254, %v5374, 0
        %v5392 = vsel %vm254, %v5375, 0
        %v5395 = vsel %vm254, %v5376, 0
        %v5398 = vsel %vm254, %v5377, 0
        %v5401 = vsel %vm254, %v5378, 0
        %5403 = vmatpush.bf16.msra.mxu0 0
        %5404 = vmatpush.bf16.msra.mxu0 0
        %5405 = vmatpush.bf16.msra.mxu0 0
        %5406 = vmatpush.bf16.msra.mxu0 0
        %5407 = vmatpush.bf16.msra.mxu0 0
        %5408 = vmatpush.bf16.msra.mxu0 0
        %5409 = vmatpush.bf16.msra.mxu0 0
        %5410 = vmatpush.bf16.msra.mxu0 %v5383
        %5411 = vmatmul.bf16.gmra.mxu0 %v5380
        %v5412 = vpop.f32.mrf.mxu0
        %v5413 = vadd.f32 0.0, %v5412
        %v5414 = vpop.f32.mrf.mxu0
        %5415 = vdwg.mxu0
        %5416 = vmatpush.bf16.msra.mxu0 0
        %5417 = vmatpush.bf16.msra.mxu0 0
        %5418 = vmatpush.bf16.msra.mxu0 0
        %5419 = vmatpush.bf16.msra.mxu0 0
        %5420 = vmatpush.bf16.msra.mxu0 0
        %5421 = vmatpush.bf16.msra.mxu0 0
        %5422 = vmatpush.bf16.msra.mxu0 0
        %5423 = vmatpush.bf16.msra.mxu0 %v5386
        %5424 = vmatmul.bf16.gmra.mxu0 %v5380
        %v5425 = vpop.f32.mrf.mxu0
        %v5426 = vadd.f32 0.0, %v5425
        %v5427 = vpop.f32.mrf.mxu0
        %5428 = vdwg.mxu0
        %5429 = vmatpush.bf16.msra.mxu0 0
        %5430 = vmatpush.bf16.msra.mxu0 0
        %5431 = vmatpush.bf16.msra.mxu0 0
        %5432 = vmatpush.bf16.msra.mxu0 0
        %5433 = vmatpush.bf16.msra.mxu0 0
        %5434 = vmatpush.bf16.msra.mxu0 0
        %5435 = vmatpush.bf16.msra.mxu0 0
        %5436 = vmatpush.bf16.msra.mxu0 %v5389
        %5437 = vmatmul.bf16.gmra.mxu0 %v5380
        %v5438 = vpop.f32.mrf.mxu0
        %v5439 = vadd.f32 0.0, %v5438
        %v5440 = vpop.f32.mrf.mxu0
        %5441 = vdwg.mxu0
        %5442 = vmatpush.bf16.msra.mxu0 0
        %5443 = vmatpush.bf16.msra.mxu0 0
        %5444 = vmatpush.bf16.msra.mxu0 0
        %5445 = vmatpush.bf16.msra.mxu0 0
        %5446 = vmatpush.bf16.msra.mxu0 0
        %5447 = vmatpush.bf16.msra.mxu0 0
        %5448 = vmatpush.bf16.msra.mxu0 0
        %5449 = vmatpush.bf16.msra.mxu0 %v5392
        %5450 = vmatmul.bf16.gmra.mxu0 %v5380
        %v5451 = vpop.f32.mrf.mxu0
        %v5452 = vadd.f32 0.0, %v5451
        %v5453 = vpop.f32.mrf.mxu0
        %5454 = vdwg.mxu0
        %5455 = vmatpush.bf16.msra.mxu0 0
        %5456 = vmatpush.bf16.msra.mxu0 0
        %5457 = vmatpush.bf16.msra.mxu0 0
        %5458 = vmatpush.bf16.msra.mxu0 0
        %5459 = vmatpush.bf16.msra.mxu0 0
        %5460 = vmatpush.bf16.msra.mxu0 0
        %5461 = vmatpush.bf16.msra.mxu0 0
        %5462 = vmatpush.bf16.msra.mxu0 %v5395
        %5463 = vmatmul.bf16.gmra.mxu0 %v5380
        %v5464 = vpop.f32.mrf.mxu0
        %v5465 = vadd.f32 0.0, %v5464
        %v5466 = vpop.f32.mrf.mxu0
        %5467 = vdwg.mxu0
        %5468 = vmatpush.bf16.msra.mxu0 0
        %5469 = vmatpush.bf16.msra.mxu0 0
        %5470 = vmatpush.bf16.msra.mxu0 0
        %5471 = vmatpush.bf16.msra.mxu0 0
        %5472 = vmatpush.bf16.msra.mxu0 0
        %5473 = vmatpush.bf16.msra.mxu0 0
        %5474 = vmatpush.bf16.msra.mxu0 0
        %5475 = vmatpush.bf16.msra.mxu0 %v5398
        %5476 = vmatmul.bf16.gmra.mxu0 %v5380
        %v5477 = vpop.f32.mrf.mxu0
        %v5478 = vadd.f32 0.0, %v5477
        %v5479 = vpop.f32.mrf.mxu0
        %5480 = vdwg.mxu0
        %5481 = vmatpush.bf16.msra.mxu0 0
        %5482 = vmatpush.bf16.msra.mxu0 0
        %5483 = vmatpush.bf16.msra.mxu0 0
        %5484 = vmatpush.bf16.msra.mxu0 0
        %5485 = vmatpush.bf16.msra.mxu0 0
        %5486 = vmatpush.bf16.msra.mxu0 0
        %5487 = vmatpush.bf16.msra.mxu0 0
        %5488 = vmatpush.bf16.msra.mxu0 %v5401
        %5489 = vmatmul.bf16.gmra.mxu0 %v5380
        %v5490 = vpop.f32.mrf.mxu0
        %v5491 = vadd.f32 0.0, %v5490
        %v5492 = vpop.f32.mrf.mxu0
        %5493 = vdwg.mxu0
        %v5494 = vadd.f32 %v5346, %v5413
        %v5495 = vadd.f32 %v5347, %v5426
        %v5496 = vadd.f32 %v5348, %v5439
        %v5497 = vadd.f32 %v5349, %v5452
        %v5498 = vadd.f32 %v5350, %v5465
        %v5499 = vadd.f32 %v5351, %v5478
        %v5500 = vadd.f32 %v5352, %v5491
        %s5501 = scalar_lea.vmem %s2, 32
        %v5502 = vld [vmem:[%s5501] sm:$0xf]
        %5503 = vrot.lane.b32.xlu0 %v4327, 89
        %v5504 = vpop.permute.xlu0 %5503
        %5505 = vrot.lane.b32.xlu0 %v4328, 89
        %v5506 = vpop.permute.xlu0 %5505
        %5507 = vrot.lane.b32.xlu0 %v4329, 89
        %v5508 = vpop.permute.xlu0 %5507
        %5509 = vrot.lane.b32.xlu0 %v4330, 89
        %v5510 = vpop.permute.xlu0 %5509
        %5511 = vrot.lane.b32.xlu0 %v4331, 89
        %v5512 = vpop.permute.xlu0 %5511
        %5513 = vrot.lane.b32.xlu0 %v4332, 89
        %v5514 = vpop.permute.xlu0 %5513
        %5515 = vrot.lane.b32.xlu0 %v4333, 89
        %v5516 = vpop.permute.xlu0 %5515
        %5517 = vrot.lane.b32.xlu0 %v4334, 89
        %v5518 = vpop.permute.xlu0 %5517
        %vm5519 = vcmask 728064
        %v5520 = vsel %vm5519, %v5504, %v5506
        %v5521 = vsel %vm5519, %v5506, %v5508
        %v5522 = vsel %vm5519, %v5508, %v5510
        %v5523 = vsel %vm5519, %v5510, %v5512
        %v5524 = vsel %vm5519, %v5512, %v5514
        %v5525 = vsel %vm5519, %v5514, %v5516
        %v5526 = vsel %vm5519, %v5516, %v5518
        %v5528 = vsel %vm250, %v5502, 0
        %v5531 = vsel %vm254, %v5520, 0
        %v5534 = vsel %vm254, %v5521, 0
        %v5537 = vsel %vm254, %v5522, 0
        %v5540 = vsel %vm254, %v5523, 0
        %v5543 = vsel %vm254, %v5524, 0
        %v5546 = vsel %vm254, %v5525, 0
        %v5549 = vsel %vm254, %v5526, 0
        %5551 = vmatpush.bf16.msra.mxu0 0
        %5552 = vmatpush.bf16.msra.mxu0 0
        %5553 = vmatpush.bf16.msra.mxu0 0
        %5554 = vmatpush.bf16.msra.mxu0 0
        %5555 = vmatpush.bf16.msra.mxu0 0
        %5556 = vmatpush.bf16.msra.mxu0 0
        %5557 = vmatpush.bf16.msra.mxu0 0
        %5558 = vmatpush.bf16.msra.mxu0 %v5531
        %5559 = vmatmul.bf16.gmra.mxu0 %v5528
        %v5560 = vpop.f32.mrf.mxu0
        %v5561 = vadd.f32 0.0, %v5560
        %v5562 = vpop.f32.mrf.mxu0
        %5563 = vdwg.mxu0
        %5564 = vmatpush.bf16.msra.mxu0 0
        %5565 = vmatpush.bf16.msra.mxu0 0
        %5566 = vmatpush.bf16.msra.mxu0 0
        %5567 = vmatpush.bf16.msra.mxu0 0
        %5568 = vmatpush.bf16.msra.mxu0 0
        %5569 = vmatpush.bf16.msra.mxu0 0
        %5570 = vmatpush.bf16.msra.mxu0 0
        %5571 = vmatpush.bf16.msra.mxu0 %v5534
        %5572 = vmatmul.bf16.gmra.mxu0 %v5528
        %v5573 = vpop.f32.mrf.mxu0
        %v5574 = vadd.f32 0.0, %v5573
        %v5575 = vpop.f32.mrf.mxu0
        %5576 = vdwg.mxu0
        %5577 = vmatpush.bf16.msra.mxu0 0
        %5578 = vmatpush.bf16.msra.mxu0 0
        %5579 = vmatpush.bf16.msra.mxu0 0
        %5580 = vmatpush.bf16.msra.mxu0 0
        %5581 = vmatpush.bf16.msra.mxu0 0
        %5582 = vmatpush.bf16.msra.mxu0 0
        %5583 = vmatpush.bf16.msra.mxu0 0
        %5584 = vmatpush.bf16.msra.mxu0 %v5537
        %5585 = vmatmul.bf16.gmra.mxu0 %v5528
        %v5586 = vpop.f32.mrf.mxu0
        %v5587 = vadd.f32 0.0, %v5586
        %v5588 = vpop.f32.mrf.mxu0
        %5589 = vdwg.mxu0
        %5590 = vmatpush.bf16.msra.mxu0 0
        %5591 = vmatpush.bf16.msra.mxu0 0
        %5592 = vmatpush.bf16.msra.mxu0 0
        %5593 = vmatpush.bf16.msra.mxu0 0
        %5594 = vmatpush.bf16.msra.mxu0 0
        %5595 = vmatpush.bf16.msra.mxu0 0
        %5596 = vmatpush.bf16.msra.mxu0 0
        %5597 = vmatpush.bf16.msra.mxu0 %v5540
        %5598 = vmatmul.bf16.gmra.mxu0 %v5528
        %v5599 = vpop.f32.mrf.mxu0
        %v5600 = vadd.f32 0.0, %v5599
        %v5601 = vpop.f32.mrf.mxu0
        %5602 = vdwg.mxu0
        %5603 = vmatpush.bf16.msra.mxu0 0
        %5604 = vmatpush.bf16.msra.mxu0 0
        %5605 = vmatpush.bf16.msra.mxu0 0
        %5606 = vmatpush.bf16.msra.mxu0 0
        %5607 = vmatpush.bf16.msra.mxu0 0
        %5608 = vmatpush.bf16.msra.mxu0 0
        %5609 = vmatpush.bf16.msra.mxu0 0
        %5610 = vmatpush.bf16.msra.mxu0 %v5543
        %5611 = vmatmul.bf16.gmra.mxu0 %v5528
        %v5612 = vpop.f32.mrf.mxu0
        %v5613 = vadd.f32 0.0, %v5612
        %v5614 = vpop.f32.mrf.mxu0
        %5615 = vdwg.mxu0
        %5616 = vmatpush.bf16.msra.mxu0 0
        %5617 = vmatpush.bf16.msra.mxu0 0
        %5618 = vmatpush.bf16.msra.mxu0 0
        %5619 = vmatpush.bf16.msra.mxu0 0
        %5620 = vmatpush.bf16.msra.mxu0 0
        %5621 = vmatpush.bf16.msra.mxu0 0
        %5622 = vmatpush.bf16.msra.mxu0 0
        %5623 = vmatpush.bf16.msra.mxu0 %v5546
        %5624 = vmatmul.bf16.gmra.mxu0 %v5528
        %v5625 = vpop.f32.mrf.mxu0
        %v5626 = vadd.f32 0.0, %v5625
        %v5627 = vpop.f32.mrf.mxu0
        %5628 = vdwg.mxu0
        %5629 = vmatpush.bf16.msra.mxu0 0
        %5630 = vmatpush.bf16.msra.mxu0 0
        %5631 = vmatpush.bf16.msra.mxu0 0
        %5632 = vmatpush.bf16.msra.mxu0 0
        %5633 = vmatpush.bf16.msra.mxu0 0
        %5634 = vmatpush.bf16.msra.mxu0 0
        %5635 = vmatpush.bf16.msra.mxu0 0
        %5636 = vmatpush.bf16.msra.mxu0 %v5549
        %5637 = vmatmul.bf16.gmra.mxu0 %v5528
        %v5638 = vpop.f32.mrf.mxu0
        %v5639 = vadd.f32 0.0, %v5638
        %v5640 = vpop.f32.mrf.mxu0
        %5641 = vdwg.mxu0
        %v5642 = vadd.f32 %v5494, %v5561
        %v5643 = vadd.f32 %v5495, %v5574
        %v5644 = vadd.f32 %v5496, %v5587
        %v5645 = vadd.f32 %v5497, %v5600
        %v5646 = vadd.f32 %v5498, %v5613
        %v5647 = vadd.f32 %v5499, %v5626
        %v5648 = vadd.f32 %v5500, %v5639
        %s5649 = scalar_lea.vmem %s2, 36
        %v5650 = vld [vmem:[%s5649] sm:$0xf]
        %5651 = vrot.lane.b32.xlu0 %v4327, 11
        %v5652 = vpop.permute.xlu0 %5651
        %5653 = vrot.lane.b32.xlu0 %v4328, 11
        %v5654 = vpop.permute.xlu0 %5653
        %5655 = vrot.lane.b32.xlu0 %v4329, 11
        %v5656 = vpop.permute.xlu0 %5655
        %5657 = vrot.lane.b32.xlu0 %v4330, 11
        %v5658 = vpop.permute.xlu0 %5657
        %5659 = vrot.lane.b32.xlu0 %v4331, 11
        %v5660 = vpop.permute.xlu0 %5659
        %5661 = vrot.lane.b32.xlu0 %v4332, 11
        %v5662 = vpop.permute.xlu0 %5661
        %5663 = vrot.lane.b32.xlu0 %v4333, 11
        %v5664 = vpop.permute.xlu0 %5663
        %5665 = vrot.lane.b32.xlu0 %v4334, 11
        %v5666 = vpop.permute.xlu0 %5665
        %vm5667 = vcmask 89088
        %v5668 = vsel %vm5667, %v5652, %v5654
        %v5669 = vsel %vm5667, %v5654, %v5656
        %v5670 = vsel %vm5667, %v5656, %v5658
        %v5671 = vsel %vm5667, %v5658, %v5660
        %v5672 = vsel %vm5667, %v5660, %v5662
        %v5673 = vsel %vm5667, %v5662, %v5664
        %v5674 = vsel %vm5667, %v5664, %v5666
        %v5676 = vsel %vm250, %v5650, 0
        %v5679 = vsel %vm254, %v5668, 0
        %v5682 = vsel %vm254, %v5669, 0
        %v5685 = vsel %vm254, %v5670, 0
        %v5688 = vsel %vm254, %v5671, 0
        %v5691 = vsel %vm254, %v5672, 0
        %v5694 = vsel %vm254, %v5673, 0
        %v5697 = vsel %vm254, %v5674, 0
        %5699 = vmatpush.bf16.msra.mxu0 0
        %5700 = vmatpush.bf16.msra.mxu0 0
        %5701 = vmatpush.bf16.msra.mxu0 0
        %5702 = vmatpush.bf16.msra.mxu0 0
        %5703 = vmatpush.bf16.msra.mxu0 0
        %5704 = vmatpush.bf16.msra.mxu0 0
        %5705 = vmatpush.bf16.msra.mxu0 0
        %5706 = vmatpush.bf16.msra.mxu0 %v5679
        %5707 = vmatmul.bf16.gmra.mxu0 %v5676
        %v5708 = vpop.f32.mrf.mxu0
        %v5709 = vadd.f32 0.0, %v5708
        %v5710 = vpop.f32.mrf.mxu0
        %5711 = vdwg.mxu0
        %5712 = vmatpush.bf16.msra.mxu0 0
        %5713 = vmatpush.bf16.msra.mxu0 0
        %5714 = vmatpush.bf16.msra.mxu0 0
        %5715 = vmatpush.bf16.msra.mxu0 0
        %5716 = vmatpush.bf16.msra.mxu0 0
        %5717 = vmatpush.bf16.msra.mxu0 0
        %5718 = vmatpush.bf16.msra.mxu0 0
        %5719 = vmatpush.bf16.msra.mxu0 %v5682
        %5720 = vmatmul.bf16.gmra.mxu0 %v5676
        %v5721 = vpop.f32.mrf.mxu0
        %v5722 = vadd.f32 0.0, %v5721
        %v5723 = vpop.f32.mrf.mxu0
        %5724 = vdwg.mxu0
        %5725 = vmatpush.bf16.msra.mxu0 0
        %5726 = vmatpush.bf16.msra.mxu0 0
        %5727 = vmatpush.bf16.msra.mxu0 0
        %5728 = vmatpush.bf16.msra.mxu0 0
        %5729 = vmatpush.bf16.msra.mxu0 0
        %5730 = vmatpush.bf16.msra.mxu0 0
        %5731 = vmatpush.bf16.msra.mxu0 0
        %5732 = vmatpush.bf16.msra.mxu0 %v5685
        %5733 = vmatmul.bf16.gmra.mxu0 %v5676
        %v5734 = vpop.f32.mrf.mxu0
        %v5735 = vadd.f32 0.0, %v5734
        %v5736 = vpop.f32.mrf.mxu0
        %5737 = vdwg.mxu0
        %5738 = vmatpush.bf16.msra.mxu0 0
        %5739 = vmatpush.bf16.msra.mxu0 0
        %5740 = vmatpush.bf16.msra.mxu0 0
        %5741 = vmatpush.bf16.msra.mxu0 0
        %5742 = vmatpush.bf16.msra.mxu0 0
        %5743 = vmatpush.bf16.msra.mxu0 0
        %5744 = vmatpush.bf16.msra.mxu0 0
        %5745 = vmatpush.bf16.msra.mxu0 %v5688
        %5746 = vmatmul.bf16.gmra.mxu0 %v5676
        %v5747 = vpop.f32.mrf.mxu0
        %v5748 = vadd.f32 0.0, %v5747
        %v5749 = vpop.f32.mrf.mxu0
        %5750 = vdwg.mxu0
        %5751 = vmatpush.bf16.msra.mxu0 0
        %5752 = vmatpush.bf16.msra.mxu0 0
        %5753 = vmatpush.bf16.msra.mxu0 0
        %5754 = vmatpush.bf16.msra.mxu0 0
        %5755 = vmatpush.bf16.msra.mxu0 0
        %5756 = vmatpush.bf16.msra.mxu0 0
        %5757 = vmatpush.bf16.msra.mxu0 0
        %5758 = vmatpush.bf16.msra.mxu0 %v5691
        %5759 = vmatmul.bf16.gmra.mxu0 %v5676
        %v5760 = vpop.f32.mrf.mxu0
        %v5761 = vadd.f32 0.0, %v5760
        %v5762 = vpop.f32.mrf.mxu0
        %5763 = vdwg.mxu0
        %5764 = vmatpush.bf16.msra.mxu0 0
        %5765 = vmatpush.bf16.msra.mxu0 0
        %5766 = vmatpush.bf16.msra.mxu0 0
        %5767 = vmatpush.bf16.msra.mxu0 0
        %5768 = vmatpush.bf16.msra.mxu0 0
        %5769 = vmatpush.bf16.msra.mxu0 0
        %5770 = vmatpush.bf16.msra.mxu0 0
        %5771 = vmatpush.bf16.msra.mxu0 %v5694
        %5772 = vmatmul.bf16.gmra.mxu0 %v5676
        %v5773 = vpop.f32.mrf.mxu0
        %v5774 = vadd.f32 0.0, %v5773
        %v5775 = vpop.f32.mrf.mxu0
        %5776 = vdwg.mxu0
        %5777 = vmatpush.bf16.msra.mxu0 0
        %5778 = vmatpush.bf16.msra.mxu0 0
        %5779 = vmatpush.bf16.msra.mxu0 0
        %5780 = vmatpush.bf16.msra.mxu0 0
        %5781 = vmatpush.bf16.msra.mxu0 0
        %5782 = vmatpush.bf16.msra.mxu0 0
        %5783 = vmatpush.bf16.msra.mxu0 0
        %5784 = vmatpush.bf16.msra.mxu0 %v5697
        %5785 = vmatmul.bf16.gmra.mxu0 %v5676
        %v5786 = vpop.f32.mrf.mxu0
        %v5787 = vadd.f32 0.0, %v5786
        %v5788 = vpop.f32.mrf.mxu0
        %5789 = vdwg.mxu0
        %v5790 = vadd.f32 %v5642, %v5709
        %v5791 = vadd.f32 %v5643, %v5722
        %v5792 = vadd.f32 %v5644, %v5735
        %v5793 = vadd.f32 %v5645, %v5748
        %v5794 = vadd.f32 %v5646, %v5761
        %v5795 = vadd.f32 %v5647, %v5774
        %v5796 = vadd.f32 %v5648, %v5787
        %s5797 = scalar_lea.vmem %s2, 40
        %v5798 = vld [vmem:[%s5797] sm:$0xf]
        %5799 = vrot.lane.b32.xlu0 %v4327, 10
        %v5800 = vpop.permute.xlu0 %5799
        %5801 = vrot.lane.b32.xlu0 %v4328, 10
        %v5802 = vpop.permute.xlu0 %5801
        %5803 = vrot.lane.b32.xlu0 %v4329, 10
        %v5804 = vpop.permute.xlu0 %5803
        %5805 = vrot.lane.b32.xlu0 %v4330, 10
        %v5806 = vpop.permute.xlu0 %5805
        %5807 = vrot.lane.b32.xlu0 %v4331, 10
        %v5808 = vpop.permute.xlu0 %5807
        %5809 = vrot.lane.b32.xlu0 %v4332, 10
        %v5810 = vpop.permute.xlu0 %5809
        %5811 = vrot.lane.b32.xlu0 %v4333, 10
        %v5812 = vpop.permute.xlu0 %5811
        %5813 = vrot.lane.b32.xlu0 %v4334, 10
        %v5814 = vpop.permute.xlu0 %5813
        %vm5815 = vcmask 80896
        %v5816 = vsel %vm5815, %v5800, %v5802
        %v5817 = vsel %vm5815, %v5802, %v5804
        %v5818 = vsel %vm5815, %v5804, %v5806
        %v5819 = vsel %vm5815, %v5806, %v5808
        %v5820 = vsel %vm5815, %v5808, %v5810
        %v5821 = vsel %vm5815, %v5810, %v5812
        %v5822 = vsel %vm5815, %v5812, %v5814
        %v5824 = vsel %vm250, %v5798, 0
        %v5827 = vsel %vm254, %v5816, 0
        %v5830 = vsel %vm254, %v5817, 0
        %v5833 = vsel %vm254, %v5818, 0
        %v5836 = vsel %vm254, %v5819, 0
        %v5839 = vsel %vm254, %v5820, 0
        %v5842 = vsel %vm254, %v5821, 0
        %v5845 = vsel %vm254, %v5822, 0
        %5847 = vmatpush.bf16.msra.mxu0 0
        %5848 = vmatpush.bf16.msra.mxu0 0
        %5849 = vmatpush.bf16.msra.mxu0 0
        %5850 = vmatpush.bf16.msra.mxu0 0
        %5851 = vmatpush.bf16.msra.mxu0 0
        %5852 = vmatpush.bf16.msra.mxu0 0
        %5853 = vmatpush.bf16.msra.mxu0 0
        %5854 = vmatpush.bf16.msra.mxu0 %v5827
        %5855 = vmatmul.bf16.gmra.mxu0 %v5824
        %v5856 = vpop.f32.mrf.mxu0
        %v5857 = vadd.f32 0.0, %v5856
        %v5858 = vpop.f32.mrf.mxu0
        %5859 = vdwg.mxu0
        %5860 = vmatpush.bf16.msra.mxu0 0
        %5861 = vmatpush.bf16.msra.mxu0 0
        %5862 = vmatpush.bf16.msra.mxu0 0
        %5863 = vmatpush.bf16.msra.mxu0 0
        %5864 = vmatpush.bf16.msra.mxu0 0
        %5865 = vmatpush.bf16.msra.mxu0 0
        %5866 = vmatpush.bf16.msra.mxu0 0
        %5867 = vmatpush.bf16.msra.mxu0 %v5830
        %5868 = vmatmul.bf16.gmra.mxu0 %v5824
        %v5869 = vpop.f32.mrf.mxu0
        %v5870 = vadd.f32 0.0, %v5869
        %v5871 = vpop.f32.mrf.mxu0
        %5872 = vdwg.mxu0
        %5873 = vmatpush.bf16.msra.mxu0 0
        %5874 = vmatpush.bf16.msra.mxu0 0
        %5875 = vmatpush.bf16.msra.mxu0 0
        %5876 = vmatpush.bf16.msra.mxu0 0
        %5877 = vmatpush.bf16.msra.mxu0 0
        %5878 = vmatpush.bf16.msra.mxu0 0
        %5879 = vmatpush.bf16.msra.mxu0 0
        %5880 = vmatpush.bf16.msra.mxu0 %v5833
        %5881 = vmatmul.bf16.gmra.mxu0 %v5824
        %v5882 = vpop.f32.mrf.mxu0
        %v5883 = vadd.f32 0.0, %v5882
        %v5884 = vpop.f32.mrf.mxu0
        %5885 = vdwg.mxu0
        %5886 = vmatpush.bf16.msra.mxu0 0
        %5887 = vmatpush.bf16.msra.mxu0 0
        %5888 = vmatpush.bf16.msra.mxu0 0
        %5889 = vmatpush.bf16.msra.mxu0 0
        %5890 = vmatpush.bf16.msra.mxu0 0
        %5891 = vmatpush.bf16.msra.mxu0 0
        %5892 = vmatpush.bf16.msra.mxu0 0
        %5893 = vmatpush.bf16.msra.mxu0 %v5836
        %5894 = vmatmul.bf16.gmra.mxu0 %v5824
        %v5895 = vpop.f32.mrf.mxu0
        %v5896 = vadd.f32 0.0, %v5895
        %v5897 = vpop.f32.mrf.mxu0
        %5898 = vdwg.mxu0
        %5899 = vmatpush.bf16.msra.mxu0 0
        %5900 = vmatpush.bf16.msra.mxu0 0
        %5901 = vmatpush.bf16.msra.mxu0 0
        %5902 = vmatpush.bf16.msra.mxu0 0
        %5903 = vmatpush.bf16.msra.mxu0 0
        %5904 = vmatpush.bf16.msra.mxu0 0
        %5905 = vmatpush.bf16.msra.mxu0 0
        %5906 = vmatpush.bf16.msra.mxu0 %v5839
        %5907 = vmatmul.bf16.gmra.mxu0 %v5824
        %v5908 = vpop.f32.mrf.mxu0
        %v5909 = vadd.f32 0.0, %v5908
        %v5910 = vpop.f32.mrf.mxu0
        %5911 = vdwg.mxu0
        %5912 = vmatpush.bf16.msra.mxu0 0
        %5913 = vmatpush.bf16.msra.mxu0 0
        %5914 = vmatpush.bf16.msra.mxu0 0
        %5915 = vmatpush.bf16.msra.mxu0 0
        %5916 = vmatpush.bf16.msra.mxu0 0
        %5917 = vmatpush.bf16.msra.mxu0 0
        %5918 = vmatpush.bf16.msra.mxu0 0
        %5919 = vmatpush.bf16.msra.mxu0 %v5842
        %5920 = vmatmul.bf16.gmra.mxu0 %v5824
        %v5921 = vpop.f32.mrf.mxu0
        %v5922 = vadd.f32 0.0, %v5921
        %v5923 = vpop.f32.mrf.mxu0
        %5924 = vdwg.mxu0
        %5925 = vmatpush.bf16.msra.mxu0 0
        %5926 = vmatpush.bf16.msra.mxu0 0
        %5927 = vmatpush.bf16.msra.mxu0 0
        %5928 = vmatpush.bf16.msra.mxu0 0
        %5929 = vmatpush.bf16.msra.mxu0 0
        %5930 = vmatpush.bf16.msra.mxu0 0
        %5931 = vmatpush.bf16.msra.mxu0 0
        %5932 = vmatpush.bf16.msra.mxu0 %v5845
        %5933 = vmatmul.bf16.gmra.mxu0 %v5824
        %v5934 = vpop.f32.mrf.mxu0
        %v5935 = vadd.f32 0.0, %v5934
        %v5936 = vpop.f32.mrf.mxu0
        %5937 = vdwg.mxu0
        %v5938 = vadd.f32 %v5790, %v5857
        %v5939 = vadd.f32 %v5791, %v5870
        %v5940 = vadd.f32 %v5792, %v5883
        %v5941 = vadd.f32 %v5793, %v5896
        %v5942 = vadd.f32 %v5794, %v5909
        %v5943 = vadd.f32 %v5795, %v5922
        %v5944 = vadd.f32 %v5796, %v5935
        %s5945 = scalar_lea.vmem %s2, 44
        %v5946 = vld [vmem:[%s5945] sm:$0xf]
        %5947 = vrot.lane.b32.xlu0 %v4327, 9
        %v5948 = vpop.permute.xlu0 %5947
        %5949 = vrot.lane.b32.xlu0 %v4328, 9
        %v5950 = vpop.permute.xlu0 %5949
        %5951 = vrot.lane.b32.xlu0 %v4329, 9
        %v5952 = vpop.permute.xlu0 %5951
        %5953 = vrot.lane.b32.xlu0 %v4330, 9
        %v5954 = vpop.permute.xlu0 %5953
        %5955 = vrot.lane.b32.xlu0 %v4331, 9
        %v5956 = vpop.permute.xlu0 %5955
        %5957 = vrot.lane.b32.xlu0 %v4332, 9
        %v5958 = vpop.permute.xlu0 %5957
        %5959 = vrot.lane.b32.xlu0 %v4333, 9
        %v5960 = vpop.permute.xlu0 %5959
        %5961 = vrot.lane.b32.xlu0 %v4334, 9
        %v5962 = vpop.permute.xlu0 %5961
        %vm5963 = vcmask 72704
        %v5964 = vsel %vm5963, %v5948, %v5950
        %v5965 = vsel %vm5963, %v5950, %v5952
        %v5966 = vsel %vm5963, %v5952, %v5954
        %v5967 = vsel %vm5963, %v5954, %v5956
        %v5968 = vsel %vm5963, %v5956, %v5958
        %v5969 = vsel %vm5963, %v5958, %v5960
        %v5970 = vsel %vm5963, %v5960, %v5962
        %v5972 = vsel %vm250, %v5946, 0
        %v5975 = vsel %vm254, %v5964, 0
        %v5978 = vsel %vm254, %v5965, 0
        %v5981 = vsel %vm254, %v5966, 0
        %v5984 = vsel %vm254, %v5967, 0
        %v5987 = vsel %vm254, %v5968, 0
        %v5990 = vsel %vm254, %v5969, 0
        %v5993 = vsel %vm254, %v5970, 0
        %5995 = vmatpush.bf16.msra.mxu0 0
        %5996 = vmatpush.bf16.msra.mxu0 0
        %5997 = vmatpush.bf16.msra.mxu0 0
        %5998 = vmatpush.bf16.msra.mxu0 0
        %5999 = vmatpush.bf16.msra.mxu0 0
        %6000 = vmatpush.bf16.msra.mxu0 0
        %6001 = vmatpush.bf16.msra.mxu0 0
        %6002 = vmatpush.bf16.msra.mxu0 %v5975
        %6003 = vmatmul.bf16.gmra.mxu0 %v5972
        %v6004 = vpop.f32.mrf.mxu0
        %v6005 = vadd.f32 0.0, %v6004
        %v6006 = vpop.f32.mrf.mxu0
        %6007 = vdwg.mxu0
        %6008 = vmatpush.bf16.msra.mxu0 0
        %6009 = vmatpush.bf16.msra.mxu0 0
        %6010 = vmatpush.bf16.msra.mxu0 0
        %6011 = vmatpush.bf16.msra.mxu0 0
        %6012 = vmatpush.bf16.msra.mxu0 0
        %6013 = vmatpush.bf16.msra.mxu0 0
        %6014 = vmatpush.bf16.msra.mxu0 0
        %6015 = vmatpush.bf16.msra.mxu0 %v5978
        %6016 = vmatmul.bf16.gmra.mxu0 %v5972
        %v6017 = vpop.f32.mrf.mxu0
        %v6018 = vadd.f32 0.0, %v6017
        %v6019 = vpop.f32.mrf.mxu0
        %6020 = vdwg.mxu0
        %6021 = vmatpush.bf16.msra.mxu0 0
        %6022 = vmatpush.bf16.msra.mxu0 0
        %6023 = vmatpush.bf16.msra.mxu0 0
        %6024 = vmatpush.bf16.msra.mxu0 0
        %6025 = vmatpush.bf16.msra.mxu0 0
        %6026 = vmatpush.bf16.msra.mxu0 0
        %6027 = vmatpush.bf16.msra.mxu0 0
        %6028 = vmatpush.bf16.msra.mxu0 %v5981
        %6029 = vmatmul.bf16.gmra.mxu0 %v5972
        %v6030 = vpop.f32.mrf.mxu0
        %v6031 = vadd.f32 0.0, %v6030
        %v6032 = vpop.f32.mrf.mxu0
        %6033 = vdwg.mxu0
        %6034 = vmatpush.bf16.msra.mxu0 0
        %6035 = vmatpush.bf16.msra.mxu0 0
        %6036 = vmatpush.bf16.msra.mxu0 0
        %6037 = vmatpush.bf16.msra.mxu0 0
        %6038 = vmatpush.bf16.msra.mxu0 0
        %6039 = vmatpush.bf16.msra.mxu0 0
        %6040 = vmatpush.bf16.msra.mxu0 0
        %6041 = vmatpush.bf16.msra.mxu0 %v5984
        %6042 = vmatmul.bf16.gmra.mxu0 %v5972
        %v6043 = vpop.f32.mrf.mxu0
        %v6044 = vadd.f32 0.0, %v6043
        %v6045 = vpop.f32.mrf.mxu0
        %6046 = vdwg.mxu0
        %6047 = vmatpush.bf16.msra.mxu0 0
        %6048 = vmatpush.bf16.msra.mxu0 0
        %6049 = vmatpush.bf16.msra.mxu0 0
        %6050 = vmatpush.bf16.msra.mxu0 0
        %6051 = vmatpush.bf16.msra.mxu0 0
        %6052 = vmatpush.bf16.msra.mxu0 0
        %6053 = vmatpush.bf16.msra.mxu0 0
        %6054 = vmatpush.bf16.msra.mxu0 %v5987
        %6055 = vmatmul.bf16.gmra.mxu0 %v5972
        %v6056 = vpop.f32.mrf.mxu0
        %v6057 = vadd.f32 0.0, %v6056
        %v6058 = vpop.f32.mrf.mxu0
        %6059 = vdwg.mxu0
        %6060 = vmatpush.bf16.msra.mxu0 0
        %6061 = vmatpush.bf16.msra.mxu0 0
        %6062 = vmatpush.bf16.msra.mxu0 0
        %6063 = vmatpush.bf16.msra.mxu0 0
        %6064 = vmatpush.bf16.msra.mxu0 0
        %6065 = vmatpush.bf16.msra.mxu0 0
        %6066 = vmatpush.bf16.msra.mxu0 0
        %6067 = vmatpush.bf16.msra.mxu0 %v5990
        %6068 = vmatmul.bf16.gmra.mxu0 %v5972
        %v6069 = vpop.f32.mrf.mxu0
        %v6070 = vadd.f32 0.0, %v6069
        %v6071 = vpop.f32.mrf.mxu0
        %6072 = vdwg.mxu0
        %6073 = vmatpush.bf16.msra.mxu0 0
        %6074 = vmatpush.bf16.msra.mxu0 0
        %6075 = vmatpush.bf16.msra.mxu0 0
        %6076 = vmatpush.bf16.msra.mxu0 0
        %6077 = vmatpush.bf16.msra.mxu0 0
        %6078 = vmatpush.bf16.msra.mxu0 0
        %6079 = vmatpush.bf16.msra.mxu0 0
        %6080 = vmatpush.bf16.msra.mxu0 %v5993
        %6081 = vmatmul.bf16.gmra.mxu0 %v5972
        %v6082 = vpop.f32.mrf.mxu0
        %v6083 = vadd.f32 0.0, %v6082
        %v6084 = vpop.f32.mrf.mxu0
        %6085 = vdwg.mxu0
        %v6086 = vadd.f32 %v5938, %v6005
        %v6087 = vadd.f32 %v5939, %v6018
        %v6088 = vadd.f32 %v5940, %v6031
        %v6089 = vadd.f32 %v5941, %v6044
        %v6090 = vadd.f32 %v5942, %v6057
        %v6091 = vadd.f32 %v5943, %v6070
        %v6092 = vadd.f32 %v5944, %v6083
        %s6093 = scalar_lea.vmem %s2, 48
        %v6094 = vld [vmem:[%s6093] sm:$0xf]
        %6095 = vrot.lane.b32.xlu0 %v4327, 1
        %v6096 = vpop.permute.xlu0 %6095
        %6097 = vrot.lane.b32.xlu0 %v4328, 1
        %v6098 = vpop.permute.xlu0 %6097
        %6099 = vrot.lane.b32.xlu0 %v4329, 1
        %v6100 = vpop.permute.xlu0 %6099
        %6101 = vrot.lane.b32.xlu0 %v4330, 1
        %v6102 = vpop.permute.xlu0 %6101
        %6103 = vrot.lane.b32.xlu0 %v4331, 1
        %v6104 = vpop.permute.xlu0 %6103
        %6105 = vrot.lane.b32.xlu0 %v4332, 1
        %v6106 = vpop.permute.xlu0 %6105
        %6107 = vrot.lane.b32.xlu0 %v4333, 1
        %v6108 = vpop.permute.xlu0 %6107
        %6109 = vrot.lane.b32.xlu0 %v4334, 1
        %v6110 = vpop.permute.xlu0 %6109
        %vm6111 = vcmask 7168
        %v6112 = vsel %vm6111, %v6096, %v6098
        %v6113 = vsel %vm6111, %v6098, %v6100
        %v6114 = vsel %vm6111, %v6100, %v6102
        %v6115 = vsel %vm6111, %v6102, %v6104
        %v6116 = vsel %vm6111, %v6104, %v6106
        %v6117 = vsel %vm6111, %v6106, %v6108
        %v6118 = vsel %vm6111, %v6108, %v6110
        %v6120 = vsel %vm250, %v6094, 0
        %v6123 = vsel %vm254, %v6112, 0
        %v6126 = vsel %vm254, %v6113, 0
        %v6129 = vsel %vm254, %v6114, 0
        %v6132 = vsel %vm254, %v6115, 0
        %v6135 = vsel %vm254, %v6116, 0
        %v6138 = vsel %vm254, %v6117, 0
        %v6141 = vsel %vm254, %v6118, 0
        %6143 = vmatpush.bf16.msra.mxu0 0
        %6144 = vmatpush.bf16.msra.mxu0 0
        %6145 = vmatpush.bf16.msra.mxu0 0
        %6146 = vmatpush.bf16.msra.mxu0 0
        %6147 = vmatpush.bf16.msra.mxu0 0
        %6148 = vmatpush.bf16.msra.mxu0 0
        %6149 = vmatpush.bf16.msra.mxu0 0
        %6150 = vmatpush.bf16.msra.mxu0 %v6123
        %6151 = vmatmul.bf16.gmra.mxu0 %v6120
        %v6152 = vpop.f32.mrf.mxu0
        %v6153 = vadd.f32 0.0, %v6152
        %v6154 = vpop.f32.mrf.mxu0
        %6155 = vdwg.mxu0
        %6156 = vmatpush.bf16.msra.mxu0 0
        %6157 = vmatpush.bf16.msra.mxu0 0
        %6158 = vmatpush.bf16.msra.mxu0 0
        %6159 = vmatpush.bf16.msra.mxu0 0
        %6160 = vmatpush.bf16.msra.mxu0 0
        %6161 = vmatpush.bf16.msra.mxu0 0
        %6162 = vmatpush.bf16.msra.mxu0 0
        %6163 = vmatpush.bf16.msra.mxu0 %v6126
        %6164 = vmatmul.bf16.gmra.mxu0 %v6120
        %v6165 = vpop.f32.mrf.mxu0
        %v6166 = vadd.f32 0.0, %v6165
        %v6167 = vpop.f32.mrf.mxu0
        %6168 = vdwg.mxu0
        %6169 = vmatpush.bf16.msra.mxu0 0
        %6170 = vmatpush.bf16.msra.mxu0 0
        %6171 = vmatpush.bf16.msra.mxu0 0
        %6172 = vmatpush.bf16.msra.mxu0 0
        %6173 = vmatpush.bf16.msra.mxu0 0
        %6174 = vmatpush.bf16.msra.mxu0 0
        %6175 = vmatpush.bf16.msra.mxu0 0
        %6176 = vmatpush.bf16.msra.mxu0 %v6129
        %6177 = vmatmul.bf16.gmra.mxu0 %v6120
        %v6178 = vpop.f32.mrf.mxu0
        %v6179 = vadd.f32 0.0, %v6178
        %v6180 = vpop.f32.mrf.mxu0
        %6181 = vdwg.mxu0
        %6182 = vmatpush.bf16.msra.mxu0 0
        %6183 = vmatpush.bf16.msra.mxu0 0
        %6184 = vmatpush.bf16.msra.mxu0 0
        %6185 = vmatpush.bf16.msra.mxu0 0
        %6186 = vmatpush.bf16.msra.mxu0 0
        %6187 = vmatpush.bf16.msra.mxu0 0
        %6188 = vmatpush.bf16.msra.mxu0 0
        %6189 = vmatpush.bf16.msra.mxu0 %v6132
        %6190 = vmatmul.bf16.gmra.mxu0 %v6120
        %v6191 = vpop.f32.mrf.mxu0
        %v6192 = vadd.f32 0.0, %v6191
        %v6193 = vpop.f32.mrf.mxu0
        %6194 = vdwg.mxu0
        %6195 = vmatpush.bf16.msra.mxu0 0
        %6196 = vmatpush.bf16.msra.mxu0 0
        %6197 = vmatpush.bf16.msra.mxu0 0
        %6198 = vmatpush.bf16.msra.mxu0 0
        %6199 = vmatpush.bf16.msra.mxu0 0
        %6200 = vmatpush.bf16.msra.mxu0 0
        %6201 = vmatpush.bf16.msra.mxu0 0
        %6202 = vmatpush.bf16.msra.mxu0 %v6135
        %6203 = vmatmul.bf16.gmra.mxu0 %v6120
        %v6204 = vpop.f32.mrf.mxu0
        %v6205 = vadd.f32 0.0, %v6204
        %v6206 = vpop.f32.mrf.mxu0
        %6207 = vdwg.mxu0
        %6208 = vmatpush.bf16.msra.mxu0 0
        %6209 = vmatpush.bf16.msra.mxu0 0
        %6210 = vmatpush.bf16.msra.mxu0 0
        %6211 = vmatpush.bf16.msra.mxu0 0
        %6212 = vmatpush.bf16.msra.mxu0 0
        %6213 = vmatpush.bf16.msra.mxu0 0
        %6214 = vmatpush.bf16.msra.mxu0 0
        %6215 = vmatpush.bf16.msra.mxu0 %v6138
        %6216 = vmatmul.bf16.gmra.mxu0 %v6120
        %v6217 = vpop.f32.mrf.mxu0
        %v6218 = vadd.f32 0.0, %v6217
        %v6219 = vpop.f32.mrf.mxu0
        %6220 = vdwg.mxu0
        %6221 = vmatpush.bf16.msra.mxu0 0
        %6222 = vmatpush.bf16.msra.mxu0 0
        %6223 = vmatpush.bf16.msra.mxu0 0
        %6224 = vmatpush.bf16.msra.mxu0 0
        %6225 = vmatpush.bf16.msra.mxu0 0
        %6226 = vmatpush.bf16.msra.mxu0 0
        %6227 = vmatpush.bf16.msra.mxu0 0
        %6228 = vmatpush.bf16.msra.mxu0 %v6141
        %6229 = vmatmul.bf16.gmra.mxu0 %v6120
        %v6230 = vpop.f32.mrf.mxu0
        %v6231 = vadd.f32 0.0, %v6230
        %v6232 = vpop.f32.mrf.mxu0
        %6233 = vdwg.mxu0
        %v6234 = vadd.f32 %v6086, %v6153
        %v6235 = vadd.f32 %v6087, %v6166
        %v6236 = vadd.f32 %v6088, %v6179
        %v6237 = vadd.f32 %v6089, %v6192
        %v6238 = vadd.f32 %v6090, %v6205
        %v6239 = vadd.f32 %v6091, %v6218
        %v6240 = vadd.f32 %v6092, %v6231
        %s6241 = scalar_lea.vmem %s2, 52
        %v6242 = vld [vmem:[%s6241] sm:$0xf]
        %v6243 = vld [vmem:[#allocation2 + $0x4] sm:$0xff]
        %v6244 = vld [vmem:[#allocation2 + $0xc] sm:$0xff]
        %v6245 = vld [vmem:[#allocation2 + $0x14] sm:$0xff]
        %v6246 = vld [vmem:[#allocation2 + $0x1c] sm:$0xf]
        %v6251 = vunpack.c.l.b16 %v6243
        %v6252 = vunpack.c.h.b16 %v6243
        %v6253 = vunpack.c.l.b16 %v6244
        %v6254 = vunpack.c.h.b16 %v6244
        %v6255 = vunpack.c.l.b16 %v6245
        %v6256 = vunpack.c.h.b16 %v6245
        %v6257 = vunpack.c.l.b16 %v6246
        %v6258 = vpack.c.b16 %v6251, %v6251
        %v6259 = vpack.c.b16 %v6252, %v6252
        %v6260 = vpack.c.b16 %v6253, %v6253
        %v6261 = vpack.c.b16 %v6254, %v6254
        %v6262 = vpack.c.b16 %v6255, %v6255
        %v6263 = vpack.c.b16 %v6256, %v6256
        %v6264 = vpack.c.b16 %v6257, %v6257
        %v6266 = vsel %vm250, %v6242, 0
        %v6269 = vsel %vm254, %v6258, 0
        %v6272 = vsel %vm254, %v6259, 0
        %v6275 = vsel %vm254, %v6260, 0
        %v6278 = vsel %vm254, %v6261, 0
        %v6281 = vsel %vm254, %v6262, 0
        %v6284 = vsel %vm254, %v6263, 0
        %v6287 = vsel %vm254, %v6264, 0
        %6289 = vmatpush.bf16.msra.mxu0 0
        %6290 = vmatpush.bf16.msra.mxu0 0
        %6291 = vmatpush.bf16.msra.mxu0 0
        %6292 = vmatpush.bf16.msra.mxu0 0
        %6293 = vmatpush.bf16.msra.mxu0 0
        %6294 = vmatpush.bf16.msra.mxu0 0
        %6295 = vmatpush.bf16.msra.mxu0 0
        %6296 = vmatpush.bf16.msra.mxu0 %v6269
        %6297 = vmatmul.bf16.gmra.mxu0 %v6266
        %v6298 = vpop.f32.mrf.mxu0
        %v6299 = vadd.f32 0.0, %v6298
        %v6300 = vpop.f32.mrf.mxu0
        %6301 = vdwg.mxu0
        %6302 = vmatpush.bf16.msra.mxu0 0
        %6303 = vmatpush.bf16.msra.mxu0 0
        %6304 = vmatpush.bf16.msra.mxu0 0
        %6305 = vmatpush.bf16.msra.mxu0 0
        %6306 = vmatpush.bf16.msra.mxu0 0
        %6307 = vmatpush.bf16.msra.mxu0 0
        %6308 = vmatpush.bf16.msra.mxu0 0
        %6309 = vmatpush.bf16.msra.mxu0 %v6272
        %6310 = vmatmul.bf16.gmra.mxu0 %v6266
        %v6311 = vpop.f32.mrf.mxu0
        %v6312 = vadd.f32 0.0, %v6311
        %v6313 = vpop.f32.mrf.mxu0
        %6314 = vdwg.mxu0
        %6315 = vmatpush.bf16.msra.mxu0 0
        %6316 = vmatpush.bf16.msra.mxu0 0
        %6317 = vmatpush.bf16.msra.mxu0 0
        %6318 = vmatpush.bf16.msra.mxu0 0
        %6319 = vmatpush.bf16.msra.mxu0 0
        %6320 = vmatpush.bf16.msra.mxu0 0
        %6321 = vmatpush.bf16.msra.mxu0 0
        %6322 = vmatpush.bf16.msra.mxu0 %v6275
        %6323 = vmatmul.bf16.gmra.mxu0 %v6266
        %v6324 = vpop.f32.mrf.mxu0
        %v6325 = vadd.f32 0.0, %v6324
        %v6326 = vpop.f32.mrf.mxu0
        %6327 = vdwg.mxu0
        %6328 = vmatpush.bf16.msra.mxu0 0
        %6329 = vmatpush.bf16.msra.mxu0 0
        %6330 = vmatpush.bf16.msra.mxu0 0
        %6331 = vmatpush.bf16.msra.mxu0 0
        %6332 = vmatpush.bf16.msra.mxu0 0
        %6333 = vmatpush.bf16.msra.mxu0 0
        %6334 = vmatpush.bf16.msra.mxu0 0
        %6335 = vmatpush.bf16.msra.mxu0 %v6278
        %6336 = vmatmul.bf16.gmra.mxu0 %v6266
        %v6337 = vpop.f32.mrf.mxu0
        %v6338 = vadd.f32 0.0, %v6337
        %v6339 = vpop.f32.mrf.mxu0
        %6340 = vdwg.mxu0
        %6341 = vmatpush.bf16.msra.mxu0 0
        %6342 = vmatpush.bf16.msra.mxu0 0
        %6343 = vmatpush.bf16.msra.mxu0 0
        %6344 = vmatpush.bf16.msra.mxu0 0
        %6345 = vmatpush.bf16.msra.mxu0 0
        %6346 = vmatpush.bf16.msra.mxu0 0
        %6347 = vmatpush.bf16.msra.mxu0 0
        %6348 = vmatpush.bf16.msra.mxu0 %v6281
        %6349 = vmatmul.bf16.gmra.mxu0 %v6266
        %v6350 = vpop.f32.mrf.mxu0
        %v6351 = vadd.f32 0.0, %v6350
        %v6352 = vpop.f32.mrf.mxu0
        %6353 = vdwg.mxu0
        %6354 = vmatpush.bf16.msra.mxu0 0
        %6355 = vmatpush.bf16.msra.mxu0 0
        %6356 = vmatpush.bf16.msra.mxu0 0
        %6357 = vmatpush.bf16.msra.mxu0 0
        %6358 = vmatpush.bf16.msra.mxu0 0
        %6359 = vmatpush.bf16.msra.mxu0 0
        %6360 = vmatpush.bf16.msra.mxu0 0
        %6361 = vmatpush.bf16.msra.mxu0 %v6284
        %6362 = vmatmul.bf16.gmra.mxu0 %v6266
        %v6363 = vpop.f32.mrf.mxu0
        %v6364 = vadd.f32 0.0, %v6363
        %v6365 = vpop.f32.mrf.mxu0
        %6366 = vdwg.mxu0
        %6367 = vmatpush.bf16.msra.mxu0 0
        %6368 = vmatpush.bf16.msra.mxu0 0
        %6369 = vmatpush.bf16.msra.mxu0 0
        %6370 = vmatpush.bf16.msra.mxu0 0
        %6371 = vmatpush.bf16.msra.mxu0 0
        %6372 = vmatpush.bf16.msra.mxu0 0
        %6373 = vmatpush.bf16.msra.mxu0 0
        %6374 = vmatpush.bf16.msra.mxu0 %v6287
        %6375 = vmatmul.bf16.gmra.mxu0 %v6266
        %v6376 = vpop.f32.mrf.mxu0
        %v6377 = vadd.f32 0.0, %v6376
        %v6378 = vpop.f32.mrf.mxu0
        %6379 = vdwg.mxu0
        %v6380 = vadd.f32 %v6234, %v6299
        %v6381 = vadd.f32 %v6235, %v6312
        %v6382 = vadd.f32 %v6236, %v6325
        %v6383 = vadd.f32 %v6237, %v6338
        %v6384 = vadd.f32 %v6238, %v6351
        %v6385 = vadd.f32 %v6239, %v6364
        %v6386 = vadd.f32 %v6240, %v6377
        %s6387 = scalar_lea.vmem %s2, 56
        %v6388 = vld [vmem:[%s6387] sm:$0xf]
        %v6389 = vld [vmem:[#allocation2 + $0x4] sm:$0xff]
        %v6390 = vld [vmem:[#allocation2 + $0xc] sm:$0xff]
        %v6391 = vld [vmem:[#allocation2 + $0x14] sm:$0xff]
        %v6392 = vld [vmem:[#allocation2 + $0x1c] sm:$0xff]
        %v6397 = vunpack.c.l.b16 %v6389
        %v6398 = vunpack.c.h.b16 %v6389
        %v6399 = vunpack.c.l.b16 %v6390
        %v6400 = vunpack.c.h.b16 %v6390
        %v6401 = vunpack.c.l.b16 %v6391
        %v6402 = vunpack.c.h.b16 %v6391
        %v6403 = vunpack.c.l.b16 %v6392
        %v6404 = vunpack.c.h.b16 %v6392
        %v6405 = vpack.c.b16 %v6397, %v6397
        %v6406 = vpack.c.b16 %v6398, %v6398
        %v6407 = vpack.c.b16 %v6399, %v6399
        %v6408 = vpack.c.b16 %v6400, %v6400
        %v6409 = vpack.c.b16 %v6401, %v6401
        %v6410 = vpack.c.b16 %v6402, %v6402
        %v6411 = vpack.c.b16 %v6403, %v6403
        %v6412 = vpack.c.b16 %v6404, %v6404
        %6413 = vrot.lane.b32.xlu0 %v6405, 127
        %v6414 = vpop.permute.xlu0 %6413
        %6415 = vrot.lane.b32.xlu0 %v6406, 127
        %v6416 = vpop.permute.xlu0 %6415
        %6417 = vrot.lane.b32.xlu0 %v6407, 127
        %v6418 = vpop.permute.xlu0 %6417
        %6419 = vrot.lane.b32.xlu0 %v6408, 127
        %v6420 = vpop.permute.xlu0 %6419
        %6421 = vrot.lane.b32.xlu0 %v6409, 127
        %v6422 = vpop.permute.xlu0 %6421
        %6423 = vrot.lane.b32.xlu0 %v6410, 127
        %v6424 = vpop.permute.xlu0 %6423
        %6425 = vrot.lane.b32.xlu0 %v6411, 127
        %v6426 = vpop.permute.xlu0 %6425
        %6427 = vrot.lane.b32.xlu0 %v6412, 127
        %v6428 = vpop.permute.xlu0 %6427
        %v6429 = vsel %vm242, %v6414, %v6416
        %v6430 = vsel %vm242, %v6416, %v6418
        %v6431 = vsel %vm242, %v6418, %v6420
        %v6432 = vsel %vm242, %v6420, %v6422
        %v6433 = vsel %vm242, %v6422, %v6424
        %v6434 = vsel %vm242, %v6424, %v6426
        %v6435 = vsel %vm242, %v6426, %v6428
        %v6437 = vsel %vm250, %v6388, 0
        %v6440 = vsel %vm254, %v6429, 0
        %v6443 = vsel %vm254, %v6430, 0
        %v6446 = vsel %vm254, %v6431, 0
        %v6449 = vsel %vm254, %v6432, 0
        %v6452 = vsel %vm254, %v6433, 0
        %v6455 = vsel %vm254, %v6434, 0
        %v6458 = vsel %vm254, %v6435, 0
        %6460 = vmatpush.bf16.msra.mxu0 0
        %6461 = vmatpush.bf16.msra.mxu0 0
        %6462 = vmatpush.bf16.msra.mxu0 0
        %6463 = vmatpush.bf16.msra.mxu0 0
        %6464 = vmatpush.bf16.msra.mxu0 0
        %6465 = vmatpush.bf16.msra.mxu0 0
        %6466 = vmatpush.bf16.msra.mxu0 0
        %6467 = vmatpush.bf16.msra.mxu0 %v6440
        %6468 = vmatmul.bf16.gmra.mxu0 %v6437
        %v6469 = vpop.f32.mrf.mxu0
        %v6470 = vadd.f32 0.0, %v6469
        %v6471 = vpop.f32.mrf.mxu0
        %6472 = vdwg.mxu0
        %6473 = vmatpush.bf16.msra.mxu0 0
        %6474 = vmatpush.bf16.msra.mxu0 0
        %6475 = vmatpush.bf16.msra.mxu0 0
        %6476 = vmatpush.bf16.msra.mxu0 0
        %6477 = vmatpush.bf16.msra.mxu0 0
        %6478 = vmatpush.bf16.msra.mxu0 0
        %6479 = vmatpush.bf16.msra.mxu0 0
        %6480 = vmatpush.bf16.msra.mxu0 %v6443
        %6481 = vmatmul.bf16.gmra.mxu0 %v6437
        %v6482 = vpop.f32.mrf.mxu0
        %v6483 = vadd.f32 0.0, %v6482
        %v6484 = vpop.f32.mrf.mxu0
        %6485 = vdwg.mxu0
        %6486 = vmatpush.bf16.msra.mxu0 0
        %6487 = vmatpush.bf16.msra.mxu0 0
        %6488 = vmatpush.bf16.msra.mxu0 0
        %6489 = vmatpush.bf16.msra.mxu0 0
        %6490 = vmatpush.bf16.msra.mxu0 0
        %6491 = vmatpush.bf16.msra.mxu0 0
        %6492 = vmatpush.bf16.msra.mxu0 0
        %6493 = vmatpush.bf16.msra.mxu0 %v6446
        %6494 = vmatmul.bf16.gmra.mxu0 %v6437
        %v6495 = vpop.f32.mrf.mxu0
        %v6496 = vadd.f32 0.0, %v6495
        %v6497 = vpop.f32.mrf.mxu0
        %6498 = vdwg.mxu0
        %6499 = vmatpush.bf16.msra.mxu0 0
        %6500 = vmatpush.bf16.msra.mxu0 0
        %6501 = vmatpush.bf16.msra.mxu0 0
        %6502 = vmatpush.bf16.msra.mxu0 0
        %6503 = vmatpush.bf16.msra.mxu0 0
        %6504 = vmatpush.bf16.msra.mxu0 0
        %6505 = vmatpush.bf16.msra.mxu0 0
        %6506 = vmatpush.bf16.msra.mxu0 %v6449
        %6507 = vmatmul.bf16.gmra.mxu0 %v6437
        %v6508 = vpop.f32.mrf.mxu0
        %v6509 = vadd.f32 0.0, %v6508
        %v6510 = vpop.f32.mrf.mxu0
        %6511 = vdwg.mxu0
        %6512 = vmatpush.bf16.msra.mxu0 0
        %6513 = vmatpush.bf16.msra.mxu0 0
        %6514 = vmatpush.bf16.msra.mxu0 0
        %6515 = vmatpush.bf16.msra.mxu0 0
        %6516 = vmatpush.bf16.msra.mxu0 0
        %6517 = vmatpush.bf16.msra.mxu0 0
        %6518 = vmatpush.bf16.msra.mxu0 0
        %6519 = vmatpush.bf16.msra.mxu0 %v6452
        %6520 = vmatmul.bf16.gmra.mxu0 %v6437
        %v6521 = vpop.f32.mrf.mxu0
        %v6522 = vadd.f32 0.0, %v6521
        %v6523 = vpop.f32.mrf.mxu0
        %6524 = vdwg.mxu0
        %6525 = vmatpush.bf16.msra.mxu0 0
        %6526 = vmatpush.bf16.msra.mxu0 0
        %6527 = vmatpush.bf16.msra.mxu0 0
        %6528 = vmatpush.bf16.msra.mxu0 0
        %6529 = vmatpush.bf16.msra.mxu0 0
        %6530 = vmatpush.bf16.msra.mxu0 0
        %6531 = vmatpush.bf16.msra.mxu0 0
        %6532 = vmatpush.bf16.msra.mxu0 %v6455
        %6533 = vmatmul.bf16.gmra.mxu0 %v6437
        %v6534 = vpop.f32.mrf.mxu0
        %v6535 = vadd.f32 0.0, %v6534
        %v6536 = vpop.f32.mrf.mxu0
        %6537 = vdwg.mxu0
        %6538 = vmatpush.bf16.msra.mxu0 0
        %6539 = vmatpush.bf16.msra.mxu0 0
        %6540 = vmatpush.bf16.msra.mxu0 0
        %6541 = vmatpush.bf16.msra.mxu0 0
        %6542 = vmatpush.bf16.msra.mxu0 0
        %6543 = vmatpush.bf16.msra.mxu0 0
        %6544 = vmatpush.bf16.msra.mxu0 0
        %6545 = vmatpush.bf16.msra.mxu0 %v6458
        %6546 = vmatmul.bf16.gmra.mxu0 %v6437
        %v6547 = vpop.f32.mrf.mxu0
        %v6548 = vadd.f32 0.0, %v6547
        %v6549 = vpop.f32.mrf.mxu0
        %6550 = vdwg.mxu0
        %v6551 = vadd.f32 %v6380, %v6470
        %v6552 = vadd.f32 %v6381, %v6483
        %v6553 = vadd.f32 %v6382, %v6496
        %v6554 = vadd.f32 %v6383, %v6509
        %v6555 = vadd.f32 %v6384, %v6522
        %v6556 = vadd.f32 %v6385, %v6535
        %v6557 = vadd.f32 %v6386, %v6548
        %s6558 = scalar_lea.vmem %s2, 60
        %v6559 = vld [vmem:[%s6558] sm:$0xf]
        %6560 = vrot.lane.b32.xlu0 %v6405, 119
        %v6561 = vpop.permute.xlu0 %6560
        %6562 = vrot.lane.b32.xlu0 %v6406, 119
        %v6563 = vpop.permute.xlu0 %6562
        %6564 = vrot.lane.b32.xlu0 %v6407, 119
        %v6565 = vpop.permute.xlu0 %6564
        %6566 = vrot.lane.b32.xlu0 %v6408, 119
        %v6567 = vpop.permute.xlu0 %6566
        %6568 = vrot.lane.b32.xlu0 %v6409, 119
        %v6569 = vpop.permute.xlu0 %6568
        %6570 = vrot.lane.b32.xlu0 %v6410, 119
        %v6571 = vpop.permute.xlu0 %6570
        %6572 = vrot.lane.b32.xlu0 %v6411, 119
        %v6573 = vpop.permute.xlu0 %6572
        %6574 = vrot.lane.b32.xlu0 %v6412, 119
        %v6575 = vpop.permute.xlu0 %6574
        %vm6576 = vcmask 973824
        %v6577 = vsel %vm6576, %v6561, %v6563
        %v6578 = vsel %vm6576, %v6563, %v6565
        %v6579 = vsel %vm6576, %v6565, %v6567
        %v6580 = vsel %vm6576, %v6567, %v6569
        %v6581 = vsel %vm6576, %v6569, %v6571
        %v6582 = vsel %vm6576, %v6571, %v6573
        %v6583 = vsel %vm6576, %v6573, %v6575
        %v6585 = vsel %vm250, %v6559, 0
        %v6588 = vsel %vm254, %v6577, 0
        %v6591 = vsel %vm254, %v6578, 0
        %v6594 = vsel %vm254, %v6579, 0
        %v6597 = vsel %vm254, %v6580, 0
        %v6600 = vsel %vm254, %v6581, 0
        %v6603 = vsel %vm254, %v6582, 0
        %v6606 = vsel %vm254, %v6583, 0
        %6608 = vmatpush.bf16.msra.mxu0 0
        %6609 = vmatpush.bf16.msra.mxu0 0
        %6610 = vmatpush.bf16.msra.mxu0 0
        %6611 = vmatpush.bf16.msra.mxu0 0
        %6612 = vmatpush.bf16.msra.mxu0 0
        %6613 = vmatpush.bf16.msra.mxu0 0
        %6614 = vmatpush.bf16.msra.mxu0 0
        %6615 = vmatpush.bf16.msra.mxu0 %v6588
        %6616 = vmatmul.bf16.gmra.mxu0 %v6585
        %v6617 = vpop.f32.mrf.mxu0
        %v6618 = vadd.f32 0.0, %v6617
        %v6619 = vpop.f32.mrf.mxu0
        %6620 = vdwg.mxu0
        %6621 = vmatpush.bf16.msra.mxu0 0
        %6622 = vmatpush.bf16.msra.mxu0 0
        %6623 = vmatpush.bf16.msra.mxu0 0
        %6624 = vmatpush.bf16.msra.mxu0 0
        %6625 = vmatpush.bf16.msra.mxu0 0
        %6626 = vmatpush.bf16.msra.mxu0 0
        %6627 = vmatpush.bf16.msra.mxu0 0
        %6628 = vmatpush.bf16.msra.mxu0 %v6591
        %6629 = vmatmul.bf16.gmra.mxu0 %v6585
        %v6630 = vpop.f32.mrf.mxu0
        %v6631 = vadd.f32 0.0, %v6630
        %v6632 = vpop.f32.mrf.mxu0
        %6633 = vdwg.mxu0
        %6634 = vmatpush.bf16.msra.mxu0 0
        %6635 = vmatpush.bf16.msra.mxu0 0
        %6636 = vmatpush.bf16.msra.mxu0 0
        %6637 = vmatpush.bf16.msra.mxu0 0
        %6638 = vmatpush.bf16.msra.mxu0 0
        %6639 = vmatpush.bf16.msra.mxu0 0
        %6640 = vmatpush.bf16.msra.mxu0 0
        %6641 = vmatpush.bf16.msra.mxu0 %v6594
        %6642 = vmatmul.bf16.gmra.mxu0 %v6585
        %v6643 = vpop.f32.mrf.mxu0
        %v6644 = vadd.f32 0.0, %v6643
        %v6645 = vpop.f32.mrf.mxu0
        %6646 = vdwg.mxu0
        %6647 = vmatpush.bf16.msra.mxu0 0
        %6648 = vmatpush.bf16.msra.mxu0 0
        %6649 = vmatpush.bf16.msra.mxu0 0
        %6650 = vmatpush.bf16.msra.mxu0 0
        %6651 = vmatpush.bf16.msra.mxu0 0
        %6652 = vmatpush.bf16.msra.mxu0 0
        %6653 = vmatpush.bf16.msra.mxu0 0
        %6654 = vmatpush.bf16.msra.mxu0 %v6597
        %6655 = vmatmul.bf16.gmra.mxu0 %v6585
        %v6656 = vpop.f32.mrf.mxu0
        %v6657 = vadd.f32 0.0, %v6656
        %v6658 = vpop.f32.mrf.mxu0
        %6659 = vdwg.mxu0
        %6660 = vmatpush.bf16.msra.mxu0 0
        %6661 = vmatpush.bf16.msra.mxu0 0
        %6662 = vmatpush.bf16.msra.mxu0 0
        %6663 = vmatpush.bf16.msra.mxu0 0
        %6664 = vmatpush.bf16.msra.mxu0 0
        %6665 = vmatpush.bf16.msra.mxu0 0
        %6666 = vmatpush.bf16.msra.mxu0 0
        %6667 = vmatpush.bf16.msra.mxu0 %v6600
        %6668 = vmatmul.bf16.gmra.mxu0 %v6585
        %v6669 = vpop.f32.mrf.mxu0
        %v6670 = vadd.f32 0.0, %v6669
        %v6671 = vpop.f32.mrf.mxu0
        %6672 = vdwg.mxu0
        %6673 = vmatpush.bf16.msra.mxu0 0
        %6674 = vmatpush.bf16.msra.mxu0 0
        %6675 = vmatpush.bf16.msra.mxu0 0
        %6676 = vmatpush.bf16.msra.mxu0 0
        %6677 = vmatpush.bf16.msra.mxu0 0
        %6678 = vmatpush.bf16.msra.mxu0 0
        %6679 = vmatpush.bf16.msra.mxu0 0
        %6680 = vmatpush.bf16.msra.mxu0 %v6603
        %6681 = vmatmul.bf16.gmra.mxu0 %v6585
        %v6682 = vpop.f32.mrf.mxu0
        %v6683 = vadd.f32 0.0, %v6682
        %v6684 = vpop.f32.mrf.mxu0
        %6685 = vdwg.mxu0
        %6686 = vmatpush.bf16.msra.mxu0 0
        %6687 = vmatpush.bf16.msra.mxu0 0
        %6688 = vmatpush.bf16.msra.mxu0 0
        %6689 = vmatpush.bf16.msra.mxu0 0
        %6690 = vmatpush.bf16.msra.mxu0 0
        %6691 = vmatpush.bf16.msra.mxu0 0
        %6692 = vmatpush.bf16.msra.mxu0 0
        %6693 = vmatpush.bf16.msra.mxu0 %v6606
        %6694 = vmatmul.bf16.gmra.mxu0 %v6585
        %v6695 = vpop.f32.mrf.mxu0
        %v6696 = vadd.f32 0.0, %v6695
        %v6697 = vpop.f32.mrf.mxu0
        %6698 = vdwg.mxu0
        %v6699 = vadd.f32 %v6551, %v6618
        %v6700 = vadd.f32 %v6552, %v6631
        %v6701 = vadd.f32 %v6553, %v6644
        %v6702 = vadd.f32 %v6554, %v6657
        %v6703 = vadd.f32 %v6555, %v6670
        %v6704 = vadd.f32 %v6556, %v6683
        %v6705 = vadd.f32 %v6557, %v6696
        %s6706 = scalar_lea.vmem %s2, 64
        %v6707 = vld [vmem:[%s6706] sm:$0xf]
        %6708 = vrot.lane.b32.xlu0 %v6405, 118
        %v6709 = vpop.permute.xlu0 %6708
        %6710 = vrot.lane.b32.xlu0 %v6406, 118
        %v6711 = vpop.permute.xlu0 %6710
        %6712 = vrot.lane.b32.xlu0 %v6407, 118
        %v6713 = vpop.permute.xlu0 %6712
        %6714 = vrot.lane.b32.xlu0 %v6408, 118
        %v6715 = vpop.permute.xlu0 %6714
        %6716 = vrot.lane.b32.xlu0 %v6409, 118
        %v6717 = vpop.permute.xlu0 %6716
        %6718 = vrot.lane.b32.xlu0 %v6410, 118
        %v6719 = vpop.permute.xlu0 %6718
        %6720 = vrot.lane.b32.xlu0 %v6411, 118
        %v6721 = vpop.permute.xlu0 %6720
        %6722 = vrot.lane.b32.xlu0 %v6412, 118
        %v6723 = vpop.permute.xlu0 %6722
        %v6724 = vsel %vm651, %v6709, %v6711
        %v6725 = vsel %vm651, %v6711, %v6713
        %v6726 = vsel %vm651, %v6713, %v6715
        %v6727 = vsel %vm651, %v6715, %v6717
        %v6728 = vsel %vm651, %v6717, %v6719
        %v6729 = vsel %vm651, %v6719, %v6721
        %v6730 = vsel %vm651, %v6721, %v6723
        %v6732 = vsel %vm250, %v6707, 0
        %v6735 = vsel %vm254, %v6724, 0
        %v6738 = vsel %vm254, %v6725, 0
        %v6741 = vsel %vm254, %v6726, 0
        %v6744 = vsel %vm254, %v6727, 0
        %v6747 = vsel %vm254, %v6728, 0
        %v6750 = vsel %vm254, %v6729, 0
        %v6753 = vsel %vm254, %v6730, 0
        %6755 = vmatpush.bf16.msra.mxu0 0
        %6756 = vmatpush.bf16.msra.mxu0 0
        %6757 = vmatpush.bf16.msra.mxu0 0
        %6758 = vmatpush.bf16.msra.mxu0 0
        %6759 = vmatpush.bf16.msra.mxu0 0
        %6760 = vmatpush.bf16.msra.mxu0 0
        %6761 = vmatpush.bf16.msra.mxu0 0
        %6762 = vmatpush.bf16.msra.mxu0 %v6735
        %6763 = vmatmul.bf16.gmra.mxu0 %v6732
        %v6764 = vpop.f32.mrf.mxu0
        %v6765 = vadd.f32 0.0, %v6764
        %v6766 = vpop.f32.mrf.mxu0
        %6767 = vdwg.mxu0
        %6768 = vmatpush.bf16.msra.mxu0 0
        %6769 = vmatpush.bf16.msra.mxu0 0
        %6770 = vmatpush.bf16.msra.mxu0 0
        %6771 = vmatpush.bf16.msra.mxu0 0
        %6772 = vmatpush.bf16.msra.mxu0 0
        %6773 = vmatpush.bf16.msra.mxu0 0
        %6774 = vmatpush.bf16.msra.mxu0 0
        %6775 = vmatpush.bf16.msra.mxu0 %v6738
        %6776 = vmatmul.bf16.gmra.mxu0 %v6732
        %v6777 = vpop.f32.mrf.mxu0
        %v6778 = vadd.f32 0.0, %v6777
        %v6779 = vpop.f32.mrf.mxu0
        %6780 = vdwg.mxu0
        %6781 = vmatpush.bf16.msra.mxu0 0
        %6782 = vmatpush.bf16.msra.mxu0 0
        %6783 = vmatpush.bf16.msra.mxu0 0
        %6784 = vmatpush.bf16.msra.mxu0 0
        %6785 = vmatpush.bf16.msra.mxu0 0
        %6786 = vmatpush.bf16.msra.mxu0 0
        %6787 = vmatpush.bf16.msra.mxu0 0
        %6788 = vmatpush.bf16.msra.mxu0 %v6741
        %6789 = vmatmul.bf16.gmra.mxu0 %v6732
        %v6790 = vpop.f32.mrf.mxu0
        %v6791 = vadd.f32 0.0, %v6790
        %v6792 = vpop.f32.mrf.mxu0
        %6793 = vdwg.mxu0
        %6794 = vmatpush.bf16.msra.mxu0 0
        %6795 = vmatpush.bf16.msra.mxu0 0
        %6796 = vmatpush.bf16.msra.mxu0 0
        %6797 = vmatpush.bf16.msra.mxu0 0
        %6798 = vmatpush.bf16.msra.mxu0 0
        %6799 = vmatpush.bf16.msra.mxu0 0
        %6800 = vmatpush.bf16.msra.mxu0 0
        %6801 = vmatpush.bf16.msra.mxu0 %v6744
        %6802 = vmatmul.bf16.gmra.mxu0 %v6732
        %v6803 = vpop.f32.mrf.mxu0
        %v6804 = vadd.f32 0.0, %v6803
        %v6805 = vpop.f32.mrf.mxu0
        %6806 = vdwg.mxu0
        %6807 = vmatpush.bf16.msra.mxu0 0
        %6808 = vmatpush.bf16.msra.mxu0 0
        %6809 = vmatpush.bf16.msra.mxu0 0
        %6810 = vmatpush.bf16.msra.mxu0 0
        %6811 = vmatpush.bf16.msra.mxu0 0
        %6812 = vmatpush.bf16.msra.mxu0 0
        %6813 = vmatpush.bf16.msra.mxu0 0
        %6814 = vmatpush.bf16.msra.mxu0 %v6747
        %6815 = vmatmul.bf16.gmra.mxu0 %v6732
        %v6816 = vpop.f32.mrf.mxu0
        %v6817 = vadd.f32 0.0, %v6816
        %v6818 = vpop.f32.mrf.mxu0
        %6819 = vdwg.mxu0
        %6820 = vmatpush.bf16.msra.mxu0 0
        %6821 = vmatpush.bf16.msra.mxu0 0
        %6822 = vmatpush.bf16.msra.mxu0 0
        %6823 = vmatpush.bf16.msra.mxu0 0
        %6824 = vmatpush.bf16.msra.mxu0 0
        %6825 = vmatpush.bf16.msra.mxu0 0
        %6826 = vmatpush.bf16.msra.mxu0 0
        %6827 = vmatpush.bf16.msra.mxu0 %v6750
        %6828 = vmatmul.bf16.gmra.mxu0 %v6732
        %v6829 = vpop.f32.mrf.mxu0
        %v6830 = vadd.f32 0.0, %v6829
        %v6831 = vpop.f32.mrf.mxu0
        %6832 = vdwg.mxu0
        %6833 = vmatpush.bf16.msra.mxu0 0
        %6834 = vmatpush.bf16.msra.mxu0 0
        %6835 = vmatpush.bf16.msra.mxu0 0
        %6836 = vmatpush.bf16.msra.mxu0 0
        %6837 = vmatpush.bf16.msra.mxu0 0
        %6838 = vmatpush.bf16.msra.mxu0 0
        %6839 = vmatpush.bf16.msra.mxu0 0
        %6840 = vmatpush.bf16.msra.mxu0 %v6753
        %6841 = vmatmul.bf16.gmra.mxu0 %v6732
        %v6842 = vpop.f32.mrf.mxu0
        %v6843 = vadd.f32 0.0, %v6842
        %v6844 = vpop.f32.mrf.mxu0
        %6845 = vdwg.mxu0
        %v6846 = vadd.f32 %v6699, %v6765
        %v6847 = vadd.f32 %v6700, %v6778
        %v6848 = vadd.f32 %v6701, %v6791
        %v6849 = vadd.f32 %v6702, %v6804
        %v6850 = vadd.f32 %v6703, %v6817
        %v6851 = vadd.f32 %v6704, %v6830
        %v6852 = vadd.f32 %v6705, %v6843
        %s6853 = scalar_lea.vmem %s2, 68
        %v6854 = vld [vmem:[%s6853] sm:$0xf]
        %6855 = vrot.lane.b32.xlu0 %v6405, 117
        %v6856 = vpop.permute.xlu0 %6855
        %6857 = vrot.lane.b32.xlu0 %v6406, 117
        %v6858 = vpop.permute.xlu0 %6857
        %6859 = vrot.lane.b32.xlu0 %v6407, 117
        %v6860 = vpop.permute.xlu0 %6859
        %6861 = vrot.lane.b32.xlu0 %v6408, 117
        %v6862 = vpop.permute.xlu0 %6861
        %6863 = vrot.lane.b32.xlu0 %v6409, 117
        %v6864 = vpop.permute.xlu0 %6863
        %6865 = vrot.lane.b32.xlu0 %v6410, 117
        %v6866 = vpop.permute.xlu0 %6865
        %6867 = vrot.lane.b32.xlu0 %v6411, 117
        %v6868 = vpop.permute.xlu0 %6867
        %6869 = vrot.lane.b32.xlu0 %v6412, 117
        %v6870 = vpop.permute.xlu0 %6869
        %v6871 = vsel %vm799, %v6856, %v6858
        %v6872 = vsel %vm799, %v6858, %v6860
        %v6873 = vsel %vm799, %v6860, %v6862
        %v6874 = vsel %vm799, %v6862, %v6864
        %v6875 = vsel %vm799, %v6864, %v6866
        %v6876 = vsel %vm799, %v6866, %v6868
        %v6877 = vsel %vm799, %v6868, %v6870
        %v6879 = vsel %vm250, %v6854, 0
        %v6882 = vsel %vm254, %v6871, 0
        %v6885 = vsel %vm254, %v6872, 0
        %v6888 = vsel %vm254, %v6873, 0
        %v6891 = vsel %vm254, %v6874, 0
        %v6894 = vsel %vm254, %v6875, 0
        %v6897 = vsel %vm254, %v6876, 0
        %v6900 = vsel %vm254, %v6877, 0
        %6902 = vmatpush.bf16.msra.mxu0 0
        %6903 = vmatpush.bf16.msra.mxu0 0
        %6904 = vmatpush.bf16.msra.mxu0 0
        %6905 = vmatpush.bf16.msra.mxu0 0
        %6906 = vmatpush.bf16.msra.mxu0 0
        %6907 = vmatpush.bf16.msra.mxu0 0
        %6908 = vmatpush.bf16.msra.mxu0 0
        %6909 = vmatpush.bf16.msra.mxu0 %v6882
        %6910 = vmatmul.bf16.gmra.mxu0 %v6879
        %v6911 = vpop.f32.mrf.mxu0
        %v6912 = vadd.f32 0.0, %v6911
        %v6913 = vpop.f32.mrf.mxu0
        %6914 = vdwg.mxu0
        %6915 = vmatpush.bf16.msra.mxu0 0
        %6916 = vmatpush.bf16.msra.mxu0 0
        %6917 = vmatpush.bf16.msra.mxu0 0
        %6918 = vmatpush.bf16.msra.mxu0 0
        %6919 = vmatpush.bf16.msra.mxu0 0
        %6920 = vmatpush.bf16.msra.mxu0 0
        %6921 = vmatpush.bf16.msra.mxu0 0
        %6922 = vmatpush.bf16.msra.mxu0 %v6885
        %6923 = vmatmul.bf16.gmra.mxu0 %v6879
        %v6924 = vpop.f32.mrf.mxu0
        %v6925 = vadd.f32 0.0, %v6924
        %v6926 = vpop.f32.mrf.mxu0
        %6927 = vdwg.mxu0
        %6928 = vmatpush.bf16.msra.mxu0 0
        %6929 = vmatpush.bf16.msra.mxu0 0
        %6930 = vmatpush.bf16.msra.mxu0 0
        %6931 = vmatpush.bf16.msra.mxu0 0
        %6932 = vmatpush.bf16.msra.mxu0 0
        %6933 = vmatpush.bf16.msra.mxu0 0
        %6934 = vmatpush.bf16.msra.mxu0 0
        %6935 = vmatpush.bf16.msra.mxu0 %v6888
        %6936 = vmatmul.bf16.gmra.mxu0 %v6879
        %v6937 = vpop.f32.mrf.mxu0
        %v6938 = vadd.f32 0.0, %v6937
        %v6939 = vpop.f32.mrf.mxu0
        %6940 = vdwg.mxu0
        %6941 = vmatpush.bf16.msra.mxu0 0
        %6942 = vmatpush.bf16.msra.mxu0 0
        %6943 = vmatpush.bf16.msra.mxu0 0
        %6944 = vmatpush.bf16.msra.mxu0 0
        %6945 = vmatpush.bf16.msra.mxu0 0
        %6946 = vmatpush.bf16.msra.mxu0 0
        %6947 = vmatpush.bf16.msra.mxu0 0
        %6948 = vmatpush.bf16.msra.mxu0 %v6891
        %6949 = vmatmul.bf16.gmra.mxu0 %v6879
        %v6950 = vpop.f32.mrf.mxu0
        %v6951 = vadd.f32 0.0, %v6950
        %v6952 = vpop.f32.mrf.mxu0
        %6953 = vdwg.mxu0
        %6954 = vmatpush.bf16.msra.mxu0 0
        %6955 = vmatpush.bf16.msra.mxu0 0
        %6956 = vmatpush.bf16.msra.mxu0 0
        %6957 = vmatpush.bf16.msra.mxu0 0
        %6958 = vmatpush.bf16.msra.mxu0 0
        %6959 = vmatpush.bf16.msra.mxu0 0
        %6960 = vmatpush.bf16.msra.mxu0 0
        %6961 = vmatpush.bf16.msra.mxu0 %v6894
        %6962 = vmatmul.bf16.gmra.mxu0 %v6879
        %v6963 = vpop.f32.mrf.mxu0
        %v6964 = vadd.f32 0.0, %v6963
        %v6965 = vpop.f32.mrf.mxu0
        %6966 = vdwg.mxu0
        %6967 = vmatpush.bf16.msra.mxu0 0
        %6968 = vmatpush.bf16.msra.mxu0 0
        %6969 = vmatpush.bf16.msra.mxu0 0
        %6970 = vmatpush.bf16.msra.mxu0 0
        %6971 = vmatpush.bf16.msra.mxu0 0
        %6972 = vmatpush.bf16.msra.mxu0 0
        %6973 = vmatpush.bf16.msra.mxu0 0
        %6974 = vmatpush.bf16.msra.mxu0 %v6897
        %6975 = vmatmul.bf16.gmra.mxu0 %v6879
        %v6976 = vpop.f32.mrf.mxu0
        %v6977 = vadd.f32 0.0, %v6976
        %v6978 = vpop.f32.mrf.mxu0
        %6979 = vdwg.mxu0
        %6980 = vmatpush.bf16.msra.mxu0 0
        %6981 = vmatpush.bf16.msra.mxu0 0
        %6982 = vmatpush.bf16.msra.mxu0 0
        %6983 = vmatpush.bf16.msra.mxu0 0
        %6984 = vmatpush.bf16.msra.mxu0 0
        %6985 = vmatpush.bf16.msra.mxu0 0
        %6986 = vmatpush.bf16.msra.mxu0 0
        %6987 = vmatpush.bf16.msra.mxu0 %v6900
        %6988 = vmatmul.bf16.gmra.mxu0 %v6879
        %v6989 = vpop.f32.mrf.mxu0
        %v6990 = vadd.f32 0.0, %v6989
        %v6991 = vpop.f32.mrf.mxu0
        %6992 = vdwg.mxu0
        %v6993 = vadd.f32 %v6846, %v6912
        %v6994 = vadd.f32 %v6847, %v6925
        %v6995 = vadd.f32 %v6848, %v6938
        %v6996 = vadd.f32 %v6849, %v6951
        %v6997 = vadd.f32 %v6850, %v6964
        %v6998 = vadd.f32 %v6851, %v6977
        %v6999 = vadd.f32 %v6852, %v6990
        %s7000 = scalar_lea.vmem %s2, 72
        %v7001 = vld [vmem:[%s7000] sm:$0xf]
        %7002 = vrot.lane.b32.xlu0 %v6405, 39
        %v7003 = vpop.permute.xlu0 %7002
        %7004 = vrot.lane.b32.xlu0 %v6406, 39
        %v7005 = vpop.permute.xlu0 %7004
        %7006 = vrot.lane.b32.xlu0 %v6407, 39
        %v7007 = vpop.permute.xlu0 %7006
        %7008 = vrot.lane.b32.xlu0 %v6408, 39
        %v7009 = vpop.permute.xlu0 %7008
        %7010 = vrot.lane.b32.xlu0 %v6409, 39
        %v7011 = vpop.permute.xlu0 %7010
        %7012 = vrot.lane.b32.xlu0 %v6410, 39
        %v7013 = vpop.permute.xlu0 %7012
        %7014 = vrot.lane.b32.xlu0 %v6411, 39
        %v7015 = vpop.permute.xlu0 %7014
        %7016 = vrot.lane.b32.xlu0 %v6412, 39
        %v7017 = vpop.permute.xlu0 %7016
        %vm7018 = vcmask 318464
        %v7019 = vsel %vm7018, %v7003, %v7005
        %v7020 = vsel %vm7018, %v7005, %v7007
        %v7021 = vsel %vm7018, %v7007, %v7009
        %v7022 = vsel %vm7018, %v7009, %v7011
        %v7023 = vsel %vm7018, %v7011, %v7013
        %v7024 = vsel %vm7018, %v7013, %v7015
        %v7025 = vsel %vm7018, %v7015, %v7017
        %v7027 = vsel %vm250, %v7001, 0
        %v7030 = vsel %vm254, %v7019, 0
        %v7033 = vsel %vm254, %v7020, 0
        %v7036 = vsel %vm254, %v7021, 0
        %v7039 = vsel %vm254, %v7022, 0
        %v7042 = vsel %vm254, %v7023, 0
        %v7045 = vsel %vm254, %v7024, 0
        %v7048 = vsel %vm254, %v7025, 0
        %7050 = vmatpush.bf16.msra.mxu0 0
        %7051 = vmatpush.bf16.msra.mxu0 0
        %7052 = vmatpush.bf16.msra.mxu0 0
        %7053 = vmatpush.bf16.msra.mxu0 0
        %7054 = vmatpush.bf16.msra.mxu0 0
        %7055 = vmatpush.bf16.msra.mxu0 0
        %7056 = vmatpush.bf16.msra.mxu0 0
        %7057 = vmatpush.bf16.msra.mxu0 %v7030
        %7058 = vmatmul.bf16.gmra.mxu0 %v7027
        %v7059 = vpop.f32.mrf.mxu0
        %v7060 = vadd.f32 0.0, %v7059
        %v7061 = vpop.f32.mrf.mxu0
        %7062 = vdwg.mxu0
        %7063 = vmatpush.bf16.msra.mxu0 0
        %7064 = vmatpush.bf16.msra.mxu0 0
        %7065 = vmatpush.bf16.msra.mxu0 0
        %7066 = vmatpush.bf16.msra.mxu0 0
        %7067 = vmatpush.bf16.msra.mxu0 0
        %7068 = vmatpush.bf16.msra.mxu0 0
        %7069 = vmatpush.bf16.msra.mxu0 0
        %7070 = vmatpush.bf16.msra.mxu0 %v7033
        %7071 = vmatmul.bf16.gmra.mxu0 %v7027
        %v7072 = vpop.f32.mrf.mxu0
        %v7073 = vadd.f32 0.0, %v7072
        %v7074 = vpop.f32.mrf.mxu0
        %7075 = vdwg.mxu0
        %7076 = vmatpush.bf16.msra.mxu0 0
        %7077 = vmatpush.bf16.msra.mxu0 0
        %7078 = vmatpush.bf16.msra.mxu0 0
        %7079 = vmatpush.bf16.msra.mxu0 0
        %7080 = vmatpush.bf16.msra.mxu0 0
        %7081 = vmatpush.bf16.msra.mxu0 0
        %7082 = vmatpush.bf16.msra.mxu0 0
        %7083 = vmatpush.bf16.msra.mxu0 %v7036
        %7084 = vmatmul.bf16.gmra.mxu0 %v7027
        %v7085 = vpop.f32.mrf.mxu0
        %v7086 = vadd.f32 0.0, %v7085
        %v7087 = vpop.f32.mrf.mxu0
        %7088 = vdwg.mxu0
        %7089 = vmatpush.bf16.msra.mxu0 0
        %7090 = vmatpush.bf16.msra.mxu0 0
        %7091 = vmatpush.bf16.msra.mxu0 0
        %7092 = vmatpush.bf16.msra.mxu0 0
        %7093 = vmatpush.bf16.msra.mxu0 0
        %7094 = vmatpush.bf16.msra.mxu0 0
        %7095 = vmatpush.bf16.msra.mxu0 0
        %7096 = vmatpush.bf16.msra.mxu0 %v7039
        %7097 = vmatmul.bf16.gmra.mxu0 %v7027
        %v7098 = vpop.f32.mrf.mxu0
        %v7099 = vadd.f32 0.0, %v7098
        %v7100 = vpop.f32.mrf.mxu0
        %7101 = vdwg.mxu0
        %7102 = vmatpush.bf16.msra.mxu0 0
        %7103 = vmatpush.bf16.msra.mxu0 0
        %7104 = vmatpush.bf16.msra.mxu0 0
        %7105 = vmatpush.bf16.msra.mxu0 0
        %7106 = vmatpush.bf16.msra.mxu0 0
        %7107 = vmatpush.bf16.msra.mxu0 0
        %7108 = vmatpush.bf16.msra.mxu0 0
        %7109 = vmatpush.bf16.msra.mxu0 %v7042
        %7110 = vmatmul.bf16.gmra.mxu0 %v7027
        %v7111 = vpop.f32.mrf.mxu0
        %v7112 = vadd.f32 0.0, %v7111
        %v7113 = vpop.f32.mrf.mxu0
        %7114 = vdwg.mxu0
        %7115 = vmatpush.bf16.msra.mxu0 0
        %7116 = vmatpush.bf16.msra.mxu0 0
        %7117 = vmatpush.bf16.msra.mxu0 0
        %7118 = vmatpush.bf16.msra.mxu0 0
        %7119 = vmatpush.bf16.msra.mxu0 0
        %7120 = vmatpush.bf16.msra.mxu0 0
        %7121 = vmatpush.bf16.msra.mxu0 0
        %7122 = vmatpush.bf16.msra.mxu0 %v7045
        %7123 = vmatmul.bf16.gmra.mxu0 %v7027
        %v7124 = vpop.f32.mrf.mxu0
        %v7125 = vadd.f32 0.0, %v7124
        %v7126 = vpop.f32.mrf.mxu0
        %7127 = vdwg.mxu0
        %7128 = vmatpush.bf16.msra.mxu0 0
        %7129 = vmatpush.bf16.msra.mxu0 0
        %7130 = vmatpush.bf16.msra.mxu0 0
        %7131 = vmatpush.bf16.msra.mxu0 0
        %7132 = vmatpush.bf16.msra.mxu0 0
        %7133 = vmatpush.bf16.msra.mxu0 0
        %7134 = vmatpush.bf16.msra.mxu0 0
        %7135 = vmatpush.bf16.msra.mxu0 %v7048
        %7136 = vmatmul.bf16.gmra.mxu0 %v7027
        %v7137 = vpop.f32.mrf.mxu0
        %v7138 = vadd.f32 0.0, %v7137
        %v7139 = vpop.f32.mrf.mxu0
        %7140 = vdwg.mxu0
        %v7141 = vadd.f32 %v6993, %v7060
        %v7142 = vadd.f32 %v6994, %v7073
        %v7143 = vadd.f32 %v6995, %v7086
        %v7144 = vadd.f32 %v6996, %v7099
        %v7145 = vadd.f32 %v6997, %v7112
        %v7146 = vadd.f32 %v6998, %v7125
        %v7147 = vadd.f32 %v6999, %v7138
        %s7148 = scalar_lea.vmem %s2, 76
        %v7149 = vld [vmem:[%s7148] sm:$0xf]
        %7150 = vrot.lane.b32.xlu0 %v6405, 38
        %v7151 = vpop.permute.xlu0 %7150
        %7152 = vrot.lane.b32.xlu0 %v6406, 38
        %v7153 = vpop.permute.xlu0 %7152
        %7154 = vrot.lane.b32.xlu0 %v6407, 38
        %v7155 = vpop.permute.xlu0 %7154
        %7156 = vrot.lane.b32.xlu0 %v6408, 38
        %v7157 = vpop.permute.xlu0 %7156
        %7158 = vrot.lane.b32.xlu0 %v6409, 38
        %v7159 = vpop.permute.xlu0 %7158
        %7160 = vrot.lane.b32.xlu0 %v6410, 38
        %v7161 = vpop.permute.xlu0 %7160
        %7162 = vrot.lane.b32.xlu0 %v6411, 38
        %v7163 = vpop.permute.xlu0 %7162
        %7164 = vrot.lane.b32.xlu0 %v6412, 38
        %v7165 = vpop.permute.xlu0 %7164
        %vm7166 = vcmask 310272
        %v7167 = vsel %vm7166, %v7151, %v7153
        %v7168 = vsel %vm7166, %v7153, %v7155
        %v7169 = vsel %vm7166, %v7155, %v7157
        %v7170 = vsel %vm7166, %v7157, %v7159
        %v7171 = vsel %vm7166, %v7159, %v7161
        %v7172 = vsel %vm7166, %v7161, %v7163
        %v7173 = vsel %vm7166, %v7163, %v7165
        %v7175 = vsel %vm250, %v7149, 0
        %v7178 = vsel %vm254, %v7167, 0
        %v7181 = vsel %vm254, %v7168, 0
        %v7184 = vsel %vm254, %v7169, 0
        %v7187 = vsel %vm254, %v7170, 0
        %v7190 = vsel %vm254, %v7171, 0
        %v7193 = vsel %vm254, %v7172, 0
        %v7196 = vsel %vm254, %v7173, 0
        %7198 = vmatpush.bf16.msra.mxu0 0
        %7199 = vmatpush.bf16.msra.mxu0 0
        %7200 = vmatpush.bf16.msra.mxu0 0
        %7201 = vmatpush.bf16.msra.mxu0 0
        %7202 = vmatpush.bf16.msra.mxu0 0
        %7203 = vmatpush.bf16.msra.mxu0 0
        %7204 = vmatpush.bf16.msra.mxu0 0
        %7205 = vmatpush.bf16.msra.mxu0 %v7178
        %7206 = vmatmul.bf16.gmra.mxu0 %v7175
        %v7207 = vpop.f32.mrf.mxu0
        %v7208 = vadd.f32 0.0, %v7207
        %v7209 = vpop.f32.mrf.mxu0
        %7210 = vdwg.mxu0
        %7211 = vmatpush.bf16.msra.mxu0 0
        %7212 = vmatpush.bf16.msra.mxu0 0
        %7213 = vmatpush.bf16.msra.mxu0 0
        %7214 = vmatpush.bf16.msra.mxu0 0
        %7215 = vmatpush.bf16.msra.mxu0 0
        %7216 = vmatpush.bf16.msra.mxu0 0
        %7217 = vmatpush.bf16.msra.mxu0 0
        %7218 = vmatpush.bf16.msra.mxu0 %v7181
        %7219 = vmatmul.bf16.gmra.mxu0 %v7175
        %v7220 = vpop.f32.mrf.mxu0
        %v7221 = vadd.f32 0.0, %v7220
        %v7222 = vpop.f32.mrf.mxu0
        %7223 = vdwg.mxu0
        %7224 = vmatpush.bf16.msra.mxu0 0
        %7225 = vmatpush.bf16.msra.mxu0 0
        %7226 = vmatpush.bf16.msra.mxu0 0
        %7227 = vmatpush.bf16.msra.mxu0 0
        %7228 = vmatpush.bf16.msra.mxu0 0
        %7229 = vmatpush.bf16.msra.mxu0 0
        %7230 = vmatpush.bf16.msra.mxu0 0
        %7231 = vmatpush.bf16.msra.mxu0 %v7184
        %7232 = vmatmul.bf16.gmra.mxu0 %v7175
        %v7233 = vpop.f32.mrf.mxu0
        %v7234 = vadd.f32 0.0, %v7233
        %v7235 = vpop.f32.mrf.mxu0
        %7236 = vdwg.mxu0
        %7237 = vmatpush.bf16.msra.mxu0 0
        %7238 = vmatpush.bf16.msra.mxu0 0
        %7239 = vmatpush.bf16.msra.mxu0 0
        %7240 = vmatpush.bf16.msra.mxu0 0
        %7241 = vmatpush.bf16.msra.mxu0 0
        %7242 = vmatpush.bf16.msra.mxu0 0
        %7243 = vmatpush.bf16.msra.mxu0 0
        %7244 = vmatpush.bf16.msra.mxu0 %v7187
        %7245 = vmatmul.bf16.gmra.mxu0 %v7175
        %v7246 = vpop.f32.mrf.mxu0
        %v7247 = vadd.f32 0.0, %v7246
        %v7248 = vpop.f32.mrf.mxu0
        %7249 = vdwg.mxu0
        %7250 = vmatpush.bf16.msra.mxu0 0
        %7251 = vmatpush.bf16.msra.mxu0 0
        %7252 = vmatpush.bf16.msra.mxu0 0
        %7253 = vmatpush.bf16.msra.mxu0 0
        %7254 = vmatpush.bf16.msra.mxu0 0
        %7255 = vmatpush.bf16.msra.mxu0 0
        %7256 = vmatpush.bf16.msra.mxu0 0
        %7257 = vmatpush.bf16.msra.mxu0 %v7190
        %7258 = vmatmul.bf16.gmra.mxu0 %v7175
        %v7259 = vpop.f32.mrf.mxu0
        %v7260 = vadd.f32 0.0, %v7259
        %v7261 = vpop.f32.mrf.mxu0
        %7262 = vdwg.mxu0
        %7263 = vmatpush.bf16.msra.mxu0 0
        %7264 = vmatpush.bf16.msra.mxu0 0
        %7265 = vmatpush.bf16.msra.mxu0 0
        %7266 = vmatpush.bf16.msra.mxu0 0
        %7267 = vmatpush.bf16.msra.mxu0 0
        %7268 = vmatpush.bf16.msra.mxu0 0
        %7269 = vmatpush.bf16.msra.mxu0 0
        %7270 = vmatpush.bf16.msra.mxu0 %v7193
        %7271 = vmatmul.bf16.gmra.mxu0 %v7175
        %v7272 = vpop.f32.mrf.mxu0
        %v7273 = vadd.f32 0.0, %v7272
        %v7274 = vpop.f32.mrf.mxu0
        %7275 = vdwg.mxu0
        %7276 = vmatpush.bf16.msra.mxu0 0
        %7277 = vmatpush.bf16.msra.mxu0 0
        %7278 = vmatpush.bf16.msra.mxu0 0
        %7279 = vmatpush.bf16.msra.mxu0 0
        %7280 = vmatpush.bf16.msra.mxu0 0
        %7281 = vmatpush.bf16.msra.mxu0 0
        %7282 = vmatpush.bf16.msra.mxu0 0
        %7283 = vmatpush.bf16.msra.mxu0 %v7196
        %7284 = vmatmul.bf16.gmra.mxu0 %v7175
        %v7285 = vpop.f32.mrf.mxu0
        %v7286 = vadd.f32 0.0, %v7285
        %v7287 = vpop.f32.mrf.mxu0
        %7288 = vdwg.mxu0
        %v7289 = vadd.f32 %v7141, %v7208
        %v7290 = vadd.f32 %v7142, %v7221
        %v7291 = vadd.f32 %v7143, %v7234
        %v7292 = vadd.f32 %v7144, %v7247
        %v7293 = vadd.f32 %v7145, %v7260
        %v7294 = vadd.f32 %v7146, %v7273
        %v7295 = vadd.f32 %v7147, %v7286
        %s7296 = scalar_lea.vmem %s2, 80
        %v7297 = vld [vmem:[%s7296] sm:$0xf]
        %7298 = vrot.lane.b32.xlu0 %v6405, 37
        %v7299 = vpop.permute.xlu0 %7298
        %7300 = vrot.lane.b32.xlu0 %v6406, 37
        %v7301 = vpop.permute.xlu0 %7300
        %7302 = vrot.lane.b32.xlu0 %v6407, 37
        %v7303 = vpop.permute.xlu0 %7302
        %7304 = vrot.lane.b32.xlu0 %v6408, 37
        %v7305 = vpop.permute.xlu0 %7304
        %7306 = vrot.lane.b32.xlu0 %v6409, 37
        %v7307 = vpop.permute.xlu0 %7306
        %7308 = vrot.lane.b32.xlu0 %v6410, 37
        %v7309 = vpop.permute.xlu0 %7308
        %7310 = vrot.lane.b32.xlu0 %v6411, 37
        %v7311 = vpop.permute.xlu0 %7310
        %7312 = vrot.lane.b32.xlu0 %v6412, 37
        %v7313 = vpop.permute.xlu0 %7312
        %vm7314 = vcmask 302080
        %v7315 = vsel %vm7314, %v7299, %v7301
        %v7316 = vsel %vm7314, %v7301, %v7303
        %v7317 = vsel %vm7314, %v7303, %v7305
        %v7318 = vsel %vm7314, %v7305, %v7307
        %v7319 = vsel %vm7314, %v7307, %v7309
        %v7320 = vsel %vm7314, %v7309, %v7311
        %v7321 = vsel %vm7314, %v7311, %v7313
        %v7323 = vsel %vm250, %v7297, 0
        %v7326 = vsel %vm254, %v7315, 0
        %v7329 = vsel %vm254, %v7316, 0
        %v7332 = vsel %vm254, %v7317, 0
        %v7335 = vsel %vm254, %v7318, 0
        %v7338 = vsel %vm254, %v7319, 0
        %v7341 = vsel %vm254, %v7320, 0
        %v7344 = vsel %vm254, %v7321, 0
        %7346 = vmatpush.bf16.msra.mxu0 0
        %7347 = vmatpush.bf16.msra.mxu0 0
        %7348 = vmatpush.bf16.msra.mxu0 0
        %7349 = vmatpush.bf16.msra.mxu0 0
        %7350 = vmatpush.bf16.msra.mxu0 0
        %7351 = vmatpush.bf16.msra.mxu0 0
        %7352 = vmatpush.bf16.msra.mxu0 0
        %7353 = vmatpush.bf16.msra.mxu0 %v7326
        %7354 = vmatmul.bf16.gmra.mxu0 %v7323
        %v7355 = vpop.f32.mrf.mxu0
        %v7356 = vadd.f32 0.0, %v7355
        %v7357 = vpop.f32.mrf.mxu0
        %7358 = vdwg.mxu0
        %7359 = vmatpush.bf16.msra.mxu0 0
        %7360 = vmatpush.bf16.msra.mxu0 0
        %7361 = vmatpush.bf16.msra.mxu0 0
        %7362 = vmatpush.bf16.msra.mxu0 0
        %7363 = vmatpush.bf16.msra.mxu0 0
        %7364 = vmatpush.bf16.msra.mxu0 0
        %7365 = vmatpush.bf16.msra.mxu0 0
        %7366 = vmatpush.bf16.msra.mxu0 %v7329
        %7367 = vmatmul.bf16.gmra.mxu0 %v7323
        %v7368 = vpop.f32.mrf.mxu0
        %v7369 = vadd.f32 0.0, %v7368
        %v7370 = vpop.f32.mrf.mxu0
        %7371 = vdwg.mxu0
        %7372 = vmatpush.bf16.msra.mxu0 0
        %7373 = vmatpush.bf16.msra.mxu0 0
        %7374 = vmatpush.bf16.msra.mxu0 0
        %7375 = vmatpush.bf16.msra.mxu0 0
        %7376 = vmatpush.bf16.msra.mxu0 0
        %7377 = vmatpush.bf16.msra.mxu0 0
        %7378 = vmatpush.bf16.msra.mxu0 0
        %7379 = vmatpush.bf16.msra.mxu0 %v7332
        %7380 = vmatmul.bf16.gmra.mxu0 %v7323
        %v7381 = vpop.f32.mrf.mxu0
        %v7382 = vadd.f32 0.0, %v7381
        %v7383 = vpop.f32.mrf.mxu0
        %7384 = vdwg.mxu0
        %7385 = vmatpush.bf16.msra.mxu0 0
        %7386 = vmatpush.bf16.msra.mxu0 0
        %7387 = vmatpush.bf16.msra.mxu0 0
        %7388 = vmatpush.bf16.msra.mxu0 0
        %7389 = vmatpush.bf16.msra.mxu0 0
        %7390 = vmatpush.bf16.msra.mxu0 0
        %7391 = vmatpush.bf16.msra.mxu0 0
        %7392 = vmatpush.bf16.msra.mxu0 %v7335
        %7393 = vmatmul.bf16.gmra.mxu0 %v7323
        %v7394 = vpop.f32.mrf.mxu0
        %v7395 = vadd.f32 0.0, %v7394
        %v7396 = vpop.f32.mrf.mxu0
        %7397 = vdwg.mxu0
        %7398 = vmatpush.bf16.msra.mxu0 0
        %7399 = vmatpush.bf16.msra.mxu0 0
        %7400 = vmatpush.bf16.msra.mxu0 0
        %7401 = vmatpush.bf16.msra.mxu0 0
        %7402 = vmatpush.bf16.msra.mxu0 0
        %7403 = vmatpush.bf16.msra.mxu0 0
        %7404 = vmatpush.bf16.msra.mxu0 0
        %7405 = vmatpush.bf16.msra.mxu0 %v7338
        %7406 = vmatmul.bf16.gmra.mxu0 %v7323
        %v7407 = vpop.f32.mrf.mxu0
        %v7408 = vadd.f32 0.0, %v7407
        %v7409 = vpop.f32.mrf.mxu0
        %7410 = vdwg.mxu0
        %7411 = vmatpush.bf16.msra.mxu0 0
        %7412 = vmatpush.bf16.msra.mxu0 0
        %7413 = vmatpush.bf16.msra.mxu0 0
        %7414 = vmatpush.bf16.msra.mxu0 0
        %7415 = vmatpush.bf16.msra.mxu0 0
        %7416 = vmatpush.bf16.msra.mxu0 0
        %7417 = vmatpush.bf16.msra.mxu0 0
        %7418 = vmatpush.bf16.msra.mxu0 %v7341
        %7419 = vmatmul.bf16.gmra.mxu0 %v7323
        %v7420 = vpop.f32.mrf.mxu0
        %v7421 = vadd.f32 0.0, %v7420
        %v7422 = vpop.f32.mrf.mxu0
        %7423 = vdwg.mxu0
        %7424 = vmatpush.bf16.msra.mxu0 0
        %7425 = vmatpush.bf16.msra.mxu0 0
        %7426 = vmatpush.bf16.msra.mxu0 0
        %7427 = vmatpush.bf16.msra.mxu0 0
        %7428 = vmatpush.bf16.msra.mxu0 0
        %7429 = vmatpush.bf16.msra.mxu0 0
        %7430 = vmatpush.bf16.msra.mxu0 0
        %7431 = vmatpush.bf16.msra.mxu0 %v7344
        %7432 = vmatmul.bf16.gmra.mxu0 %v7323
        %v7433 = vpop.f32.mrf.mxu0
        %v7434 = vadd.f32 0.0, %v7433
        %v7435 = vpop.f32.mrf.mxu0
        %7436 = vdwg.mxu0
        %v7437 = vadd.f32 %v7289, %v7356
        %v7438 = vadd.f32 %v7290, %v7369
        %v7439 = vadd.f32 %v7291, %v7382
        %v7440 = vadd.f32 %v7292, %v7395
        %v7441 = vadd.f32 %v7293, %v7408
        %v7442 = vadd.f32 %v7294, %v7421
        %v7443 = vadd.f32 %v7295, %v7434
        %s7444 = scalar_lea.vmem %s2, 84
        %v7445 = vld [vmem:[%s7444] sm:$0xf]
        %7446 = vrot.lane.b32.xlu0 %v6405, 29
        %v7447 = vpop.permute.xlu0 %7446
        %7448 = vrot.lane.b32.xlu0 %v6406, 29
        %v7449 = vpop.permute.xlu0 %7448
        %7450 = vrot.lane.b32.xlu0 %v6407, 29
        %v7451 = vpop.permute.xlu0 %7450
        %7452 = vrot.lane.b32.xlu0 %v6408, 29
        %v7453 = vpop.permute.xlu0 %7452
        %7454 = vrot.lane.b32.xlu0 %v6409, 29
        %v7455 = vpop.permute.xlu0 %7454
        %7456 = vrot.lane.b32.xlu0 %v6410, 29
        %v7457 = vpop.permute.xlu0 %7456
        %7458 = vrot.lane.b32.xlu0 %v6411, 29
        %v7459 = vpop.permute.xlu0 %7458
        %7460 = vrot.lane.b32.xlu0 %v6412, 29
        %v7461 = vpop.permute.xlu0 %7460
        %vm7462 = vcmask 236544
        %v7463 = vsel %vm7462, %v7447, %v7449
        %v7464 = vsel %vm7462, %v7449, %v7451
        %v7465 = vsel %vm7462, %v7451, %v7453
        %v7466 = vsel %vm7462, %v7453, %v7455
        %v7467 = vsel %vm7462, %v7455, %v7457
        %v7468 = vsel %vm7462, %v7457, %v7459
        %v7469 = vsel %vm7462, %v7459, %v7461
        %v7471 = vsel %vm250, %v7445, 0
        %v7474 = vsel %vm254, %v7463, 0
        %v7477 = vsel %vm254, %v7464, 0
        %v7480 = vsel %vm254, %v7465, 0
        %v7483 = vsel %vm254, %v7466, 0
        %v7486 = vsel %vm254, %v7467, 0
        %v7489 = vsel %vm254, %v7468, 0
        %v7492 = vsel %vm254, %v7469, 0
        %7494 = vmatpush.bf16.msra.mxu0 0
        %7495 = vmatpush.bf16.msra.mxu0 0
        %7496 = vmatpush.bf16.msra.mxu0 0
        %7497 = vmatpush.bf16.msra.mxu0 0
        %7498 = vmatpush.bf16.msra.mxu0 0
        %7499 = vmatpush.bf16.msra.mxu0 0
        %7500 = vmatpush.bf16.msra.mxu0 0
        %7501 = vmatpush.bf16.msra.mxu0 %v7474
        %7502 = vmatmul.bf16.gmra.mxu0 %v7471
        %v7503 = vpop.f32.mrf.mxu0
        %v7504 = vadd.f32 0.0, %v7503
        %v7505 = vpop.f32.mrf.mxu0
        %7506 = vdwg.mxu0
        %7507 = vmatpush.bf16.msra.mxu0 0
        %7508 = vmatpush.bf16.msra.mxu0 0
        %7509 = vmatpush.bf16.msra.mxu0 0
        %7510 = vmatpush.bf16.msra.mxu0 0
        %7511 = vmatpush.bf16.msra.mxu0 0
        %7512 = vmatpush.bf16.msra.mxu0 0
        %7513 = vmatpush.bf16.msra.mxu0 0
        %7514 = vmatpush.bf16.msra.mxu0 %v7477
        %7515 = vmatmul.bf16.gmra.mxu0 %v7471
        %v7516 = vpop.f32.mrf.mxu0
        %v7517 = vadd.f32 0.0, %v7516
        %v7518 = vpop.f32.mrf.mxu0
        %7519 = vdwg.mxu0
        %7520 = vmatpush.bf16.msra.mxu0 0
        %7521 = vmatpush.bf16.msra.mxu0 0
        %7522 = vmatpush.bf16.msra.mxu0 0
        %7523 = vmatpush.bf16.msra.mxu0 0
        %7524 = vmatpush.bf16.msra.mxu0 0
        %7525 = vmatpush.bf16.msra.mxu0 0
        %7526 = vmatpush.bf16.msra.mxu0 0
        %7527 = vmatpush.bf16.msra.mxu0 %v7480
        %7528 = vmatmul.bf16.gmra.mxu0 %v7471
        %v7529 = vpop.f32.mrf.mxu0
        %v7530 = vadd.f32 0.0, %v7529
        %v7531 = vpop.f32.mrf.mxu0
        %7532 = vdwg.mxu0
        %7533 = vmatpush.bf16.msra.mxu0 0
        %7534 = vmatpush.bf16.msra.mxu0 0
        %7535 = vmatpush.bf16.msra.mxu0 0
        %7536 = vmatpush.bf16.msra.mxu0 0
        %7537 = vmatpush.bf16.msra.mxu0 0
        %7538 = vmatpush.bf16.msra.mxu0 0
        %7539 = vmatpush.bf16.msra.mxu0 0
        %7540 = vmatpush.bf16.msra.mxu0 %v7483
        %7541 = vmatmul.bf16.gmra.mxu0 %v7471
        %v7542 = vpop.f32.mrf.mxu0
        %v7543 = vadd.f32 0.0, %v7542
        %v7544 = vpop.f32.mrf.mxu0
        %7545 = vdwg.mxu0
        %7546 = vmatpush.bf16.msra.mxu0 0
        %7547 = vmatpush.bf16.msra.mxu0 0
        %7548 = vmatpush.bf16.msra.mxu0 0
        %7549 = vmatpush.bf16.msra.mxu0 0
        %7550 = vmatpush.bf16.msra.mxu0 0
        %7551 = vmatpush.bf16.msra.mxu0 0
        %7552 = vmatpush.bf16.msra.mxu0 0
        %7553 = vmatpush.bf16.msra.mxu0 %v7486
        %7554 = vmatmul.bf16.gmra.mxu0 %v7471
        %v7555 = vpop.f32.mrf.mxu0
        %v7556 = vadd.f32 0.0, %v7555
        %v7557 = vpop.f32.mrf.mxu0
        %7558 = vdwg.mxu0
        %7559 = vmatpush.bf16.msra.mxu0 0
        %7560 = vmatpush.bf16.msra.mxu0 0
        %7561 = vmatpush.bf16.msra.mxu0 0
        %7562 = vmatpush.bf16.msra.mxu0 0
        %7563 = vmatpush.bf16.msra.mxu0 0
        %7564 = vmatpush.bf16.msra.mxu0 0
        %7565 = vmatpush.bf16.msra.mxu0 0
        %7566 = vmatpush.bf16.msra.mxu0 %v7489
        %7567 = vmatmul.bf16.gmra.mxu0 %v7471
        %v7568 = vpop.f32.mrf.mxu0
        %v7569 = vadd.f32 0.0, %v7568
        %v7570 = vpop.f32.mrf.mxu0
        %7571 = vdwg.mxu0
        %7572 = vmatpush.bf16.msra.mxu0 0
        %7573 = vmatpush.bf16.msra.mxu0 0
        %7574 = vmatpush.bf16.msra.mxu0 0
        %7575 = vmatpush.bf16.msra.mxu0 0
        %7576 = vmatpush.bf16.msra.mxu0 0
        %7577 = vmatpush.bf16.msra.mxu0 0
        %7578 = vmatpush.bf16.msra.mxu0 0
        %7579 = vmatpush.bf16.msra.mxu0 %v7492
        %7580 = vmatmul.bf16.gmra.mxu0 %v7471
        %v7581 = vpop.f32.mrf.mxu0
        %v7582 = vadd.f32 0.0, %v7581
        %v7583 = vpop.f32.mrf.mxu0
        %7584 = vdwg.mxu0
        %v7585 = vadd.f32 %v7437, %v7504
        %v7586 = vadd.f32 %v7438, %v7517
        %v7587 = vadd.f32 %v7439, %v7530
        %v7588 = vadd.f32 %v7440, %v7543
        %v7589 = vadd.f32 %v7441, %v7556
        %v7590 = vadd.f32 %v7442, %v7569
        %v7591 = vadd.f32 %v7443, %v7582
        %s7592 = scalar_lea.vmem %s2, 88
        %v7593 = vld [vmem:[%s7592] sm:$0xf]
        %7594 = vrot.lane.b32.xlu0 %v6405, 28
        %v7595 = vpop.permute.xlu0 %7594
        %7596 = vrot.lane.b32.xlu0 %v6406, 28
        %v7597 = vpop.permute.xlu0 %7596
        %7598 = vrot.lane.b32.xlu0 %v6407, 28
        %v7599 = vpop.permute.xlu0 %7598
        %7600 = vrot.lane.b32.xlu0 %v6408, 28
        %v7601 = vpop.permute.xlu0 %7600
        %7602 = vrot.lane.b32.xlu0 %v6409, 28
        %v7603 = vpop.permute.xlu0 %7602
        %7604 = vrot.lane.b32.xlu0 %v6410, 28
        %v7605 = vpop.permute.xlu0 %7604
        %7606 = vrot.lane.b32.xlu0 %v6411, 28
        %v7607 = vpop.permute.xlu0 %7606
        %7608 = vrot.lane.b32.xlu0 %v6412, 28
        %v7609 = vpop.permute.xlu0 %7608
        %v7610 = vsel %vm1539, %v7595, %v7597
        %v7611 = vsel %vm1539, %v7597, %v7599
        %v7612 = vsel %vm1539, %v7599, %v7601
        %v7613 = vsel %vm1539, %v7601, %v7603
        %v7614 = vsel %vm1539, %v7603, %v7605
        %v7615 = vsel %vm1539, %v7605, %v7607
        %v7616 = vsel %vm1539, %v7607, %v7609
        %v7618 = vsel %vm250, %v7593, 0
        %v7621 = vsel %vm254, %v7610, 0
        %v7624 = vsel %vm254, %v7611, 0
        %v7627 = vsel %vm254, %v7612, 0
        %v7630 = vsel %vm254, %v7613, 0
        %v7633 = vsel %vm254, %v7614, 0
        %v7636 = vsel %vm254, %v7615, 0
        %v7639 = vsel %vm254, %v7616, 0
        %7641 = vmatpush.bf16.msra.mxu0 0
        %7642 = vmatpush.bf16.msra.mxu0 0
        %7643 = vmatpush.bf16.msra.mxu0 0
        %7644 = vmatpush.bf16.msra.mxu0 0
        %7645 = vmatpush.bf16.msra.mxu0 0
        %7646 = vmatpush.bf16.msra.mxu0 0
        %7647 = vmatpush.bf16.msra.mxu0 0
        %7648 = vmatpush.bf16.msra.mxu0 %v7621
        %7649 = vmatmul.bf16.gmra.mxu0 %v7618
        %v7650 = vpop.f32.mrf.mxu0
        %v7651 = vadd.f32 0.0, %v7650
        %v7652 = vpop.f32.mrf.mxu0
        %7653 = vdwg.mxu0
        %7654 = vmatpush.bf16.msra.mxu0 0
        %7655 = vmatpush.bf16.msra.mxu0 0
        %7656 = vmatpush.bf16.msra.mxu0 0
        %7657 = vmatpush.bf16.msra.mxu0 0
        %7658 = vmatpush.bf16.msra.mxu0 0
        %7659 = vmatpush.bf16.msra.mxu0 0
        %7660 = vmatpush.bf16.msra.mxu0 0
        %7661 = vmatpush.bf16.msra.mxu0 %v7624
        %7662 = vmatmul.bf16.gmra.mxu0 %v7618
        %v7663 = vpop.f32.mrf.mxu0
        %v7664 = vadd.f32 0.0, %v7663
        %v7665 = vpop.f32.mrf.mxu0
        %7666 = vdwg.mxu0
        %7667 = vmatpush.bf16.msra.mxu0 0
        %7668 = vmatpush.bf16.msra.mxu0 0
        %7669 = vmatpush.bf16.msra.mxu0 0
        %7670 = vmatpush.bf16.msra.mxu0 0
        %7671 = vmatpush.bf16.msra.mxu0 0
        %7672 = vmatpush.bf16.msra.mxu0 0
        %7673 = vmatpush.bf16.msra.mxu0 0
        %7674 = vmatpush.bf16.msra.mxu0 %v7627
        %7675 = vmatmul.bf16.gmra.mxu0 %v7618
        %v7676 = vpop.f32.mrf.mxu0
        %v7677 = vadd.f32 0.0, %v7676
        %v7678 = vpop.f32.mrf.mxu0
        %7679 = vdwg.mxu0
        %7680 = vmatpush.bf16.msra.mxu0 0
        %7681 = vmatpush.bf16.msra.mxu0 0
        %7682 = vmatpush.bf16.msra.mxu0 0
        %7683 = vmatpush.bf16.msra.mxu0 0
        %7684 = vmatpush.bf16.msra.mxu0 0
        %7685 = vmatpush.bf16.msra.mxu0 0
        %7686 = vmatpush.bf16.msra.mxu0 0
        %7687 = vmatpush.bf16.msra.mxu0 %v7630
        %7688 = vmatmul.bf16.gmra.mxu0 %v7618
        %v7689 = vpop.f32.mrf.mxu0
        %v7690 = vadd.f32 0.0, %v7689
        %v7691 = vpop.f32.mrf.mxu0
        %7692 = vdwg.mxu0
        %7693 = vmatpush.bf16.msra.mxu0 0
        %7694 = vmatpush.bf16.msra.mxu0 0
        %7695 = vmatpush.bf16.msra.mxu0 0
        %7696 = vmatpush.bf16.msra.mxu0 0
        %7697 = vmatpush.bf16.msra.mxu0 0
        %7698 = vmatpush.bf16.msra.mxu0 0
        %7699 = vmatpush.bf16.msra.mxu0 0
        %7700 = vmatpush.bf16.msra.mxu0 %v7633
        %7701 = vmatmul.bf16.gmra.mxu0 %v7618
        %v7702 = vpop.f32.mrf.mxu0
        %v7703 = vadd.f32 0.0, %v7702
        %v7704 = vpop.f32.mrf.mxu0
        %7705 = vdwg.mxu0
        %7706 = vmatpush.bf16.msra.mxu0 0
        %7707 = vmatpush.bf16.msra.mxu0 0
        %7708 = vmatpush.bf16.msra.mxu0 0
        %7709 = vmatpush.bf16.msra.mxu0 0
        %7710 = vmatpush.bf16.msra.mxu0 0
        %7711 = vmatpush.bf16.msra.mxu0 0
        %7712 = vmatpush.bf16.msra.mxu0 0
        %7713 = vmatpush.bf16.msra.mxu0 %v7636
        %7714 = vmatmul.bf16.gmra.mxu0 %v7618
        %v7715 = vpop.f32.mrf.mxu0
        %v7716 = vadd.f32 0.0, %v7715
        %v7717 = vpop.f32.mrf.mxu0
        %7718 = vdwg.mxu0
        %7719 = vmatpush.bf16.msra.mxu0 0
        %7720 = vmatpush.bf16.msra.mxu0 0
        %7721 = vmatpush.bf16.msra.mxu0 0
        %7722 = vmatpush.bf16.msra.mxu0 0
        %7723 = vmatpush.bf16.msra.mxu0 0
        %7724 = vmatpush.bf16.msra.mxu0 0
        %7725 = vmatpush.bf16.msra.mxu0 0
        %7726 = vmatpush.bf16.msra.mxu0 %v7639
        %7727 = vmatmul.bf16.gmra.mxu0 %v7618
        %v7728 = vpop.f32.mrf.mxu0
        %v7729 = vadd.f32 0.0, %v7728
        %v7730 = vpop.f32.mrf.mxu0
        %7731 = vdwg.mxu0
        %v7732 = vadd.f32 %v7585, %v7651
        %v7733 = vadd.f32 %v7586, %v7664
        %v7734 = vadd.f32 %v7587, %v7677
        %v7735 = vadd.f32 %v7588, %v7690
        %v7736 = vadd.f32 %v7589, %v7703
        %v7737 = vadd.f32 %v7590, %v7716
        %v7738 = vadd.f32 %v7591, %v7729
        %s7739 = scalar_lea.vmem %s2, 92
        %v7740 = vld [vmem:[%s7739] sm:$0xf]
        %7741 = vrot.lane.b32.xlu0 %v6405, 27
        %v7742 = vpop.permute.xlu0 %7741
        %7743 = vrot.lane.b32.xlu0 %v6406, 27
        %v7744 = vpop.permute.xlu0 %7743
        %7745 = vrot.lane.b32.xlu0 %v6407, 27
        %v7746 = vpop.permute.xlu0 %7745
        %7747 = vrot.lane.b32.xlu0 %v6408, 27
        %v7748 = vpop.permute.xlu0 %7747
        %7749 = vrot.lane.b32.xlu0 %v6409, 27
        %v7750 = vpop.permute.xlu0 %7749
        %7751 = vrot.lane.b32.xlu0 %v6410, 27
        %v7752 = vpop.permute.xlu0 %7751
        %7753 = vrot.lane.b32.xlu0 %v6411, 27
        %v7754 = vpop.permute.xlu0 %7753
        %7755 = vrot.lane.b32.xlu0 %v6412, 27
        %v7756 = vpop.permute.xlu0 %7755
        %v7757 = vsel %vm1687, %v7742, %v7744
        %v7758 = vsel %vm1687, %v7744, %v7746
        %v7759 = vsel %vm1687, %v7746, %v7748
        %v7760 = vsel %vm1687, %v7748, %v7750
        %v7761 = vsel %vm1687, %v7750, %v7752
        %v7762 = vsel %vm1687, %v7752, %v7754
        %v7763 = vsel %vm1687, %v7754, %v7756
        %v7765 = vsel %vm250, %v7740, 0
        %v7768 = vsel %vm254, %v7757, 0
        %v7771 = vsel %vm254, %v7758, 0
        %v7774 = vsel %vm254, %v7759, 0
        %v7777 = vsel %vm254, %v7760, 0
        %v7780 = vsel %vm254, %v7761, 0
        %v7783 = vsel %vm254, %v7762, 0
        %v7786 = vsel %vm254, %v7763, 0
        %7788 = vmatpush.bf16.msra.mxu0 0
        %7789 = vmatpush.bf16.msra.mxu0 0
        %7790 = vmatpush.bf16.msra.mxu0 0
        %7791 = vmatpush.bf16.msra.mxu0 0
        %7792 = vmatpush.bf16.msra.mxu0 0
        %7793 = vmatpush.bf16.msra.mxu0 0
        %7794 = vmatpush.bf16.msra.mxu0 0
        %7795 = vmatpush.bf16.msra.mxu0 %v7768
        %7796 = vmatmul.bf16.gmra.mxu0 %v7765
        %v7797 = vpop.f32.mrf.mxu0
        %v7798 = vadd.f32 0.0, %v7797
        %v7799 = vpop.f32.mrf.mxu0
        %7800 = vdwg.mxu0
        %7801 = vmatpush.bf16.msra.mxu0 0
        %7802 = vmatpush.bf16.msra.mxu0 0
        %7803 = vmatpush.bf16.msra.mxu0 0
        %7804 = vmatpush.bf16.msra.mxu0 0
        %7805 = vmatpush.bf16.msra.mxu0 0
        %7806 = vmatpush.bf16.msra.mxu0 0
        %7807 = vmatpush.bf16.msra.mxu0 0
        %7808 = vmatpush.bf16.msra.mxu0 %v7771
        %7809 = vmatmul.bf16.gmra.mxu0 %v7765
        %v7810 = vpop.f32.mrf.mxu0
        %v7811 = vadd.f32 0.0, %v7810
        %v7812 = vpop.f32.mrf.mxu0
        %7813 = vdwg.mxu0
        %7814 = vmatpush.bf16.msra.mxu0 0
        %7815 = vmatpush.bf16.msra.mxu0 0
        %7816 = vmatpush.bf16.msra.mxu0 0
        %7817 = vmatpush.bf16.msra.mxu0 0
        %7818 = vmatpush.bf16.msra.mxu0 0
        %7819 = vmatpush.bf16.msra.mxu0 0
        %7820 = vmatpush.bf16.msra.mxu0 0
        %7821 = vmatpush.bf16.msra.mxu0 %v7774
        %7822 = vmatmul.bf16.gmra.mxu0 %v7765
        %v7823 = vpop.f32.mrf.mxu0
        %v7824 = vadd.f32 0.0, %v7823
        %v7825 = vpop.f32.mrf.mxu0
        %7826 = vdwg.mxu0
        %7827 = vmatpush.bf16.msra.mxu0 0
        %7828 = vmatpush.bf16.msra.mxu0 0
        %7829 = vmatpush.bf16.msra.mxu0 0
        %7830 = vmatpush.bf16.msra.mxu0 0
        %7831 = vmatpush.bf16.msra.mxu0 0
        %7832 = vmatpush.bf16.msra.mxu0 0
        %7833 = vmatpush.bf16.msra.mxu0 0
        %7834 = vmatpush.bf16.msra.mxu0 %v7777
        %7835 = vmatmul.bf16.gmra.mxu0 %v7765
        %v7836 = vpop.f32.mrf.mxu0
        %v7837 = vadd.f32 0.0, %v7836
        %v7838 = vpop.f32.mrf.mxu0
        %7839 = vdwg.mxu0
        %7840 = vmatpush.bf16.msra.mxu0 0
        %7841 = vmatpush.bf16.msra.mxu0 0
        %7842 = vmatpush.bf16.msra.mxu0 0
        %7843 = vmatpush.bf16.msra.mxu0 0
        %7844 = vmatpush.bf16.msra.mxu0 0
        %7845 = vmatpush.bf16.msra.mxu0 0
        %7846 = vmatpush.bf16.msra.mxu0 0
        %7847 = vmatpush.bf16.msra.mxu0 %v7780
        %7848 = vmatmul.bf16.gmra.mxu0 %v7765
        %v7849 = vpop.f32.mrf.mxu0
        %v7850 = vadd.f32 0.0, %v7849
        %v7851 = vpop.f32.mrf.mxu0
        %7852 = vdwg.mxu0
        %7853 = vmatpush.bf16.msra.mxu0 0
        %7854 = vmatpush.bf16.msra.mxu0 0
        %7855 = vmatpush.bf16.msra.mxu0 0
        %7856 = vmatpush.bf16.msra.mxu0 0
        %7857 = vmatpush.bf16.msra.mxu0 0
        %7858 = vmatpush.bf16.msra.mxu0 0
        %7859 = vmatpush.bf16.msra.mxu0 0
        %7860 = vmatpush.bf16.msra.mxu0 %v7783
        %7861 = vmatmul.bf16.gmra.mxu0 %v7765
        %v7862 = vpop.f32.mrf.mxu0
        %v7863 = vadd.f32 0.0, %v7862
        %v7864 = vpop.f32.mrf.mxu0
        %7865 = vdwg.mxu0
        %7866 = vmatpush.bf16.msra.mxu0 0
        %7867 = vmatpush.bf16.msra.mxu0 0
        %7868 = vmatpush.bf16.msra.mxu0 0
        %7869 = vmatpush.bf16.msra.mxu0 0
        %7870 = vmatpush.bf16.msra.mxu0 0
        %7871 = vmatpush.bf16.msra.mxu0 0
        %7872 = vmatpush.bf16.msra.mxu0 0
        %7873 = vmatpush.bf16.msra.mxu0 %v7786
        %7874 = vmatmul.bf16.gmra.mxu0 %v7765
        %v7875 = vpop.f32.mrf.mxu0
        %v7876 = vadd.f32 0.0, %v7875
        %v7877 = vpop.f32.mrf.mxu0
        %7878 = vdwg.mxu0
        %v7879 = vadd.f32 %v7732, %v7798
        %v7880 = vadd.f32 %v7733, %v7811
        %v7881 = vadd.f32 %v7734, %v7824
        %v7882 = vadd.f32 %v7735, %v7837
        %v7883 = vadd.f32 %v7736, %v7850
        %v7884 = vadd.f32 %v7737, %v7863
        %v7885 = vadd.f32 %v7738, %v7876
        %s7886 = scalar_lea.vmem %s2, 96
        %v7887 = vld [vmem:[%s7886] sm:$0xf]
        %7888 = vrot.lane.b32.xlu0 %v6405, 19
        %v7889 = vpop.permute.xlu0 %7888
        %7890 = vrot.lane.b32.xlu0 %v6406, 19
        %v7891 = vpop.permute.xlu0 %7890
        %7892 = vrot.lane.b32.xlu0 %v6407, 19
        %v7893 = vpop.permute.xlu0 %7892
        %7894 = vrot.lane.b32.xlu0 %v6408, 19
        %v7895 = vpop.permute.xlu0 %7894
        %7896 = vrot.lane.b32.xlu0 %v6409, 19
        %v7897 = vpop.permute.xlu0 %7896
        %7898 = vrot.lane.b32.xlu0 %v6410, 19
        %v7899 = vpop.permute.xlu0 %7898
        %7900 = vrot.lane.b32.xlu0 %v6411, 19
        %v7901 = vpop.permute.xlu0 %7900
        %7902 = vrot.lane.b32.xlu0 %v6412, 19
        %v7903 = vpop.permute.xlu0 %7902
        %vm7904 = vcmask 154624
        %v7905 = vsel %vm7904, %v7889, %v7891
        %v7906 = vsel %vm7904, %v7891, %v7893
        %v7907 = vsel %vm7904, %v7893, %v7895
        %v7908 = vsel %vm7904, %v7895, %v7897
        %v7909 = vsel %vm7904, %v7897, %v7899
        %v7910 = vsel %vm7904, %v7899, %v7901
        %v7911 = vsel %vm7904, %v7901, %v7903
        %v7913 = vsel %vm250, %v7887, 0
        %v7916 = vsel %vm254, %v7905, 0
        %v7919 = vsel %vm254, %v7906, 0
        %v7922 = vsel %vm254, %v7907, 0
        %v7925 = vsel %vm254, %v7908, 0
        %v7928 = vsel %vm254, %v7909, 0
        %v7931 = vsel %vm254, %v7910, 0
        %v7934 = vsel %vm254, %v7911, 0
        %7936 = vmatpush.bf16.msra.mxu0 0
        %7937 = vmatpush.bf16.msra.mxu0 0
        %7938 = vmatpush.bf16.msra.mxu0 0
        %7939 = vmatpush.bf16.msra.mxu0 0
        %7940 = vmatpush.bf16.msra.mxu0 0
        %7941 = vmatpush.bf16.msra.mxu0 0
        %7942 = vmatpush.bf16.msra.mxu0 0
        %7943 = vmatpush.bf16.msra.mxu0 %v7916
        %7944 = vmatmul.bf16.gmra.mxu0 %v7913
        %v7945 = vpop.f32.mrf.mxu0
        %v7946 = vadd.f32 0.0, %v7945
        %v7947 = vpop.f32.mrf.mxu0
        %7948 = vdwg.mxu0
        %7949 = vmatpush.bf16.msra.mxu0 0
        %7950 = vmatpush.bf16.msra.mxu0 0
        %7951 = vmatpush.bf16.msra.mxu0 0
        %7952 = vmatpush.bf16.msra.mxu0 0
        %7953 = vmatpush.bf16.msra.mxu0 0
        %7954 = vmatpush.bf16.msra.mxu0 0
        %7955 = vmatpush.bf16.msra.mxu0 0
        %7956 = vmatpush.bf16.msra.mxu0 %v7919
        %7957 = vmatmul.bf16.gmra.mxu0 %v7913
        %v7958 = vpop.f32.mrf.mxu0
        %v7959 = vadd.f32 0.0, %v7958
        %v7960 = vpop.f32.mrf.mxu0
        %7961 = vdwg.mxu0
        %7962 = vmatpush.bf16.msra.mxu0 0
        %7963 = vmatpush.bf16.msra.mxu0 0
        %7964 = vmatpush.bf16.msra.mxu0 0
        %7965 = vmatpush.bf16.msra.mxu0 0
        %7966 = vmatpush.bf16.msra.mxu0 0
        %7967 = vmatpush.bf16.msra.mxu0 0
        %7968 = vmatpush.bf16.msra.mxu0 0
        %7969 = vmatpush.bf16.msra.mxu0 %v7922
        %7970 = vmatmul.bf16.gmra.mxu0 %v7913
        %v7971 = vpop.f32.mrf.mxu0
        %v7972 = vadd.f32 0.0, %v7971
        %v7973 = vpop.f32.mrf.mxu0
        %7974 = vdwg.mxu0
        %7975 = vmatpush.bf16.msra.mxu0 0
        %7976 = vmatpush.bf16.msra.mxu0 0
        %7977 = vmatpush.bf16.msra.mxu0 0
        %7978 = vmatpush.bf16.msra.mxu0 0
        %7979 = vmatpush.bf16.msra.mxu0 0
        %7980 = vmatpush.bf16.msra.mxu0 0
        %7981 = vmatpush.bf16.msra.mxu0 0
        %7982 = vmatpush.bf16.msra.mxu0 %v7925
        %7983 = vmatmul.bf16.gmra.mxu0 %v7913
        %v7984 = vpop.f32.mrf.mxu0
        %v7985 = vadd.f32 0.0, %v7984
        %v7986 = vpop.f32.mrf.mxu0
        %7987 = vdwg.mxu0
        %7988 = vmatpush.bf16.msra.mxu0 0
        %7989 = vmatpush.bf16.msra.mxu0 0
        %7990 = vmatpush.bf16.msra.mxu0 0
        %7991 = vmatpush.bf16.msra.mxu0 0
        %7992 = vmatpush.bf16.msra.mxu0 0
        %7993 = vmatpush.bf16.msra.mxu0 0
        %7994 = vmatpush.bf16.msra.mxu0 0
        %7995 = vmatpush.bf16.msra.mxu0 %v7928
        %7996 = vmatmul.bf16.gmra.mxu0 %v7913
        %v7997 = vpop.f32.mrf.mxu0
        %v7998 = vadd.f32 0.0, %v7997
        %v7999 = vpop.f32.mrf.mxu0
        %8000 = vdwg.mxu0
        %8001 = vmatpush.bf16.msra.mxu0 0
        %8002 = vmatpush.bf16.msra.mxu0 0
        %8003 = vmatpush.bf16.msra.mxu0 0
        %8004 = vmatpush.bf16.msra.mxu0 0
        %8005 = vmatpush.bf16.msra.mxu0 0
        %8006 = vmatpush.bf16.msra.mxu0 0
        %8007 = vmatpush.bf16.msra.mxu0 0
        %8008 = vmatpush.bf16.msra.mxu0 %v7931
        %8009 = vmatmul.bf16.gmra.mxu0 %v7913
        %v8010 = vpop.f32.mrf.mxu0
        %v8011 = vadd.f32 0.0, %v8010
        %v8012 = vpop.f32.mrf.mxu0
        %8013 = vdwg.mxu0
        %8014 = vmatpush.bf16.msra.mxu0 0
        %8015 = vmatpush.bf16.msra.mxu0 0
        %8016 = vmatpush.bf16.msra.mxu0 0
        %8017 = vmatpush.bf16.msra.mxu0 0
        %8018 = vmatpush.bf16.msra.mxu0 0
        %8019 = vmatpush.bf16.msra.mxu0 0
        %8020 = vmatpush.bf16.msra.mxu0 0
        %8021 = vmatpush.bf16.msra.mxu0 %v7934
        %8022 = vmatmul.bf16.gmra.mxu0 %v7913
        %v8023 = vpop.f32.mrf.mxu0
        %v8024 = vadd.f32 0.0, %v8023
        %v8025 = vpop.f32.mrf.mxu0
        %8026 = vdwg.mxu0
        %v8027 = vadd.f32 %v7879, %v7946
        %v8028 = vadd.f32 %v7880, %v7959
        %v8029 = vadd.f32 %v7881, %v7972
        %v8030 = vadd.f32 %v7882, %v7985
        %v8031 = vadd.f32 %v7883, %v7998
        %v8032 = vadd.f32 %v7884, %v8011
        %v8033 = vadd.f32 %v7885, %v8024
        %s8034 = scalar_lea.vmem %s2, 100
        %v8035 = vld [vmem:[%s8034] sm:$0xf]
        %8036 = vrot.lane.b32.xlu0 %v6405, 18
        %v8037 = vpop.permute.xlu0 %8036
        %8038 = vrot.lane.b32.xlu0 %v6406, 18
        %v8039 = vpop.permute.xlu0 %8038
        %8040 = vrot.lane.b32.xlu0 %v6407, 18
        %v8041 = vpop.permute.xlu0 %8040
        %8042 = vrot.lane.b32.xlu0 %v6408, 18
        %v8043 = vpop.permute.xlu0 %8042
        %8044 = vrot.lane.b32.xlu0 %v6409, 18
        %v8045 = vpop.permute.xlu0 %8044
        %8046 = vrot.lane.b32.xlu0 %v6410, 18
        %v8047 = vpop.permute.xlu0 %8046
        %8048 = vrot.lane.b32.xlu0 %v6411, 18
        %v8049 = vpop.permute.xlu0 %8048
        %8050 = vrot.lane.b32.xlu0 %v6412, 18
        %v8051 = vpop.permute.xlu0 %8050
        %v8052 = vsel %vm1983, %v8037, %v8039
        %v8053 = vsel %vm1983, %v8039, %v8041
        %v8054 = vsel %vm1983, %v8041, %v8043
        %v8055 = vsel %vm1983, %v8043, %v8045
        %v8056 = vsel %vm1983, %v8045, %v8047
        %v8057 = vsel %vm1983, %v8047, %v8049
        %v8058 = vsel %vm1983, %v8049, %v8051
        %v8060 = vsel %vm250, %v8035, 0
        %v8063 = vsel %vm254, %v8052, 0
        %v8066 = vsel %vm254, %v8053, 0
        %v8069 = vsel %vm254, %v8054, 0
        %v8072 = vsel %vm254, %v8055, 0
        %v8075 = vsel %vm254, %v8056, 0
        %v8078 = vsel %vm254, %v8057, 0
        %v8081 = vsel %vm254, %v8058, 0
        %8083 = vmatpush.bf16.msra.mxu0 0
        %8084 = vmatpush.bf16.msra.mxu0 0
        %8085 = vmatpush.bf16.msra.mxu0 0
        %8086 = vmatpush.bf16.msra.mxu0 0
        %8087 = vmatpush.bf16.msra.mxu0 0
        %8088 = vmatpush.bf16.msra.mxu0 0
        %8089 = vmatpush.bf16.msra.mxu0 0
        %8090 = vmatpush.bf16.msra.mxu0 %v8063
        %8091 = vmatmul.bf16.gmra.mxu0 %v8060
        %v8092 = vpop.f32.mrf.mxu0
        %v8093 = vadd.f32 0.0, %v8092
        %v8094 = vpop.f32.mrf.mxu0
        %8095 = vdwg.mxu0
        %8096 = vmatpush.bf16.msra.mxu0 0
        %8097 = vmatpush.bf16.msra.mxu0 0
        %8098 = vmatpush.bf16.msra.mxu0 0
        %8099 = vmatpush.bf16.msra.mxu0 0
        %8100 = vmatpush.bf16.msra.mxu0 0
        %8101 = vmatpush.bf16.msra.mxu0 0
        %8102 = vmatpush.bf16.msra.mxu0 0
        %8103 = vmatpush.bf16.msra.mxu0 %v8066
        %8104 = vmatmul.bf16.gmra.mxu0 %v8060
        %v8105 = vpop.f32.mrf.mxu0
        %v8106 = vadd.f32 0.0, %v8105
        %v8107 = vpop.f32.mrf.mxu0
        %8108 = vdwg.mxu0
        %8109 = vmatpush.bf16.msra.mxu0 0
        %8110 = vmatpush.bf16.msra.mxu0 0
        %8111 = vmatpush.bf16.msra.mxu0 0
        %8112 = vmatpush.bf16.msra.mxu0 0
        %8113 = vmatpush.bf16.msra.mxu0 0
        %8114 = vmatpush.bf16.msra.mxu0 0
        %8115 = vmatpush.bf16.msra.mxu0 0
        %8116 = vmatpush.bf16.msra.mxu0 %v8069
        %8117 = vmatmul.bf16.gmra.mxu0 %v8060
        %v8118 = vpop.f32.mrf.mxu0
        %v8119 = vadd.f32 0.0, %v8118
        %v8120 = vpop.f32.mrf.mxu0
        %8121 = vdwg.mxu0
        %8122 = vmatpush.bf16.msra.mxu0 0
        %8123 = vmatpush.bf16.msra.mxu0 0
        %8124 = vmatpush.bf16.msra.mxu0 0
        %8125 = vmatpush.bf16.msra.mxu0 0
        %8126 = vmatpush.bf16.msra.mxu0 0
        %8127 = vmatpush.bf16.msra.mxu0 0
        %8128 = vmatpush.bf16.msra.mxu0 0
        %8129 = vmatpush.bf16.msra.mxu0 %v8072
        %8130 = vmatmul.bf16.gmra.mxu0 %v8060
        %v8131 = vpop.f32.mrf.mxu0
        %v8132 = vadd.f32 0.0, %v8131
        %v8133 = vpop.f32.mrf.mxu0
        %8134 = vdwg.mxu0
        %8135 = vmatpush.bf16.msra.mxu0 0
        %8136 = vmatpush.bf16.msra.mxu0 0
        %8137 = vmatpush.bf16.msra.mxu0 0
        %8138 = vmatpush.bf16.msra.mxu0 0
        %8139 = vmatpush.bf16.msra.mxu0 0
        %8140 = vmatpush.bf16.msra.mxu0 0
        %8141 = vmatpush.bf16.msra.mxu0 0
        %8142 = vmatpush.bf16.msra.mxu0 %v8075
        %8143 = vmatmul.bf16.gmra.mxu0 %v8060
        %v8144 = vpop.f32.mrf.mxu0
        %v8145 = vadd.f32 0.0, %v8144
        %v8146 = vpop.f32.mrf.mxu0
        %8147 = vdwg.mxu0
        %8148 = vmatpush.bf16.msra.mxu0 0
        %8149 = vmatpush.bf16.msra.mxu0 0
        %8150 = vmatpush.bf16.msra.mxu0 0
        %8151 = vmatpush.bf16.msra.mxu0 0
        %8152 = vmatpush.bf16.msra.mxu0 0
        %8153 = vmatpush.bf16.msra.mxu0 0
        %8154 = vmatpush.bf16.msra.mxu0 0
        %8155 = vmatpush.bf16.msra.mxu0 %v8078
        %8156 = vmatmul.bf16.gmra.mxu0 %v8060
        %v8157 = vpop.f32.mrf.mxu0
        %v8158 = vadd.f32 0.0, %v8157
        %v8159 = vpop.f32.mrf.mxu0
        %8160 = vdwg.mxu0
        %8161 = vmatpush.bf16.msra.mxu0 0
        %8162 = vmatpush.bf16.msra.mxu0 0
        %8163 = vmatpush.bf16.msra.mxu0 0
        %8164 = vmatpush.bf16.msra.mxu0 0
        %8165 = vmatpush.bf16.msra.mxu0 0
        %8166 = vmatpush.bf16.msra.mxu0 0
        %8167 = vmatpush.bf16.msra.mxu0 0
        %8168 = vmatpush.bf16.msra.mxu0 %v8081
        %8169 = vmatmul.bf16.gmra.mxu0 %v8060
        %v8170 = vpop.f32.mrf.mxu0
        %v8171 = vadd.f32 0.0, %v8170
        %v8172 = vpop.f32.mrf.mxu0
        %8173 = vdwg.mxu0
        %v8174 = vadd.f32 %v8027, %v8093
        %v8175 = vadd.f32 %v8028, %v8106
        %v8176 = vadd.f32 %v8029, %v8119
        %v8177 = vadd.f32 %v8030, %v8132
        %v8178 = vadd.f32 %v8031, %v8145
        %v8179 = vadd.f32 %v8032, %v8158
        %v8180 = vadd.f32 %v8033, %v8171
        %s8181 = scalar_lea.vmem %s2, 104
        %v8182 = vld [vmem:[%s8181] sm:$0xf]
        %8183 = vrot.lane.b32.xlu0 %v6405, 17
        %v8184 = vpop.permute.xlu0 %8183
        %8185 = vrot.lane.b32.xlu0 %v6406, 17
        %v8186 = vpop.permute.xlu0 %8185
        %8187 = vrot.lane.b32.xlu0 %v6407, 17
        %v8188 = vpop.permute.xlu0 %8187
        %8189 = vrot.lane.b32.xlu0 %v6408, 17
        %v8190 = vpop.permute.xlu0 %8189
        %8191 = vrot.lane.b32.xlu0 %v6409, 17
        %v8192 = vpop.permute.xlu0 %8191
        %8193 = vrot.lane.b32.xlu0 %v6410, 17
        %v8194 = vpop.permute.xlu0 %8193
        %8195 = vrot.lane.b32.xlu0 %v6411, 17
        %v8196 = vpop.permute.xlu0 %8195
        %8197 = vrot.lane.b32.xlu0 %v6412, 17
        %v8198 = vpop.permute.xlu0 %8197
        %v8199 = vsel %vm2131, %v8184, %v8186
        %v8200 = vsel %vm2131, %v8186, %v8188
        %v8201 = vsel %vm2131, %v8188, %v8190
        %v8202 = vsel %vm2131, %v8190, %v8192
        %v8203 = vsel %vm2131, %v8192, %v8194
        %v8204 = vsel %vm2131, %v8194, %v8196
        %v8205 = vsel %vm2131, %v8196, %v8198
        %v8207 = vsel %vm250, %v8182, 0
        %v8210 = vsel %vm254, %v8199, 0
        %v8213 = vsel %vm254, %v8200, 0
        %v8216 = vsel %vm254, %v8201, 0
        %v8219 = vsel %vm254, %v8202, 0
        %v8222 = vsel %vm254, %v8203, 0
        %v8225 = vsel %vm254, %v8204, 0
        %v8228 = vsel %vm254, %v8205, 0
        %8230 = vmatpush.bf16.msra.mxu0 0
        %8231 = vmatpush.bf16.msra.mxu0 0
        %8232 = vmatpush.bf16.msra.mxu0 0
        %8233 = vmatpush.bf16.msra.mxu0 0
        %8234 = vmatpush.bf16.msra.mxu0 0
        %8235 = vmatpush.bf16.msra.mxu0 0
        %8236 = vmatpush.bf16.msra.mxu0 0
        %8237 = vmatpush.bf16.msra.mxu0 %v8210
        %8238 = vmatmul.bf16.gmra.mxu0 %v8207
        %v8239 = vpop.f32.mrf.mxu0
        %v8240 = vadd.f32 0.0, %v8239
        %v8241 = vpop.f32.mrf.mxu0
        %8242 = vdwg.mxu0
        %8243 = vmatpush.bf16.msra.mxu0 0
        %8244 = vmatpush.bf16.msra.mxu0 0
        %8245 = vmatpush.bf16.msra.mxu0 0
        %8246 = vmatpush.bf16.msra.mxu0 0
        %8247 = vmatpush.bf16.msra.mxu0 0
        %8248 = vmatpush.bf16.msra.mxu0 0
        %8249 = vmatpush.bf16.msra.mxu0 0
        %8250 = vmatpush.bf16.msra.mxu0 %v8213
        %8251 = vmatmul.bf16.gmra.mxu0 %v8207
        %v8252 = vpop.f32.mrf.mxu0
        %v8253 = vadd.f32 0.0, %v8252
        %v8254 = vpop.f32.mrf.mxu0
        %8255 = vdwg.mxu0
        %8256 = vmatpush.bf16.msra.mxu0 0
        %8257 = vmatpush.bf16.msra.mxu0 0
        %8258 = vmatpush.bf16.msra.mxu0 0
        %8259 = vmatpush.bf16.msra.mxu0 0
        %8260 = vmatpush.bf16.msra.mxu0 0
        %8261 = vmatpush.bf16.msra.mxu0 0
        %8262 = vmatpush.bf16.msra.mxu0 0
        %8263 = vmatpush.bf16.msra.mxu0 %v8216
        %8264 = vmatmul.bf16.gmra.mxu0 %v8207
        %v8265 = vpop.f32.mrf.mxu0
        %v8266 = vadd.f32 0.0, %v8265
        %v8267 = vpop.f32.mrf.mxu0
        %8268 = vdwg.mxu0
        %8269 = vmatpush.bf16.msra.mxu0 0
        %8270 = vmatpush.bf16.msra.mxu0 0
        %8271 = vmatpush.bf16.msra.mxu0 0
        %8272 = vmatpush.bf16.msra.mxu0 0
        %8273 = vmatpush.bf16.msra.mxu0 0
        %8274 = vmatpush.bf16.msra.mxu0 0
        %8275 = vmatpush.bf16.msra.mxu0 0
        %8276 = vmatpush.bf16.msra.mxu0 %v8219
        %8277 = vmatmul.bf16.gmra.mxu0 %v8207
        %v8278 = vpop.f32.mrf.mxu0
        %v8279 = vadd.f32 0.0, %v8278
        %v8280 = vpop.f32.mrf.mxu0
        %8281 = vdwg.mxu0
        %8282 = vmatpush.bf16.msra.mxu0 0
        %8283 = vmatpush.bf16.msra.mxu0 0
        %8284 = vmatpush.bf16.msra.mxu0 0
        %8285 = vmatpush.bf16.msra.mxu0 0
        %8286 = vmatpush.bf16.msra.mxu0 0
        %8287 = vmatpush.bf16.msra.mxu0 0
        %8288 = vmatpush.bf16.msra.mxu0 0
        %8289 = vmatpush.bf16.msra.mxu0 %v8222
        %8290 = vmatmul.bf16.gmra.mxu0 %v8207
        %v8291 = vpop.f32.mrf.mxu0
        %v8292 = vadd.f32 0.0, %v8291
        %v8293 = vpop.f32.mrf.mxu0
        %8294 = vdwg.mxu0
        %8295 = vmatpush.bf16.msra.mxu0 0
        %8296 = vmatpush.bf16.msra.mxu0 0
        %8297 = vmatpush.bf16.msra.mxu0 0
        %8298 = vmatpush.bf16.msra.mxu0 0
        %8299 = vmatpush.bf16.msra.mxu0 0
        %8300 = vmatpush.bf16.msra.mxu0 0
        %8301 = vmatpush.bf16.msra.mxu0 0
        %8302 = vmatpush.bf16.msra.mxu0 %v8225
        %8303 = vmatmul.bf16.gmra.mxu0 %v8207
        %v8304 = vpop.f32.mrf.mxu0
        %v8305 = vadd.f32 0.0, %v8304
        %v8306 = vpop.f32.mrf.mxu0
        %8307 = vdwg.mxu0
        %8308 = vmatpush.bf16.msra.mxu0 0
        %8309 = vmatpush.bf16.msra.mxu0 0
        %8310 = vmatpush.bf16.msra.mxu0 0
        %8311 = vmatpush.bf16.msra.mxu0 0
        %8312 = vmatpush.bf16.msra.mxu0 0
        %8313 = vmatpush.bf16.msra.mxu0 0
        %8314 = vmatpush.bf16.msra.mxu0 0
        %8315 = vmatpush.bf16.msra.mxu0 %v8228
        %8316 = vmatmul.bf16.gmra.mxu0 %v8207
        %v8317 = vpop.f32.mrf.mxu0
        %v8318 = vadd.f32 0.0, %v8317
        %v8319 = vpop.f32.mrf.mxu0
        %8320 = vdwg.mxu0
        %v8321 = vadd.f32 %v8174, %v8240
        %v8322 = vadd.f32 %v8175, %v8253
        %v8323 = vadd.f32 %v8176, %v8266
        %v8324 = vadd.f32 %v8177, %v8279
        %v8325 = vadd.f32 %v8178, %v8292
        %v8326 = vadd.f32 %v8179, %v8305
        %v8327 = vadd.f32 %v8180, %v8318
        %v8328 = vmul.f32 %v8321, %v4210
        %v8329 = vmul.f32 %v8322, %v4211
        %v8330 = vmul.f32 %v8323, %v4212
        %v8331 = vmul.f32 %v8324, %v4213
        %v8332 = vmul.f32 %v8325, %v4214
        %v8333 = vmul.f32 %v8326, %v4215
        %v8334 = vmul.f32 %v8327, %v4216
        %v8335 = vadd.f32 %v8328, %v8329
        %v8336 = vadd.f32 %v8335, %v8330
        %v8337 = vadd.f32 %v8336, %v8331
        %v8338 = vadd.f32 %v8337, %v8332
        %v8339 = vadd.f32 %v8338, %v8333
        %v8340 = vadd.f32 %v8339, %v8334
        %8341 = vadd.xlane.f32.xlu0 %v8340
        %v8342 = vpop.xlane.xlu0 %8341
        %v8343 = vmul.f32 %v8328, %v8321
        %v8344 = vmul.f32 %v8329, %v8322
        %v8345 = vmul.f32 %v8330, %v8323
        %v8346 = vmul.f32 %v8331, %v8324
        %v8347 = vmul.f32 %v8332, %v8325
        %v8348 = vmul.f32 %v8333, %v8326
        %v8349 = vmul.f32 %v8334, %v8327
        %v8350 = vadd.f32 %v8343, %v8344
        %v8351 = vadd.f32 %v8350, %v8345
        %v8352 = vadd.f32 %v8351, %v8346
        %v8353 = vadd.f32 %v8352, %v8347
        %v8354 = vadd.f32 %v8353, %v8348
        %v8355 = vadd.f32 %v8354, %v8349
        %8356 = vadd.xlane.f32.xlu0 %v8355
        %v8357 = vpop.xlane.xlu0 %8356
        %v8358 = vmul.f32 %v8342, 0.001953125
        %v8359 = vmul.f32 %v8357, 0.001953125
        %v8360 = vmul.f32 %v8358, %v8358
        %v8361 = vsub.f32 %v8359, %v8360
        %v8362 = vmax.f32 %v8361, 0.0
        %v8363 = vsub.f32 %v8321, %v8358
        %v8364 = vsub.f32 %v8322, %v8358
        %v8365 = vsub.f32 %v8323, %v8358
        %v8366 = vsub.f32 %v8324, %v8358
        %v8367 = vsub.f32 %v8325, %v8358
        %v8368 = vsub.f32 %v8326, %v8358
        %v8369 = vsub.f32 %v8327, %v8358
        %v8370 = vadd.f32 %v8362, 1e-05
        %v8371 = vrsqrt.pop %v8370
        %v8372 = vmul.f32 %v8371, %v8370
        %v8373 = vmul.f32 %v8372, %v8371
        %v8374 = vmul.f32 0.5, %v8373
        %v8375 = vsub.f32 1.5, %v8374
        %v8376 = vmul.f32 %v8371, %v8375
        %vm8377 = vweird.f32 %v8370
        %vm8378 = vweird.f32 %v8371
        %vm8379 = vmor %vm8377, %vm8378
        %v8380 = vsel %vm8379, %v8371, %v8376
        %v8381 = vmul.f32 %v8363, %v8380
        %v8382 = vmul.f32 %v8364, %v8380
        %v8383 = vmul.f32 %v8365, %v8380
        %v8384 = vmul.f32 %v8366, %v8380
        %v8385 = vmul.f32 %v8367, %v8380
        %v8386 = vmul.f32 %v8368, %v8380
        %v8387 = vmul.f32 %v8369, %v8380
        %v8388 = vmax.f32 %v8381, 0.0
        %v8389 = vmax.f32 %v8382, 0.0
        %v8390 = vmax.f32 %v8383, 0.0
        %v8391 = vmax.f32 %v8384, 0.0
        %v8392 = vmax.f32 %v8385, 0.0
        %v8393 = vmax.f32 %v8386, 0.0
        %v8394 = vmax.f32 %v8387, 0.0
        %8395 = vst [vmem:[%s190] sm:$0xff] %v8388
        %8396 = vst [vmem:[%s190 + $0x8] sm:$0xff] %v8389
        %8397 = vst [vmem:[%s190 + $0x10] sm:$0xff] %v8390
        %8398 = vst [vmem:[%s190 + $0x18] sm:$0xff] %v8391
        %8399 = vst [vmem:[%s190 + $0x20] sm:$0xff] %v8392
        %8400 = vst [vmem:[%s190 + $0x28] sm:$0xff] %v8393
        %8401 = vst [vmem:[%s190 + $0x30] sm:$0xff] %v8394
        %s8402 = sand.u32 %s115, 1
        %s8403 = scalar_lea.sflag [#allocation4], %s8402
        %s8404 = sand.u32 %s115, 1
        %s8405 = smul.addr %s8404, 56
        %s8406 = scalar_lea.vmem [#allocation3], %s8405
        // Predicated region
        $region37: #{tpu_custom_call.1} parent=35 // pred_check
          %p8407 = pneg %p125
        $region38: #{tpu_custom_call.1} parent=35 // pred_check_branch
          %8409 = sbr.rel (%p8407) target = $region40
        $region39: #{tpu_custom_call.1} parent=35 // pred_region
          %8411 = vsyncadd %s8403, 0
          %s8412 = smul.addr %s18, 7
          %s8413 = smul.addr %s8412, 8
          %s8414 = scalar_lea.hbm %s4, %s8413
          %s8416 = sshll.u32 %s8406, 4
          %s8417 = int_to_ptr.vmem [resolvable:$true] %s8416
          %s8418 = sshll.u32 %s8414, 4
          %s8419 = int_to_ptr.hbm [resolvable:$true] %s8418
          %8421 = dma.vmem_to_hbm [thread:$0]  %s8417, 896, %s8419, %s8403
        $region40: #{tpu_custom_call.1} parent=35 // pred_fallthru
          _
      $region36: #{tpu_custom_call.1} parent=5 // pred_fallthru
        _
      %p8422 = scmp.le.s32.totalorder 2, %s13
      // Predicated region
      $region41: #{tpu_custom_call.1} parent=5 // pred_check
        %p8423 = pneg %p8422
      $region42: #{tpu_custom_call.1} parent=5 // pred_check_branch
        %8425 = sbr.rel (%p8423) target = $region44
      $region43: #{tpu_custom_call.1} parent=5 // pred_region
        %s8426 = ssub.s32 %s13, 2
        // Predicated region
        $region45: #{tpu_custom_call.1} parent=43 // pred_check
          %p8427 = pneg %p131
        $region46: #{tpu_custom_call.1} parent=43 // pred_check_branch
          %8429 = sbr.rel (%p8427) target = $region48
        $region47: #{tpu_custom_call.1} parent=43 // pred_region
          %s8430 = sand.u32 %s116, 1
          %s8431 = scalar_lea.sflag [#allocation4], %s8430
          %s8432 = sand.u32 %s116, 1
          %s8433 = smul.addr %s8432, 56
          %s8434 = scalar_lea.vmem [#allocation3], %s8433
          %8436 = dma.done %s8431, 896
        $region48: #{tpu_custom_call.1} parent=43 // pred_fallthru
          _
      $region44: #{tpu_custom_call.1} parent=5 // pred_fallthru
        _
    $region6: #{tpu_custom_call.1} parent=1 // loop_footer
      %s17 = sadd.s32 1, %s13
    $region7: #{tpu_custom_call.1} parent=1 // loop_footer_branch
      %12 = sbr.rel target = $region3
    $region8: #{tpu_custom_call.1} parent=1 // loop_exit
      _
    %8437 = vsyncpa [#allocation4], 1
    %s8438 = scalar_lea.sflag [#allocation4], 1
    %8439 = vsyncpa %s8438, 1

</llo_original>
